<compile_context>
chip_gen: v7x
topology: tpu7x:2x2x1
jax: 0.10.0
libtpu: 0.0.40
codegen_flags: <defaults>
</compile_context>

<pallas_src>
import functools

import jax
import jax.numpy as jnp
from jax.experimental import pallas as pl
from jax.experimental.pallas import tpu as pltpu

INPUT_DIM = 784
HIDDEN_DIM = 400
LATENT_DIM = 2

INPUT_PAD = 896    # 7 * 128  (decoder output / recon lanes)
HIDDEN_PAD = 512   # 4 * 128  (hidden activation lanes)


def _round_up(n, m):
    return ((n + m - 1) // m) * m


def _choose_tile(B, batch_tile):
    """Pick (tile, padded_B) with tile | padded_B, minimal padding, >=2 grid
    steps when B > 128 (so both v7x TensorCores get work)."""
    padded_B = _round_up(B, 8)
    if padded_B <= 128:
        return padded_B, padded_B
    padded_B = _round_up(B, 128)
    n_blocks = padded_B // 128
    n_steps = max(2, pl.cdiv(padded_B, batch_tile))
    n_steps = min(n_steps, n_blocks)
    while n_blocks % n_steps:          # make the tile divide padded_B exactly
        n_steps += 1
    return padded_B // n_steps, padded_B


def _vae_kernel(x_ref, eps_ref,
                w1_ref, b1_ref, w2_ref, b2_ref,
                wml_ref, bml_ref,
                wd1_ref, bd1_ref, wd2_ref, bd2_ref, wd3_ref, bd3_ref,
                out_ref):
    # ---- encoder: Linear -> ReLU -> Linear -> ReLU (bf16 MXU, f32 accum) ----
    x = x_ref[...].astype(jnp.bfloat16)                              # (tile, 784)
    h = jnp.dot(x, w1_ref[...], preferred_element_type=jnp.float32) + b1_ref[...]
    h = jnp.maximum(h, 0.0)                                          # (tile, 512) f32
    h = jnp.dot(h.astype(jnp.bfloat16), w2_ref[...],
                preferred_element_type=jnp.float32) + b2_ref[...]
    h = jnp.maximum(h, 0.0)                                          # (tile, 512) f32

    # ---- fused mu|logvar head, kept f32 (tiny N=4 matmul) ----
    mulog = jnp.dot(h, wml_ref[...],
                    preferred_element_type=jnp.float32) + bml_ref[...]   # (tile, 4)
    mu = mulog[:, :LATENT_DIM]
    logvar = mulog[:, LATENT_DIM:]

    # ---- reparameterize: z = mu + eps * exp(0.5 * logvar)  (VPU/EUP, f32) ----
    z = mu + eps_ref[...] * jnp.exp(0.5 * logvar)                    # (tile, 2)

    # ---- decoder layer 1 (K=LATENT=2): VPU broadcast-FMA outer products ----
    wd1 = wd1_ref[...]                                               # (2, 512) f32
    d = bd1_ref[...] + z[:, 0:1] * wd1[0:1, :]
    for k in range(1, LATENT_DIM):
        d = d + z[:, k:k + 1] * wd1[k:k + 1, :]
    d = jnp.maximum(d, 0.0).astype(jnp.bfloat16)

    # ---- decoder layers 2/3 (bf16 MXU) + sigmoid via tanh (single EUP op) ----
    d = jnp.dot(d, wd2_ref[...], preferred_element_type=jnp.float32) + bd2_ref[...]
    d = jnp.maximum(d, 0.0).astype(jnp.bfloat16)
    logits = jnp.dot(d, wd3_ref[...],
                     preferred_element_type=jnp.float32) + bd3_ref[...]  # (tile, 896)
    recon = 0.5 * jnp.tanh(0.5 * logits) + 0.5                       # exact sigmoid

    # One lane-dense output slab: recon in lanes [0, 784), mu|logvar packed
    # into the spare lanes [784, 788).  Lanes [788, 896) are padding.
    out_ref[...] = recon
    out_ref[:, INPUT_DIM:INPUT_DIM + 2 * LATENT_DIM] = mulog


def prepare_params(params):
    """One-time conversion of PyTorch-layout params into kernel-ready arrays:
    (in,out) weights zero-padded to lane multiples, MXU weights cast to bf16,
    mu/var heads fused (kept f32)."""
    (w1, b1, w2, b2, wmu, bmu, wvar, bvar,
     wd1, bd1, wd2, bd2, wd3, bd3) = params
    bf16 = jnp.bfloat16

    def pad2(a, rows, cols):
        return jnp.pad(a, ((0, rows - a.shape[0]), (0, cols - a.shape[1])))

    w1k = pad2(w1, INPUT_DIM, HIDDEN_PAD).astype(bf16)          # (784, 512)
    b1k = pad2(b1, 1, HIDDEN_PAD)                               # (1, 512) f32
    w2k = pad2(w2, HIDDEN_PAD, HIDDEN_PAD).astype(bf16)         # (512, 512)
    b2k = pad2(b2, 1, HIDDEN_PAD)
    wml = pad2(jnp.concatenate([wmu, wvar], axis=1),
               HIDDEN_PAD, 2 * LATENT_DIM)                      # (512, 4) f32
    bml = jnp.concatenate([bmu, bvar], axis=1)                  # (1, 4) f32
    wd1k = pad2(wd1, LATENT_DIM, HIDDEN_PAD)                    # (2, 512) f32 (VPU)
    bd1k = pad2(bd1, 1, HIDDEN_PAD)
    wd2k = pad2(wd2, HIDDEN_PAD, HIDDEN_PAD).astype(bf16)       # (512, 512)
    bd2k = pad2(bd2, 1, HIDDEN_PAD)
    wd3k = pad2(wd3, HIDDEN_PAD, INPUT_PAD).astype(bf16)        # (512, 896)
    bd3k = pad2(bd3, 1, INPUT_PAD)                              # (1, 896) f32
    return (w1k, b1k, w2k, b2k, wml, bml,
            wd1k, bd1k, wd2k, bd2k, wd3k, bd3k)


@functools.partial(jax.jit, static_argnames=("batch_tile",))
def vae_forward(x_flat, eps, kparams, batch_tile=512):
    """x_flat: (B, 784) f32 or bf16, eps: (B, LATENT) f32, kparams from
    prepare_params(). Returns (recon, mu, logvar) in f32."""
    B = x_flat.shape[0]
    (w1, b1, w2, b2, wml, bml,
     wd1, bd1, wd2, bd2, wd3, bd3) = kparams

    tile, padded_B = _choose_tile(B, batch_tile)
    if padded_B != B:
        pad = padded_B - B
        x_flat = jnp.pad(x_flat, ((0, pad), (0, 0)))
        eps = jnp.pad(eps, ((0, pad), (0, 0)))

    def row_spec(feat):
        return pl.BlockSpec((tile, feat), lambda i: (i, 0))

    def wspec(a):
        # Invariant weights: whole array resident every step.
        # TODO(synk): pipeline_mode=pl.Buffered(1) would save the duplicate
        # weight buffer near the v7x VMEM ceiling; budget fits comfortably at
        # the tile caps used here, so default buffering is kept for safety.
        return pl.BlockSpec(a.shape, lambda i: (0, 0))

    in_specs = [
        row_spec(INPUT_DIM),               # x
        row_spec(LATENT_DIM),              # eps
        wspec(w1), wspec(b1), wspec(w2), wspec(b2),
        wspec(wml), wspec(bml),
        wspec(wd1), wspec(bd1), wspec(wd2), wspec(bd2),
        wspec(wd3), wspec(bd3),
    ]

    out = pl.pallas_call(
        _vae_kernel,
        out_shape=jax.ShapeDtypeStruct((padded_B, INPUT_PAD), jnp.float32),
        grid_spec=pltpu.PrefetchScalarGridSpec(
            num_scalar_prefetch=0,
            grid=(padded_B // tile,),
            in_specs=in_specs,
            out_specs=pl.BlockSpec((tile, INPUT_PAD), lambda i: (i, 0)),
        ),
        compiler_params=pltpu.CompilerParams(
            dimension_semantics=("parallel",),
            vmem_limit_bytes=48 * 1024 * 1024,
        ),
    )(x_flat, eps, w1, b1, w2, b2, wml, bml,
      wd1, bd1, wd2, bd2, wd3, bd3)

    recon = out[:B, :INPUT_DIM]
    mu = out[:B, INPUT_DIM:INPUT_DIM + LATENT_DIM]
    logvar = out[:B, INPUT_DIM + LATENT_DIM:INPUT_DIM + 2 * LATENT_DIM]
    return recon, mu, logvar


def init_params(key):
    """PyTorch-Linear-style init: U(-1/sqrt(fan_in), +1/sqrt(fan_in)).
    Weights stored as (in_features, out_features), biases as (1, out_features)."""
    dims = [
        (INPUT_DIM, HIDDEN_DIM),    # encoder.0
        (HIDDEN_DIM, HIDDEN_DIM),   # encoder.2
        (HIDDEN_DIM, LATENT_DIM),   # fc_mu
        (HIDDEN_DIM, LATENT_DIM),   # fc_var
        (LATENT_DIM, HIDDEN_DIM),   # decoder.0
        (HIDDEN_DIM, HIDDEN_DIM),   # decoder.2
        (HIDDEN_DIM, INPUT_DIM),    # decoder.4
    ]
    params = []
    for (fan_in, fan_out) in dims:
        key, kw, kb = jax.random.split(key, 3)
        bound = 1.0 / jnp.sqrt(fan_in)
        w = jax.random.uniform(kw, (fan_in, fan_out), jnp.float32, -bound, bound)
        b = jax.random.uniform(kb, (1, fan_out), jnp.float32, -bound, bound)
        params.extend([w, b])
    return tuple(params)


def vae_forward_ref(x_flat, eps, params):
    """Pure-JAX f32 reference for numerical check."""
    (w1, b1, w2, b2, wmu, bmu, wvar, bvar,
     wd1, bd1, wd2, bd2, wd3, bd3) = params
    h = jnp.maximum(x_flat @ w1 + b1, 0.0)
    h = jnp.maximum(h @ w2 + b2, 0.0)
    mu = h @ wmu + bmu
    logvar = h @ wvar + bvar
    z = mu + eps * jnp.exp(0.5 * logvar)
    d = jnp.maximum(z @ wd1 + bd1, 0.0)
    d = jnp.maximum(d @ wd2 + bd2, 0.0)
    recon = jax.nn.sigmoid(d @ wd3 + bd3)
    return recon, mu, logvar


if __name__ == "__main__":
    key = jax.random.PRNGKey(0)
    kp, kx, keps = jax.random.split(key, 3)

    params = init_params(kp)
    kparams = prepare_params(params)     # one-time: pad/cast/fuse weights

    # Non-tile-aligned batch exercises the padding policy: B=200 -> padded 256,
    # tile 128, grid of 2 steps (both v7x TensorCores active).
    B = 200
    x = jax.random.uniform(kx, (B, 1, 28, 28), jnp.float32)   # MNIST-like NCHW
    x_flat = x.reshape(-1, INPUT_DIM)                         # == x.view(-1, 784)
    # eps plays the role of torch.randn_like(std), supplied as an explicit input.
    # TODO(synk): in-kernel pltpu PRNG sampling of eps would diverge from the
    # deterministic reparameterization reference, so eps stays an explicit input.
    eps = jax.random.normal(keps, (B, LATENT_DIM), jnp.float32)

    recon, mu, logvar = vae_forward(x_flat, eps, kparams)
    jax.block_until_ready((recon, mu, logvar))

    r_ref, mu_ref, lv_ref = vae_forward_ref(x_flat, eps, params)
    assert recon.shape == (B, INPUT_DIM)
    assert mu.shape == (B, LATENT_DIM) and logvar.shape == (B, LATENT_DIM)
    # bf16 MXU matmuls -> looser tolerance than pure f32.
    assert jnp.allclose(recon, r_ref, atol=3e-2, rtol=3e-2)
    assert jnp.allclose(mu, mu_ref, atol=3e-2, rtol=3e-2)
    assert jnp.allclose(logvar, lv_ref, atol=3e-2, rtol=3e-2)

    print("KERNEL_OK")
</pallas_src>

<mosaic_0001>
module attributes {stable_mosaic.version = 11 : i64} {
  func.func @_vae_kernel(%arg0: i32, %arg1: memref<128x784xf32, #tpu.memory_space<vmem>>, %arg2: memref<128x2xf32, #tpu.memory_space<vmem>>, %arg3: memref<784x512xbf16, #tpu.memory_space<vmem>>, %arg4: memref<1x512xf32, #tpu.memory_space<vmem>>, %arg5: memref<512x512xbf16, #tpu.memory_space<vmem>>, %arg6: memref<1x512xf32, #tpu.memory_space<vmem>>, %arg7: memref<512x4xf32, #tpu.memory_space<vmem>>, %arg8: memref<1x4xf32, #tpu.memory_space<vmem>>, %arg9: memref<2x512xf32, #tpu.memory_space<vmem>>, %arg10: memref<1x512xf32, #tpu.memory_space<vmem>>, %arg11: memref<512x512xbf16, #tpu.memory_space<vmem>>, %arg12: memref<1x512xf32, #tpu.memory_space<vmem>>, %arg13: memref<512x896xbf16, #tpu.memory_space<vmem>>, %arg14: memref<1x896xf32, #tpu.memory_space<vmem>>, %arg15: memref<128x896xf32, #tpu.memory_space<vmem>>) attributes {dimension_semantics = [#tpu.dimension_semantics<parallel>], iteration_bounds = array<i64: 2>, scalar_prefetch = 0 : i64, scratch_operands = 0 : i64, tpu.core_type = #tpu.core_type<tc>, window_params = [{transform_indices = @transform_0, window_bounds = array<i64: 128, 784>}, {transform_indices = @transform_1, window_bounds = array<i64: 128, 2>}, {pipeline_mode = #tpu.pipeline_mode<synchronous>, transform_indices = @transform_2, window_bounds = array<i64: 784, 512>}, {pipeline_mode = #tpu.pipeline_mode<synchronous>, transform_indices = @transform_3, window_bounds = array<i64: 1, 512>}, {pipeline_mode = #tpu.pipeline_mode<synchronous>, transform_indices = @transform_4, window_bounds = array<i64: 512, 512>}, {pipeline_mode = #tpu.pipeline_mode<synchronous>, transform_indices = @transform_5, window_bounds = array<i64: 1, 512>}, {pipeline_mode = #tpu.pipeline_mode<synchronous>, transform_indices = @transform_6, window_bounds = array<i64: 512, 4>}, {pipeline_mode = #tpu.pipeline_mode<synchronous>, transform_indices = @transform_7, window_bounds = array<i64: 1, 4>}, {pipeline_mode = #tpu.pipeline_mode<synchronous>, transform_indices = @transform_8, window_bounds = array<i64: 2, 512>}, {pipeline_mode = #tpu.pipeline_mode<synchronous>, transform_indices = @transform_9, window_bounds = array<i64: 1, 512>}, {pipeline_mode = #tpu.pipeline_mode<synchronous>, transform_indices = @transform_10, window_bounds = array<i64: 512, 512>}, {pipeline_mode = #tpu.pipeline_mode<synchronous>, transform_indices = @transform_11, window_bounds = array<i64: 1, 512>}, {pipeline_mode = #tpu.pipeline_mode<synchronous>, transform_indices = @transform_12, window_bounds = array<i64: 512, 896>}, {pipeline_mode = #tpu.pipeline_mode<synchronous>, transform_indices = @transform_13, window_bounds = array<i64: 1, 896>}, {transform_indices = @transform_14, window_bounds = array<i64: 128, 896>}]} {
    %c0 = arith.constant 0 : index
    %c0_0 = arith.constant 0 : index
    %0 = vector.load %arg1[%c0, %c0_0] : memref<128x784xf32, #tpu.memory_space<vmem>>, vector<128x784xf32>
    %1 = arith.truncf %0 : vector<128x784xf32> to vector<128x784xbf16>
    %c0_1 = arith.constant 0 : index
    %c0_2 = arith.constant 0 : index
    %2 = vector.load %arg3[%c0_1, %c0_2] : memref<784x512xbf16, #tpu.memory_space<vmem>>, vector<784x512xbf16>
    %cst = arith.constant dense<0.000000e+00> : vector<128x512xf32>
    %3 = tpu.matmul %1, %2, %cst {dimension_numbers = #tpu.dot_dimension_numbers<[1], [0], [0], [1], [0, 0, 1, 1], [], []>} : vector<128x784xbf16>, vector<784x512xbf16>, vector<128x512xf32> -> vector<128x512xf32>
    %c0_3 = arith.constant 0 : index
    %c0_4 = arith.constant 0 : index
    %4 = vector.load %arg4[%c0_3, %c0_4] : memref<1x512xf32, #tpu.memory_space<vmem>>, vector<1x512xf32>
    %5 = vector.broadcast %4 : vector<1x512xf32> to vector<128x512xf32>
    %6 = arith.addf %3, %5 : vector<128x512xf32>
    %cst_5 = arith.constant 0.000000e+00 : f32
    %7 = vector.broadcast %cst_5 : f32 to vector<128x512xf32>
    %8 = arith.maximumf %6, %7 : vector<128x512xf32>
    %9 = arith.truncf %8 : vector<128x512xf32> to vector<128x512xbf16>
    %c0_6 = arith.constant 0 : index
    %c0_7 = arith.constant 0 : index
    %10 = vector.load %arg5[%c0_6, %c0_7] : memref<512x512xbf16, #tpu.memory_space<vmem>>, vector<512x512xbf16>
    %cst_8 = arith.constant dense<0.000000e+00> : vector<128x512xf32>
    %11 = tpu.matmul %9, %10, %cst_8 {dimension_numbers = #tpu.dot_dimension_numbers<[1], [0], [0], [1], [0, 0, 1, 1], [], []>} : vector<128x512xbf16>, vector<512x512xbf16>, vector<128x512xf32> -> vector<128x512xf32>
    %c0_9 = arith.constant 0 : index
    %c0_10 = arith.constant 0 : index
    %12 = vector.load %arg6[%c0_9, %c0_10] : memref<1x512xf32, #tpu.memory_space<vmem>>, vector<1x512xf32>
    %13 = vector.broadcast %12 : vector<1x512xf32> to vector<128x512xf32>
    %14 = arith.addf %11, %13 : vector<128x512xf32>
    %cst_11 = arith.constant 0.000000e+00 : f32
    %15 = vector.broadcast %cst_11 : f32 to vector<128x512xf32>
    %16 = arith.maximumf %14, %15 : vector<128x512xf32>
    %c0_12 = arith.constant 0 : index
    %c0_13 = arith.constant 0 : index
    %17 = vector.load %arg7[%c0_12, %c0_13] : memref<512x4xf32, #tpu.memory_space<vmem>>, vector<512x4xf32>
    %cst_14 = arith.constant dense<0.000000e+00> : vector<128x4xf32>
    %18 = tpu.matmul %16, %17, %cst_14 {dimension_numbers = #tpu.dot_dimension_numbers<[1], [0], [0], [1], [0, 0, 1, 1], [], []>} : vector<128x512xf32>, vector<512x4xf32>, vector<128x4xf32> -> vector<128x4xf32>
    %c0_15 = arith.constant 0 : index
    %c0_16 = arith.constant 0 : index
    %19 = vector.load %arg8[%c0_15, %c0_16] : memref<1x4xf32, #tpu.memory_space<vmem>>, vector<1x4xf32>
    %20 = vector.broadcast %19 : vector<1x4xf32> to vector<128x4xf32>
    %21 = arith.addf %18, %20 : vector<128x4xf32>
    %22 = vector.extract_strided_slice %21 {offsets = [0, 0], sizes = [128, 2], strides = [1, 1]} : vector<128x4xf32> to vector<128x2xf32>
    %23 = vector.extract_strided_slice %21 {offsets = [0, 2], sizes = [128, 2], strides = [1, 1]} : vector<128x4xf32> to vector<128x2xf32>
    %c0_17 = arith.constant 0 : index
    %c0_18 = arith.constant 0 : index
    %24 = vector.load %arg2[%c0_17, %c0_18] : memref<128x2xf32, #tpu.memory_space<vmem>>, vector<128x2xf32>
    %cst_19 = arith.constant 5.000000e-01 : f32
    %25 = vector.broadcast %cst_19 : f32 to vector<128x2xf32>
    %26 = arith.mulf %25, %23 : vector<128x2xf32>
    %27 = math.exp %26 : vector<128x2xf32>
    %28 = arith.mulf %24, %27 : vector<128x2xf32>
    %29 = arith.addf %22, %28 : vector<128x2xf32>
    %c0_20 = arith.constant 0 : index
    %c0_21 = arith.constant 0 : index
    %30 = vector.load %arg9[%c0_20, %c0_21] : memref<2x512xf32, #tpu.memory_space<vmem>>, vector<2x512xf32>
    %c0_22 = arith.constant 0 : index
    %c0_23 = arith.constant 0 : index
    %31 = vector.load %arg10[%c0_22, %c0_23] : memref<1x512xf32, #tpu.memory_space<vmem>>, vector<1x512xf32>
    %32 = vector.extract_strided_slice %29 {offsets = [0, 0], sizes = [128, 1], strides = [1, 1]} : vector<128x2xf32> to vector<128x1xf32>
    %33 = vector.extract_strided_slice %30 {offsets = [0, 0], sizes = [1, 512], strides = [1, 1]} : vector<2x512xf32> to vector<1x512xf32>
    %34 = vector.broadcast %32 : vector<128x1xf32> to vector<128x512xf32>
    %35 = vector.broadcast %33 : vector<1x512xf32> to vector<128x512xf32>
    %36 = arith.mulf %34, %35 : vector<128x512xf32>
    %37 = vector.broadcast %31 : vector<1x512xf32> to vector<128x512xf32>
    %38 = arith.addf %37, %36 : vector<128x512xf32>
    %39 = vector.extract_strided_slice %29 {offsets = [0, 1], sizes = [128, 1], strides = [1, 1]} : vector<128x2xf32> to vector<128x1xf32>
    %40 = vector.extract_strided_slice %30 {offsets = [1, 0], sizes = [1, 512], strides = [1, 1]} : vector<2x512xf32> to vector<1x512xf32>
    %41 = vector.broadcast %39 : vector<128x1xf32> to vector<128x512xf32>
    %42 = vector.broadcast %40 : vector<1x512xf32> to vector<128x512xf32>
    %43 = arith.mulf %41, %42 : vector<128x512xf32>
    %44 = arith.addf %38, %43 : vector<128x512xf32>
    %cst_24 = arith.constant 0.000000e+00 : f32
    %45 = vector.broadcast %cst_24 : f32 to vector<128x512xf32>
    %46 = arith.maximumf %44, %45 : vector<128x512xf32>
    %47 = arith.truncf %46 : vector<128x512xf32> to vector<128x512xbf16>
    %c0_25 = arith.constant 0 : index
    %c0_26 = arith.constant 0 : index
    %48 = vector.load %arg11[%c0_25, %c0_26] : memref<512x512xbf16, #tpu.memory_space<vmem>>, vector<512x512xbf16>
    %cst_27 = arith.constant dense<0.000000e+00> : vector<128x512xf32>
    %49 = tpu.matmul %47, %48, %cst_27 {dimension_numbers = #tpu.dot_dimension_numbers<[1], [0], [0], [1], [0, 0, 1, 1], [], []>} : vector<128x512xbf16>, vector<512x512xbf16>, vector<128x512xf32> -> vector<128x512xf32>
    %c0_28 = arith.constant 0 : index
    %c0_29 = arith.constant 0 : index
    %50 = vector.load %arg12[%c0_28, %c0_29] : memref<1x512xf32, #tpu.memory_space<vmem>>, vector<1x512xf32>
    %51 = vector.broadcast %50 : vector<1x512xf32> to vector<128x512xf32>
    %52 = arith.addf %49, %51 : vector<128x512xf32>
    %cst_30 = arith.constant 0.000000e+00 : f32
    %53 = vector.broadcast %cst_30 : f32 to vector<128x512xf32>
    %54 = arith.maximumf %52, %53 : vector<128x512xf32>
    %55 = arith.truncf %54 : vector<128x512xf32> to vector<128x512xbf16>
    %c0_31 = arith.constant 0 : index
    %c0_32 = arith.constant 0 : index
    %56 = vector.load %arg13[%c0_31, %c0_32] : memref<512x896xbf16, #tpu.memory_space<vmem>>, vector<512x896xbf16>
    %cst_33 = arith.constant dense<0.000000e+00> : vector<128x896xf32>
    %57 = tpu.matmul %55, %56, %cst_33 {dimension_numbers = #tpu.dot_dimension_numbers<[1], [0], [0], [1], [0, 0, 1, 1], [], []>} : vector<128x512xbf16>, vector<512x896xbf16>, vector<128x896xf32> -> vector<128x896xf32>
    %c0_34 = arith.constant 0 : index
    %c0_35 = arith.constant 0 : index
    %58 = vector.load %arg14[%c0_34, %c0_35] : memref<1x896xf32, #tpu.memory_space<vmem>>, vector<1x896xf32>
    %59 = vector.broadcast %58 : vector<1x896xf32> to vector<128x896xf32>
    %60 = arith.addf %57, %59 : vector<128x896xf32>
    %cst_36 = arith.constant 5.000000e-01 : f32
    %61 = vector.broadcast %cst_36 : f32 to vector<128x896xf32>
    %62 = arith.mulf %61, %60 : vector<128x896xf32>
    %63 = math.tanh %62 : vector<128x896xf32>
    %cst_37 = arith.constant 5.000000e-01 : f32
    %64 = vector.broadcast %cst_37 : f32 to vector<128x896xf32>
    %65 = arith.mulf %64, %63 : vector<128x896xf32>
    %cst_38 = arith.constant 5.000000e-01 : f32
    %66 = vector.broadcast %cst_38 : f32 to vector<128x896xf32>
    %67 = arith.addf %65, %66 : vector<128x896xf32>
    %c0_39 = arith.constant 0 : index
    %c0_40 = arith.constant 0 : index
    %68 = vector.load %arg15[%c0_39, %c0_40] : memref<128x896xf32, #tpu.memory_space<vmem>>, vector<128x896xf32>
    tpu.vector_store %arg15[%c0_39, %c0_40], %67 {strides = array<i32>} : memref<128x896xf32, #tpu.memory_space<vmem>>, vector<128x896xf32>,
    %c0_41 = arith.constant 0 : index
    %c784 = arith.constant 784 : index
    %69 = vector.load %arg15[%c0_41, %c784] : memref<128x896xf32, #tpu.memory_space<vmem>>, vector<128x4xf32>
    tpu.vector_store %arg15[%c0_41, %c784], %21 {strides = array<i32>} : memref<128x896xf32, #tpu.memory_space<vmem>>, vector<128x4xf32>,
    return
  }
  func.func @transform_0(%arg0: i32) -> (i32, i32) {
    %c0_i32 = arith.constant 0 : i32
    %c0_i32_0 = arith.constant 0 : i32
    return %arg0, %c0_i32 : i32, i32
  }
  func.func @transform_1(%arg0: i32) -> (i32, i32) {
    %c0_i32 = arith.constant 0 : i32
    %c0_i32_0 = arith.constant 0 : i32
    return %arg0, %c0_i32 : i32, i32
  }
  func.func @transform_2(%arg0: i32) -> (i32, i32) {
    %c0_i32 = arith.constant 0 : i32
    %c0_i32_0 = arith.constant 0 : i32
    %c0_i32_1 = arith.constant 0 : i32
    return %c0_i32, %c0_i32_0 : i32, i32
  }
  func.func @transform_3(%arg0: i32) -> (i32, i32) {
    %c0_i32 = arith.constant 0 : i32
    %c0_i32_0 = arith.constant 0 : i32
    %c0_i32_1 = arith.constant 0 : i32
    return %c0_i32, %c0_i32_0 : i32, i32
  }
  func.func @transform_4(%arg0: i32) -> (i32, i32) {
    %c0_i32 = arith.constant 0 : i32
    %c0_i32_0 = arith.constant 0 : i32
    %c0_i32_1 = arith.constant 0 : i32
    return %c0_i32, %c0_i32_0 : i32, i32
  }
  func.func @transform_5(%arg0: i32) -> (i32, i32) {
    %c0_i32 = arith.constant 0 : i32
    %c0_i32_0 = arith.constant 0 : i32
    %c0_i32_1 = arith.constant 0 : i32
    return %c0_i32, %c0_i32_0 : i32, i32
  }
  func.func @transform_6(%arg0: i32) -> (i32, i32) {
    %c0_i32 = arith.constant 0 : i32
    %c0_i32_0 = arith.constant 0 : i32
    %c0_i32_1 = arith.constant 0 : i32
    return %c0_i32, %c0_i32_0 : i32, i32
  }
  func.func @transform_7(%arg0: i32) -> (i32, i32) {
    %c0_i32 = arith.constant 0 : i32
    %c0_i32_0 = arith.constant 0 : i32
    %c0_i32_1 = arith.constant 0 : i32
    return %c0_i32, %c0_i32_0 : i32, i32
  }
  func.func @transform_8(%arg0: i32) -> (i32, i32) {
    %c0_i32 = arith.constant 0 : i32
    %c0_i32_0 = arith.constant 0 : i32
    %c0_i32_1 = arith.constant 0 : i32
    return %c0_i32, %c0_i32_0 : i32, i32
  }
  func.func @transform_9(%arg0: i32) -> (i32, i32) {
    %c0_i32 = arith.constant 0 : i32
    %c0_i32_0 = arith.constant 0 : i32
    %c0_i32_1 = arith.constant 0 : i32
    return %c0_i32, %c0_i32_0 : i32, i32
  }
  func.func @transform_10(%arg0: i32) -> (i32, i32) {
    %c0_i32 = arith.constant 0 : i32
    %c0_i32_0 = arith.constant 0 : i32
    %c0_i32_1 = arith.constant 0 : i32
    return %c0_i32, %c0_i32_0 : i32, i32
  }
  func.func @transform_11(%arg0: i32) -> (i32, i32) {
    %c0_i32 = arith.constant 0 : i32
    %c0_i32_0 = arith.constant 0 : i32
    %c0_i32_1 = arith.constant 0 : i32
    return %c0_i32, %c0_i32_0 : i32, i32
  }
  func.func @transform_12(%arg0: i32) -> (i32, i32) {
    %c0_i32 = arith.constant 0 : i32
    %c0_i32_0 = arith.constant 0 : i32
    %c0_i32_1 = arith.constant 0 : i32
    return %c0_i32, %c0_i32_0 : i32, i32
  }
  func.func @transform_13(%arg0: i32) -> (i32, i32) {
    %c0_i32 = arith.constant 0 : i32
    %c0_i32_0 = arith.constant 0 : i32
    %c0_i32_1 = arith.constant 0 : i32
    return %c0_i32, %c0_i32_0 : i32, i32
  }
  func.func @transform_14(%arg0: i32) -> (i32, i32) {
    %c0_i32 = arith.constant 0 : i32
    %c0_i32_0 = arith.constant 0 : i32
    return %arg0, %c0_i32 : i32, i32
  }
}

</mosaic_0001>

<llo_original>
// kernel: vae_forward.1
$region0: #{vae_forward.1}
  #allocation0 [shape = 'u32[]', space=smem, size = 0x4, offset = 0x4, fixed_abs, tag = 'smem constant byte address 0x4 - core index']
  #allocation1 [shape = 'u32[144,128]{1,0:T(1,128)}', space=vmem, size = 0x12000, scoped, tag = 'internal scratch']
  %s0 = inlined_call_operand.vmem [shape: f32[256,784], index: 0, kind: input, shape index: {}]
  %s1 = inlined_call_operand.vmem [shape: f32[256,2], index: 1, kind: input, shape index: {}]
  %s2 = inlined_call_operand.vmem [shape: bf16[784,512], index: 2, kind: input, shape index: {}]
  %s3 = inlined_call_operand.vmem [shape: f32[1,512], index: 3, kind: input, shape index: {}]
  %s4 = inlined_call_operand.hbm [shape: bf16[512,512], index: 4, kind: input, shape index: {}]
  %s5 = inlined_call_operand.vmem [shape: f32[1,512], index: 5, kind: input, shape index: {}]
  %s6 = inlined_call_operand.vmem [shape: f32[512,4], index: 6, kind: input, shape index: {}]
  %s7 = inlined_call_operand.vmem [shape: f32[1,4], index: 7, kind: input, shape index: {}]
  %s8 = inlined_call_operand.vmem [shape: f32[2,512], index: 8, kind: input, shape index: {}]
  %s9 = inlined_call_operand.vmem [shape: f32[1,512], index: 9, kind: input, shape index: {}]
  %s10 = inlined_call_operand.hbm [shape: bf16[512,512], index: 10, kind: input, shape index: {}]
  %s11 = inlined_call_operand.vmem [shape: f32[1,512], index: 11, kind: input, shape index: {}]
  %s12 = inlined_call_operand.vmem [shape: bf16[512,896], index: 12, kind: input, shape index: {}]
  %s13 = inlined_call_operand.vmem [shape: f32[1,896], index: 13, kind: input, shape index: {}]
  %s14 = inlined_call_operand.vmem [shape: f32[256,896], index: 14, kind: output, shape index: {}]
  %s15 = sld [smem:[#allocation0]]
  $region97: #{vae_forward.1} parent=0
    _
  %s17 = ssub.s32 1, %s15
  %s18 = scalar_select 0, %s17, %s15
  $region1: #{vae_forward.1} parent=0
    #allocation2 [shape = 'u8[524288]{0}', space=vmem, size = 0x80000, scoped, tag = 'input window, operand 4, single buffered']
    #allocation3 [shape = 's32[2]{0}', space=sflag, size = 0x8, scoped, tag = 'scoped memory for vae_forward.1']
    #allocation4 [shape = 'u8[524288]{0}', space=vmem, size = 0x80000, scoped, tag = 'input window, operand 10, single buffered']
    #allocation5 [shape = 's32[1]{0}', space=sflag, size = 0x4, scoped, tag = 'scoped memory for vae_forward.1']
    %19 = vsyncpa [#allocation3], 0
    %20 = vsyncpa [#allocation5], 0
    loop: start=0, step=1, limit=4
    $region2: #{vae_forward.1} parent=1 // loop_pre_header
      _
    $region3: #{vae_forward.1} parent=1 // loop_header
      %s22 = sphi 0, %s26
      %p23 = scmp.ge.s32.totalorder %s22, 4
      %s32 = sphi 0, %s34
      %s35 = sphi 0, %s32
      %s36 = sphi 0, %s35
      %s52 = sphi 0, %s36
      %s58 = sphi 0, %s60
      %s61 = sphi 0, %s58
      %s62 = sphi 0, %s61
      %s78 = sphi 0, %s62
      %s82 = sphi 0, %s82
      %s84 = sphi 0, %s82
      %s85 = sphi 0, %s84
      %s99 = sphi 0, %s85
      %s103 = sphi 0, %s103
      %s105 = sphi 0, %s103
      %s106 = sphi 0, %s105
      %s120 = sphi 0, %s106
      %s124 = sphi 0, %s124
      %s126 = sphi 0, %s124
      %s127 = sphi 0, %s126
      %s141 = sphi 0, %s127
      %s145 = sphi 0, %s145
      %s147 = sphi 0, %s145
      %s148 = sphi 0, %s147
      %s162 = sphi 0, %s148
      %s166 = sphi 0, %s166
      %s168 = sphi 0, %s166
      %s169 = sphi 0, %s168
      %s183 = sphi 0, %s169
      %s187 = sphi 0, %s187
      %s189 = sphi 0, %s187
      %s190 = sphi 0, %s189
      %s204 = sphi 0, %s190
      %s208 = sphi 0, %s208
      %s210 = sphi 0, %s208
      %s211 = sphi 0, %s210
      %s225 = sphi 0, %s211
      %s229 = sphi 0, %s229
      %s231 = sphi 0, %s229
      %s232 = sphi 0, %s231
      %s246 = sphi 0, %s232
      %s250 = sphi 0, %s250
      %s252 = sphi 0, %s250
      %s253 = sphi 0, %s252
      %s267 = sphi 0, %s253
      %s271 = sphi 0, %s271
      %s273 = sphi 0, %s271
      %s274 = sphi 0, %s273
      %s288 = sphi 0, %s274
      %s292 = sphi 0, %s292
      %s294 = sphi 0, %s292
      %s295 = sphi 0, %s294
      %s309 = sphi 0, %s295
      %s313 = sphi 0, %s313
      %s315 = sphi 0, %s313
      %s316 = sphi 0, %s315
      %s330 = sphi 0, %s316
      %s336 = sphi 0, %s338
      %s339 = sphi 0, %s336
      %s340 = sphi 0, %s339
      %s356 = sphi 0, %s340
    $region4: #{vae_forward.1} parent=1 // loop_header_branch
      %25 = sbr.rel (%p23) target = $region8
    $region5: #{vae_forward.1} parent=1 // loop_body
      %s27 = ssub.s32 %s22, 1
      %s28 = ssub.s32 %s22, 2
      %s29 = sadd.s32 %s22, 1
      %s30 = ssub.s32 %s22, %s29
      %p31 = scmp.eq.s32.totalorder %s30, 0
      %s33 = sadd.s32 %s32, 1
      %s34 = scalar_select %p31, %s32, %s33
      %p37 = pneg %p31
      %p38 = scmp.eq.s32.totalorder %s22, 1
      %p39 = por %p37, %p38
      %p40 = scmp.ne.s32.totalorder %s32, %s35
      %p41 = scmp.eq.s32.totalorder %s22, 0
      %p42 = por %p40, %p41
      %p43 = scmp.ne.s32.totalorder %s32, %s35
      %p44 = scmp.eq.s32.totalorder %s27, 1
      %p45 = por %p43, %p44
      %p46 = scmp.ne.s32.totalorder %s35, %s36
      %p47 = scmp.eq.s32.totalorder %s27, 0
      %p48 = por %p46, %p47
      %p49 = scmp.ne.s32.totalorder %s35, %s36
      %p50 = scmp.eq.s32.totalorder %s28, 1
      %p51 = por %p49, %p50
      %p53 = scmp.ne.s32.totalorder %s36, %s52
      %p54 = scmp.eq.s32.totalorder %s28, 0
      %p55 = por %p53, %p54
      %s56 = ssub.s32 %s22, %s29
      %p57 = scmp.eq.s32.totalorder %s56, 0
      %s59 = sadd.s32 %s58, 1
      %s60 = scalar_select %p57, %s58, %s59
      %p63 = pneg %p57
      %p64 = scmp.eq.s32.totalorder %s22, 1
      %p65 = por %p63, %p64
      %p66 = scmp.ne.s32.totalorder %s58, %s61
      %p67 = scmp.eq.s32.totalorder %s22, 0
      %p68 = por %p66, %p67
      %p69 = scmp.ne.s32.totalorder %s58, %s61
      %p70 = scmp.eq.s32.totalorder %s27, 1
      %p71 = por %p69, %p70
      %p72 = scmp.ne.s32.totalorder %s61, %s62
      %p73 = scmp.eq.s32.totalorder %s27, 0
      %p74 = por %p72, %p73
      %p75 = scmp.ne.s32.totalorder %s61, %s62
      %p76 = scmp.eq.s32.totalorder %s28, 1
      %p77 = por %p75, %p76
      %p79 = scmp.ne.s32.totalorder %s62, %s78
      %p80 = scmp.eq.s32.totalorder %s28, 0
      %p81 = por %p79, %p80
      %s83 = sadd.s32 %s82, 1
      %p86 = scmp.eq.s32.totalorder %s22, 1
      %p87 = scmp.ne.s32.totalorder %s82, %s84
      %p88 = scmp.eq.s32.totalorder %s22, 0
      %p89 = por %p87, %p88
      %p90 = scmp.ne.s32.totalorder %s82, %s84
      %p91 = scmp.eq.s32.totalorder %s27, 1
      %p92 = por %p90, %p91
      %p93 = scmp.ne.s32.totalorder %s84, %s85
      %p94 = scmp.eq.s32.totalorder %s27, 0
      %p95 = por %p93, %p94
      %p96 = scmp.ne.s32.totalorder %s84, %s85
      %p97 = scmp.eq.s32.totalorder %s28, 1
      %p98 = por %p96, %p97
      %p100 = scmp.ne.s32.totalorder %s85, %s99
      %p101 = scmp.eq.s32.totalorder %s28, 0
      %p102 = por %p100, %p101
      %s104 = sadd.s32 %s103, 1
      %p107 = scmp.eq.s32.totalorder %s22, 1
      %p108 = scmp.ne.s32.totalorder %s103, %s105
      %p109 = scmp.eq.s32.totalorder %s22, 0
      %p110 = por %p108, %p109
      %p111 = scmp.ne.s32.totalorder %s103, %s105
      %p112 = scmp.eq.s32.totalorder %s27, 1
      %p113 = por %p111, %p112
      %p114 = scmp.ne.s32.totalorder %s105, %s106
      %p115 = scmp.eq.s32.totalorder %s27, 0
      %p116 = por %p114, %p115
      %p117 = scmp.ne.s32.totalorder %s105, %s106
      %p118 = scmp.eq.s32.totalorder %s28, 1
      %p119 = por %p117, %p118
      %p121 = scmp.ne.s32.totalorder %s106, %s120
      %p122 = scmp.eq.s32.totalorder %s28, 0
      %p123 = por %p121, %p122
      %s125 = sadd.s32 %s124, 1
      %p128 = scmp.eq.s32.totalorder %s22, 1
      %p129 = scmp.ne.s32.totalorder %s124, %s126
      %p130 = scmp.eq.s32.totalorder %s22, 0
      %p131 = por %p129, %p130
      %p132 = scmp.ne.s32.totalorder %s124, %s126
      %p133 = scmp.eq.s32.totalorder %s27, 1
      %p134 = por %p132, %p133
      %p135 = scmp.ne.s32.totalorder %s126, %s127
      %p136 = scmp.eq.s32.totalorder %s27, 0
      %p137 = por %p135, %p136
      %p138 = scmp.ne.s32.totalorder %s126, %s127
      %p139 = scmp.eq.s32.totalorder %s28, 1
      %p140 = por %p138, %p139
      %p142 = scmp.ne.s32.totalorder %s127, %s141
      %p143 = scmp.eq.s32.totalorder %s28, 0
      %p144 = por %p142, %p143
      %s146 = sadd.s32 %s145, 1
      %p149 = scmp.eq.s32.totalorder %s22, 1
      %p150 = scmp.ne.s32.totalorder %s145, %s147
      %p151 = scmp.eq.s32.totalorder %s22, 0
      %p152 = por %p150, %p151
      %p153 = scmp.ne.s32.totalorder %s145, %s147
      %p154 = scmp.eq.s32.totalorder %s27, 1
      %p155 = por %p153, %p154
      %p156 = scmp.ne.s32.totalorder %s147, %s148
      %p157 = scmp.eq.s32.totalorder %s27, 0
      %p158 = por %p156, %p157
      %p159 = scmp.ne.s32.totalorder %s147, %s148
      %p160 = scmp.eq.s32.totalorder %s28, 1
      %p161 = por %p159, %p160
      %p163 = scmp.ne.s32.totalorder %s148, %s162
      %p164 = scmp.eq.s32.totalorder %s28, 0
      %p165 = por %p163, %p164
      %s167 = sadd.s32 %s166, 1
      %p170 = scmp.eq.s32.totalorder %s22, 1
      %p171 = scmp.ne.s32.totalorder %s166, %s168
      %p172 = scmp.eq.s32.totalorder %s22, 0
      %p173 = por %p171, %p172
      %p174 = scmp.ne.s32.totalorder %s166, %s168
      %p175 = scmp.eq.s32.totalorder %s27, 1
      %p176 = por %p174, %p175
      %p177 = scmp.ne.s32.totalorder %s168, %s169
      %p178 = scmp.eq.s32.totalorder %s27, 0
      %p179 = por %p177, %p178
      %p180 = scmp.ne.s32.totalorder %s168, %s169
      %p181 = scmp.eq.s32.totalorder %s28, 1
      %p182 = por %p180, %p181
      %p184 = scmp.ne.s32.totalorder %s169, %s183
      %p185 = scmp.eq.s32.totalorder %s28, 0
      %p186 = por %p184, %p185
      %s188 = sadd.s32 %s187, 1
      %p191 = scmp.eq.s32.totalorder %s22, 1
      %p192 = scmp.ne.s32.totalorder %s187, %s189
      %p193 = scmp.eq.s32.totalorder %s22, 0
      %p194 = por %p192, %p193
      %p195 = scmp.ne.s32.totalorder %s187, %s189
      %p196 = scmp.eq.s32.totalorder %s27, 1
      %p197 = por %p195, %p196
      %p198 = scmp.ne.s32.totalorder %s189, %s190
      %p199 = scmp.eq.s32.totalorder %s27, 0
      %p200 = por %p198, %p199
      %p201 = scmp.ne.s32.totalorder %s189, %s190
      %p202 = scmp.eq.s32.totalorder %s28, 1
      %p203 = por %p201, %p202
      %p205 = scmp.ne.s32.totalorder %s190, %s204
      %p206 = scmp.eq.s32.totalorder %s28, 0
      %p207 = por %p205, %p206
      %s209 = sadd.s32 %s208, 1
      %p212 = scmp.eq.s32.totalorder %s22, 1
      %p213 = scmp.ne.s32.totalorder %s208, %s210
      %p214 = scmp.eq.s32.totalorder %s22, 0
      %p215 = por %p213, %p214
      %p216 = scmp.ne.s32.totalorder %s208, %s210
      %p217 = scmp.eq.s32.totalorder %s27, 1
      %p218 = por %p216, %p217
      %p219 = scmp.ne.s32.totalorder %s210, %s211
      %p220 = scmp.eq.s32.totalorder %s27, 0
      %p221 = por %p219, %p220
      %p222 = scmp.ne.s32.totalorder %s210, %s211
      %p223 = scmp.eq.s32.totalorder %s28, 1
      %p224 = por %p222, %p223
      %p226 = scmp.ne.s32.totalorder %s211, %s225
      %p227 = scmp.eq.s32.totalorder %s28, 0
      %p228 = por %p226, %p227
      %s230 = sadd.s32 %s229, 1
      %p233 = scmp.eq.s32.totalorder %s22, 1
      %p234 = scmp.ne.s32.totalorder %s229, %s231
      %p235 = scmp.eq.s32.totalorder %s22, 0
      %p236 = por %p234, %p235
      %p237 = scmp.ne.s32.totalorder %s229, %s231
      %p238 = scmp.eq.s32.totalorder %s27, 1
      %p239 = por %p237, %p238
      %p240 = scmp.ne.s32.totalorder %s231, %s232
      %p241 = scmp.eq.s32.totalorder %s27, 0
      %p242 = por %p240, %p241
      %p243 = scmp.ne.s32.totalorder %s231, %s232
      %p244 = scmp.eq.s32.totalorder %s28, 1
      %p245 = por %p243, %p244
      %p247 = scmp.ne.s32.totalorder %s232, %s246
      %p248 = scmp.eq.s32.totalorder %s28, 0
      %p249 = por %p247, %p248
      %s251 = sadd.s32 %s250, 1
      %p254 = scmp.eq.s32.totalorder %s22, 1
      %p255 = scmp.ne.s32.totalorder %s250, %s252
      %p256 = scmp.eq.s32.totalorder %s22, 0
      %p257 = por %p255, %p256
      %p258 = scmp.ne.s32.totalorder %s250, %s252
      %p259 = scmp.eq.s32.totalorder %s27, 1
      %p260 = por %p258, %p259
      %p261 = scmp.ne.s32.totalorder %s252, %s253
      %p262 = scmp.eq.s32.totalorder %s27, 0
      %p263 = por %p261, %p262
      %p264 = scmp.ne.s32.totalorder %s252, %s253
      %p265 = scmp.eq.s32.totalorder %s28, 1
      %p266 = por %p264, %p265
      %p268 = scmp.ne.s32.totalorder %s253, %s267
      %p269 = scmp.eq.s32.totalorder %s28, 0
      %p270 = por %p268, %p269
      %s272 = sadd.s32 %s271, 1
      %p275 = scmp.eq.s32.totalorder %s22, 1
      %p276 = scmp.ne.s32.totalorder %s271, %s273
      %p277 = scmp.eq.s32.totalorder %s22, 0
      %p278 = por %p276, %p277
      %p279 = scmp.ne.s32.totalorder %s271, %s273
      %p280 = scmp.eq.s32.totalorder %s27, 1
      %p281 = por %p279, %p280
      %p282 = scmp.ne.s32.totalorder %s273, %s274
      %p283 = scmp.eq.s32.totalorder %s27, 0
      %p284 = por %p282, %p283
      %p285 = scmp.ne.s32.totalorder %s273, %s274
      %p286 = scmp.eq.s32.totalorder %s28, 1
      %p287 = por %p285, %p286
      %p289 = scmp.ne.s32.totalorder %s274, %s288
      %p290 = scmp.eq.s32.totalorder %s28, 0
      %p291 = por %p289, %p290
      %s293 = sadd.s32 %s292, 1
      %p296 = scmp.eq.s32.totalorder %s22, 1
      %p297 = scmp.ne.s32.totalorder %s292, %s294
      %p298 = scmp.eq.s32.totalorder %s22, 0
      %p299 = por %p297, %p298
      %p300 = scmp.ne.s32.totalorder %s292, %s294
      %p301 = scmp.eq.s32.totalorder %s27, 1
      %p302 = por %p300, %p301
      %p303 = scmp.ne.s32.totalorder %s294, %s295
      %p304 = scmp.eq.s32.totalorder %s27, 0
      %p305 = por %p303, %p304
      %p306 = scmp.ne.s32.totalorder %s294, %s295
      %p307 = scmp.eq.s32.totalorder %s28, 1
      %p308 = por %p306, %p307
      %p310 = scmp.ne.s32.totalorder %s295, %s309
      %p311 = scmp.eq.s32.totalorder %s28, 0
      %p312 = por %p310, %p311
      %s314 = sadd.s32 %s313, 1
      %p317 = scmp.eq.s32.totalorder %s22, 1
      %p318 = scmp.ne.s32.totalorder %s313, %s315
      %p319 = scmp.eq.s32.totalorder %s22, 0
      %p320 = por %p318, %p319
      %p321 = scmp.ne.s32.totalorder %s313, %s315
      %p322 = scmp.eq.s32.totalorder %s27, 1
      %p323 = por %p321, %p322
      %p324 = scmp.ne.s32.totalorder %s315, %s316
      %p325 = scmp.eq.s32.totalorder %s27, 0
      %p326 = por %p324, %p325
      %p327 = scmp.ne.s32.totalorder %s315, %s316
      %p328 = scmp.eq.s32.totalorder %s28, 1
      %p329 = por %p327, %p328
      %p331 = scmp.ne.s32.totalorder %s316, %s330
      %p332 = scmp.eq.s32.totalorder %s28, 0
      %p333 = por %p331, %p332
      %s334 = ssub.s32 %s22, %s29
      %p335 = scmp.eq.s32.totalorder %s334, 0
      %s337 = sadd.s32 %s336, 1
      %s338 = scalar_select %p335, %s336, %s337
      %p341 = pneg %p335
      %p342 = scmp.eq.s32.totalorder %s22, 1
      %p343 = por %p341, %p342
      %p344 = scmp.ne.s32.totalorder %s336, %s339
      %p345 = scmp.eq.s32.totalorder %s22, 0
      %p346 = por %p344, %p345
      %p347 = scmp.ne.s32.totalorder %s336, %s339
      %p348 = scmp.eq.s32.totalorder %s27, 1
      %p349 = por %p347, %p348
      %p350 = scmp.ne.s32.totalorder %s339, %s340
      %p351 = scmp.eq.s32.totalorder %s27, 0
      %p352 = por %p350, %p351
      %p353 = scmp.ne.s32.totalorder %s339, %s340
      %p354 = scmp.eq.s32.totalorder %s28, 1
      %p355 = por %p353, %p354
      %p357 = scmp.ne.s32.totalorder %s340, %s356
      %p358 = scmp.eq.s32.totalorder %s28, 0
      %p359 = por %p357, %p358
      %p360 = scmp.le.s32.totalorder 1, %s22
      %p361 = scmp.lt.s32.totalorder %s22, 3
      %p362 = pnand %p360, %p361
      %p363 = pneg %p362
      // Predicated region
      $region9: #{vae_forward.1} parent=5 // pred_check
        _
      $region10: #{vae_forward.1} parent=5 // pred_check_branch
        %365 = sbr.rel (%p362) target = $region12
      $region11: #{vae_forward.1} parent=5 // pred_region
        %s366 = ssub.s32 %s22, 1
        // Predicated region
        $region13: #{vae_forward.1} parent=11 // pred_check
          %p367 = pneg %p95
        $region14: #{vae_forward.1} parent=11 // pred_check_branch
          %369 = sbr.rel (%p367) target = $region16
        $region15: #{vae_forward.1} parent=11 // pred_region
          _
        $region16: #{vae_forward.1} parent=11 // pred_fallthru
          _
        // Predicated region
        $region17: #{vae_forward.1} parent=11 // pred_check
          %p370 = pneg %p116
        $region18: #{vae_forward.1} parent=11 // pred_check_branch
          %372 = sbr.rel (%p370) target = $region20
        $region19: #{vae_forward.1} parent=11 // pred_region
          _
        $region20: #{vae_forward.1} parent=11 // pred_fallthru
          _
        // Predicated region
        $region21: #{vae_forward.1} parent=11 // pred_check
          %p373 = pneg %p137
        $region22: #{vae_forward.1} parent=11 // pred_check_branch
          %375 = sbr.rel (%p373) target = $region24
        $region23: #{vae_forward.1} parent=11 // pred_region
          %s377 = ssub.s32 16384, 16384
          %378 = vsyncadd [#allocation3], %s377
          %s379 = sshll.u32 [#allocation2], 4
          %s380 = int_to_ptr.vmem [resolvable:$true] %s379
          %385 = dma.hbm_to_vmem [thread:$0]  %s4, 16384, %s380, [#allocation3], 256, 256, 16
        $region24: #{vae_forward.1} parent=11 // pred_fallthru
          _
        // Predicated region
        $region25: #{vae_forward.1} parent=11 // pred_check
          %p386 = pneg %p158
        $region26: #{vae_forward.1} parent=11 // pred_check_branch
          %388 = sbr.rel (%p386) target = $region28
        $region27: #{vae_forward.1} parent=11 // pred_region
          _
        $region28: #{vae_forward.1} parent=11 // pred_fallthru
          _
        // Predicated region
        $region29: #{vae_forward.1} parent=11 // pred_check
          %p389 = pneg %p179
        $region30: #{vae_forward.1} parent=11 // pred_check_branch
          %391 = sbr.rel (%p389) target = $region32
        $region31: #{vae_forward.1} parent=11 // pred_region
          _
        $region32: #{vae_forward.1} parent=11 // pred_fallthru
          _
        // Predicated region
        $region33: #{vae_forward.1} parent=11 // pred_check
          %p392 = pneg %p200
        $region34: #{vae_forward.1} parent=11 // pred_check_branch
          %394 = sbr.rel (%p392) target = $region36
        $region35: #{vae_forward.1} parent=11 // pred_region
          _
        $region36: #{vae_forward.1} parent=11 // pred_fallthru
          _
        // Predicated region
        $region37: #{vae_forward.1} parent=11 // pred_check
          %p395 = pneg %p221
        $region38: #{vae_forward.1} parent=11 // pred_check_branch
          %397 = sbr.rel (%p395) target = $region40
        $region39: #{vae_forward.1} parent=11 // pred_region
          _
        $region40: #{vae_forward.1} parent=11 // pred_fallthru
          _
        // Predicated region
        $region41: #{vae_forward.1} parent=11 // pred_check
          %p398 = pneg %p242
        $region42: #{vae_forward.1} parent=11 // pred_check_branch
          %400 = sbr.rel (%p398) target = $region44
        $region43: #{vae_forward.1} parent=11 // pred_region
          _
        $region44: #{vae_forward.1} parent=11 // pred_fallthru
          _
        // Predicated region
        $region45: #{vae_forward.1} parent=11 // pred_check
          %p401 = pneg %p263
        $region46: #{vae_forward.1} parent=11 // pred_check_branch
          %403 = sbr.rel (%p401) target = $region48
        $region47: #{vae_forward.1} parent=11 // pred_region
          %s405 = ssub.s32 16384, 16384
          %406 = vsyncadd [#allocation5], %s405
          %s407 = sshll.u32 [#allocation4], 4
          %s408 = int_to_ptr.vmem [resolvable:$true] %s407
          %413 = dma.hbm_to_vmem [thread:$0]  %s10, 16384, %s408, [#allocation5], 256, 256, 16
        $region48: #{vae_forward.1} parent=11 // pred_fallthru
          _
        // Predicated region
        $region49: #{vae_forward.1} parent=11 // pred_check
          %p414 = pneg %p284
        $region50: #{vae_forward.1} parent=11 // pred_check_branch
          %416 = sbr.rel (%p414) target = $region52
        $region51: #{vae_forward.1} parent=11 // pred_region
          _
        $region52: #{vae_forward.1} parent=11 // pred_fallthru
          _
        // Predicated region
        $region53: #{vae_forward.1} parent=11 // pred_check
          %p417 = pneg %p305
        $region54: #{vae_forward.1} parent=11 // pred_check_branch
          %419 = sbr.rel (%p417) target = $region56
        $region55: #{vae_forward.1} parent=11 // pred_region
          _
        $region56: #{vae_forward.1} parent=11 // pred_fallthru
          _
        // Predicated region
        $region57: #{vae_forward.1} parent=11 // pred_check
          %p420 = pneg %p326
        $region58: #{vae_forward.1} parent=11 // pred_check_branch
          %422 = sbr.rel (%p420) target = $region60
        $region59: #{vae_forward.1} parent=11 // pred_region
          _
        $region60: #{vae_forward.1} parent=11 // pred_fallthru
          _
      $region12: #{vae_forward.1} parent=5 // pred_fallthru
        _
      %p423 = scmp.lt.s32.totalorder %s22, 2
      // Predicated region
      $region61: #{vae_forward.1} parent=5 // pred_check
        %p424 = pneg %p423
      $region62: #{vae_forward.1} parent=5 // pred_check_branch
        %426 = sbr.rel (%p424) target = $region64
      $region63: #{vae_forward.1} parent=5 // pred_region
        // Predicated region
        $region65: #{vae_forward.1} parent=63 // pred_check
          %p427 = pneg %p42
        $region66: #{vae_forward.1} parent=63 // pred_check_branch
          %429 = sbr.rel (%p427) target = $region68
        $region67: #{vae_forward.1} parent=63 // pred_region
          %s430 = smul.u32 16, %s22
          %p431 = scmp.lt.s32.totalorder %s430, 31
          %s432 = scalar_select %p431, %s430, 31
          %s433 = smul.addr %s432, 7
          %s434 = smul.addr %s433, 8
          %s435 = scalar_lea.vmem %s0, %s434
          %s436 = smul.u32 16, %s22
        $region68: #{vae_forward.1} parent=63 // pred_fallthru
          _
        // Predicated region
        $region69: #{vae_forward.1} parent=63 // pred_check
          %p437 = pneg %p68
        $region70: #{vae_forward.1} parent=63 // pred_check_branch
          %439 = sbr.rel (%p437) target = $region72
        $region71: #{vae_forward.1} parent=63 // pred_region
          %s440 = smul.u32 16, %s22
          %p441 = scmp.lt.s32.totalorder %s440, 31
          %s442 = scalar_select %p441, %s440, 31
          %s443 = smul.addr %s442, 8
          %s444 = scalar_lea.vmem %s1, %s443
          %s445 = smul.u32 16, %s22
        $region72: #{vae_forward.1} parent=63 // pred_fallthru
          _
      $region64: #{vae_forward.1} parent=5 // pred_fallthru
        _
      %p446 = scmp.le.s32.totalorder 1, %s22
      %p447 = scmp.lt.s32.totalorder %s22, 3
      %p448 = pnand %p446, %p447
      %p449 = pneg %p448
      // Predicated region
      $region73: #{vae_forward.1} parent=5 // pred_check
        _
      $region74: #{vae_forward.1} parent=5 // pred_check_branch
        %451 = sbr.rel (%p448) target = $region76
      $region75: #{vae_forward.1} parent=5 // pred_region
        %s452 = ssub.s32 %s22, 1
        // Predicated region
        $region77: #{vae_forward.1} parent=75 // pred_check
          %p453 = pneg %p137
        $region78: #{vae_forward.1} parent=75 // pred_check_branch
          %455 = sbr.rel (%p453) target = $region80
        $region79: #{vae_forward.1} parent=75 // pred_region
          %456 = dma.done [#allocation3], 16384
        $region80: #{vae_forward.1} parent=75 // pred_fallthru
          _
        // Predicated region
        $region81: #{vae_forward.1} parent=75 // pred_check
          %p457 = pneg %p263
        $region82: #{vae_forward.1} parent=75 // pred_check_branch
          %459 = sbr.rel (%p457) target = $region84
        $region83: #{vae_forward.1} parent=75 // pred_region
          %460 = dma.done [#allocation5], 16384
        $region84: #{vae_forward.1} parent=75 // pred_fallthru
          _
        %s461 = smul.u32 16, %s27
        %p462 = scmp.lt.s32.totalorder %s461, 31
        %s463 = scalar_select %p462, %s461, 31
        %s464 = smul.addr %s463, 7
        %s465 = smul.addr %s464, 8
        %s466 = scalar_lea.vmem %s0, %s465
        %p467 = pneg %p48
        %p468 = pneg %p45
        %s469 = smul.u32 16, %s27
        %p470 = scmp.lt.s32.totalorder %s469, 31
        %s471 = scalar_select %p470, %s469, 31
        %s472 = smul.addr %s471, 8
        %s473 = scalar_lea.vmem %s1, %s472
        %p474 = pneg %p74
        %p475 = pneg %p71
        %p476 = pneg %p95
        %p477 = pneg %p92
        %p478 = pneg %p116
        %p479 = pneg %p113
        %p480 = pneg %p137
        %p481 = pneg %p134
        %p482 = pneg %p158
        %p483 = pneg %p155
        %p484 = pneg %p179
        %p485 = pneg %p176
        %p486 = pneg %p200
        %p487 = pneg %p197
        %p488 = pneg %p221
        %p489 = pneg %p218
        %p490 = pneg %p242
        %p491 = pneg %p239
        %p492 = pneg %p263
        %p493 = pneg %p260
        %p494 = pneg %p284
        %p495 = pneg %p281
        %p496 = pneg %p305
        %p497 = pneg %p302
        %p498 = pneg %p326
        %p499 = pneg %p323
        %p500 = pneg %p352
        %p501 = pneg %p349
        %s502 = smul.u32 16, %s27
        %p503 = scmp.lt.s32.totalorder %s502, 31
        %s504 = scalar_select %p503, %s502, 31
        %s505 = smul.addr %s504, 7
        %s506 = smul.addr %s505, 8
        %s507 = scalar_lea.vmem %s14, %s506
        %s508 = smul.u32 16, %s27
        %p509 = scmp.lt.s32.totalorder %s508, 31
        %s510 = scalar_select %p509, %s508, 31
        %s511 = smul.addr %s510, 7
        %s512 = smul.addr %s511, 8
        %s513 = scalar_lea.vmem %s0, %s512
        %s514 = smul.u32 16, %s27
        %s515 = smul.u32 16, %s27
        %p516 = scmp.lt.s32.totalorder %s515, 31
        %s517 = scalar_select %p516, %s515, 31
        %s518 = smul.addr %s517, 8
        %s519 = scalar_lea.vmem %s1, %s518
        %s520 = smul.u32 16, %s27
        %s521 = smul.u32 16, %s27
        %p522 = scmp.lt.s32.totalorder %s521, 31
        %s523 = scalar_select %p522, %s521, 31
        %s524 = smul.addr %s523, 7
        %s525 = smul.addr %s524, 8
        %s526 = scalar_lea.vmem %s14, %s525
        %s527 = smul.u32 16, %s27
        %v529 = vld [vmem:[%s513] sm:$0xff]
        %v530 = vld [vmem:[%s513 + $0x8] sm:$0xff]
        %v531 = vld [vmem:[%s513 + $0x10] sm:$0xff]
        %v532 = vld [vmem:[%s513 + $0x18] sm:$0xff]
        %v533 = vld [vmem:[%s513 + $0x20] sm:$0xff]
        %v534 = vld [vmem:[%s513 + $0x28] sm:$0xff]
        %v535 = vld [vmem:[%s513 + $0x30] sm:$0xff]
        %v536 = vld [vmem:[%s513 + $0x38] sm:$0xff]
        %v537 = vld [vmem:[%s513 + $0x40] sm:$0xff]
        %v538 = vld [vmem:[%s513 + $0x48] sm:$0xff]
        %v539 = vld [vmem:[%s513 + $0x50] sm:$0xff]
        %v540 = vld [vmem:[%s513 + $0x58] sm:$0xff]
        %v541 = vld [vmem:[%s513 + $0x60] sm:$0xff]
        %v542 = vld [vmem:[%s513 + $0x68] sm:$0xff]
        %v543 = vld [vmem:[%s513 + $0x70] sm:$0xff]
        %v544 = vld [vmem:[%s513 + $0x78] sm:$0xff]
        %v545 = vld [vmem:[%s513 + $0x80] sm:$0xff]
        %v546 = vld [vmem:[%s513 + $0x88] sm:$0xff]
        %v547 = vld [vmem:[%s513 + $0x90] sm:$0xff]
        %v548 = vld [vmem:[%s513 + $0x98] sm:$0xff]
        %v549 = vld [vmem:[%s513 + $0xa0] sm:$0xff]
        %v550 = vld [vmem:[%s513 + $0xa8] sm:$0xff]
        %v551 = vld [vmem:[%s513 + $0xb0] sm:$0xff]
        %v552 = vld [vmem:[%s513 + $0xb8] sm:$0xff]
        %v553 = vld [vmem:[%s513 + $0xc0] sm:$0xff]
        %v554 = vld [vmem:[%s513 + $0xc8] sm:$0xff]
        %v555 = vld [vmem:[%s513 + $0xd0] sm:$0xff]
        %v556 = vld [vmem:[%s513 + $0xd8] sm:$0xff]
        %v557 = vld [vmem:[%s513 + $0xe0] sm:$0xff]
        %v558 = vld [vmem:[%s513 + $0xe8] sm:$0xff]
        %v559 = vld [vmem:[%s513 + $0xf0] sm:$0xff]
        %v560 = vld [vmem:[%s513 + $0xf8] sm:$0xff]
        %v561 = vld [vmem:[%s513 + $0x100] sm:$0xff]
        %v562 = vld [vmem:[%s513 + $0x108] sm:$0xff]
        %v563 = vld [vmem:[%s513 + $0x110] sm:$0xff]
        %v564 = vld [vmem:[%s513 + $0x118] sm:$0xff]
        %v565 = vld [vmem:[%s513 + $0x120] sm:$0xff]
        %v566 = vld [vmem:[%s513 + $0x128] sm:$0xff]
        %v567 = vld [vmem:[%s513 + $0x130] sm:$0xff]
        %v568 = vld [vmem:[%s513 + $0x138] sm:$0xff]
        %v569 = vld [vmem:[%s513 + $0x140] sm:$0xff]
        %v570 = vld [vmem:[%s513 + $0x148] sm:$0xff]
        %v571 = vld [vmem:[%s513 + $0x150] sm:$0xff]
        %v572 = vld [vmem:[%s513 + $0x158] sm:$0xff]
        %v573 = vld [vmem:[%s513 + $0x160] sm:$0xff]
        %v574 = vld [vmem:[%s513 + $0x168] sm:$0xff]
        %v575 = vld [vmem:[%s513 + $0x170] sm:$0xff]
        %v576 = vld [vmem:[%s513 + $0x178] sm:$0xff]
        %v577 = vld [vmem:[%s513 + $0x180] sm:$0xff]
        %v578 = vld [vmem:[%s513 + $0x188] sm:$0xff]
        %v579 = vld [vmem:[%s513 + $0x190] sm:$0xff]
        %v580 = vld [vmem:[%s513 + $0x198] sm:$0xff]
        %v581 = vld [vmem:[%s513 + $0x1a0] sm:$0xff]
        %v582 = vld [vmem:[%s513 + $0x1a8] sm:$0xff]
        %v583 = vld [vmem:[%s513 + $0x1b0] sm:$0xff]
        %v584 = vld [vmem:[%s513 + $0x1b8] sm:$0xff]
        %v585 = vld [vmem:[%s513 + $0x1c0] sm:$0xff]
        %v586 = vld [vmem:[%s513 + $0x1c8] sm:$0xff]
        %v587 = vld [vmem:[%s513 + $0x1d0] sm:$0xff]
        %v588 = vld [vmem:[%s513 + $0x1d8] sm:$0xff]
        %v589 = vld [vmem:[%s513 + $0x1e0] sm:$0xff]
        %v590 = vld [vmem:[%s513 + $0x1e8] sm:$0xff]
        %v591 = vld [vmem:[%s513 + $0x1f0] sm:$0xff]
        %v592 = vld [vmem:[%s513 + $0x1f8] sm:$0xff]
        %v593 = vld [vmem:[%s513 + $0x200] sm:$0xff]
        %v594 = vld [vmem:[%s513 + $0x208] sm:$0xff]
        %v595 = vld [vmem:[%s513 + $0x210] sm:$0xff]
        %v596 = vld [vmem:[%s513 + $0x218] sm:$0xff]
        %v597 = vld [vmem:[%s513 + $0x220] sm:$0xff]
        %v598 = vld [vmem:[%s513 + $0x228] sm:$0xff]
        %v599 = vld [vmem:[%s513 + $0x230] sm:$0xff]
        %v600 = vld [vmem:[%s513 + $0x238] sm:$0xff]
        %v601 = vld [vmem:[%s513 + $0x240] sm:$0xff]
        %v602 = vld [vmem:[%s513 + $0x248] sm:$0xff]
        %v603 = vld [vmem:[%s513 + $0x250] sm:$0xff]
        %v604 = vld [vmem:[%s513 + $0x258] sm:$0xff]
        %v605 = vld [vmem:[%s513 + $0x260] sm:$0xff]
        %v606 = vld [vmem:[%s513 + $0x268] sm:$0xff]
        %v607 = vld [vmem:[%s513 + $0x270] sm:$0xff]
        %v608 = vld [vmem:[%s513 + $0x278] sm:$0xff]
        %v609 = vld [vmem:[%s513 + $0x280] sm:$0xff]
        %v610 = vld [vmem:[%s513 + $0x288] sm:$0xff]
        %v611 = vld [vmem:[%s513 + $0x290] sm:$0xff]
        %v612 = vld [vmem:[%s513 + $0x298] sm:$0xff]
        %v613 = vld [vmem:[%s513 + $0x2a0] sm:$0xff]
        %v614 = vld [vmem:[%s513 + $0x2a8] sm:$0xff]
        %v615 = vld [vmem:[%s513 + $0x2b0] sm:$0xff]
        %v616 = vld [vmem:[%s513 + $0x2b8] sm:$0xff]
        %v617 = vld [vmem:[%s513 + $0x2c0] sm:$0xff]
        %v618 = vld [vmem:[%s513 + $0x2c8] sm:$0xff]
        %v619 = vld [vmem:[%s513 + $0x2d0] sm:$0xff]
        %v620 = vld [vmem:[%s513 + $0x2d8] sm:$0xff]
        %v621 = vld [vmem:[%s513 + $0x2e0] sm:$0xff]
        %v622 = vld [vmem:[%s513 + $0x2e8] sm:$0xff]
        %v623 = vld [vmem:[%s513 + $0x2f0] sm:$0xff]
        %v624 = vld [vmem:[%s513 + $0x2f8] sm:$0xff]
        %v625 = vld [vmem:[%s513 + $0x300] sm:$0xff]
        %v626 = vld [vmem:[%s513 + $0x308] sm:$0xff]
        %v627 = vld [vmem:[%s513 + $0x310] sm:$0xff]
        %v628 = vld [vmem:[%s513 + $0x318] sm:$0xff]
        %v629 = vld [vmem:[%s513 + $0x320] sm:$0xff]
        %v630 = vld [vmem:[%s513 + $0x328] sm:$0xff]
        %v631 = vld [vmem:[%s513 + $0x330] sm:$0xff]
        %v632 = vld [vmem:[%s513 + $0x338] sm:$0xff]
        %v633 = vld [vmem:[%s513 + $0x340] sm:$0xff]
        %v634 = vld [vmem:[%s513 + $0x348] sm:$0xff]
        %v635 = vld [vmem:[%s513 + $0x350] sm:$0xff]
        %v636 = vld [vmem:[%s513 + $0x358] sm:$0xff]
        %v637 = vld [vmem:[%s513 + $0x360] sm:$0xff]
        %v638 = vld [vmem:[%s513 + $0x368] sm:$0xff]
        %v639 = vld [vmem:[%s513 + $0x370] sm:$0xff]
        %v640 = vld [vmem:[%s513 + $0x378] sm:$0xff]
        %v641 = vpack.c.bf16 %v536, %v529
        %v642 = vpack.c.bf16 %v537, %v530
        %v643 = vpack.c.bf16 %v538, %v531
        %v644 = vpack.c.bf16 %v539, %v532
        %v645 = vpack.c.bf16 %v540, %v533
        %v646 = vpack.c.bf16 %v541, %v534
        %v647 = vpack.c.bf16 %v542, %v535
        %v648 = vpack.c.bf16 %v550, %v543
        %v649 = vpack.c.bf16 %v551, %v544
        %v650 = vpack.c.bf16 %v552, %v545
        %v651 = vpack.c.bf16 %v553, %v546
        %v652 = vpack.c.bf16 %v554, %v547
        %v653 = vpack.c.bf16 %v555, %v548
        %v654 = vpack.c.bf16 %v556, %v549
        %v655 = vpack.c.bf16 %v564, %v557
        %v656 = vpack.c.bf16 %v565, %v558
        %v657 = vpack.c.bf16 %v566, %v559
        %v658 = vpack.c.bf16 %v567, %v560
        %v659 = vpack.c.bf16 %v568, %v561
        %v660 = vpack.c.bf16 %v569, %v562
        %v661 = vpack.c.bf16 %v570, %v563
        %v662 = vpack.c.bf16 %v578, %v571
        %v663 = vpack.c.bf16 %v579, %v572
        %v664 = vpack.c.bf16 %v580, %v573
        %v665 = vpack.c.bf16 %v581, %v574
        %v666 = vpack.c.bf16 %v582, %v575
        %v667 = vpack.c.bf16 %v583, %v576
        %v668 = vpack.c.bf16 %v584, %v577
        %v669 = vpack.c.bf16 %v592, %v585
        %v670 = vpack.c.bf16 %v593, %v586
        %v671 = vpack.c.bf16 %v594, %v587
        %v672 = vpack.c.bf16 %v595, %v588
        %v673 = vpack.c.bf16 %v596, %v589
        %v674 = vpack.c.bf16 %v597, %v590
        %v675 = vpack.c.bf16 %v598, %v591
        %v676 = vpack.c.bf16 %v606, %v599
        %v677 = vpack.c.bf16 %v607, %v600
        %v678 = vpack.c.bf16 %v608, %v601
        %v679 = vpack.c.bf16 %v609, %v602
        %v680 = vpack.c.bf16 %v610, %v603
        %v681 = vpack.c.bf16 %v611, %v604
        %v682 = vpack.c.bf16 %v612, %v605
        %v683 = vpack.c.bf16 %v620, %v613
        %v684 = vpack.c.bf16 %v621, %v614
        %v685 = vpack.c.bf16 %v622, %v615
        %v686 = vpack.c.bf16 %v623, %v616
        %v687 = vpack.c.bf16 %v624, %v617
        %v688 = vpack.c.bf16 %v625, %v618
        %v689 = vpack.c.bf16 %v626, %v619
        %v690 = vpack.c.bf16 %v634, %v627
        %v691 = vpack.c.bf16 %v635, %v628
        %v692 = vpack.c.bf16 %v636, %v629
        %v693 = vpack.c.bf16 %v637, %v630
        %v694 = vpack.c.bf16 %v638, %v631
        %v695 = vpack.c.bf16 %v639, %v632
        %v696 = vpack.c.bf16 %v640, %v633
        %v697 = vld [vmem:[%s2] sm:$0xff]
        %v698 = vld [vmem:[%s2 + $0x8] sm:$0xff]
        %v699 = vld [vmem:[%s2 + $0x10] sm:$0xff]
        %v700 = vld [vmem:[%s2 + $0x18] sm:$0xff]
        %v701 = vld [vmem:[%s2 + $0x20] sm:$0xff]
        %v702 = vld [vmem:[%s2 + $0x28] sm:$0xff]
        %v703 = vld [vmem:[%s2 + $0x30] sm:$0xff]
        %v704 = vld [vmem:[%s2 + $0x38] sm:$0xff]
        %v705 = vld [vmem:[%s2 + $0x40] sm:$0xff]
        %v706 = vld [vmem:[%s2 + $0x48] sm:$0xff]
        %v707 = vld [vmem:[%s2 + $0x50] sm:$0xff]
        %v708 = vld [vmem:[%s2 + $0x58] sm:$0xff]
        %v709 = vld [vmem:[%s2 + $0x60] sm:$0xff]
        %v710 = vld [vmem:[%s2 + $0x68] sm:$0xff]
        %v711 = vld [vmem:[%s2 + $0x70] sm:$0xff]
        %v712 = vld [vmem:[%s2 + $0x78] sm:$0xff]
        %v713 = vld [vmem:[%s2 + $0x80] sm:$0xff]
        %v714 = vld [vmem:[%s2 + $0x88] sm:$0xff]
        %v715 = vld [vmem:[%s2 + $0x90] sm:$0xff]
        %v716 = vld [vmem:[%s2 + $0x98] sm:$0xff]
        %v717 = vld [vmem:[%s2 + $0xa0] sm:$0xff]
        %v718 = vld [vmem:[%s2 + $0xa8] sm:$0xff]
        %v719 = vld [vmem:[%s2 + $0xb0] sm:$0xff]
        %v720 = vld [vmem:[%s2 + $0xb8] sm:$0xff]
        %v721 = vld [vmem:[%s2 + $0xc0] sm:$0xff]
        %v722 = vld [vmem:[%s2 + $0xc8] sm:$0xff]
        %v723 = vld [vmem:[%s2 + $0xd0] sm:$0xff]
        %v724 = vld [vmem:[%s2 + $0xd8] sm:$0xff]
        %v725 = vld [vmem:[%s2 + $0xe0] sm:$0xff]
        %v726 = vld [vmem:[%s2 + $0xe8] sm:$0xff]
        %v727 = vld [vmem:[%s2 + $0xf0] sm:$0xff]
        %v728 = vld [vmem:[%s2 + $0xf8] sm:$0xff]
        %v729 = vld [vmem:[%s2 + $0x100] sm:$0xff]
        %v730 = vld [vmem:[%s2 + $0x108] sm:$0xff]
        %v731 = vld [vmem:[%s2 + $0x110] sm:$0xff]
        %v732 = vld [vmem:[%s2 + $0x118] sm:$0xff]
        %v733 = vld [vmem:[%s2 + $0x120] sm:$0xff]
        %v734 = vld [vmem:[%s2 + $0x128] sm:$0xff]
        %v735 = vld [vmem:[%s2 + $0x130] sm:$0xff]
        %v736 = vld [vmem:[%s2 + $0x138] sm:$0xff]
        %v737 = vld [vmem:[%s2 + $0x140] sm:$0xff]
        %v738 = vld [vmem:[%s2 + $0x148] sm:$0xff]
        %v739 = vld [vmem:[%s2 + $0x150] sm:$0xff]
        %v740 = vld [vmem:[%s2 + $0x158] sm:$0xff]
        %v741 = vld [vmem:[%s2 + $0x160] sm:$0xff]
        %v742 = vld [vmem:[%s2 + $0x168] sm:$0xff]
        %v743 = vld [vmem:[%s2 + $0x170] sm:$0xff]
        %v744 = vld [vmem:[%s2 + $0x178] sm:$0xff]
        %v745 = vld [vmem:[%s2 + $0x180] sm:$0xff]
        %v746 = vld [vmem:[%s2 + $0x188] sm:$0xff]
        %v747 = vld [vmem:[%s2 + $0x190] sm:$0xff]
        %v748 = vld [vmem:[%s2 + $0x198] sm:$0xff]
        %v749 = vld [vmem:[%s2 + $0x1a0] sm:$0xff]
        %v750 = vld [vmem:[%s2 + $0x1a8] sm:$0xff]
        %v751 = vld [vmem:[%s2 + $0x1b0] sm:$0xff]
        %v752 = vld [vmem:[%s2 + $0x1b8] sm:$0xff]
        %v753 = vld [vmem:[%s2 + $0x1c0] sm:$0xff]
        %v754 = vld [vmem:[%s2 + $0x1c8] sm:$0xff]
        %v755 = vld [vmem:[%s2 + $0x1d0] sm:$0xff]
        %v756 = vld [vmem:[%s2 + $0x1d8] sm:$0xff]
        %v757 = vld [vmem:[%s2 + $0x1e0] sm:$0xff]
        %v758 = vld [vmem:[%s2 + $0x1e8] sm:$0xff]
        %v759 = vld [vmem:[%s2 + $0x1f0] sm:$0xff]
        %v760 = vld [vmem:[%s2 + $0x1f8] sm:$0xff]
        %v761 = vld [vmem:[%s2 + $0x200] sm:$0xff]
        %v762 = vld [vmem:[%s2 + $0x208] sm:$0xff]
        %v763 = vld [vmem:[%s2 + $0x210] sm:$0xff]
        %v764 = vld [vmem:[%s2 + $0x218] sm:$0xff]
        %v765 = vld [vmem:[%s2 + $0x220] sm:$0xff]
        %v766 = vld [vmem:[%s2 + $0x228] sm:$0xff]
        %v767 = vld [vmem:[%s2 + $0x230] sm:$0xff]
        %v768 = vld [vmem:[%s2 + $0x238] sm:$0xff]
        %v769 = vld [vmem:[%s2 + $0x240] sm:$0xff]
        %v770 = vld [vmem:[%s2 + $0x248] sm:$0xff]
        %v771 = vld [vmem:[%s2 + $0x250] sm:$0xff]
        %v772 = vld [vmem:[%s2 + $0x258] sm:$0xff]
        %v773 = vld [vmem:[%s2 + $0x260] sm:$0xff]
        %v774 = vld [vmem:[%s2 + $0x268] sm:$0xff]
        %v775 = vld [vmem:[%s2 + $0x270] sm:$0xff]
        %v776 = vld [vmem:[%s2 + $0x278] sm:$0xff]
        %v777 = vld [vmem:[%s2 + $0x280] sm:$0xff]
        %v778 = vld [vmem:[%s2 + $0x288] sm:$0xff]
        %v779 = vld [vmem:[%s2 + $0x290] sm:$0xff]
        %v780 = vld [vmem:[%s2 + $0x298] sm:$0xff]
        %v781 = vld [vmem:[%s2 + $0x2a0] sm:$0xff]
        %v782 = vld [vmem:[%s2 + $0x2a8] sm:$0xff]
        %v783 = vld [vmem:[%s2 + $0x2b0] sm:$0xff]
        %v784 = vld [vmem:[%s2 + $0x2b8] sm:$0xff]
        %v785 = vld [vmem:[%s2 + $0x2c0] sm:$0xff]
        %v786 = vld [vmem:[%s2 + $0x2c8] sm:$0xff]
        %v787 = vld [vmem:[%s2 + $0x2d0] sm:$0xff]
        %v788 = vld [vmem:[%s2 + $0x2d8] sm:$0xff]
        %v789 = vld [vmem:[%s2 + $0x2e0] sm:$0xff]
        %v790 = vld [vmem:[%s2 + $0x2e8] sm:$0xff]
        %v791 = vld [vmem:[%s2 + $0x2f0] sm:$0xff]
        %v792 = vld [vmem:[%s2 + $0x2f8] sm:$0xff]
        %v793 = vld [vmem:[%s2 + $0x300] sm:$0xff]
        %v794 = vld [vmem:[%s2 + $0x308] sm:$0xff]
        %v795 = vld [vmem:[%s2 + $0x310] sm:$0xff]
        %v796 = vld [vmem:[%s2 + $0x318] sm:$0xff]
        %v797 = vld [vmem:[%s2 + $0x320] sm:$0xff]
        %v798 = vld [vmem:[%s2 + $0x328] sm:$0xff]
        %v799 = vld [vmem:[%s2 + $0x330] sm:$0xff]
        %v800 = vld [vmem:[%s2 + $0x338] sm:$0xff]
        %v801 = vld [vmem:[%s2 + $0x340] sm:$0xff]
        %v802 = vld [vmem:[%s2 + $0x348] sm:$0xff]
        %v803 = vld [vmem:[%s2 + $0x350] sm:$0xff]
        %v804 = vld [vmem:[%s2 + $0x358] sm:$0xff]
        %v805 = vld [vmem:[%s2 + $0x360] sm:$0xff]
        %v806 = vld [vmem:[%s2 + $0x368] sm:$0xff]
        %v807 = vld [vmem:[%s2 + $0x370] sm:$0xff]
        %v808 = vld [vmem:[%s2 + $0x378] sm:$0xff]
        %v809 = vld [vmem:[%s2 + $0x380] sm:$0xff]
        %v810 = vld [vmem:[%s2 + $0x388] sm:$0xff]
        %v811 = vld [vmem:[%s2 + $0x390] sm:$0xff]
        %v812 = vld [vmem:[%s2 + $0x398] sm:$0xff]
        %v813 = vld [vmem:[%s2 + $0x3a0] sm:$0xff]
        %v814 = vld [vmem:[%s2 + $0x3a8] sm:$0xff]
        %v815 = vld [vmem:[%s2 + $0x3b0] sm:$0xff]
        %v816 = vld [vmem:[%s2 + $0x3b8] sm:$0xff]
        %v817 = vld [vmem:[%s2 + $0x3c0] sm:$0xff]
        %v818 = vld [vmem:[%s2 + $0x3c8] sm:$0xff]
        %v819 = vld [vmem:[%s2 + $0x3d0] sm:$0xff]
        %v820 = vld [vmem:[%s2 + $0x3d8] sm:$0xff]
        %v821 = vld [vmem:[%s2 + $0x3e0] sm:$0xff]
        %v822 = vld [vmem:[%s2 + $0x3e8] sm:$0xff]
        %v823 = vld [vmem:[%s2 + $0x3f0] sm:$0xff]
        %v824 = vld [vmem:[%s2 + $0x3f8] sm:$0xff]
        %v825 = vld [vmem:[%s2 + $0x400] sm:$0xff]
        %v826 = vld [vmem:[%s2 + $0x408] sm:$0xff]
        %v827 = vld [vmem:[%s2 + $0x410] sm:$0xff]
        %v828 = vld [vmem:[%s2 + $0x418] sm:$0xff]
        %v829 = vld [vmem:[%s2 + $0x420] sm:$0xff]
        %v830 = vld [vmem:[%s2 + $0x428] sm:$0xff]
        %v831 = vld [vmem:[%s2 + $0x430] sm:$0xff]
        %v832 = vld [vmem:[%s2 + $0x438] sm:$0xff]
        %v833 = vld [vmem:[%s2 + $0x440] sm:$0xff]
        %v834 = vld [vmem:[%s2 + $0x448] sm:$0xff]
        %v835 = vld [vmem:[%s2 + $0x450] sm:$0xff]
        %v836 = vld [vmem:[%s2 + $0x458] sm:$0xff]
        %v837 = vld [vmem:[%s2 + $0x460] sm:$0xff]
        %v838 = vld [vmem:[%s2 + $0x468] sm:$0xff]
        %v839 = vld [vmem:[%s2 + $0x470] sm:$0xff]
        %v840 = vld [vmem:[%s2 + $0x478] sm:$0xff]
        %v841 = vld [vmem:[%s2 + $0x480] sm:$0xff]
        %v842 = vld [vmem:[%s2 + $0x488] sm:$0xff]
        %v843 = vld [vmem:[%s2 + $0x490] sm:$0xff]
        %v844 = vld [vmem:[%s2 + $0x498] sm:$0xff]
        %v845 = vld [vmem:[%s2 + $0x4a0] sm:$0xff]
        %v846 = vld [vmem:[%s2 + $0x4a8] sm:$0xff]
        %v847 = vld [vmem:[%s2 + $0x4b0] sm:$0xff]
        %v848 = vld [vmem:[%s2 + $0x4b8] sm:$0xff]
        %v849 = vld [vmem:[%s2 + $0x4c0] sm:$0xff]
        %v850 = vld [vmem:[%s2 + $0x4c8] sm:$0xff]
        %v851 = vld [vmem:[%s2 + $0x4d0] sm:$0xff]
        %v852 = vld [vmem:[%s2 + $0x4d8] sm:$0xff]
        %v853 = vld [vmem:[%s2 + $0x4e0] sm:$0xff]
        %v854 = vld [vmem:[%s2 + $0x4e8] sm:$0xff]
        %v855 = vld [vmem:[%s2 + $0x4f0] sm:$0xff]
        %v856 = vld [vmem:[%s2 + $0x4f8] sm:$0xff]
        %v857 = vld [vmem:[%s2 + $0x500] sm:$0xff]
        %v858 = vld [vmem:[%s2 + $0x508] sm:$0xff]
        %v859 = vld [vmem:[%s2 + $0x510] sm:$0xff]
        %v860 = vld [vmem:[%s2 + $0x518] sm:$0xff]
        %v861 = vld [vmem:[%s2 + $0x520] sm:$0xff]
        %v862 = vld [vmem:[%s2 + $0x528] sm:$0xff]
        %v863 = vld [vmem:[%s2 + $0x530] sm:$0xff]
        %v864 = vld [vmem:[%s2 + $0x538] sm:$0xff]
        %v865 = vld [vmem:[%s2 + $0x540] sm:$0xff]
        %v866 = vld [vmem:[%s2 + $0x548] sm:$0xff]
        %v867 = vld [vmem:[%s2 + $0x550] sm:$0xff]
        %v868 = vld [vmem:[%s2 + $0x558] sm:$0xff]
        %v869 = vld [vmem:[%s2 + $0x560] sm:$0xff]
        %v870 = vld [vmem:[%s2 + $0x568] sm:$0xff]
        %v871 = vld [vmem:[%s2 + $0x570] sm:$0xff]
        %v872 = vld [vmem:[%s2 + $0x578] sm:$0xff]
        %v873 = vld [vmem:[%s2 + $0x580] sm:$0xff]
        %v874 = vld [vmem:[%s2 + $0x588] sm:$0xff]
        %v875 = vld [vmem:[%s2 + $0x590] sm:$0xff]
        %v876 = vld [vmem:[%s2 + $0x598] sm:$0xff]
        %v877 = vld [vmem:[%s2 + $0x5a0] sm:$0xff]
        %v878 = vld [vmem:[%s2 + $0x5a8] sm:$0xff]
        %v879 = vld [vmem:[%s2 + $0x5b0] sm:$0xff]
        %v880 = vld [vmem:[%s2 + $0x5b8] sm:$0xff]
        %v881 = vld [vmem:[%s2 + $0x5c0] sm:$0xff]
        %v882 = vld [vmem:[%s2 + $0x5c8] sm:$0xff]
        %v883 = vld [vmem:[%s2 + $0x5d0] sm:$0xff]
        %v884 = vld [vmem:[%s2 + $0x5d8] sm:$0xff]
        %v885 = vld [vmem:[%s2 + $0x5e0] sm:$0xff]
        %v886 = vld [vmem:[%s2 + $0x5e8] sm:$0xff]
        %v887 = vld [vmem:[%s2 + $0x5f0] sm:$0xff]
        %v888 = vld [vmem:[%s2 + $0x5f8] sm:$0xff]
        %v889 = vld [vmem:[%s2 + $0x600] sm:$0xff]
        %v890 = vld [vmem:[%s2 + $0x608] sm:$0xff]
        %v891 = vld [vmem:[%s2 + $0x610] sm:$0xff]
        %v892 = vld [vmem:[%s2 + $0x618] sm:$0xff]
        %v893 = vld [vmem:[%s3] sm:$0xf]
        %v895 = vlaneseq
        %v896 = vshrl.u32 %v895, 7
        %v897 = vsub.s32 0, %v896
        %v898 = vrot.slane %v893, %v897
        %v899 = vlaneseq
        %v900 = vshrl.u32 %v899, 7
        %v901 = vsub.s32 1, %v900
        %v902 = vrot.slane %v893, %v901
        %v903 = vlaneseq
        %v904 = vshrl.u32 %v903, 7
        %v905 = vsub.s32 2, %v904
        %v906 = vrot.slane %v893, %v905
        %v907 = vlaneseq
        %v908 = vshrl.u32 %v907, 7
        %v909 = vsub.s32 3, %v908
        %v910 = vrot.slane %v893, %v909
        %v1111 = vunpack.c.l.b16 %v697
        %v1112 = vunpack.c.h.b16 %v697
        %v1113 = vunpack.c.l.b16 %v698
        %v1114 = vunpack.c.h.b16 %v698
        %v1115 = vunpack.c.l.b16 %v699
        %v1116 = vunpack.c.h.b16 %v699
        %v1117 = vunpack.c.l.b16 %v700
        %v1118 = vunpack.c.h.b16 %v700
        %v1119 = vunpack.c.l.b16 %v701
        %v1120 = vunpack.c.h.b16 %v701
        %v1121 = vunpack.c.l.b16 %v702
        %v1122 = vunpack.c.h.b16 %v702
        %v1123 = vunpack.c.l.b16 %v703
        %v1124 = vunpack.c.h.b16 %v703
        %v1125 = vunpack.c.l.b16 %v704
        %v1126 = vunpack.c.h.b16 %v704
        %v1127 = vunpack.c.l.b16 %v705
        %v1128 = vunpack.c.h.b16 %v705
        %v1129 = vunpack.c.l.b16 %v706
        %v1130 = vunpack.c.h.b16 %v706
        %v1131 = vunpack.c.l.b16 %v707
        %v1132 = vunpack.c.h.b16 %v707
        %v1133 = vunpack.c.l.b16 %v708
        %v1134 = vunpack.c.h.b16 %v708
        %v1135 = vunpack.c.l.b16 %v709
        %v1136 = vunpack.c.h.b16 %v709
        %v1137 = vunpack.c.l.b16 %v710
        %v1138 = vunpack.c.h.b16 %v710
        %v1139 = vunpack.c.l.b16 %v711
        %v1140 = vunpack.c.h.b16 %v711
        %v1141 = vunpack.c.l.b16 %v712
        %v1142 = vunpack.c.h.b16 %v712
        %v1143 = vunpack.c.l.b16 %v713
        %v1144 = vunpack.c.h.b16 %v713
        %v1145 = vunpack.c.l.b16 %v714
        %v1146 = vunpack.c.h.b16 %v714
        %v1147 = vunpack.c.l.b16 %v715
        %v1148 = vunpack.c.h.b16 %v715
        %v1149 = vunpack.c.l.b16 %v716
        %v1150 = vunpack.c.h.b16 %v716
        %v1151 = vunpack.c.l.b16 %v717
        %v1152 = vunpack.c.h.b16 %v717
        %v1153 = vunpack.c.l.b16 %v718
        %v1154 = vunpack.c.h.b16 %v718
        %v1155 = vunpack.c.l.b16 %v719
        %v1156 = vunpack.c.h.b16 %v719
        %v1157 = vunpack.c.l.b16 %v720
        %v1158 = vunpack.c.h.b16 %v720
        %v1159 = vunpack.c.l.b16 %v721
        %v1160 = vunpack.c.h.b16 %v721
        %v1161 = vunpack.c.l.b16 %v722
        %v1162 = vunpack.c.h.b16 %v722
        %v1163 = vunpack.c.l.b16 %v723
        %v1164 = vunpack.c.h.b16 %v723
        %v1165 = vunpack.c.l.b16 %v724
        %v1166 = vunpack.c.h.b16 %v724
        %v1167 = vunpack.c.l.b16 %v725
        %v1168 = vunpack.c.h.b16 %v725
        %v1169 = vunpack.c.l.b16 %v726
        %v1170 = vunpack.c.h.b16 %v726
        %v1171 = vunpack.c.l.b16 %v727
        %v1172 = vunpack.c.h.b16 %v727
        %v1173 = vunpack.c.l.b16 %v728
        %v1174 = vunpack.c.h.b16 %v728
        %v1175 = vunpack.c.l.b16 %v729
        %v1176 = vunpack.c.h.b16 %v729
        %v1177 = vunpack.c.l.b16 %v730
        %v1178 = vunpack.c.h.b16 %v730
        %v1179 = vunpack.c.l.b16 %v731
        %v1180 = vunpack.c.h.b16 %v731
        %v1181 = vunpack.c.l.b16 %v732
        %v1182 = vunpack.c.h.b16 %v732
        %v1183 = vunpack.c.l.b16 %v733
        %v1184 = vunpack.c.h.b16 %v733
        %v1185 = vunpack.c.l.b16 %v734
        %v1186 = vunpack.c.h.b16 %v734
        %v1187 = vunpack.c.l.b16 %v735
        %v1188 = vunpack.c.h.b16 %v735
        %v1189 = vunpack.c.l.b16 %v736
        %v1190 = vunpack.c.h.b16 %v736
        %v1191 = vunpack.c.l.b16 %v737
        %v1192 = vunpack.c.h.b16 %v737
        %v1193 = vunpack.c.l.b16 %v738
        %v1194 = vunpack.c.h.b16 %v738
        %v1195 = vunpack.c.l.b16 %v739
        %v1196 = vunpack.c.h.b16 %v739
        %v1197 = vunpack.c.l.b16 %v740
        %v1198 = vunpack.c.h.b16 %v740
        %v1199 = vunpack.c.l.b16 %v741
        %v1200 = vunpack.c.h.b16 %v741
        %v1201 = vunpack.c.l.b16 %v742
        %v1202 = vunpack.c.h.b16 %v742
        %v1203 = vunpack.c.l.b16 %v743
        %v1204 = vunpack.c.h.b16 %v743
        %v1205 = vunpack.c.l.b16 %v744
        %v1206 = vunpack.c.h.b16 %v744
        %v1207 = vunpack.c.l.b16 %v745
        %v1208 = vunpack.c.h.b16 %v745
        %v1209 = vunpack.c.l.b16 %v746
        %v1210 = vunpack.c.h.b16 %v746
        %v1211 = vunpack.c.l.b16 %v747
        %v1212 = vunpack.c.h.b16 %v747
        %v1213 = vunpack.c.l.b16 %v748
        %v1214 = vunpack.c.h.b16 %v748
        %v1215 = vunpack.c.l.b16 %v749
        %v1216 = vunpack.c.h.b16 %v749
        %v1217 = vunpack.c.l.b16 %v750
        %v1218 = vunpack.c.h.b16 %v750
        %v1219 = vunpack.c.l.b16 %v751
        %v1220 = vunpack.c.h.b16 %v751
        %v1221 = vunpack.c.l.b16 %v752
        %v1222 = vunpack.c.h.b16 %v752
        %v1223 = vunpack.c.l.b16 %v753
        %v1224 = vunpack.c.h.b16 %v753
        %v1225 = vunpack.c.l.b16 %v754
        %v1226 = vunpack.c.h.b16 %v754
        %v1227 = vunpack.c.l.b16 %v755
        %v1228 = vunpack.c.h.b16 %v755
        %v1229 = vunpack.c.l.b16 %v756
        %v1230 = vunpack.c.h.b16 %v756
        %v1231 = vunpack.c.l.b16 %v757
        %v1232 = vunpack.c.h.b16 %v757
        %v1233 = vunpack.c.l.b16 %v758
        %v1234 = vunpack.c.h.b16 %v758
        %v1235 = vunpack.c.l.b16 %v759
        %v1236 = vunpack.c.h.b16 %v759
        %v1237 = vunpack.c.l.b16 %v760
        %v1238 = vunpack.c.h.b16 %v760
        %v1239 = vunpack.c.l.b16 %v761
        %v1240 = vunpack.c.h.b16 %v761
        %v1241 = vunpack.c.l.b16 %v762
        %v1242 = vunpack.c.h.b16 %v762
        %v1243 = vunpack.c.l.b16 %v763
        %v1244 = vunpack.c.h.b16 %v763
        %v1245 = vunpack.c.l.b16 %v764
        %v1246 = vunpack.c.h.b16 %v764
        %v1247 = vunpack.c.l.b16 %v765
        %v1248 = vunpack.c.h.b16 %v765
        %v1249 = vunpack.c.l.b16 %v766
        %v1250 = vunpack.c.h.b16 %v766
        %v1251 = vunpack.c.l.b16 %v767
        %v1252 = vunpack.c.h.b16 %v767
        %v1253 = vunpack.c.l.b16 %v768
        %v1254 = vunpack.c.h.b16 %v768
        %v1255 = vunpack.c.l.b16 %v769
        %v1256 = vunpack.c.h.b16 %v769
        %v1257 = vunpack.c.l.b16 %v770
        %v1258 = vunpack.c.h.b16 %v770
        %v1259 = vunpack.c.l.b16 %v771
        %v1260 = vunpack.c.h.b16 %v771
        %v1261 = vunpack.c.l.b16 %v772
        %v1262 = vunpack.c.h.b16 %v772
        %v1263 = vunpack.c.l.b16 %v773
        %v1264 = vunpack.c.h.b16 %v773
        %v1265 = vunpack.c.l.b16 %v774
        %v1266 = vunpack.c.h.b16 %v774
        %v1267 = vunpack.c.l.b16 %v775
        %v1268 = vunpack.c.h.b16 %v775
        %v1269 = vunpack.c.l.b16 %v776
        %v1270 = vunpack.c.h.b16 %v776
        %v1271 = vunpack.c.l.b16 %v777
        %v1272 = vunpack.c.h.b16 %v777
        %v1273 = vunpack.c.l.b16 %v778
        %v1274 = vunpack.c.h.b16 %v778
        %v1275 = vunpack.c.l.b16 %v779
        %v1276 = vunpack.c.h.b16 %v779
        %v1277 = vunpack.c.l.b16 %v780
        %v1278 = vunpack.c.h.b16 %v780
        %v1279 = vunpack.c.l.b16 %v781
        %v1280 = vunpack.c.h.b16 %v781
        %v1281 = vunpack.c.l.b16 %v782
        %v1282 = vunpack.c.h.b16 %v782
        %v1283 = vunpack.c.l.b16 %v783
        %v1284 = vunpack.c.h.b16 %v783
        %v1285 = vunpack.c.l.b16 %v784
        %v1286 = vunpack.c.h.b16 %v784
        %v1287 = vunpack.c.l.b16 %v785
        %v1288 = vunpack.c.h.b16 %v785
        %v1289 = vunpack.c.l.b16 %v786
        %v1290 = vunpack.c.h.b16 %v786
        %v1291 = vunpack.c.l.b16 %v787
        %v1292 = vunpack.c.h.b16 %v787
        %v1293 = vunpack.c.l.b16 %v788
        %v1294 = vunpack.c.h.b16 %v788
        %v1295 = vunpack.c.l.b16 %v789
        %v1296 = vunpack.c.h.b16 %v789
        %v1297 = vunpack.c.l.b16 %v790
        %v1298 = vunpack.c.h.b16 %v790
        %v1299 = vunpack.c.l.b16 %v791
        %v1300 = vunpack.c.h.b16 %v791
        %v1301 = vunpack.c.l.b16 %v792
        %v1302 = vunpack.c.h.b16 %v792
        %v1303 = vunpack.c.l.b16 %v793
        %v1304 = vunpack.c.h.b16 %v793
        %v1305 = vunpack.c.l.b16 %v794
        %v1306 = vunpack.c.h.b16 %v794
        %v1307 = vunpack.c.l.b16 %v795
        %v1308 = vunpack.c.h.b16 %v795
        %v1309 = vunpack.c.l.b16 %v796
        %v1310 = vunpack.c.h.b16 %v796
        %v1311 = vunpack.c.l.b16 %v797
        %v1312 = vunpack.c.h.b16 %v797
        %v1313 = vunpack.c.l.b16 %v798
        %v1314 = vunpack.c.h.b16 %v798
        %v1315 = vunpack.c.l.b16 %v799
        %v1316 = vunpack.c.h.b16 %v799
        %v1317 = vunpack.c.l.b16 %v800
        %v1318 = vunpack.c.h.b16 %v800
        %v1319 = vunpack.c.l.b16 %v801
        %v1320 = vunpack.c.h.b16 %v801
        %v1321 = vunpack.c.l.b16 %v802
        %v1322 = vunpack.c.h.b16 %v802
        %v1323 = vunpack.c.l.b16 %v803
        %v1324 = vunpack.c.h.b16 %v803
        %v1325 = vunpack.c.l.b16 %v804
        %v1326 = vunpack.c.h.b16 %v804
        %v1327 = vunpack.c.l.b16 %v805
        %v1328 = vunpack.c.h.b16 %v805
        %v1329 = vunpack.c.l.b16 %v806
        %v1330 = vunpack.c.h.b16 %v806
        %v1331 = vunpack.c.l.b16 %v807
        %v1332 = vunpack.c.h.b16 %v807
        %v1333 = vunpack.c.l.b16 %v808
        %v1334 = vunpack.c.h.b16 %v808
        %v1335 = vunpack.c.l.b16 %v809
        %v1336 = vunpack.c.h.b16 %v809
        %v1337 = vunpack.c.l.b16 %v810
        %v1338 = vunpack.c.h.b16 %v810
        %v1339 = vunpack.c.l.b16 %v811
        %v1340 = vunpack.c.h.b16 %v811
        %v1341 = vunpack.c.l.b16 %v812
        %v1342 = vunpack.c.h.b16 %v812
        %v1343 = vunpack.c.l.b16 %v813
        %v1344 = vunpack.c.h.b16 %v813
        %v1345 = vunpack.c.l.b16 %v814
        %v1346 = vunpack.c.h.b16 %v814
        %v1347 = vunpack.c.l.b16 %v815
        %v1348 = vunpack.c.h.b16 %v815
        %v1349 = vunpack.c.l.b16 %v816
        %v1350 = vunpack.c.h.b16 %v816
        %v1351 = vunpack.c.l.b16 %v817
        %v1352 = vunpack.c.h.b16 %v817
        %v1353 = vunpack.c.l.b16 %v818
        %v1354 = vunpack.c.h.b16 %v818
        %v1355 = vunpack.c.l.b16 %v819
        %v1356 = vunpack.c.h.b16 %v819
        %v1357 = vunpack.c.l.b16 %v820
        %v1358 = vunpack.c.h.b16 %v820
        %v1359 = vunpack.c.l.b16 %v821
        %v1360 = vunpack.c.h.b16 %v821
        %v1361 = vunpack.c.l.b16 %v822
        %v1362 = vunpack.c.h.b16 %v822
        %v1363 = vunpack.c.l.b16 %v823
        %v1364 = vunpack.c.h.b16 %v823
        %v1365 = vunpack.c.l.b16 %v824
        %v1366 = vunpack.c.h.b16 %v824
        %v1367 = vunpack.c.l.b16 %v825
        %v1368 = vunpack.c.h.b16 %v825
        %v1369 = vunpack.c.l.b16 %v826
        %v1370 = vunpack.c.h.b16 %v826
        %v1371 = vunpack.c.l.b16 %v827
        %v1372 = vunpack.c.h.b16 %v827
        %v1373 = vunpack.c.l.b16 %v828
        %v1374 = vunpack.c.h.b16 %v828
        %v1375 = vunpack.c.l.b16 %v829
        %v1376 = vunpack.c.h.b16 %v829
        %v1377 = vunpack.c.l.b16 %v830
        %v1378 = vunpack.c.h.b16 %v830
        %v1379 = vunpack.c.l.b16 %v831
        %v1380 = vunpack.c.h.b16 %v831
        %v1381 = vunpack.c.l.b16 %v832
        %v1382 = vunpack.c.h.b16 %v832
        %v1383 = vunpack.c.l.b16 %v833
        %v1384 = vunpack.c.h.b16 %v833
        %v1385 = vunpack.c.l.b16 %v834
        %v1386 = vunpack.c.h.b16 %v834
        %v1387 = vunpack.c.l.b16 %v835
        %v1388 = vunpack.c.h.b16 %v835
        %v1389 = vunpack.c.l.b16 %v836
        %v1390 = vunpack.c.h.b16 %v836
        %v1391 = vunpack.c.l.b16 %v837
        %v1392 = vunpack.c.h.b16 %v837
        %v1393 = vunpack.c.l.b16 %v838
        %v1394 = vunpack.c.h.b16 %v838
        %v1395 = vunpack.c.l.b16 %v839
        %v1396 = vunpack.c.h.b16 %v839
        %v1397 = vunpack.c.l.b16 %v840
        %v1398 = vunpack.c.h.b16 %v840
        %v1399 = vunpack.c.l.b16 %v841
        %v1400 = vunpack.c.h.b16 %v841
        %v1401 = vunpack.c.l.b16 %v842
        %v1402 = vunpack.c.h.b16 %v842
        %v1403 = vunpack.c.l.b16 %v843
        %v1404 = vunpack.c.h.b16 %v843
        %v1405 = vunpack.c.l.b16 %v844
        %v1406 = vunpack.c.h.b16 %v844
        %v1407 = vunpack.c.l.b16 %v845
        %v1408 = vunpack.c.h.b16 %v845
        %v1409 = vunpack.c.l.b16 %v846
        %v1410 = vunpack.c.h.b16 %v846
        %v1411 = vunpack.c.l.b16 %v847
        %v1412 = vunpack.c.h.b16 %v847
        %v1413 = vunpack.c.l.b16 %v848
        %v1414 = vunpack.c.h.b16 %v848
        %v1415 = vunpack.c.l.b16 %v849
        %v1416 = vunpack.c.h.b16 %v849
        %v1417 = vunpack.c.l.b16 %v850
        %v1418 = vunpack.c.h.b16 %v850
        %v1419 = vunpack.c.l.b16 %v851
        %v1420 = vunpack.c.h.b16 %v851
        %v1421 = vunpack.c.l.b16 %v852
        %v1422 = vunpack.c.h.b16 %v852
        %v1423 = vunpack.c.l.b16 %v853
        %v1424 = vunpack.c.h.b16 %v853
        %v1425 = vunpack.c.l.b16 %v854
        %v1426 = vunpack.c.h.b16 %v854
        %v1427 = vunpack.c.l.b16 %v855
        %v1428 = vunpack.c.h.b16 %v855
        %v1429 = vunpack.c.l.b16 %v856
        %v1430 = vunpack.c.h.b16 %v856
        %v1431 = vunpack.c.l.b16 %v857
        %v1432 = vunpack.c.h.b16 %v857
        %v1433 = vunpack.c.l.b16 %v858
        %v1434 = vunpack.c.h.b16 %v858
        %v1435 = vunpack.c.l.b16 %v859
        %v1436 = vunpack.c.h.b16 %v859
        %v1437 = vunpack.c.l.b16 %v860
        %v1438 = vunpack.c.h.b16 %v860
        %v1439 = vunpack.c.l.b16 %v861
        %v1440 = vunpack.c.h.b16 %v861
        %v1441 = vunpack.c.l.b16 %v862
        %v1442 = vunpack.c.h.b16 %v862
        %v1443 = vunpack.c.l.b16 %v863
        %v1444 = vunpack.c.h.b16 %v863
        %v1445 = vunpack.c.l.b16 %v864
        %v1446 = vunpack.c.h.b16 %v864
        %v1447 = vunpack.c.l.b16 %v865
        %v1448 = vunpack.c.h.b16 %v865
        %v1449 = vunpack.c.l.b16 %v866
        %v1450 = vunpack.c.h.b16 %v866
        %v1451 = vunpack.c.l.b16 %v867
        %v1452 = vunpack.c.h.b16 %v867
        %v1453 = vunpack.c.l.b16 %v868
        %v1454 = vunpack.c.h.b16 %v868
        %v1455 = vunpack.c.l.b16 %v869
        %v1456 = vunpack.c.h.b16 %v869
        %v1457 = vunpack.c.l.b16 %v870
        %v1458 = vunpack.c.h.b16 %v870
        %v1459 = vunpack.c.l.b16 %v871
        %v1460 = vunpack.c.h.b16 %v871
        %v1461 = vunpack.c.l.b16 %v872
        %v1462 = vunpack.c.h.b16 %v872
        %v1463 = vunpack.c.l.b16 %v873
        %v1464 = vunpack.c.h.b16 %v873
        %v1465 = vunpack.c.l.b16 %v874
        %v1466 = vunpack.c.h.b16 %v874
        %v1467 = vunpack.c.l.b16 %v875
        %v1468 = vunpack.c.h.b16 %v875
        %v1469 = vunpack.c.l.b16 %v876
        %v1470 = vunpack.c.h.b16 %v876
        %v1471 = vunpack.c.l.b16 %v877
        %v1472 = vunpack.c.h.b16 %v877
        %v1473 = vunpack.c.l.b16 %v878
        %v1474 = vunpack.c.h.b16 %v878
        %v1475 = vunpack.c.l.b16 %v879
        %v1476 = vunpack.c.h.b16 %v879
        %v1477 = vunpack.c.l.b16 %v880
        %v1478 = vunpack.c.h.b16 %v880
        %v1479 = vunpack.c.l.b16 %v881
        %v1480 = vunpack.c.h.b16 %v881
        %v1481 = vunpack.c.l.b16 %v882
        %v1482 = vunpack.c.h.b16 %v882
        %v1483 = vunpack.c.l.b16 %v883
        %v1484 = vunpack.c.h.b16 %v883
        %v1485 = vunpack.c.l.b16 %v884
        %v1486 = vunpack.c.h.b16 %v884
        %v1487 = vunpack.c.l.b16 %v885
        %v1488 = vunpack.c.h.b16 %v885
        %v1489 = vunpack.c.l.b16 %v886
        %v1490 = vunpack.c.h.b16 %v886
        %v1491 = vunpack.c.l.b16 %v887
        %v1492 = vunpack.c.h.b16 %v887
        %v1493 = vunpack.c.l.b16 %v888
        %v1494 = vunpack.c.h.b16 %v888
        %v1495 = vunpack.c.l.b16 %v889
        %v1496 = vunpack.c.h.b16 %v889
        %v1497 = vunpack.c.l.b16 %v890
        %v1498 = vunpack.c.h.b16 %v890
        %v1499 = vunpack.c.l.b16 %v891
        %v1500 = vunpack.c.h.b16 %v891
        %v1501 = vunpack.c.l.b16 %v892
        %v1502 = vunpack.c.h.b16 %v892
        %v1503 = vpack.c.b16 %v1115, %v1111
        %v1504 = vpack.c.b16 %v1116, %v1112
        %v1505 = vpack.c.b16 %v1117, %v1113
        %v1506 = vpack.c.b16 %v1118, %v1114
        %v1507 = vpack.c.b16 %v1123, %v1119
        %v1508 = vpack.c.b16 %v1124, %v1120
        %v1509 = vpack.c.b16 %v1125, %v1121
        %v1510 = vpack.c.b16 %v1126, %v1122
        %v1511 = vpack.c.b16 %v1131, %v1127
        %v1512 = vpack.c.b16 %v1132, %v1128
        %v1513 = vpack.c.b16 %v1133, %v1129
        %v1514 = vpack.c.b16 %v1134, %v1130
        %v1515 = vpack.c.b16 %v1139, %v1135
        %v1516 = vpack.c.b16 %v1140, %v1136
        %v1517 = vpack.c.b16 %v1141, %v1137
        %v1518 = vpack.c.b16 %v1142, %v1138
        %v1519 = vpack.c.b16 %v1147, %v1143
        %v1520 = vpack.c.b16 %v1148, %v1144
        %v1521 = vpack.c.b16 %v1149, %v1145
        %v1522 = vpack.c.b16 %v1150, %v1146
        %v1523 = vpack.c.b16 %v1155, %v1151
        %v1524 = vpack.c.b16 %v1156, %v1152
        %v1525 = vpack.c.b16 %v1157, %v1153
        %v1526 = vpack.c.b16 %v1158, %v1154
        %v1527 = vpack.c.b16 %v1163, %v1159
        %v1528 = vpack.c.b16 %v1164, %v1160
        %v1529 = vpack.c.b16 %v1165, %v1161
        %v1530 = vpack.c.b16 %v1166, %v1162
        %v1531 = vpack.c.b16 %v1171, %v1167
        %v1532 = vpack.c.b16 %v1172, %v1168
        %v1533 = vpack.c.b16 %v1173, %v1169
        %v1534 = vpack.c.b16 %v1174, %v1170
        %v1535 = vpack.c.b16 %v1179, %v1175
        %v1536 = vpack.c.b16 %v1180, %v1176
        %v1537 = vpack.c.b16 %v1181, %v1177
        %v1538 = vpack.c.b16 %v1182, %v1178
        %v1539 = vpack.c.b16 %v1187, %v1183
        %v1540 = vpack.c.b16 %v1188, %v1184
        %v1541 = vpack.c.b16 %v1189, %v1185
        %v1542 = vpack.c.b16 %v1190, %v1186
        %v1543 = vpack.c.b16 %v1195, %v1191
        %v1544 = vpack.c.b16 %v1196, %v1192
        %v1545 = vpack.c.b16 %v1197, %v1193
        %v1546 = vpack.c.b16 %v1198, %v1194
        %v1547 = vpack.c.b16 %v1203, %v1199
        %v1548 = vpack.c.b16 %v1204, %v1200
        %v1549 = vpack.c.b16 %v1205, %v1201
        %v1550 = vpack.c.b16 %v1206, %v1202
        %v1551 = vpack.c.b16 %v1211, %v1207
        %v1552 = vpack.c.b16 %v1212, %v1208
        %v1553 = vpack.c.b16 %v1213, %v1209
        %v1554 = vpack.c.b16 %v1214, %v1210
        %v1555 = vpack.c.b16 %v1219, %v1215
        %v1556 = vpack.c.b16 %v1220, %v1216
        %v1557 = vpack.c.b16 %v1221, %v1217
        %v1558 = vpack.c.b16 %v1222, %v1218
        %v1559 = vpack.c.b16 %v1227, %v1223
        %v1560 = vpack.c.b16 %v1228, %v1224
        %v1561 = vpack.c.b16 %v1229, %v1225
        %v1562 = vpack.c.b16 %v1230, %v1226
        %v1563 = vpack.c.b16 %v1235, %v1231
        %v1564 = vpack.c.b16 %v1236, %v1232
        %v1565 = vpack.c.b16 %v1237, %v1233
        %v1566 = vpack.c.b16 %v1238, %v1234
        %v1567 = vpack.c.b16 %v1243, %v1239
        %v1568 = vpack.c.b16 %v1244, %v1240
        %v1569 = vpack.c.b16 %v1245, %v1241
        %v1570 = vpack.c.b16 %v1246, %v1242
        %v1571 = vpack.c.b16 %v1251, %v1247
        %v1572 = vpack.c.b16 %v1252, %v1248
        %v1573 = vpack.c.b16 %v1253, %v1249
        %v1574 = vpack.c.b16 %v1254, %v1250
        %v1575 = vpack.c.b16 %v1259, %v1255
        %v1576 = vpack.c.b16 %v1260, %v1256
        %v1577 = vpack.c.b16 %v1261, %v1257
        %v1578 = vpack.c.b16 %v1262, %v1258
        %v1579 = vpack.c.b16 %v1267, %v1263
        %v1580 = vpack.c.b16 %v1268, %v1264
        %v1581 = vpack.c.b16 %v1269, %v1265
        %v1582 = vpack.c.b16 %v1270, %v1266
        %v1583 = vpack.c.b16 %v1275, %v1271
        %v1584 = vpack.c.b16 %v1276, %v1272
        %v1585 = vpack.c.b16 %v1277, %v1273
        %v1586 = vpack.c.b16 %v1278, %v1274
        %v1587 = vpack.c.b16 %v1283, %v1279
        %v1588 = vpack.c.b16 %v1284, %v1280
        %v1589 = vpack.c.b16 %v1285, %v1281
        %v1590 = vpack.c.b16 %v1286, %v1282
        %v1591 = vpack.c.b16 %v1291, %v1287
        %v1592 = vpack.c.b16 %v1292, %v1288
        %v1593 = vpack.c.b16 %v1293, %v1289
        %v1594 = vpack.c.b16 %v1294, %v1290
        %v1595 = vpack.c.b16 %v1299, %v1295
        %v1596 = vpack.c.b16 %v1300, %v1296
        %v1597 = vpack.c.b16 %v1301, %v1297
        %v1598 = vpack.c.b16 %v1302, %v1298
        %v1599 = vpack.c.b16 %v1307, %v1303
        %v1600 = vpack.c.b16 %v1308, %v1304
        %v1601 = vpack.c.b16 %v1309, %v1305
        %v1602 = vpack.c.b16 %v1310, %v1306
        %v1603 = vpack.c.b16 %v1315, %v1311
        %v1604 = vpack.c.b16 %v1316, %v1312
        %v1605 = vpack.c.b16 %v1317, %v1313
        %v1606 = vpack.c.b16 %v1318, %v1314
        %v1607 = vpack.c.b16 %v1323, %v1319
        %v1608 = vpack.c.b16 %v1324, %v1320
        %v1609 = vpack.c.b16 %v1325, %v1321
        %v1610 = vpack.c.b16 %v1326, %v1322
        %v1611 = vpack.c.b16 %v1331, %v1327
        %v1612 = vpack.c.b16 %v1332, %v1328
        %v1613 = vpack.c.b16 %v1333, %v1329
        %v1614 = vpack.c.b16 %v1334, %v1330
        %v1615 = vpack.c.b16 %v1339, %v1335
        %v1616 = vpack.c.b16 %v1340, %v1336
        %v1617 = vpack.c.b16 %v1341, %v1337
        %v1618 = vpack.c.b16 %v1342, %v1338
        %v1619 = vpack.c.b16 %v1347, %v1343
        %v1620 = vpack.c.b16 %v1348, %v1344
        %v1621 = vpack.c.b16 %v1349, %v1345
        %v1622 = vpack.c.b16 %v1350, %v1346
        %v1623 = vpack.c.b16 %v1355, %v1351
        %v1624 = vpack.c.b16 %v1356, %v1352
        %v1625 = vpack.c.b16 %v1357, %v1353
        %v1626 = vpack.c.b16 %v1358, %v1354
        %v1627 = vpack.c.b16 %v1363, %v1359
        %v1628 = vpack.c.b16 %v1364, %v1360
        %v1629 = vpack.c.b16 %v1365, %v1361
        %v1630 = vpack.c.b16 %v1366, %v1362
        %v1631 = vpack.c.b16 %v1371, %v1367
        %v1632 = vpack.c.b16 %v1372, %v1368
        %v1633 = vpack.c.b16 %v1373, %v1369
        %v1634 = vpack.c.b16 %v1374, %v1370
        %v1635 = vpack.c.b16 %v1379, %v1375
        %v1636 = vpack.c.b16 %v1380, %v1376
        %v1637 = vpack.c.b16 %v1381, %v1377
        %v1638 = vpack.c.b16 %v1382, %v1378
        %v1639 = vpack.c.b16 %v1387, %v1383
        %v1640 = vpack.c.b16 %v1388, %v1384
        %v1641 = vpack.c.b16 %v1389, %v1385
        %v1642 = vpack.c.b16 %v1390, %v1386
        %v1643 = vpack.c.b16 %v1395, %v1391
        %v1644 = vpack.c.b16 %v1396, %v1392
        %v1645 = vpack.c.b16 %v1397, %v1393
        %v1646 = vpack.c.b16 %v1398, %v1394
        %v1647 = vpack.c.b16 %v1403, %v1399
        %v1648 = vpack.c.b16 %v1404, %v1400
        %v1649 = vpack.c.b16 %v1405, %v1401
        %v1650 = vpack.c.b16 %v1406, %v1402
        %v1651 = vpack.c.b16 %v1411, %v1407
        %v1652 = vpack.c.b16 %v1412, %v1408
        %v1653 = vpack.c.b16 %v1413, %v1409
        %v1654 = vpack.c.b16 %v1414, %v1410
        %v1655 = vpack.c.b16 %v1419, %v1415
        %v1656 = vpack.c.b16 %v1420, %v1416
        %v1657 = vpack.c.b16 %v1421, %v1417
        %v1658 = vpack.c.b16 %v1422, %v1418
        %v1659 = vpack.c.b16 %v1427, %v1423
        %v1660 = vpack.c.b16 %v1428, %v1424
        %v1661 = vpack.c.b16 %v1429, %v1425
        %v1662 = vpack.c.b16 %v1430, %v1426
        %v1663 = vpack.c.b16 %v1435, %v1431
        %v1664 = vpack.c.b16 %v1436, %v1432
        %v1665 = vpack.c.b16 %v1437, %v1433
        %v1666 = vpack.c.b16 %v1438, %v1434
        %v1667 = vpack.c.b16 %v1443, %v1439
        %v1668 = vpack.c.b16 %v1444, %v1440
        %v1669 = vpack.c.b16 %v1445, %v1441
        %v1670 = vpack.c.b16 %v1446, %v1442
        %v1671 = vpack.c.b16 %v1451, %v1447
        %v1672 = vpack.c.b16 %v1452, %v1448
        %v1673 = vpack.c.b16 %v1453, %v1449
        %v1674 = vpack.c.b16 %v1454, %v1450
        %v1675 = vpack.c.b16 %v1459, %v1455
        %v1676 = vpack.c.b16 %v1460, %v1456
        %v1677 = vpack.c.b16 %v1461, %v1457
        %v1678 = vpack.c.b16 %v1462, %v1458
        %v1679 = vpack.c.b16 %v1467, %v1463
        %v1680 = vpack.c.b16 %v1468, %v1464
        %v1681 = vpack.c.b16 %v1469, %v1465
        %v1682 = vpack.c.b16 %v1470, %v1466
        %v1683 = vpack.c.b16 %v1475, %v1471
        %v1684 = vpack.c.b16 %v1476, %v1472
        %v1685 = vpack.c.b16 %v1477, %v1473
        %v1686 = vpack.c.b16 %v1478, %v1474
        %v1687 = vpack.c.b16 %v1483, %v1479
        %v1688 = vpack.c.b16 %v1484, %v1480
        %v1689 = vpack.c.b16 %v1485, %v1481
        %v1690 = vpack.c.b16 %v1486, %v1482
        %v1691 = vpack.c.b16 %v1491, %v1487
        %v1692 = vpack.c.b16 %v1492, %v1488
        %v1693 = vpack.c.b16 %v1493, %v1489
        %v1694 = vpack.c.b16 %v1494, %v1490
        %v1695 = vpack.c.b16 %v1499, %v1495
        %v1696 = vpack.c.b16 %v1500, %v1496
        %v1697 = vpack.c.b16 %v1501, %v1497
        %v1698 = vpack.c.b16 %v1502, %v1498
        %vm1895 = vcmask 130048
        %v1897 = vsel %vm1895, %v647, 0
        %v1900 = vsel %vm1895, %v654, 0
        %v1903 = vsel %vm1895, %v661, 0
        %v1906 = vsel %vm1895, %v668, 0
        %v1909 = vsel %vm1895, %v675, 0
        %v1912 = vsel %vm1895, %v682, 0
        %v1915 = vsel %vm1895, %v689, 0
        %v1918 = vsel %vm1895, %v696, 0
        %1920 = vmatprep.subr.bf16.mxu0 %v1504
        %1921 = vmatpush1.bf16.msra.mxu0 %v1503
        %1922 = vmatprep.subr.bf16.mxu0 %v1508
        %1923 = vmatpush1.bf16.msra.mxu0 %v1507
        %1924 = vmatprep.subr.bf16.mxu0 %v1512
        %1925 = vmatpush1.bf16.msra.mxu0 %v1511
        %1926 = vmatprep.subr.bf16.mxu0 %v1516
        %1927 = vmatpush1.bf16.msra.mxu0 %v1515
        %1928 = vmatprep.subr.bf16.mxu0 %v1520
        %1929 = vmatpush1.bf16.msra.mxu0 %v1519
        %1930 = vmatprep.subr.bf16.mxu0 %v1524
        %1931 = vmatpush1.bf16.msra.mxu0 %v1523
        %1932 = vmatprep.subr.bf16.mxu0 %v1528
        %1933 = vmatpush1.bf16.msra.mxu0 %v1527
        %1934 = vmatprep.subr.bf16.mxu0 %v1532
        %1935 = vmatpush1.bf16.msra.mxu0 %v1531
        %1936 = vmatprep.subr.bf16.mxu0 %v1536
        %1937 = vmatpush1.bf16.msra.mxu0 %v1535
        %1938 = vmatprep.subr.bf16.mxu0 %v1540
        %1939 = vmatpush1.bf16.msra.mxu0 %v1539
        %1940 = vmatprep.subr.bf16.mxu0 %v1544
        %1941 = vmatpush1.bf16.msra.mxu0 %v1543
        %1942 = vmatprep.subr.bf16.mxu0 %v1548
        %1943 = vmatpush1.bf16.msra.mxu0 %v1547
        %1944 = vmatprep.subr.bf16.mxu0 %v1552
        %1945 = vmatpush1.bf16.msra.mxu0 %v1551
        %1946 = vmatprep.subr.bf16.mxu0 %v1556
        %1947 = vmatpush1.bf16.msra.mxu0 %v1555
        %1948 = vmatprep.subr.bf16.mxu0 %v1560
        %1949 = vmatpush1.bf16.msra.mxu0 %v1559
        %1950 = vmatprep.subr.bf16.mxu0 %v1564
        %1951 = vmatpush1.bf16.msra.mxu0 %v1563
        %1952 = vmatprep.mubr.bf16.mxu0 %v642
        %1953 = vmatmul.mubr.bf16.gmra.mrb[0].mxu0 %v641
        %v1954 = vpop.f32.mrb[0].mxu0
        %v1955 = vadd.f32 %v898, %v1954
        %v1956 = vpop.f32.mrb[0].mxu0
        %v1957 = vadd.f32 %v902, %v1956
        %v1958 = vpop.f32.mrb[0].mxu0
        %v1959 = vadd.f32 %v898, %v1958
        %v1960 = vpop.f32.mrb[0].mxu0
        %v1961 = vadd.f32 %v902, %v1960
        %1962 = vmatprep.mubr.bf16.mxu0 %v649
        %1963 = vmatmul.mubr.bf16.gmra.mrb[0].mxu0 %v648
        %v1964 = vpop.f32.mrb[0].mxu0
        %v1965 = vadd.f32 %v898, %v1964
        %v1966 = vpop.f32.mrb[0].mxu0
        %v1967 = vadd.f32 %v902, %v1966
        %v1968 = vpop.f32.mrb[0].mxu0
        %v1969 = vadd.f32 %v898, %v1968
        %v1970 = vpop.f32.mrb[0].mxu0
        %v1971 = vadd.f32 %v902, %v1970
        %1972 = vmatprep.mubr.bf16.mxu0 %v656
        %1973 = vmatmul.mubr.bf16.gmra.mrb[0].mxu0 %v655
        %v1974 = vpop.f32.mrb[0].mxu0
        %v1975 = vadd.f32 %v898, %v1974
        %v1976 = vpop.f32.mrb[0].mxu0
        %v1977 = vadd.f32 %v902, %v1976
        %v1978 = vpop.f32.mrb[0].mxu0
        %v1979 = vadd.f32 %v898, %v1978
        %v1980 = vpop.f32.mrb[0].mxu0
        %v1981 = vadd.f32 %v902, %v1980
        %1982 = vmatprep.mubr.bf16.mxu0 %v663
        %1983 = vmatmul.mubr.bf16.gmra.mrb[0].mxu0 %v662
        %v1984 = vpop.f32.mrb[0].mxu0
        %v1985 = vadd.f32 %v898, %v1984
        %v1986 = vpop.f32.mrb[0].mxu0
        %v1987 = vadd.f32 %v902, %v1986
        %v1988 = vpop.f32.mrb[0].mxu0
        %v1989 = vadd.f32 %v898, %v1988
        %v1990 = vpop.f32.mrb[0].mxu0
        %v1991 = vadd.f32 %v902, %v1990
        %1992 = vmatprep.mubr.bf16.mxu0 %v670
        %1993 = vmatmul.mubr.bf16.gmra.mrb[0].mxu0 %v669
        %v1994 = vpop.f32.mrb[0].mxu0
        %v1995 = vadd.f32 %v898, %v1994
        %v1996 = vpop.f32.mrb[0].mxu0
        %v1997 = vadd.f32 %v902, %v1996
        %v1998 = vpop.f32.mrb[0].mxu0
        %v1999 = vadd.f32 %v898, %v1998
        %v2000 = vpop.f32.mrb[0].mxu0
        %v2001 = vadd.f32 %v902, %v2000
        %2002 = vmatprep.mubr.bf16.mxu0 %v677
        %2003 = vmatmul.mubr.bf16.gmra.mrb[0].mxu0 %v676
        %v2004 = vpop.f32.mrb[0].mxu0
        %v2005 = vadd.f32 %v898, %v2004
        %v2006 = vpop.f32.mrb[0].mxu0
        %v2007 = vadd.f32 %v902, %v2006
        %v2008 = vpop.f32.mrb[0].mxu0
        %v2009 = vadd.f32 %v898, %v2008
        %v2010 = vpop.f32.mrb[0].mxu0
        %v2011 = vadd.f32 %v902, %v2010
        %2012 = vmatprep.mubr.bf16.mxu0 %v684
        %2013 = vmatmul.mubr.bf16.gmra.mrb[0].mxu0 %v683
        %v2014 = vpop.f32.mrb[0].mxu0
        %v2015 = vadd.f32 %v898, %v2014
        %v2016 = vpop.f32.mrb[0].mxu0
        %v2017 = vadd.f32 %v902, %v2016
        %v2018 = vpop.f32.mrb[0].mxu0
        %v2019 = vadd.f32 %v898, %v2018
        %v2020 = vpop.f32.mrb[0].mxu0
        %v2021 = vadd.f32 %v902, %v2020
        %2022 = vmatprep.mubr.bf16.mxu0 %v691
        %2023 = vmatmul.mubr.bf16.gmra.mrb[0].mxu0 %v690
        %v2024 = vpop.f32.mrb[0].mxu0
        %v2025 = vadd.f32 %v898, %v2024
        %v2026 = vpop.f32.mrb[0].mxu0
        %v2027 = vadd.f32 %v902, %v2026
        %v2028 = vpop.f32.mrb[0].mxu0
        %v2029 = vadd.f32 %v898, %v2028
        %v2030 = vpop.f32.mrb[0].mxu0
        %v2031 = vadd.f32 %v902, %v2030
        %2032 = vdwg.mxu0
        %2033 = vmatprep.subr.bf16.mxu0 %v1568
        %2034 = vmatpush1.bf16.msra.mxu0 %v1567
        %2035 = vmatprep.subr.bf16.mxu0 %v1572
        %2036 = vmatpush1.bf16.msra.mxu0 %v1571
        %2037 = vmatprep.subr.bf16.mxu0 %v1576
        %2038 = vmatpush1.bf16.msra.mxu0 %v1575
        %2039 = vmatprep.subr.bf16.mxu0 %v1580
        %2040 = vmatpush1.bf16.msra.mxu0 %v1579
        %2041 = vmatprep.subr.bf16.mxu0 %v1584
        %2042 = vmatpush1.bf16.msra.mxu0 %v1583
        %2043 = vmatprep.subr.bf16.mxu0 %v1588
        %2044 = vmatpush1.bf16.msra.mxu0 %v1587
        %2045 = vmatprep.subr.bf16.mxu0 %v1592
        %2046 = vmatpush1.bf16.msra.mxu0 %v1591
        %2047 = vmatprep.subr.bf16.mxu0 %v1596
        %2048 = vmatpush1.bf16.msra.mxu0 %v1595
        %2049 = vmatprep.subr.bf16.mxu0 %v1600
        %2050 = vmatpush1.bf16.msra.mxu0 %v1599
        %2051 = vmatprep.subr.bf16.mxu0 %v1604
        %2052 = vmatpush1.bf16.msra.mxu0 %v1603
        %2053 = vmatprep.subr.bf16.mxu0 %v1608
        %2054 = vmatpush1.bf16.msra.mxu0 %v1607
        %2055 = vmatprep.subr.bf16.mxu0 %v1612
        %2056 = vmatpush1.bf16.msra.mxu0 %v1611
        %2057 = vmatprep.subr.bf16.mxu0 %v1616
        %2058 = vmatpush1.bf16.msra.mxu0 %v1615
        %2059 = vmatprep.subr.bf16.mxu0 %v1620
        %2060 = vmatpush1.bf16.msra.mxu0 %v1619
        %2061 = vmatprep.subr.bf16.mxu0 %v1624
        %2062 = vmatpush1.bf16.msra.mxu0 %v1623
        %2063 = vmatprep.subr.bf16.mxu0 %v1628
        %2064 = vmatpush1.bf16.msra.mxu0 %v1627
        %2065 = vmatprep.mubr.bf16.mxu0 %v644
        %2066 = vmatmul.mubr.bf16.gmra.mrb[0].mxu0 %v643
        %v2067 = vpop.f32.mrb[0].mxu0
        %v2068 = vadd.f32 %v1955, %v2067
        %v2069 = vpop.f32.mrb[0].mxu0
        %v2070 = vadd.f32 %v1957, %v2069
        %v2071 = vpop.f32.mrb[0].mxu0
        %v2072 = vadd.f32 %v1959, %v2071
        %v2073 = vpop.f32.mrb[0].mxu0
        %v2074 = vadd.f32 %v1961, %v2073
        %2075 = vmatprep.mubr.bf16.mxu0 %v651
        %2076 = vmatmul.mubr.bf16.gmra.mrb[0].mxu0 %v650
        %v2077 = vpop.f32.mrb[0].mxu0
        %v2078 = vadd.f32 %v1965, %v2077
        %v2079 = vpop.f32.mrb[0].mxu0
        %v2080 = vadd.f32 %v1967, %v2079
        %v2081 = vpop.f32.mrb[0].mxu0
        %v2082 = vadd.f32 %v1969, %v2081
        %v2083 = vpop.f32.mrb[0].mxu0
        %v2084 = vadd.f32 %v1971, %v2083
        %2085 = vmatprep.mubr.bf16.mxu0 %v658
        %2086 = vmatmul.mubr.bf16.gmra.mrb[0].mxu0 %v657
        %v2087 = vpop.f32.mrb[0].mxu0
        %v2088 = vadd.f32 %v1975, %v2087
        %v2089 = vpop.f32.mrb[0].mxu0
        %v2090 = vadd.f32 %v1977, %v2089
        %v2091 = vpop.f32.mrb[0].mxu0
        %v2092 = vadd.f32 %v1979, %v2091
        %v2093 = vpop.f32.mrb[0].mxu0
        %v2094 = vadd.f32 %v1981, %v2093
        %2095 = vmatprep.mubr.bf16.mxu0 %v665
        %2096 = vmatmul.mubr.bf16.gmra.mrb[0].mxu0 %v664
        %v2097 = vpop.f32.mrb[0].mxu0
        %v2098 = vadd.f32 %v1985, %v2097
        %v2099 = vpop.f32.mrb[0].mxu0
        %v2100 = vadd.f32 %v1987, %v2099
        %v2101 = vpop.f32.mrb[0].mxu0
        %v2102 = vadd.f32 %v1989, %v2101
        %v2103 = vpop.f32.mrb[0].mxu0
        %v2104 = vadd.f32 %v1991, %v2103
        %2105 = vmatprep.mubr.bf16.mxu0 %v672
        %2106 = vmatmul.mubr.bf16.gmra.mrb[0].mxu0 %v671
        %v2107 = vpop.f32.mrb[0].mxu0
        %v2108 = vadd.f32 %v1995, %v2107
        %v2109 = vpop.f32.mrb[0].mxu0
        %v2110 = vadd.f32 %v1997, %v2109
        %v2111 = vpop.f32.mrb[0].mxu0
        %v2112 = vadd.f32 %v1999, %v2111
        %v2113 = vpop.f32.mrb[0].mxu0
        %v2114 = vadd.f32 %v2001, %v2113
        %2115 = vmatprep.mubr.bf16.mxu0 %v679
        %2116 = vmatmul.mubr.bf16.gmra.mrb[0].mxu0 %v678
        %v2117 = vpop.f32.mrb[0].mxu0
        %v2118 = vadd.f32 %v2005, %v2117
        %v2119 = vpop.f32.mrb[0].mxu0
        %v2120 = vadd.f32 %v2007, %v2119
        %v2121 = vpop.f32.mrb[0].mxu0
        %v2122 = vadd.f32 %v2009, %v2121
        %v2123 = vpop.f32.mrb[0].mxu0
        %v2124 = vadd.f32 %v2011, %v2123
        %2125 = vmatprep.mubr.bf16.mxu0 %v686
        %2126 = vmatmul.mubr.bf16.gmra.mrb[0].mxu0 %v685
        %v2127 = vpop.f32.mrb[0].mxu0
        %v2128 = vadd.f32 %v2015, %v2127
        %v2129 = vpop.f32.mrb[0].mxu0
        %v2130 = vadd.f32 %v2017, %v2129
        %v2131 = vpop.f32.mrb[0].mxu0
        %v2132 = vadd.f32 %v2019, %v2131
        %v2133 = vpop.f32.mrb[0].mxu0
        %v2134 = vadd.f32 %v2021, %v2133
        %2135 = vmatprep.mubr.bf16.mxu0 %v693
        %2136 = vmatmul.mubr.bf16.gmra.mrb[0].mxu0 %v692
        %v2137 = vpop.f32.mrb[0].mxu0
        %v2138 = vadd.f32 %v2025, %v2137
        %v2139 = vpop.f32.mrb[0].mxu0
        %v2140 = vadd.f32 %v2027, %v2139
        %v2141 = vpop.f32.mrb[0].mxu0
        %v2142 = vadd.f32 %v2029, %v2141
        %v2143 = vpop.f32.mrb[0].mxu0
        %v2144 = vadd.f32 %v2031, %v2143
        %2145 = vdwg.mxu0
        %2146 = vmatprep.subr.bf16.mxu0 %v1632
        %2147 = vmatpush1.bf16.msra.mxu0 %v1631
        %2148 = vmatprep.subr.bf16.mxu0 %v1636
        %2149 = vmatpush1.bf16.msra.mxu0 %v1635
        %2150 = vmatprep.subr.bf16.mxu0 %v1640
        %2151 = vmatpush1.bf16.msra.mxu0 %v1639
        %2152 = vmatprep.subr.bf16.mxu0 %v1644
        %2153 = vmatpush1.bf16.msra.mxu0 %v1643
        %2154 = vmatprep.subr.bf16.mxu0 %v1648
        %2155 = vmatpush1.bf16.msra.mxu0 %v1647
        %2156 = vmatprep.subr.bf16.mxu0 %v1652
        %2157 = vmatpush1.bf16.msra.mxu0 %v1651
        %2158 = vmatprep.subr.bf16.mxu0 %v1656
        %2159 = vmatpush1.bf16.msra.mxu0 %v1655
        %2160 = vmatprep.subr.bf16.mxu0 %v1660
        %2161 = vmatpush1.bf16.msra.mxu0 %v1659
        %2162 = vmatprep.subr.bf16.mxu0 %v1664
        %2163 = vmatpush1.bf16.msra.mxu0 %v1663
        %2164 = vmatprep.subr.bf16.mxu0 %v1668
        %2165 = vmatpush1.bf16.msra.mxu0 %v1667
        %2166 = vmatprep.subr.bf16.mxu0 %v1672
        %2167 = vmatpush1.bf16.msra.mxu0 %v1671
        %2168 = vmatprep.subr.bf16.mxu0 %v1676
        %2169 = vmatpush1.bf16.msra.mxu0 %v1675
        %2170 = vmatprep.subr.bf16.mxu0 %v1680
        %2171 = vmatpush1.bf16.msra.mxu0 %v1679
        %2172 = vmatprep.subr.bf16.mxu0 %v1684
        %2173 = vmatpush1.bf16.msra.mxu0 %v1683
        %2174 = vmatprep.subr.bf16.mxu0 %v1688
        %2175 = vmatpush1.bf16.msra.mxu0 %v1687
        %2176 = vmatprep.subr.bf16.mxu0 %v1692
        %2177 = vmatpush1.bf16.msra.mxu0 %v1691
        %2178 = vmatprep.mubr.bf16.mxu0 %v646
        %2179 = vmatmul.mubr.bf16.gmra.mrb[0].mxu0 %v645
        %v2180 = vpop.f32.mrb[0].mxu0
        %v2181 = vadd.f32 %v2068, %v2180
        %v2182 = vpop.f32.mrb[0].mxu0
        %v2183 = vadd.f32 %v2070, %v2182
        %v2184 = vpop.f32.mrb[0].mxu0
        %v2185 = vadd.f32 %v2072, %v2184
        %v2186 = vpop.f32.mrb[0].mxu0
        %v2187 = vadd.f32 %v2074, %v2186
        %2188 = vmatprep.mubr.bf16.mxu0 %v653
        %2189 = vmatmul.mubr.bf16.gmra.mrb[0].mxu0 %v652
        %v2190 = vpop.f32.mrb[0].mxu0
        %v2191 = vadd.f32 %v2078, %v2190
        %v2192 = vpop.f32.mrb[0].mxu0
        %v2193 = vadd.f32 %v2080, %v2192
        %v2194 = vpop.f32.mrb[0].mxu0
        %v2195 = vadd.f32 %v2082, %v2194
        %v2196 = vpop.f32.mrb[0].mxu0
        %v2197 = vadd.f32 %v2084, %v2196
        %2198 = vmatprep.mubr.bf16.mxu0 %v660
        %2199 = vmatmul.mubr.bf16.gmra.mrb[0].mxu0 %v659
        %v2200 = vpop.f32.mrb[0].mxu0
        %v2201 = vadd.f32 %v2088, %v2200
        %v2202 = vpop.f32.mrb[0].mxu0
        %v2203 = vadd.f32 %v2090, %v2202
        %v2204 = vpop.f32.mrb[0].mxu0
        %v2205 = vadd.f32 %v2092, %v2204
        %v2206 = vpop.f32.mrb[0].mxu0
        %v2207 = vadd.f32 %v2094, %v2206
        %2208 = vmatprep.mubr.bf16.mxu0 %v667
        %2209 = vmatmul.mubr.bf16.gmra.mrb[0].mxu0 %v666
        %v2210 = vpop.f32.mrb[0].mxu0
        %v2211 = vadd.f32 %v2098, %v2210
        %v2212 = vpop.f32.mrb[0].mxu0
        %v2213 = vadd.f32 %v2100, %v2212
        %v2214 = vpop.f32.mrb[0].mxu0
        %v2215 = vadd.f32 %v2102, %v2214
        %v2216 = vpop.f32.mrb[0].mxu0
        %v2217 = vadd.f32 %v2104, %v2216
        %2218 = vmatprep.mubr.bf16.mxu0 %v674
        %2219 = vmatmul.mubr.bf16.gmra.mrb[0].mxu0 %v673
        %v2220 = vpop.f32.mrb[0].mxu0
        %v2221 = vadd.f32 %v2108, %v2220
        %v2222 = vpop.f32.mrb[0].mxu0
        %v2223 = vadd.f32 %v2110, %v2222
        %v2224 = vpop.f32.mrb[0].mxu0
        %v2225 = vadd.f32 %v2112, %v2224
        %v2226 = vpop.f32.mrb[0].mxu0
        %v2227 = vadd.f32 %v2114, %v2226
        %2228 = vmatprep.mubr.bf16.mxu0 %v681
        %2229 = vmatmul.mubr.bf16.gmra.mrb[0].mxu0 %v680
        %v2230 = vpop.f32.mrb[0].mxu0
        %v2231 = vadd.f32 %v2118, %v2230
        %v2232 = vpop.f32.mrb[0].mxu0
        %v2233 = vadd.f32 %v2120, %v2232
        %v2234 = vpop.f32.mrb[0].mxu0
        %v2235 = vadd.f32 %v2122, %v2234
        %v2236 = vpop.f32.mrb[0].mxu0
        %v2237 = vadd.f32 %v2124, %v2236
        %2238 = vmatprep.mubr.bf16.mxu0 %v688
        %2239 = vmatmul.mubr.bf16.gmra.mrb[0].mxu0 %v687
        %v2240 = vpop.f32.mrb[0].mxu0
        %v2241 = vadd.f32 %v2128, %v2240
        %v2242 = vpop.f32.mrb[0].mxu0
        %v2243 = vadd.f32 %v2130, %v2242
        %v2244 = vpop.f32.mrb[0].mxu0
        %v2245 = vadd.f32 %v2132, %v2244
        %v2246 = vpop.f32.mrb[0].mxu0
        %v2247 = vadd.f32 %v2134, %v2246
        %2248 = vmatprep.mubr.bf16.mxu0 %v695
        %2249 = vmatmul.mubr.bf16.gmra.mrb[0].mxu0 %v694
        %v2250 = vpop.f32.mrb[0].mxu0
        %v2251 = vadd.f32 %v2138, %v2250
        %v2252 = vpop.f32.mrb[0].mxu0
        %v2253 = vadd.f32 %v2140, %v2252
        %v2254 = vpop.f32.mrb[0].mxu0
        %v2255 = vadd.f32 %v2142, %v2254
        %v2256 = vpop.f32.mrb[0].mxu0
        %v2257 = vadd.f32 %v2144, %v2256
        %2258 = vdwg.mxu0
        %2259 = vmatprep.subr.bf16.mxu0 %v1696
        %2260 = vmatpush1.bf16.msra.mxu0 %v1695
        %2261 = vmatprep.subr.bf16.mxu0 0
        %2262 = vmatpush1.bf16.msra.mxu0 0
        %2263 = vmatprep.subr.bf16.mxu0 0
        %2264 = vmatpush1.bf16.msra.mxu0 0
        %2265 = vmatprep.subr.bf16.mxu0 0
        %2266 = vmatpush1.bf16.msra.mxu0 0
        %2267 = vmatprep.subr.bf16.mxu0 0
        %2268 = vmatpush1.bf16.msra.mxu0 0
        %2269 = vmatprep.subr.bf16.mxu0 0
        %2270 = vmatpush1.bf16.msra.mxu0 0
        %2271 = vmatprep.subr.bf16.mxu0 0
        %2272 = vmatpush1.bf16.msra.mxu0 0
        %2273 = vmatprep.subr.bf16.mxu0 0
        %2274 = vmatpush1.bf16.msra.mxu0 0
        %2275 = vmatprep.subr.bf16.mxu0 0
        %2276 = vmatpush1.bf16.msra.mxu0 0
        %2277 = vmatprep.subr.bf16.mxu0 0
        %2278 = vmatpush1.bf16.msra.mxu0 0
        %2279 = vmatprep.subr.bf16.mxu0 0
        %2280 = vmatpush1.bf16.msra.mxu0 0
        %2281 = vmatprep.subr.bf16.mxu0 0
        %2282 = vmatpush1.bf16.msra.mxu0 0
        %2283 = vmatprep.subr.bf16.mxu0 0
        %2284 = vmatpush1.bf16.msra.mxu0 0
        %2285 = vmatprep.subr.bf16.mxu0 0
        %2286 = vmatpush1.bf16.msra.mxu0 0
        %2287 = vmatprep.subr.bf16.mxu0 0
        %2288 = vmatpush1.bf16.msra.mxu0 0
        %2289 = vmatprep.subr.bf16.mxu0 0
        %2290 = vmatpush1.bf16.msra.mxu0 0
        %2291 = vmatprep.mubr.bf16.mxu0 0
        %2292 = vmatmul.mubr.bf16.gmra.mrb[0].mxu0 %v1897
        %v2293 = vpop.f32.mrb[0].mxu0
        %v2294 = vadd.f32 %v2181, %v2293
        %v2295 = vpop.f32.mrb[0].mxu0
        %v2296 = vadd.f32 %v2183, %v2295
        %v2297 = vpop.f32.mrb[0].mxu0
        %v2298 = vadd.f32 %v2185, %v2297
        %v2299 = vpop.f32.mrb[0].mxu0
        %v2300 = vadd.f32 %v2187, %v2299
        %2301 = vmatprep.mubr.bf16.mxu0 0
        %2302 = vmatmul.mubr.bf16.gmra.mrb[0].mxu0 %v1900
        %v2303 = vpop.f32.mrb[0].mxu0
        %v2304 = vadd.f32 %v2191, %v2303
        %v2305 = vpop.f32.mrb[0].mxu0
        %v2306 = vadd.f32 %v2193, %v2305
        %v2307 = vpop.f32.mrb[0].mxu0
        %v2308 = vadd.f32 %v2195, %v2307
        %v2309 = vpop.f32.mrb[0].mxu0
        %v2310 = vadd.f32 %v2197, %v2309
        %2311 = vmatprep.mubr.bf16.mxu0 0
        %2312 = vmatmul.mubr.bf16.gmra.mrb[0].mxu0 %v1903
        %v2313 = vpop.f32.mrb[0].mxu0
        %v2314 = vadd.f32 %v2201, %v2313
        %v2315 = vpop.f32.mrb[0].mxu0
        %v2316 = vadd.f32 %v2203, %v2315
        %v2317 = vpop.f32.mrb[0].mxu0
        %v2318 = vadd.f32 %v2205, %v2317
        %v2319 = vpop.f32.mrb[0].mxu0
        %v2320 = vadd.f32 %v2207, %v2319
        %2321 = vmatprep.mubr.bf16.mxu0 0
        %2322 = vmatmul.mubr.bf16.gmra.mrb[0].mxu0 %v1906
        %v2323 = vpop.f32.mrb[0].mxu0
        %v2324 = vadd.f32 %v2211, %v2323
        %v2325 = vpop.f32.mrb[0].mxu0
        %v2326 = vadd.f32 %v2213, %v2325
        %v2327 = vpop.f32.mrb[0].mxu0
        %v2328 = vadd.f32 %v2215, %v2327
        %v2329 = vpop.f32.mrb[0].mxu0
        %v2330 = vadd.f32 %v2217, %v2329
        %2331 = vmatprep.mubr.bf16.mxu0 0
        %2332 = vmatmul.mubr.bf16.gmra.mrb[0].mxu0 %v1909
        %v2333 = vpop.f32.mrb[0].mxu0
        %v2334 = vadd.f32 %v2221, %v2333
        %v2335 = vpop.f32.mrb[0].mxu0
        %v2336 = vadd.f32 %v2223, %v2335
        %v2337 = vpop.f32.mrb[0].mxu0
        %v2338 = vadd.f32 %v2225, %v2337
        %v2339 = vpop.f32.mrb[0].mxu0
        %v2340 = vadd.f32 %v2227, %v2339
        %2341 = vmatprep.mubr.bf16.mxu0 0
        %2342 = vmatmul.mubr.bf16.gmra.mrb[0].mxu0 %v1912
        %v2343 = vpop.f32.mrb[0].mxu0
        %v2344 = vadd.f32 %v2231, %v2343
        %v2345 = vpop.f32.mrb[0].mxu0
        %v2346 = vadd.f32 %v2233, %v2345
        %v2347 = vpop.f32.mrb[0].mxu0
        %v2348 = vadd.f32 %v2235, %v2347
        %v2349 = vpop.f32.mrb[0].mxu0
        %v2350 = vadd.f32 %v2237, %v2349
        %2351 = vmatprep.mubr.bf16.mxu0 0
        %2352 = vmatmul.mubr.bf16.gmra.mrb[0].mxu0 %v1915
        %v2353 = vpop.f32.mrb[0].mxu0
        %v2354 = vadd.f32 %v2241, %v2353
        %v2355 = vpop.f32.mrb[0].mxu0
        %v2356 = vadd.f32 %v2243, %v2355
        %v2357 = vpop.f32.mrb[0].mxu0
        %v2358 = vadd.f32 %v2245, %v2357
        %v2359 = vpop.f32.mrb[0].mxu0
        %v2360 = vadd.f32 %v2247, %v2359
        %2361 = vmatprep.mubr.bf16.mxu0 0
        %2362 = vmatmul.mubr.bf16.gmra.mrb[0].mxu0 %v1918
        %v2363 = vpop.f32.mrb[0].mxu0
        %v2364 = vadd.f32 %v2251, %v2363
        %v2365 = vpop.f32.mrb[0].mxu0
        %v2366 = vadd.f32 %v2253, %v2365
        %v2367 = vpop.f32.mrb[0].mxu0
        %v2368 = vadd.f32 %v2255, %v2367
        %v2369 = vpop.f32.mrb[0].mxu0
        %v2370 = vadd.f32 %v2257, %v2369
        %2371 = vdwg.mxu0
        %2372 = vmatprep.subr.bf16.mxu0 %v1506
        %2373 = vmatpush1.bf16.msra.mxu0 %v1505
        %2374 = vmatprep.subr.bf16.mxu0 %v1510
        %2375 = vmatpush1.bf16.msra.mxu0 %v1509
        %2376 = vmatprep.subr.bf16.mxu0 %v1514
        %2377 = vmatpush1.bf16.msra.mxu0 %v1513
        %2378 = vmatprep.subr.bf16.mxu0 %v1518
        %2379 = vmatpush1.bf16.msra.mxu0 %v1517
        %2380 = vmatprep.subr.bf16.mxu0 %v1522
        %2381 = vmatpush1.bf16.msra.mxu0 %v1521
        %2382 = vmatprep.subr.bf16.mxu0 %v1526
        %2383 = vmatpush1.bf16.msra.mxu0 %v1525
        %2384 = vmatprep.subr.bf16.mxu0 %v1530
        %2385 = vmatpush1.bf16.msra.mxu0 %v1529
        %2386 = vmatprep.subr.bf16.mxu0 %v1534
        %2387 = vmatpush1.bf16.msra.mxu0 %v1533
        %2388 = vmatprep.subr.bf16.mxu0 %v1538
        %2389 = vmatpush1.bf16.msra.mxu0 %v1537
        %2390 = vmatprep.subr.bf16.mxu0 %v1542
        %2391 = vmatpush1.bf16.msra.mxu0 %v1541
        %2392 = vmatprep.subr.bf16.mxu0 %v1546
        %2393 = vmatpush1.bf16.msra.mxu0 %v1545
        %2394 = vmatprep.subr.bf16.mxu0 %v1550
        %2395 = vmatpush1.bf16.msra.mxu0 %v1549
        %2396 = vmatprep.subr.bf16.mxu0 %v1554
        %2397 = vmatpush1.bf16.msra.mxu0 %v1553
        %2398 = vmatprep.subr.bf16.mxu0 %v1558
        %2399 = vmatpush1.bf16.msra.mxu0 %v1557
        %2400 = vmatprep.subr.bf16.mxu0 %v1562
        %2401 = vmatpush1.bf16.msra.mxu0 %v1561
        %2402 = vmatprep.subr.bf16.mxu0 %v1566
        %2403 = vmatpush1.bf16.msra.mxu0 %v1565
        %2404 = vmatprep.mubr.bf16.mxu0 %v642
        %2405 = vmatmul.mubr.bf16.gmra.mrb[0].mxu0 %v641
        %v2406 = vpop.f32.mrb[0].mxu0
        %v2407 = vadd.f32 %v906, %v2406
        %v2408 = vpop.f32.mrb[0].mxu0
        %v2409 = vadd.f32 %v910, %v2408
        %v2410 = vpop.f32.mrb[0].mxu0
        %v2411 = vadd.f32 %v906, %v2410
        %v2412 = vpop.f32.mrb[0].mxu0
        %v2413 = vadd.f32 %v910, %v2412
        %2414 = vmatprep.mubr.bf16.mxu0 %v649
        %2415 = vmatmul.mubr.bf16.gmra.mrb[0].mxu0 %v648
        %v2416 = vpop.f32.mrb[0].mxu0
        %v2417 = vadd.f32 %v906, %v2416
        %v2418 = vpop.f32.mrb[0].mxu0
        %v2419 = vadd.f32 %v910, %v2418
        %v2420 = vpop.f32.mrb[0].mxu0
        %v2421 = vadd.f32 %v906, %v2420
        %v2422 = vpop.f32.mrb[0].mxu0
        %v2423 = vadd.f32 %v910, %v2422
        %2424 = vmatprep.mubr.bf16.mxu0 %v656
        %2425 = vmatmul.mubr.bf16.gmra.mrb[0].mxu0 %v655
        %v2426 = vpop.f32.mrb[0].mxu0
        %v2427 = vadd.f32 %v906, %v2426
        %v2428 = vpop.f32.mrb[0].mxu0
        %v2429 = vadd.f32 %v910, %v2428
        %v2430 = vpop.f32.mrb[0].mxu0
        %v2431 = vadd.f32 %v906, %v2430
        %v2432 = vpop.f32.mrb[0].mxu0
        %v2433 = vadd.f32 %v910, %v2432
        %2434 = vmatprep.mubr.bf16.mxu0 %v663
        %2435 = vmatmul.mubr.bf16.gmra.mrb[0].mxu0 %v662
        %v2436 = vpop.f32.mrb[0].mxu0
        %v2437 = vadd.f32 %v906, %v2436
        %v2438 = vpop.f32.mrb[0].mxu0
        %v2439 = vadd.f32 %v910, %v2438
        %v2440 = vpop.f32.mrb[0].mxu0
        %v2441 = vadd.f32 %v906, %v2440
        %v2442 = vpop.f32.mrb[0].mxu0
        %v2443 = vadd.f32 %v910, %v2442
        %2444 = vmatprep.mubr.bf16.mxu0 %v670
        %2445 = vmatmul.mubr.bf16.gmra.mrb[0].mxu0 %v669
        %v2446 = vpop.f32.mrb[0].mxu0
        %v2447 = vadd.f32 %v906, %v2446
        %v2448 = vpop.f32.mrb[0].mxu0
        %v2449 = vadd.f32 %v910, %v2448
        %v2450 = vpop.f32.mrb[0].mxu0
        %v2451 = vadd.f32 %v906, %v2450
        %v2452 = vpop.f32.mrb[0].mxu0
        %v2453 = vadd.f32 %v910, %v2452
        %2454 = vmatprep.mubr.bf16.mxu0 %v677
        %2455 = vmatmul.mubr.bf16.gmra.mrb[0].mxu0 %v676
        %v2456 = vpop.f32.mrb[0].mxu0
        %v2457 = vadd.f32 %v906, %v2456
        %v2458 = vpop.f32.mrb[0].mxu0
        %v2459 = vadd.f32 %v910, %v2458
        %v2460 = vpop.f32.mrb[0].mxu0
        %v2461 = vadd.f32 %v906, %v2460
        %v2462 = vpop.f32.mrb[0].mxu0
        %v2463 = vadd.f32 %v910, %v2462
        %2464 = vmatprep.mubr.bf16.mxu0 %v684
        %2465 = vmatmul.mubr.bf16.gmra.mrb[0].mxu0 %v683
        %v2466 = vpop.f32.mrb[0].mxu0
        %v2467 = vadd.f32 %v906, %v2466
        %v2468 = vpop.f32.mrb[0].mxu0
        %v2469 = vadd.f32 %v910, %v2468
        %v2470 = vpop.f32.mrb[0].mxu0
        %v2471 = vadd.f32 %v906, %v2470
        %v2472 = vpop.f32.mrb[0].mxu0
        %v2473 = vadd.f32 %v910, %v2472
        %2474 = vmatprep.mubr.bf16.mxu0 %v691
        %2475 = vmatmul.mubr.bf16.gmra.mrb[0].mxu0 %v690
        %v2476 = vpop.f32.mrb[0].mxu0
        %v2477 = vadd.f32 %v906, %v2476
        %v2478 = vpop.f32.mrb[0].mxu0
        %v2479 = vadd.f32 %v910, %v2478
        %v2480 = vpop.f32.mrb[0].mxu0
        %v2481 = vadd.f32 %v906, %v2480
        %v2482 = vpop.f32.mrb[0].mxu0
        %v2483 = vadd.f32 %v910, %v2482
        %2484 = vdwg.mxu0
        %2485 = vmatprep.subr.bf16.mxu0 %v1570
        %2486 = vmatpush1.bf16.msra.mxu0 %v1569
        %2487 = vmatprep.subr.bf16.mxu0 %v1574
        %2488 = vmatpush1.bf16.msra.mxu0 %v1573
        %2489 = vmatprep.subr.bf16.mxu0 %v1578
        %2490 = vmatpush1.bf16.msra.mxu0 %v1577
        %2491 = vmatprep.subr.bf16.mxu0 %v1582
        %2492 = vmatpush1.bf16.msra.mxu0 %v1581
        %2493 = vmatprep.subr.bf16.mxu0 %v1586
        %2494 = vmatpush1.bf16.msra.mxu0 %v1585
        %2495 = vmatprep.subr.bf16.mxu0 %v1590
        %2496 = vmatpush1.bf16.msra.mxu0 %v1589
        %2497 = vmatprep.subr.bf16.mxu0 %v1594
        %2498 = vmatpush1.bf16.msra.mxu0 %v1593
        %2499 = vmatprep.subr.bf16.mxu0 %v1598
        %2500 = vmatpush1.bf16.msra.mxu0 %v1597
        %2501 = vmatprep.subr.bf16.mxu0 %v1602
        %2502 = vmatpush1.bf16.msra.mxu0 %v1601
        %2503 = vmatprep.subr.bf16.mxu0 %v1606
        %2504 = vmatpush1.bf16.msra.mxu0 %v1605
        %2505 = vmatprep.subr.bf16.mxu0 %v1610
        %2506 = vmatpush1.bf16.msra.mxu0 %v1609
        %2507 = vmatprep.subr.bf16.mxu0 %v1614
        %2508 = vmatpush1.bf16.msra.mxu0 %v1613
        %2509 = vmatprep.subr.bf16.mxu0 %v1618
        %2510 = vmatpush1.bf16.msra.mxu0 %v1617
        %2511 = vmatprep.subr.bf16.mxu0 %v1622
        %2512 = vmatpush1.bf16.msra.mxu0 %v1621
        %2513 = vmatprep.subr.bf16.mxu0 %v1626
        %2514 = vmatpush1.bf16.msra.mxu0 %v1625
        %2515 = vmatprep.subr.bf16.mxu0 %v1630
        %2516 = vmatpush1.bf16.msra.mxu0 %v1629
        %2517 = vmatprep.mubr.bf16.mxu0 %v644
        %2518 = vmatmul.mubr.bf16.gmra.mrb[0].mxu0 %v643
        %v2519 = vpop.f32.mrb[0].mxu0
        %v2520 = vadd.f32 %v2407, %v2519
        %v2521 = vpop.f32.mrb[0].mxu0
        %v2522 = vadd.f32 %v2409, %v2521
        %v2523 = vpop.f32.mrb[0].mxu0
        %v2524 = vadd.f32 %v2411, %v2523
        %v2525 = vpop.f32.mrb[0].mxu0
        %v2526 = vadd.f32 %v2413, %v2525
        %2527 = vmatprep.mubr.bf16.mxu0 %v651
        %2528 = vmatmul.mubr.bf16.gmra.mrb[0].mxu0 %v650
        %v2529 = vpop.f32.mrb[0].mxu0
        %v2530 = vadd.f32 %v2417, %v2529
        %v2531 = vpop.f32.mrb[0].mxu0
        %v2532 = vadd.f32 %v2419, %v2531
        %v2533 = vpop.f32.mrb[0].mxu0
        %v2534 = vadd.f32 %v2421, %v2533
        %v2535 = vpop.f32.mrb[0].mxu0
        %v2536 = vadd.f32 %v2423, %v2535
        %2537 = vmatprep.mubr.bf16.mxu0 %v658
        %2538 = vmatmul.mubr.bf16.gmra.mrb[0].mxu0 %v657
        %v2539 = vpop.f32.mrb[0].mxu0
        %v2540 = vadd.f32 %v2427, %v2539
        %v2541 = vpop.f32.mrb[0].mxu0
        %v2542 = vadd.f32 %v2429, %v2541
        %v2543 = vpop.f32.mrb[0].mxu0
        %v2544 = vadd.f32 %v2431, %v2543
        %v2545 = vpop.f32.mrb[0].mxu0
        %v2546 = vadd.f32 %v2433, %v2545
        %2547 = vmatprep.mubr.bf16.mxu0 %v665
        %2548 = vmatmul.mubr.bf16.gmra.mrb[0].mxu0 %v664
        %v2549 = vpop.f32.mrb[0].mxu0
        %v2550 = vadd.f32 %v2437, %v2549
        %v2551 = vpop.f32.mrb[0].mxu0
        %v2552 = vadd.f32 %v2439, %v2551
        %v2553 = vpop.f32.mrb[0].mxu0
        %v2554 = vadd.f32 %v2441, %v2553
        %v2555 = vpop.f32.mrb[0].mxu0
        %v2556 = vadd.f32 %v2443, %v2555
        %2557 = vmatprep.mubr.bf16.mxu0 %v672
        %2558 = vmatmul.mubr.bf16.gmra.mrb[0].mxu0 %v671
        %v2559 = vpop.f32.mrb[0].mxu0
        %v2560 = vadd.f32 %v2447, %v2559
        %v2561 = vpop.f32.mrb[0].mxu0
        %v2562 = vadd.f32 %v2449, %v2561
        %v2563 = vpop.f32.mrb[0].mxu0
        %v2564 = vadd.f32 %v2451, %v2563
        %v2565 = vpop.f32.mrb[0].mxu0
        %v2566 = vadd.f32 %v2453, %v2565
        %2567 = vmatprep.mubr.bf16.mxu0 %v679
        %2568 = vmatmul.mubr.bf16.gmra.mrb[0].mxu0 %v678
        %v2569 = vpop.f32.mrb[0].mxu0
        %v2570 = vadd.f32 %v2457, %v2569
        %v2571 = vpop.f32.mrb[0].mxu0
        %v2572 = vadd.f32 %v2459, %v2571
        %v2573 = vpop.f32.mrb[0].mxu0
        %v2574 = vadd.f32 %v2461, %v2573
        %v2575 = vpop.f32.mrb[0].mxu0
        %v2576 = vadd.f32 %v2463, %v2575
        %2577 = vmatprep.mubr.bf16.mxu0 %v686
        %2578 = vmatmul.mubr.bf16.gmra.mrb[0].mxu0 %v685
        %v2579 = vpop.f32.mrb[0].mxu0
        %v2580 = vadd.f32 %v2467, %v2579
        %v2581 = vpop.f32.mrb[0].mxu0
        %v2582 = vadd.f32 %v2469, %v2581
        %v2583 = vpop.f32.mrb[0].mxu0
        %v2584 = vadd.f32 %v2471, %v2583
        %v2585 = vpop.f32.mrb[0].mxu0
        %v2586 = vadd.f32 %v2473, %v2585
        %2587 = vmatprep.mubr.bf16.mxu0 %v693
        %2588 = vmatmul.mubr.bf16.gmra.mrb[0].mxu0 %v692
        %v2589 = vpop.f32.mrb[0].mxu0
        %v2590 = vadd.f32 %v2477, %v2589
        %v2591 = vpop.f32.mrb[0].mxu0
        %v2592 = vadd.f32 %v2479, %v2591
        %v2593 = vpop.f32.mrb[0].mxu0
        %v2594 = vadd.f32 %v2481, %v2593
        %v2595 = vpop.f32.mrb[0].mxu0
        %v2596 = vadd.f32 %v2483, %v2595
        %2597 = vdwg.mxu0
        %2598 = vmatprep.subr.bf16.mxu0 %v1634
        %2599 = vmatpush1.bf16.msra.mxu0 %v1633
        %2600 = vmatprep.subr.bf16.mxu0 %v1638
        %2601 = vmatpush1.bf16.msra.mxu0 %v1637
        %2602 = vmatprep.subr.bf16.mxu0 %v1642
        %2603 = vmatpush1.bf16.msra.mxu0 %v1641
        %2604 = vmatprep.subr.bf16.mxu0 %v1646
        %2605 = vmatpush1.bf16.msra.mxu0 %v1645
        %2606 = vmatprep.subr.bf16.mxu0 %v1650
        %2607 = vmatpush1.bf16.msra.mxu0 %v1649
        %2608 = vmatprep.subr.bf16.mxu0 %v1654
        %2609 = vmatpush1.bf16.msra.mxu0 %v1653
        %2610 = vmatprep.subr.bf16.mxu0 %v1658
        %2611 = vmatpush1.bf16.msra.mxu0 %v1657
        %2612 = vmatprep.subr.bf16.mxu0 %v1662
        %2613 = vmatpush1.bf16.msra.mxu0 %v1661
        %2614 = vmatprep.subr.bf16.mxu0 %v1666
        %2615 = vmatpush1.bf16.msra.mxu0 %v1665
        %2616 = vmatprep.subr.bf16.mxu0 %v1670
        %2617 = vmatpush1.bf16.msra.mxu0 %v1669
        %2618 = vmatprep.subr.bf16.mxu0 %v1674
        %2619 = vmatpush1.bf16.msra.mxu0 %v1673
        %2620 = vmatprep.subr.bf16.mxu0 %v1678
        %2621 = vmatpush1.bf16.msra.mxu0 %v1677
        %2622 = vmatprep.subr.bf16.mxu0 %v1682
        %2623 = vmatpush1.bf16.msra.mxu0 %v1681
        %2624 = vmatprep.subr.bf16.mxu0 %v1686
        %2625 = vmatpush1.bf16.msra.mxu0 %v1685
        %2626 = vmatprep.subr.bf16.mxu0 %v1690
        %2627 = vmatpush1.bf16.msra.mxu0 %v1689
        %2628 = vmatprep.subr.bf16.mxu0 %v1694
        %2629 = vmatpush1.bf16.msra.mxu0 %v1693
        %2630 = vmatprep.mubr.bf16.mxu0 %v646
        %2631 = vmatmul.mubr.bf16.gmra.mrb[0].mxu0 %v645
        %v2632 = vpop.f32.mrb[0].mxu0
        %v2633 = vadd.f32 %v2520, %v2632
        %v2634 = vpop.f32.mrb[0].mxu0
        %v2635 = vadd.f32 %v2522, %v2634
        %v2636 = vpop.f32.mrb[0].mxu0
        %v2637 = vadd.f32 %v2524, %v2636
        %v2638 = vpop.f32.mrb[0].mxu0
        %v2639 = vadd.f32 %v2526, %v2638
        %2640 = vmatprep.mubr.bf16.mxu0 %v653
        %2641 = vmatmul.mubr.bf16.gmra.mrb[0].mxu0 %v652
        %v2642 = vpop.f32.mrb[0].mxu0
        %v2643 = vadd.f32 %v2530, %v2642
        %v2644 = vpop.f32.mrb[0].mxu0
        %v2645 = vadd.f32 %v2532, %v2644
        %v2646 = vpop.f32.mrb[0].mxu0
        %v2647 = vadd.f32 %v2534, %v2646
        %v2648 = vpop.f32.mrb[0].mxu0
        %v2649 = vadd.f32 %v2536, %v2648
        %2650 = vmatprep.mubr.bf16.mxu0 %v660
        %2651 = vmatmul.mubr.bf16.gmra.mrb[0].mxu0 %v659
        %v2652 = vpop.f32.mrb[0].mxu0
        %v2653 = vadd.f32 %v2540, %v2652
        %v2654 = vpop.f32.mrb[0].mxu0
        %v2655 = vadd.f32 %v2542, %v2654
        %v2656 = vpop.f32.mrb[0].mxu0
        %v2657 = vadd.f32 %v2544, %v2656
        %v2658 = vpop.f32.mrb[0].mxu0
        %v2659 = vadd.f32 %v2546, %v2658
        %2660 = vmatprep.mubr.bf16.mxu0 %v667
        %2661 = vmatmul.mubr.bf16.gmra.mrb[0].mxu0 %v666
        %v2662 = vpop.f32.mrb[0].mxu0
        %v2663 = vadd.f32 %v2550, %v2662
        %v2664 = vpop.f32.mrb[0].mxu0
        %v2665 = vadd.f32 %v2552, %v2664
        %v2666 = vpop.f32.mrb[0].mxu0
        %v2667 = vadd.f32 %v2554, %v2666
        %v2668 = vpop.f32.mrb[0].mxu0
        %v2669 = vadd.f32 %v2556, %v2668
        %2670 = vmatprep.mubr.bf16.mxu0 %v674
        %2671 = vmatmul.mubr.bf16.gmra.mrb[0].mxu0 %v673
        %v2672 = vpop.f32.mrb[0].mxu0
        %v2673 = vadd.f32 %v2560, %v2672
        %v2674 = vpop.f32.mrb[0].mxu0
        %v2675 = vadd.f32 %v2562, %v2674
        %v2676 = vpop.f32.mrb[0].mxu0
        %v2677 = vadd.f32 %v2564, %v2676
        %v2678 = vpop.f32.mrb[0].mxu0
        %v2679 = vadd.f32 %v2566, %v2678
        %2680 = vmatprep.mubr.bf16.mxu0 %v681
        %2681 = vmatmul.mubr.bf16.gmra.mrb[0].mxu0 %v680
        %v2682 = vpop.f32.mrb[0].mxu0
        %v2683 = vadd.f32 %v2570, %v2682
        %v2684 = vpop.f32.mrb[0].mxu0
        %v2685 = vadd.f32 %v2572, %v2684
        %v2686 = vpop.f32.mrb[0].mxu0
        %v2687 = vadd.f32 %v2574, %v2686
        %v2688 = vpop.f32.mrb[0].mxu0
        %v2689 = vadd.f32 %v2576, %v2688
        %2690 = vmatprep.mubr.bf16.mxu0 %v688
        %2691 = vmatmul.mubr.bf16.gmra.mrb[0].mxu0 %v687
        %v2692 = vpop.f32.mrb[0].mxu0
        %v2693 = vadd.f32 %v2580, %v2692
        %v2694 = vpop.f32.mrb[0].mxu0
        %v2695 = vadd.f32 %v2582, %v2694
        %v2696 = vpop.f32.mrb[0].mxu0
        %v2697 = vadd.f32 %v2584, %v2696
        %v2698 = vpop.f32.mrb[0].mxu0
        %v2699 = vadd.f32 %v2586, %v2698
        %2700 = vmatprep.mubr.bf16.mxu0 %v695
        %2701 = vmatmul.mubr.bf16.gmra.mrb[0].mxu0 %v694
        %v2702 = vpop.f32.mrb[0].mxu0
        %v2703 = vadd.f32 %v2590, %v2702
        %v2704 = vpop.f32.mrb[0].mxu0
        %v2705 = vadd.f32 %v2592, %v2704
        %v2706 = vpop.f32.mrb[0].mxu0
        %v2707 = vadd.f32 %v2594, %v2706
        %v2708 = vpop.f32.mrb[0].mxu0
        %v2709 = vadd.f32 %v2596, %v2708
        %2710 = vdwg.mxu0
        %2711 = vmatprep.subr.bf16.mxu0 %v1698
        %2712 = vmatpush1.bf16.msra.mxu0 %v1697
        %2713 = vmatprep.subr.bf16.mxu0 0
        %2714 = vmatpush1.bf16.msra.mxu0 0
        %2715 = vmatprep.subr.bf16.mxu0 0
        %2716 = vmatpush1.bf16.msra.mxu0 0
        %2717 = vmatprep.subr.bf16.mxu0 0
        %2718 = vmatpush1.bf16.msra.mxu0 0
        %2719 = vmatprep.subr.bf16.mxu0 0
        %2720 = vmatpush1.bf16.msra.mxu0 0
        %2721 = vmatprep.subr.bf16.mxu0 0
        %2722 = vmatpush1.bf16.msra.mxu0 0
        %2723 = vmatprep.subr.bf16.mxu0 0
        %2724 = vmatpush1.bf16.msra.mxu0 0
        %2725 = vmatprep.subr.bf16.mxu0 0
        %2726 = vmatpush1.bf16.msra.mxu0 0
        %2727 = vmatprep.subr.bf16.mxu0 0
        %2728 = vmatpush1.bf16.msra.mxu0 0
        %2729 = vmatprep.subr.bf16.mxu0 0
        %2730 = vmatpush1.bf16.msra.mxu0 0
        %2731 = vmatprep.subr.bf16.mxu0 0
        %2732 = vmatpush1.bf16.msra.mxu0 0
        %2733 = vmatprep.subr.bf16.mxu0 0
        %2734 = vmatpush1.bf16.msra.mxu0 0
        %2735 = vmatprep.subr.bf16.mxu0 0
        %2736 = vmatpush1.bf16.msra.mxu0 0
        %2737 = vmatprep.subr.bf16.mxu0 0
        %2738 = vmatpush1.bf16.msra.mxu0 0
        %2739 = vmatprep.subr.bf16.mxu0 0
        %2740 = vmatpush1.bf16.msra.mxu0 0
        %2741 = vmatprep.subr.bf16.mxu0 0
        %2742 = vmatpush1.bf16.msra.mxu0 0
        %2743 = vmatprep.mubr.bf16.mxu0 0
        %2744 = vmatmul.mubr.bf16.gmra.mrb[0].mxu0 %v1897
        %v2745 = vpop.f32.mrb[0].mxu0
        %v2746 = vadd.f32 %v2633, %v2745
        %v2747 = vpop.f32.mrb[0].mxu0
        %v2748 = vadd.f32 %v2635, %v2747
        %v2749 = vpop.f32.mrb[0].mxu0
        %v2750 = vadd.f32 %v2637, %v2749
        %v2751 = vpop.f32.mrb[0].mxu0
        %v2752 = vadd.f32 %v2639, %v2751
        %2753 = vmatprep.mubr.bf16.mxu0 0
        %2754 = vmatmul.mubr.bf16.gmra.mrb[0].mxu0 %v1900
        %v2755 = vpop.f32.mrb[0].mxu0
        %v2756 = vadd.f32 %v2643, %v2755
        %v2757 = vpop.f32.mrb[0].mxu0
        %v2758 = vadd.f32 %v2645, %v2757
        %v2759 = vpop.f32.mrb[0].mxu0
        %v2760 = vadd.f32 %v2647, %v2759
        %v2761 = vpop.f32.mrb[0].mxu0
        %v2762 = vadd.f32 %v2649, %v2761
        %2763 = vmatprep.mubr.bf16.mxu0 0
        %2764 = vmatmul.mubr.bf16.gmra.mrb[0].mxu0 %v1903
        %v2765 = vpop.f32.mrb[0].mxu0
        %v2766 = vadd.f32 %v2653, %v2765
        %v2767 = vpop.f32.mrb[0].mxu0
        %v2768 = vadd.f32 %v2655, %v2767
        %v2769 = vpop.f32.mrb[0].mxu0
        %v2770 = vadd.f32 %v2657, %v2769
        %v2771 = vpop.f32.mrb[0].mxu0
        %v2772 = vadd.f32 %v2659, %v2771
        %2773 = vmatprep.mubr.bf16.mxu0 0
        %2774 = vmatmul.mubr.bf16.gmra.mrb[0].mxu0 %v1906
        %v2775 = vpop.f32.mrb[0].mxu0
        %v2776 = vadd.f32 %v2663, %v2775
        %v2777 = vpop.f32.mrb[0].mxu0
        %v2778 = vadd.f32 %v2665, %v2777
        %v2779 = vpop.f32.mrb[0].mxu0
        %v2780 = vadd.f32 %v2667, %v2779
        %v2781 = vpop.f32.mrb[0].mxu0
        %v2782 = vadd.f32 %v2669, %v2781
        %2783 = vmatprep.mubr.bf16.mxu0 0
        %2784 = vmatmul.mubr.bf16.gmra.mrb[0].mxu0 %v1909
        %v2785 = vpop.f32.mrb[0].mxu0
        %v2786 = vadd.f32 %v2673, %v2785
        %v2787 = vpop.f32.mrb[0].mxu0
        %v2788 = vadd.f32 %v2675, %v2787
        %v2789 = vpop.f32.mrb[0].mxu0
        %v2790 = vadd.f32 %v2677, %v2789
        %v2791 = vpop.f32.mrb[0].mxu0
        %v2792 = vadd.f32 %v2679, %v2791
        %2793 = vmatprep.mubr.bf16.mxu0 0
        %2794 = vmatmul.mubr.bf16.gmra.mrb[0].mxu0 %v1912
        %v2795 = vpop.f32.mrb[0].mxu0
        %v2796 = vadd.f32 %v2683, %v2795
        %v2797 = vpop.f32.mrb[0].mxu0
        %v2798 = vadd.f32 %v2685, %v2797
        %v2799 = vpop.f32.mrb[0].mxu0
        %v2800 = vadd.f32 %v2687, %v2799
        %v2801 = vpop.f32.mrb[0].mxu0
        %v2802 = vadd.f32 %v2689, %v2801
        %2803 = vmatprep.mubr.bf16.mxu0 0
        %2804 = vmatmul.mubr.bf16.gmra.mrb[0].mxu0 %v1915
        %v2805 = vpop.f32.mrb[0].mxu0
        %v2806 = vadd.f32 %v2693, %v2805
        %v2807 = vpop.f32.mrb[0].mxu0
        %v2808 = vadd.f32 %v2695, %v2807
        %v2809 = vpop.f32.mrb[0].mxu0
        %v2810 = vadd.f32 %v2697, %v2809
        %v2811 = vpop.f32.mrb[0].mxu0
        %v2812 = vadd.f32 %v2699, %v2811
        %2813 = vmatprep.mubr.bf16.mxu0 0
        %2814 = vmatmul.mubr.bf16.gmra.mrb[0].mxu0 %v1918
        %v2815 = vpop.f32.mrb[0].mxu0
        %v2816 = vadd.f32 %v2703, %v2815
        %v2817 = vpop.f32.mrb[0].mxu0
        %v2818 = vadd.f32 %v2705, %v2817
        %v2819 = vpop.f32.mrb[0].mxu0
        %v2820 = vadd.f32 %v2707, %v2819
        %v2821 = vpop.f32.mrb[0].mxu0
        %v2822 = vadd.f32 %v2709, %v2821
        %2823 = vdwg.mxu0
        %v2824 = vmax.f32 %v2294, 0.0
        %v2825 = vmax.f32 %v2296, 0.0
        %v2826 = vmax.f32 %v2746, 0.0
        %v2827 = vmax.f32 %v2748, 0.0
        %v2828 = vmax.f32 %v2298, 0.0
        %v2829 = vmax.f32 %v2300, 0.0
        %v2830 = vmax.f32 %v2750, 0.0
        %v2831 = vmax.f32 %v2752, 0.0
        %v2832 = vmax.f32 %v2304, 0.0
        %v2833 = vmax.f32 %v2306, 0.0
        %v2834 = vmax.f32 %v2756, 0.0
        %v2835 = vmax.f32 %v2758, 0.0
        %v2836 = vmax.f32 %v2308, 0.0
        %v2837 = vmax.f32 %v2310, 0.0
        %v2838 = vmax.f32 %v2760, 0.0
        %v2839 = vmax.f32 %v2762, 0.0
        %v2840 = vmax.f32 %v2314, 0.0
        %v2841 = vmax.f32 %v2316, 0.0
        %v2842 = vmax.f32 %v2766, 0.0
        %v2843 = vmax.f32 %v2768, 0.0
        %v2844 = vmax.f32 %v2318, 0.0
        %v2845 = vmax.f32 %v2320, 0.0
        %v2846 = vmax.f32 %v2770, 0.0
        %v2847 = vmax.f32 %v2772, 0.0
        %v2848 = vmax.f32 %v2324, 0.0
        %v2849 = vmax.f32 %v2326, 0.0
        %v2850 = vmax.f32 %v2776, 0.0
        %v2851 = vmax.f32 %v2778, 0.0
        %v2852 = vmax.f32 %v2328, 0.0
        %v2853 = vmax.f32 %v2330, 0.0
        %v2854 = vmax.f32 %v2780, 0.0
        %v2855 = vmax.f32 %v2782, 0.0
        %v2856 = vmax.f32 %v2334, 0.0
        %v2857 = vmax.f32 %v2336, 0.0
        %v2858 = vmax.f32 %v2786, 0.0
        %v2859 = vmax.f32 %v2788, 0.0
        %v2860 = vmax.f32 %v2338, 0.0
        %v2861 = vmax.f32 %v2340, 0.0
        %v2862 = vmax.f32 %v2790, 0.0
        %v2863 = vmax.f32 %v2792, 0.0
        %v2864 = vmax.f32 %v2344, 0.0
        %v2865 = vmax.f32 %v2346, 0.0
        %v2866 = vmax.f32 %v2796, 0.0
        %v2867 = vmax.f32 %v2798, 0.0
        %v2868 = vmax.f32 %v2348, 0.0
        %v2869 = vmax.f32 %v2350, 0.0
        %v2870 = vmax.f32 %v2800, 0.0
        %v2871 = vmax.f32 %v2802, 0.0
        %v2872 = vmax.f32 %v2354, 0.0
        %v2873 = vmax.f32 %v2356, 0.0
        %v2874 = vmax.f32 %v2806, 0.0
        %v2875 = vmax.f32 %v2808, 0.0
        %v2876 = vmax.f32 %v2358, 0.0
        %v2877 = vmax.f32 %v2360, 0.0
        %v2878 = vmax.f32 %v2810, 0.0
        %v2879 = vmax.f32 %v2812, 0.0
        %v2880 = vmax.f32 %v2364, 0.0
        %v2881 = vmax.f32 %v2366, 0.0
        %v2882 = vmax.f32 %v2816, 0.0
        %v2883 = vmax.f32 %v2818, 0.0
        %v2884 = vmax.f32 %v2368, 0.0
        %v2885 = vmax.f32 %v2370, 0.0
        %v2886 = vmax.f32 %v2820, 0.0
        %v2887 = vmax.f32 %v2822, 0.0
        %v2888 = vpack.c.bf16 %v2828, %v2824
        %v2889 = vpack.c.bf16 %v2829, %v2825
        %v2890 = vpack.c.bf16 %v2830, %v2826
        %v2891 = vpack.c.bf16 %v2831, %v2827
        %v2892 = vpack.c.bf16 %v2836, %v2832
        %v2893 = vpack.c.bf16 %v2837, %v2833
        %v2894 = vpack.c.bf16 %v2838, %v2834
        %v2895 = vpack.c.bf16 %v2839, %v2835
        %v2896 = vpack.c.bf16 %v2844, %v2840
        %v2897 = vpack.c.bf16 %v2845, %v2841
        %v2898 = vpack.c.bf16 %v2846, %v2842
        %v2899 = vpack.c.bf16 %v2847, %v2843
        %v2900 = vpack.c.bf16 %v2852, %v2848
        %v2901 = vpack.c.bf16 %v2853, %v2849
        %v2902 = vpack.c.bf16 %v2854, %v2850
        %v2903 = vpack.c.bf16 %v2855, %v2851
        %v2904 = vpack.c.bf16 %v2860, %v2856
        %v2905 = vpack.c.bf16 %v2861, %v2857
        %v2906 = vpack.c.bf16 %v2862, %v2858
        %v2907 = vpack.c.bf16 %v2863, %v2859
        %v2908 = vpack.c.bf16 %v2868, %v2864
        %v2909 = vpack.c.bf16 %v2869, %v2865
        %v2910 = vpack.c.bf16 %v2870, %v2866
        %v2911 = vpack.c.bf16 %v2871, %v2867
        %v2912 = vpack.c.bf16 %v2876, %v2872
        %v2913 = vpack.c.bf16 %v2877, %v2873
        %v2914 = vpack.c.bf16 %v2878, %v2874
        %v2915 = vpack.c.bf16 %v2879, %v2875
        %v2916 = vpack.c.bf16 %v2884, %v2880
        %v2917 = vpack.c.bf16 %v2885, %v2881
        %v2918 = vpack.c.bf16 %v2886, %v2882
        %v2919 = vpack.c.bf16 %v2887, %v2883
        %v2920 = vld [vmem:[#allocation2] sm:$0xff]
        %v2921 = vld [vmem:[#allocation2 + $0x8] sm:$0xff]
        %v2922 = vld [vmem:[#allocation2 + $0x10] sm:$0xff]
        %v2923 = vld [vmem:[#allocation2 + $0x18] sm:$0xff]
        %v2924 = vld [vmem:[#allocation2 + $0x20] sm:$0xff]
        %v2925 = vld [vmem:[#allocation2 + $0x28] sm:$0xff]
        %v2926 = vld [vmem:[#allocation2 + $0x30] sm:$0xff]
        %v2927 = vld [vmem:[#allocation2 + $0x38] sm:$0xff]
        %v2928 = vld [vmem:[#allocation2 + $0x40] sm:$0xff]
        %v2929 = vld [vmem:[#allocation2 + $0x48] sm:$0xff]
        %v2930 = vld [vmem:[#allocation2 + $0x50] sm:$0xff]
        %v2931 = vld [vmem:[#allocation2 + $0x58] sm:$0xff]
        %v2932 = vld [vmem:[#allocation2 + $0x60] sm:$0xff]
        %v2933 = vld [vmem:[#allocation2 + $0x68] sm:$0xff]
        %v2934 = vld [vmem:[#allocation2 + $0x70] sm:$0xff]
        %v2935 = vld [vmem:[#allocation2 + $0x78] sm:$0xff]
        %v2936 = vld [vmem:[#allocation2 + $0x80] sm:$0xff]
        %v2937 = vld [vmem:[#allocation2 + $0x88] sm:$0xff]
        %v2938 = vld [vmem:[#allocation2 + $0x90] sm:$0xff]
        %v2939 = vld [vmem:[#allocation2 + $0x98] sm:$0xff]
        %v2940 = vld [vmem:[#allocation2 + $0xa0] sm:$0xff]
        %v2941 = vld [vmem:[#allocation2 + $0xa8] sm:$0xff]
        %v2942 = vld [vmem:[#allocation2 + $0xb0] sm:$0xff]
        %v2943 = vld [vmem:[#allocation2 + $0xb8] sm:$0xff]
        %v2944 = vld [vmem:[#allocation2 + $0xc0] sm:$0xff]
        %v2945 = vld [vmem:[#allocation2 + $0xc8] sm:$0xff]
        %v2946 = vld [vmem:[#allocation2 + $0xd0] sm:$0xff]
        %v2947 = vld [vmem:[#allocation2 + $0xd8] sm:$0xff]
        %v2948 = vld [vmem:[#allocation2 + $0xe0] sm:$0xff]
        %v2949 = vld [vmem:[#allocation2 + $0xe8] sm:$0xff]
        %v2950 = vld [vmem:[#allocation2 + $0xf0] sm:$0xff]
        %v2951 = vld [vmem:[#allocation2 + $0xf8] sm:$0xff]
        %v2952 = vld [vmem:[#allocation2 + $0x100] sm:$0xff]
        %v2953 = vld [vmem:[#allocation2 + $0x108] sm:$0xff]
        %v2954 = vld [vmem:[#allocation2 + $0x110] sm:$0xff]
        %v2955 = vld [vmem:[#allocation2 + $0x118] sm:$0xff]
        %v2956 = vld [vmem:[#allocation2 + $0x120] sm:$0xff]
        %v2957 = vld [vmem:[#allocation2 + $0x128] sm:$0xff]
        %v2958 = vld [vmem:[#allocation2 + $0x130] sm:$0xff]
        %v2959 = vld [vmem:[#allocation2 + $0x138] sm:$0xff]
        %v2960 = vld [vmem:[#allocation2 + $0x140] sm:$0xff]
        %v2961 = vld [vmem:[#allocation2 + $0x148] sm:$0xff]
        %v2962 = vld [vmem:[#allocation2 + $0x150] sm:$0xff]
        %v2963 = vld [vmem:[#allocation2 + $0x158] sm:$0xff]
        %v2964 = vld [vmem:[#allocation2 + $0x160] sm:$0xff]
        %v2965 = vld [vmem:[#allocation2 + $0x168] sm:$0xff]
        %v2966 = vld [vmem:[#allocation2 + $0x170] sm:$0xff]
        %v2967 = vld [vmem:[#allocation2 + $0x178] sm:$0xff]
        %v2968 = vld [vmem:[#allocation2 + $0x180] sm:$0xff]
        %v2969 = vld [vmem:[#allocation2 + $0x188] sm:$0xff]
        %v2970 = vld [vmem:[#allocation2 + $0x190] sm:$0xff]
        %v2971 = vld [vmem:[#allocation2 + $0x198] sm:$0xff]
        %v2972 = vld [vmem:[#allocation2 + $0x1a0] sm:$0xff]
        %v2973 = vld [vmem:[#allocation2 + $0x1a8] sm:$0xff]
        %v2974 = vld [vmem:[#allocation2 + $0x1b0] sm:$0xff]
        %v2975 = vld [vmem:[#allocation2 + $0x1b8] sm:$0xff]
        %v2976 = vld [vmem:[#allocation2 + $0x1c0] sm:$0xff]
        %v2977 = vld [vmem:[#allocation2 + $0x1c8] sm:$0xff]
        %v2978 = vld [vmem:[#allocation2 + $0x1d0] sm:$0xff]
        %v2979 = vld [vmem:[#allocation2 + $0x1d8] sm:$0xff]
        %v2980 = vld [vmem:[#allocation2 + $0x1e0] sm:$0xff]
        %v2981 = vld [vmem:[#allocation2 + $0x1e8] sm:$0xff]
        %v2982 = vld [vmem:[#allocation2 + $0x1f0] sm:$0xff]
        %v2983 = vld [vmem:[#allocation2 + $0x1f8] sm:$0xff]
        %v2984 = vld [vmem:[#allocation2 + $0x200] sm:$0xff]
        %v2985 = vld [vmem:[#allocation2 + $0x208] sm:$0xff]
        %v2986 = vld [vmem:[#allocation2 + $0x210] sm:$0xff]
        %v2987 = vld [vmem:[#allocation2 + $0x218] sm:$0xff]
        %v2988 = vld [vmem:[#allocation2 + $0x220] sm:$0xff]
        %v2989 = vld [vmem:[#allocation2 + $0x228] sm:$0xff]
        %v2990 = vld [vmem:[#allocation2 + $0x230] sm:$0xff]
        %v2991 = vld [vmem:[#allocation2 + $0x238] sm:$0xff]
        %v2992 = vld [vmem:[#allocation2 + $0x240] sm:$0xff]
        %v2993 = vld [vmem:[#allocation2 + $0x248] sm:$0xff]
        %v2994 = vld [vmem:[#allocation2 + $0x250] sm:$0xff]
        %v2995 = vld [vmem:[#allocation2 + $0x258] sm:$0xff]
        %v2996 = vld [vmem:[#allocation2 + $0x260] sm:$0xff]
        %v2997 = vld [vmem:[#allocation2 + $0x268] sm:$0xff]
        %v2998 = vld [vmem:[#allocation2 + $0x270] sm:$0xff]
        %v2999 = vld [vmem:[#allocation2 + $0x278] sm:$0xff]
        %v3000 = vld [vmem:[#allocation2 + $0x280] sm:$0xff]
        %v3001 = vld [vmem:[#allocation2 + $0x288] sm:$0xff]
        %v3002 = vld [vmem:[#allocation2 + $0x290] sm:$0xff]
        %v3003 = vld [vmem:[#allocation2 + $0x298] sm:$0xff]
        %v3004 = vld [vmem:[#allocation2 + $0x2a0] sm:$0xff]
        %v3005 = vld [vmem:[#allocation2 + $0x2a8] sm:$0xff]
        %v3006 = vld [vmem:[#allocation2 + $0x2b0] sm:$0xff]
        %v3007 = vld [vmem:[#allocation2 + $0x2b8] sm:$0xff]
        %v3008 = vld [vmem:[#allocation2 + $0x2c0] sm:$0xff]
        %v3009 = vld [vmem:[#allocation2 + $0x2c8] sm:$0xff]
        %v3010 = vld [vmem:[#allocation2 + $0x2d0] sm:$0xff]
        %v3011 = vld [vmem:[#allocation2 + $0x2d8] sm:$0xff]
        %v3012 = vld [vmem:[#allocation2 + $0x2e0] sm:$0xff]
        %v3013 = vld [vmem:[#allocation2 + $0x2e8] sm:$0xff]
        %v3014 = vld [vmem:[#allocation2 + $0x2f0] sm:$0xff]
        %v3015 = vld [vmem:[#allocation2 + $0x2f8] sm:$0xff]
        %v3016 = vld [vmem:[#allocation2 + $0x300] sm:$0xff]
        %v3017 = vld [vmem:[#allocation2 + $0x308] sm:$0xff]
        %v3018 = vld [vmem:[#allocation2 + $0x310] sm:$0xff]
        %v3019 = vld [vmem:[#allocation2 + $0x318] sm:$0xff]
        %v3020 = vld [vmem:[#allocation2 + $0x320] sm:$0xff]
        %v3021 = vld [vmem:[#allocation2 + $0x328] sm:$0xff]
        %v3022 = vld [vmem:[#allocation2 + $0x330] sm:$0xff]
        %v3023 = vld [vmem:[#allocation2 + $0x338] sm:$0xff]
        %v3024 = vld [vmem:[#allocation2 + $0x340] sm:$0xff]
        %v3025 = vld [vmem:[#allocation2 + $0x348] sm:$0xff]
        %v3026 = vld [vmem:[#allocation2 + $0x350] sm:$0xff]
        %v3027 = vld [vmem:[#allocation2 + $0x358] sm:$0xff]
        %v3028 = vld [vmem:[#allocation2 + $0x360] sm:$0xff]
        %v3029 = vld [vmem:[#allocation2 + $0x368] sm:$0xff]
        %v3030 = vld [vmem:[#allocation2 + $0x370] sm:$0xff]
        %v3031 = vld [vmem:[#allocation2 + $0x378] sm:$0xff]
        %v3032 = vld [vmem:[#allocation2 + $0x380] sm:$0xff]
        %v3033 = vld [vmem:[#allocation2 + $0x388] sm:$0xff]
        %v3034 = vld [vmem:[#allocation2 + $0x390] sm:$0xff]
        %v3035 = vld [vmem:[#allocation2 + $0x398] sm:$0xff]
        %v3036 = vld [vmem:[#allocation2 + $0x3a0] sm:$0xff]
        %v3037 = vld [vmem:[#allocation2 + $0x3a8] sm:$0xff]
        %v3038 = vld [vmem:[#allocation2 + $0x3b0] sm:$0xff]
        %v3039 = vld [vmem:[#allocation2 + $0x3b8] sm:$0xff]
        %v3040 = vld [vmem:[#allocation2 + $0x3c0] sm:$0xff]
        %v3041 = vld [vmem:[#allocation2 + $0x3c8] sm:$0xff]
        %v3042 = vld [vmem:[#allocation2 + $0x3d0] sm:$0xff]
        %v3043 = vld [vmem:[#allocation2 + $0x3d8] sm:$0xff]
        %v3044 = vld [vmem:[#allocation2 + $0x3e0] sm:$0xff]
        %v3045 = vld [vmem:[#allocation2 + $0x3e8] sm:$0xff]
        %v3046 = vld [vmem:[#allocation2 + $0x3f0] sm:$0xff]
        %v3047 = vld [vmem:[#allocation2 + $0x3f8] sm:$0xff]
        %v3048 = vld [vmem:[%s5] sm:$0xf]
        %v3050 = vlaneseq
        %v3051 = vshrl.u32 %v3050, 7
        %v3052 = vsub.s32 0, %v3051
        %v3053 = vrot.slane %v3048, %v3052
        %v3054 = vlaneseq
        %v3055 = vshrl.u32 %v3054, 7
        %v3056 = vsub.s32 1, %v3055
        %v3057 = vrot.slane %v3048, %v3056
        %v3058 = vlaneseq
        %v3059 = vshrl.u32 %v3058, 7
        %v3060 = vsub.s32 2, %v3059
        %v3061 = vrot.slane %v3048, %v3060
        %v3062 = vlaneseq
        %v3063 = vshrl.u32 %v3062, 7
        %v3064 = vsub.s32 3, %v3063
        %v3065 = vrot.slane %v3048, %v3064
        %v3198 = vunpack.c.l.b16 %v2920
        %v3199 = vunpack.c.h.b16 %v2920
        %v3200 = vunpack.c.l.b16 %v2921
        %v3201 = vunpack.c.h.b16 %v2921
        %v3202 = vunpack.c.l.b16 %v2922
        %v3203 = vunpack.c.h.b16 %v2922
        %v3204 = vunpack.c.l.b16 %v2923
        %v3205 = vunpack.c.h.b16 %v2923
        %v3206 = vunpack.c.l.b16 %v2924
        %v3207 = vunpack.c.h.b16 %v2924
        %v3208 = vunpack.c.l.b16 %v2925
        %v3209 = vunpack.c.h.b16 %v2925
        %v3210 = vunpack.c.l.b16 %v2926
        %v3211 = vunpack.c.h.b16 %v2926
        %v3212 = vunpack.c.l.b16 %v2927
        %v3213 = vunpack.c.h.b16 %v2927
        %v3214 = vunpack.c.l.b16 %v2928
        %v3215 = vunpack.c.h.b16 %v2928
        %v3216 = vunpack.c.l.b16 %v2929
        %v3217 = vunpack.c.h.b16 %v2929
        %v3218 = vunpack.c.l.b16 %v2930
        %v3219 = vunpack.c.h.b16 %v2930
        %v3220 = vunpack.c.l.b16 %v2931
        %v3221 = vunpack.c.h.b16 %v2931
        %v3222 = vunpack.c.l.b16 %v2932
        %v3223 = vunpack.c.h.b16 %v2932
        %v3224 = vunpack.c.l.b16 %v2933
        %v3225 = vunpack.c.h.b16 %v2933
        %v3226 = vunpack.c.l.b16 %v2934
        %v3227 = vunpack.c.h.b16 %v2934
        %v3228 = vunpack.c.l.b16 %v2935
        %v3229 = vunpack.c.h.b16 %v2935
        %v3230 = vunpack.c.l.b16 %v2936
        %v3231 = vunpack.c.h.b16 %v2936
        %v3232 = vunpack.c.l.b16 %v2937
        %v3233 = vunpack.c.h.b16 %v2937
        %v3234 = vunpack.c.l.b16 %v2938
        %v3235 = vunpack.c.h.b16 %v2938
        %v3236 = vunpack.c.l.b16 %v2939
        %v3237 = vunpack.c.h.b16 %v2939
        %v3238 = vunpack.c.l.b16 %v2940
        %v3239 = vunpack.c.h.b16 %v2940
        %v3240 = vunpack.c.l.b16 %v2941
        %v3241 = vunpack.c.h.b16 %v2941
        %v3242 = vunpack.c.l.b16 %v2942
        %v3243 = vunpack.c.h.b16 %v2942
        %v3244 = vunpack.c.l.b16 %v2943
        %v3245 = vunpack.c.h.b16 %v2943
        %v3246 = vunpack.c.l.b16 %v2944
        %v3247 = vunpack.c.h.b16 %v2944
        %v3248 = vunpack.c.l.b16 %v2945
        %v3249 = vunpack.c.h.b16 %v2945
        %v3250 = vunpack.c.l.b16 %v2946
        %v3251 = vunpack.c.h.b16 %v2946
        %v3252 = vunpack.c.l.b16 %v2947
        %v3253 = vunpack.c.h.b16 %v2947
        %v3254 = vunpack.c.l.b16 %v2948
        %v3255 = vunpack.c.h.b16 %v2948
        %v3256 = vunpack.c.l.b16 %v2949
        %v3257 = vunpack.c.h.b16 %v2949
        %v3258 = vunpack.c.l.b16 %v2950
        %v3259 = vunpack.c.h.b16 %v2950
        %v3260 = vunpack.c.l.b16 %v2951
        %v3261 = vunpack.c.h.b16 %v2951
        %v3262 = vunpack.c.l.b16 %v2952
        %v3263 = vunpack.c.h.b16 %v2952
        %v3264 = vunpack.c.l.b16 %v2953
        %v3265 = vunpack.c.h.b16 %v2953
        %v3266 = vunpack.c.l.b16 %v2954
        %v3267 = vunpack.c.h.b16 %v2954
        %v3268 = vunpack.c.l.b16 %v2955
        %v3269 = vunpack.c.h.b16 %v2955
        %v3270 = vunpack.c.l.b16 %v2956
        %v3271 = vunpack.c.h.b16 %v2956
        %v3272 = vunpack.c.l.b16 %v2957
        %v3273 = vunpack.c.h.b16 %v2957
        %v3274 = vunpack.c.l.b16 %v2958
        %v3275 = vunpack.c.h.b16 %v2958
        %v3276 = vunpack.c.l.b16 %v2959
        %v3277 = vunpack.c.h.b16 %v2959
        %v3278 = vunpack.c.l.b16 %v2960
        %v3279 = vunpack.c.h.b16 %v2960
        %v3280 = vunpack.c.l.b16 %v2961
        %v3281 = vunpack.c.h.b16 %v2961
        %v3282 = vunpack.c.l.b16 %v2962
        %v3283 = vunpack.c.h.b16 %v2962
        %v3284 = vunpack.c.l.b16 %v2963
        %v3285 = vunpack.c.h.b16 %v2963
        %v3286 = vunpack.c.l.b16 %v2964
        %v3287 = vunpack.c.h.b16 %v2964
        %v3288 = vunpack.c.l.b16 %v2965
        %v3289 = vunpack.c.h.b16 %v2965
        %v3290 = vunpack.c.l.b16 %v2966
        %v3291 = vunpack.c.h.b16 %v2966
        %v3292 = vunpack.c.l.b16 %v2967
        %v3293 = vunpack.c.h.b16 %v2967
        %v3294 = vunpack.c.l.b16 %v2968
        %v3295 = vunpack.c.h.b16 %v2968
        %v3296 = vunpack.c.l.b16 %v2969
        %v3297 = vunpack.c.h.b16 %v2969
        %v3298 = vunpack.c.l.b16 %v2970
        %v3299 = vunpack.c.h.b16 %v2970
        %v3300 = vunpack.c.l.b16 %v2971
        %v3301 = vunpack.c.h.b16 %v2971
        %v3302 = vunpack.c.l.b16 %v2972
        %v3303 = vunpack.c.h.b16 %v2972
        %v3304 = vunpack.c.l.b16 %v2973
        %v3305 = vunpack.c.h.b16 %v2973
        %v3306 = vunpack.c.l.b16 %v2974
        %v3307 = vunpack.c.h.b16 %v2974
        %v3308 = vunpack.c.l.b16 %v2975
        %v3309 = vunpack.c.h.b16 %v2975
        %v3310 = vunpack.c.l.b16 %v2976
        %v3311 = vunpack.c.h.b16 %v2976
        %v3312 = vunpack.c.l.b16 %v2977
        %v3313 = vunpack.c.h.b16 %v2977
        %v3314 = vunpack.c.l.b16 %v2978
        %v3315 = vunpack.c.h.b16 %v2978
        %v3316 = vunpack.c.l.b16 %v2979
        %v3317 = vunpack.c.h.b16 %v2979
        %v3318 = vunpack.c.l.b16 %v2980
        %v3319 = vunpack.c.h.b16 %v2980
        %v3320 = vunpack.c.l.b16 %v2981
        %v3321 = vunpack.c.h.b16 %v2981
        %v3322 = vunpack.c.l.b16 %v2982
        %v3323 = vunpack.c.h.b16 %v2982
        %v3324 = vunpack.c.l.b16 %v2983
        %v3325 = vunpack.c.h.b16 %v2983
        %v3326 = vunpack.c.l.b16 %v2984
        %v3327 = vunpack.c.h.b16 %v2984
        %v3328 = vunpack.c.l.b16 %v2985
        %v3329 = vunpack.c.h.b16 %v2985
        %v3330 = vunpack.c.l.b16 %v2986
        %v3331 = vunpack.c.h.b16 %v2986
        %v3332 = vunpack.c.l.b16 %v2987
        %v3333 = vunpack.c.h.b16 %v2987
        %v3334 = vunpack.c.l.b16 %v2988
        %v3335 = vunpack.c.h.b16 %v2988
        %v3336 = vunpack.c.l.b16 %v2989
        %v3337 = vunpack.c.h.b16 %v2989
        %v3338 = vunpack.c.l.b16 %v2990
        %v3339 = vunpack.c.h.b16 %v2990
        %v3340 = vunpack.c.l.b16 %v2991
        %v3341 = vunpack.c.h.b16 %v2991
        %v3342 = vunpack.c.l.b16 %v2992
        %v3343 = vunpack.c.h.b16 %v2992
        %v3344 = vunpack.c.l.b16 %v2993
        %v3345 = vunpack.c.h.b16 %v2993
        %v3346 = vunpack.c.l.b16 %v2994
        %v3347 = vunpack.c.h.b16 %v2994
        %v3348 = vunpack.c.l.b16 %v2995
        %v3349 = vunpack.c.h.b16 %v2995
        %v3350 = vunpack.c.l.b16 %v2996
        %v3351 = vunpack.c.h.b16 %v2996
        %v3352 = vunpack.c.l.b16 %v2997
        %v3353 = vunpack.c.h.b16 %v2997
        %v3354 = vunpack.c.l.b16 %v2998
        %v3355 = vunpack.c.h.b16 %v2998
        %v3356 = vunpack.c.l.b16 %v2999
        %v3357 = vunpack.c.h.b16 %v2999
        %v3358 = vunpack.c.l.b16 %v3000
        %v3359 = vunpack.c.h.b16 %v3000
        %v3360 = vunpack.c.l.b16 %v3001
        %v3361 = vunpack.c.h.b16 %v3001
        %v3362 = vunpack.c.l.b16 %v3002
        %v3363 = vunpack.c.h.b16 %v3002
        %v3364 = vunpack.c.l.b16 %v3003
        %v3365 = vunpack.c.h.b16 %v3003
        %v3366 = vunpack.c.l.b16 %v3004
        %v3367 = vunpack.c.h.b16 %v3004
        %v3368 = vunpack.c.l.b16 %v3005
        %v3369 = vunpack.c.h.b16 %v3005
        %v3370 = vunpack.c.l.b16 %v3006
        %v3371 = vunpack.c.h.b16 %v3006
        %v3372 = vunpack.c.l.b16 %v3007
        %v3373 = vunpack.c.h.b16 %v3007
        %v3374 = vunpack.c.l.b16 %v3008
        %v3375 = vunpack.c.h.b16 %v3008
        %v3376 = vunpack.c.l.b16 %v3009
        %v3377 = vunpack.c.h.b16 %v3009
        %v3378 = vunpack.c.l.b16 %v3010
        %v3379 = vunpack.c.h.b16 %v3010
        %v3380 = vunpack.c.l.b16 %v3011
        %v3381 = vunpack.c.h.b16 %v3011
        %v3382 = vunpack.c.l.b16 %v3012
        %v3383 = vunpack.c.h.b16 %v3012
        %v3384 = vunpack.c.l.b16 %v3013
        %v3385 = vunpack.c.h.b16 %v3013
        %v3386 = vunpack.c.l.b16 %v3014
        %v3387 = vunpack.c.h.b16 %v3014
        %v3388 = vunpack.c.l.b16 %v3015
        %v3389 = vunpack.c.h.b16 %v3015
        %v3390 = vunpack.c.l.b16 %v3016
        %v3391 = vunpack.c.h.b16 %v3016
        %v3392 = vunpack.c.l.b16 %v3017
        %v3393 = vunpack.c.h.b16 %v3017
        %v3394 = vunpack.c.l.b16 %v3018
        %v3395 = vunpack.c.h.b16 %v3018
        %v3396 = vunpack.c.l.b16 %v3019
        %v3397 = vunpack.c.h.b16 %v3019
        %v3398 = vunpack.c.l.b16 %v3020
        %v3399 = vunpack.c.h.b16 %v3020
        %v3400 = vunpack.c.l.b16 %v3021
        %v3401 = vunpack.c.h.b16 %v3021
        %v3402 = vunpack.c.l.b16 %v3022
        %v3403 = vunpack.c.h.b16 %v3022
        %v3404 = vunpack.c.l.b16 %v3023
        %v3405 = vunpack.c.h.b16 %v3023
        %v3406 = vunpack.c.l.b16 %v3024
        %v3407 = vunpack.c.h.b16 %v3024
        %v3408 = vunpack.c.l.b16 %v3025
        %v3409 = vunpack.c.h.b16 %v3025
        %v3410 = vunpack.c.l.b16 %v3026
        %v3411 = vunpack.c.h.b16 %v3026
        %v3412 = vunpack.c.l.b16 %v3027
        %v3413 = vunpack.c.h.b16 %v3027
        %v3414 = vunpack.c.l.b16 %v3028
        %v3415 = vunpack.c.h.b16 %v3028
        %v3416 = vunpack.c.l.b16 %v3029
        %v3417 = vunpack.c.h.b16 %v3029
        %v3418 = vunpack.c.l.b16 %v3030
        %v3419 = vunpack.c.h.b16 %v3030
        %v3420 = vunpack.c.l.b16 %v3031
        %v3421 = vunpack.c.h.b16 %v3031
        %v3422 = vunpack.c.l.b16 %v3032
        %v3423 = vunpack.c.h.b16 %v3032
        %v3424 = vunpack.c.l.b16 %v3033
        %v3425 = vunpack.c.h.b16 %v3033
        %v3426 = vunpack.c.l.b16 %v3034
        %v3427 = vunpack.c.h.b16 %v3034
        %v3428 = vunpack.c.l.b16 %v3035
        %v3429 = vunpack.c.h.b16 %v3035
        %v3430 = vunpack.c.l.b16 %v3036
        %v3431 = vunpack.c.h.b16 %v3036
        %v3432 = vunpack.c.l.b16 %v3037
        %v3433 = vunpack.c.h.b16 %v3037
        %v3434 = vunpack.c.l.b16 %v3038
        %v3435 = vunpack.c.h.b16 %v3038
        %v3436 = vunpack.c.l.b16 %v3039
        %v3437 = vunpack.c.h.b16 %v3039
        %v3438 = vunpack.c.l.b16 %v3040
        %v3439 = vunpack.c.h.b16 %v3040
        %v3440 = vunpack.c.l.b16 %v3041
        %v3441 = vunpack.c.h.b16 %v3041
        %v3442 = vunpack.c.l.b16 %v3042
        %v3443 = vunpack.c.h.b16 %v3042
        %v3444 = vunpack.c.l.b16 %v3043
        %v3445 = vunpack.c.h.b16 %v3043
        %v3446 = vunpack.c.l.b16 %v3044
        %v3447 = vunpack.c.h.b16 %v3044
        %v3448 = vunpack.c.l.b16 %v3045
        %v3449 = vunpack.c.h.b16 %v3045
        %v3450 = vunpack.c.l.b16 %v3046
        %v3451 = vunpack.c.h.b16 %v3046
        %v3452 = vunpack.c.l.b16 %v3047
        %v3453 = vunpack.c.h.b16 %v3047
        %v3454 = vpack.c.b16 %v3202, %v3198
        %v3455 = vpack.c.b16 %v3203, %v3199
        %v3456 = vpack.c.b16 %v3204, %v3200
        %v3457 = vpack.c.b16 %v3205, %v3201
        %v3458 = vpack.c.b16 %v3210, %v3206
        %v3459 = vpack.c.b16 %v3211, %v3207
        %v3460 = vpack.c.b16 %v3212, %v3208
        %v3461 = vpack.c.b16 %v3213, %v3209
        %v3462 = vpack.c.b16 %v3218, %v3214
        %v3463 = vpack.c.b16 %v3219, %v3215
        %v3464 = vpack.c.b16 %v3220, %v3216
        %v3465 = vpack.c.b16 %v3221, %v3217
        %v3466 = vpack.c.b16 %v3226, %v3222
        %v3467 = vpack.c.b16 %v3227, %v3223
        %v3468 = vpack.c.b16 %v3228, %v3224
        %v3469 = vpack.c.b16 %v3229, %v3225
        %v3470 = vpack.c.b16 %v3234, %v3230
        %v3471 = vpack.c.b16 %v3235, %v3231
        %v3472 = vpack.c.b16 %v3236, %v3232
        %v3473 = vpack.c.b16 %v3237, %v3233
        %v3474 = vpack.c.b16 %v3242, %v3238
        %v3475 = vpack.c.b16 %v3243, %v3239
        %v3476 = vpack.c.b16 %v3244, %v3240
        %v3477 = vpack.c.b16 %v3245, %v3241
        %v3478 = vpack.c.b16 %v3250, %v3246
        %v3479 = vpack.c.b16 %v3251, %v3247
        %v3480 = vpack.c.b16 %v3252, %v3248
        %v3481 = vpack.c.b16 %v3253, %v3249
        %v3482 = vpack.c.b16 %v3258, %v3254
        %v3483 = vpack.c.b16 %v3259, %v3255
        %v3484 = vpack.c.b16 %v3260, %v3256
        %v3485 = vpack.c.b16 %v3261, %v3257
        %v3486 = vpack.c.b16 %v3266, %v3262
        %v3487 = vpack.c.b16 %v3267, %v3263
        %v3488 = vpack.c.b16 %v3268, %v3264
        %v3489 = vpack.c.b16 %v3269, %v3265
        %v3490 = vpack.c.b16 %v3274, %v3270
        %v3491 = vpack.c.b16 %v3275, %v3271
        %v3492 = vpack.c.b16 %v3276, %v3272
        %v3493 = vpack.c.b16 %v3277, %v3273
        %v3494 = vpack.c.b16 %v3282, %v3278
        %v3495 = vpack.c.b16 %v3283, %v3279
        %v3496 = vpack.c.b16 %v3284, %v3280
        %v3497 = vpack.c.b16 %v3285, %v3281
        %v3498 = vpack.c.b16 %v3290, %v3286
        %v3499 = vpack.c.b16 %v3291, %v3287
        %v3500 = vpack.c.b16 %v3292, %v3288
        %v3501 = vpack.c.b16 %v3293, %v3289
        %v3502 = vpack.c.b16 %v3298, %v3294
        %v3503 = vpack.c.b16 %v3299, %v3295
        %v3504 = vpack.c.b16 %v3300, %v3296
        %v3505 = vpack.c.b16 %v3301, %v3297
        %v3506 = vpack.c.b16 %v3306, %v3302
        %v3507 = vpack.c.b16 %v3307, %v3303
        %v3508 = vpack.c.b16 %v3308, %v3304
        %v3509 = vpack.c.b16 %v3309, %v3305
        %v3510 = vpack.c.b16 %v3314, %v3310
        %v3511 = vpack.c.b16 %v3315, %v3311
        %v3512 = vpack.c.b16 %v3316, %v3312
        %v3513 = vpack.c.b16 %v3317, %v3313
        %v3514 = vpack.c.b16 %v3322, %v3318
        %v3515 = vpack.c.b16 %v3323, %v3319
        %v3516 = vpack.c.b16 %v3324, %v3320
        %v3517 = vpack.c.b16 %v3325, %v3321
        %v3518 = vpack.c.b16 %v3330, %v3326
        %v3519 = vpack.c.b16 %v3331, %v3327
        %v3520 = vpack.c.b16 %v3332, %v3328
        %v3521 = vpack.c.b16 %v3333, %v3329
        %v3522 = vpack.c.b16 %v3338, %v3334
        %v3523 = vpack.c.b16 %v3339, %v3335
        %v3524 = vpack.c.b16 %v3340, %v3336
        %v3525 = vpack.c.b16 %v3341, %v3337
        %v3526 = vpack.c.b16 %v3346, %v3342
        %v3527 = vpack.c.b16 %v3347, %v3343
        %v3528 = vpack.c.b16 %v3348, %v3344
        %v3529 = vpack.c.b16 %v3349, %v3345
        %v3530 = vpack.c.b16 %v3354, %v3350
        %v3531 = vpack.c.b16 %v3355, %v3351
        %v3532 = vpack.c.b16 %v3356, %v3352
        %v3533 = vpack.c.b16 %v3357, %v3353
        %v3534 = vpack.c.b16 %v3362, %v3358
        %v3535 = vpack.c.b16 %v3363, %v3359
        %v3536 = vpack.c.b16 %v3364, %v3360
        %v3537 = vpack.c.b16 %v3365, %v3361
        %v3538 = vpack.c.b16 %v3370, %v3366
        %v3539 = vpack.c.b16 %v3371, %v3367
        %v3540 = vpack.c.b16 %v3372, %v3368
        %v3541 = vpack.c.b16 %v3373, %v3369
        %v3542 = vpack.c.b16 %v3378, %v3374
        %v3543 = vpack.c.b16 %v3379, %v3375
        %v3544 = vpack.c.b16 %v3380, %v3376
        %v3545 = vpack.c.b16 %v3381, %v3377
        %v3546 = vpack.c.b16 %v3386, %v3382
        %v3547 = vpack.c.b16 %v3387, %v3383
        %v3548 = vpack.c.b16 %v3388, %v3384
        %v3549 = vpack.c.b16 %v3389, %v3385
        %v3550 = vpack.c.b16 %v3394, %v3390
        %v3551 = vpack.c.b16 %v3395, %v3391
        %v3552 = vpack.c.b16 %v3396, %v3392
        %v3553 = vpack.c.b16 %v3397, %v3393
        %v3554 = vpack.c.b16 %v3402, %v3398
        %v3555 = vpack.c.b16 %v3403, %v3399
        %v3556 = vpack.c.b16 %v3404, %v3400
        %v3557 = vpack.c.b16 %v3405, %v3401
        %v3558 = vpack.c.b16 %v3410, %v3406
        %v3559 = vpack.c.b16 %v3411, %v3407
        %v3560 = vpack.c.b16 %v3412, %v3408
        %v3561 = vpack.c.b16 %v3413, %v3409
        %v3562 = vpack.c.b16 %v3418, %v3414
        %v3563 = vpack.c.b16 %v3419, %v3415
        %v3564 = vpack.c.b16 %v3420, %v3416
        %v3565 = vpack.c.b16 %v3421, %v3417
        %v3566 = vpack.c.b16 %v3426, %v3422
        %v3567 = vpack.c.b16 %v3427, %v3423
        %v3568 = vpack.c.b16 %v3428, %v3424
        %v3569 = vpack.c.b16 %v3429, %v3425
        %v3570 = vpack.c.b16 %v3434, %v3430
        %v3571 = vpack.c.b16 %v3435, %v3431
        %v3572 = vpack.c.b16 %v3436, %v3432
        %v3573 = vpack.c.b16 %v3437, %v3433
        %v3574 = vpack.c.b16 %v3442, %v3438
        %v3575 = vpack.c.b16 %v3443, %v3439
        %v3576 = vpack.c.b16 %v3444, %v3440
        %v3577 = vpack.c.b16 %v3445, %v3441
        %v3578 = vpack.c.b16 %v3450, %v3446
        %v3579 = vpack.c.b16 %v3451, %v3447
        %v3580 = vpack.c.b16 %v3452, %v3448
        %v3581 = vpack.c.b16 %v3453, %v3449
        %3710 = vmatprep.subr.bf16.mxu0 %v3455
        %3711 = vmatpush1.bf16.msra.mxu0 %v3454
        %3712 = vmatprep.subr.bf16.mxu0 %v3459
        %3713 = vmatpush1.bf16.msra.mxu0 %v3458
        %3714 = vmatprep.subr.bf16.mxu0 %v3463
        %3715 = vmatpush1.bf16.msra.mxu0 %v3462
        %3716 = vmatprep.subr.bf16.mxu0 %v3467
        %3717 = vmatpush1.bf16.msra.mxu0 %v3466
        %3718 = vmatprep.subr.bf16.mxu0 %v3471
        %3719 = vmatpush1.bf16.msra.mxu0 %v3470
        %3720 = vmatprep.subr.bf16.mxu0 %v3475
        %3721 = vmatpush1.bf16.msra.mxu0 %v3474
        %3722 = vmatprep.subr.bf16.mxu0 %v3479
        %3723 = vmatpush1.bf16.msra.mxu0 %v3478
        %3724 = vmatprep.subr.bf16.mxu0 %v3483
        %3725 = vmatpush1.bf16.msra.mxu0 %v3482
        %3726 = vmatprep.subr.bf16.mxu0 %v3487
        %3727 = vmatpush1.bf16.msra.mxu0 %v3486
        %3728 = vmatprep.subr.bf16.mxu0 %v3491
        %3729 = vmatpush1.bf16.msra.mxu0 %v3490
        %3730 = vmatprep.subr.bf16.mxu0 %v3495
        %3731 = vmatpush1.bf16.msra.mxu0 %v3494
        %3732 = vmatprep.subr.bf16.mxu0 %v3499
        %3733 = vmatpush1.bf16.msra.mxu0 %v3498
        %3734 = vmatprep.subr.bf16.mxu0 %v3503
        %3735 = vmatpush1.bf16.msra.mxu0 %v3502
        %3736 = vmatprep.subr.bf16.mxu0 %v3507
        %3737 = vmatpush1.bf16.msra.mxu0 %v3506
        %3738 = vmatprep.subr.bf16.mxu0 %v3511
        %3739 = vmatpush1.bf16.msra.mxu0 %v3510
        %3740 = vmatprep.subr.bf16.mxu0 %v3515
        %3741 = vmatpush1.bf16.msra.mxu0 %v3514
        %3742 = vmatprep.mubr.bf16.mxu0 %v2889
        %3743 = vmatmul.mubr.bf16.gmra.mrb[0].mxu0 %v2888
        %v3744 = vpop.f32.mrb[0].mxu0
        %v3745 = vadd.f32 %v3053, %v3744
        %v3746 = vpop.f32.mrb[0].mxu0
        %v3747 = vadd.f32 %v3057, %v3746
        %v3748 = vpop.f32.mrb[0].mxu0
        %v3749 = vadd.f32 %v3053, %v3748
        %v3750 = vpop.f32.mrb[0].mxu0
        %v3751 = vadd.f32 %v3057, %v3750
        %3752 = vmatprep.mubr.bf16.mxu0 %v2893
        %3753 = vmatmul.mubr.bf16.gmra.mrb[0].mxu0 %v2892
        %v3754 = vpop.f32.mrb[0].mxu0
        %v3755 = vadd.f32 %v3053, %v3754
        %v3756 = vpop.f32.mrb[0].mxu0
        %v3757 = vadd.f32 %v3057, %v3756
        %v3758 = vpop.f32.mrb[0].mxu0
        %v3759 = vadd.f32 %v3053, %v3758
        %v3760 = vpop.f32.mrb[0].mxu0
        %v3761 = vadd.f32 %v3057, %v3760
        %3762 = vmatprep.mubr.bf16.mxu0 %v2897
        %3763 = vmatmul.mubr.bf16.gmra.mrb[0].mxu0 %v2896
        %v3764 = vpop.f32.mrb[0].mxu0
        %v3765 = vadd.f32 %v3053, %v3764
        %v3766 = vpop.f32.mrb[0].mxu0
        %v3767 = vadd.f32 %v3057, %v3766
        %v3768 = vpop.f32.mrb[0].mxu0
        %v3769 = vadd.f32 %v3053, %v3768
        %v3770 = vpop.f32.mrb[0].mxu0
        %v3771 = vadd.f32 %v3057, %v3770
        %3772 = vmatprep.mubr.bf16.mxu0 %v2901
        %3773 = vmatmul.mubr.bf16.gmra.mrb[0].mxu0 %v2900
        %v3774 = vpop.f32.mrb[0].mxu0
        %v3775 = vadd.f32 %v3053, %v3774
        %v3776 = vpop.f32.mrb[0].mxu0
        %v3777 = vadd.f32 %v3057, %v3776
        %v3778 = vpop.f32.mrb[0].mxu0
        %v3779 = vadd.f32 %v3053, %v3778
        %v3780 = vpop.f32.mrb[0].mxu0
        %v3781 = vadd.f32 %v3057, %v3780
        %3782 = vmatprep.mubr.bf16.mxu0 %v2905
        %3783 = vmatmul.mubr.bf16.gmra.mrb[0].mxu0 %v2904
        %v3784 = vpop.f32.mrb[0].mxu0
        %v3785 = vadd.f32 %v3053, %v3784
        %v3786 = vpop.f32.mrb[0].mxu0
        %v3787 = vadd.f32 %v3057, %v3786
        %v3788 = vpop.f32.mrb[0].mxu0
        %v3789 = vadd.f32 %v3053, %v3788
        %v3790 = vpop.f32.mrb[0].mxu0
        %v3791 = vadd.f32 %v3057, %v3790
        %3792 = vmatprep.mubr.bf16.mxu0 %v2909
        %3793 = vmatmul.mubr.bf16.gmra.mrb[0].mxu0 %v2908
        %v3794 = vpop.f32.mrb[0].mxu0
        %v3795 = vadd.f32 %v3053, %v3794
        %v3796 = vpop.f32.mrb[0].mxu0
        %v3797 = vadd.f32 %v3057, %v3796
        %v3798 = vpop.f32.mrb[0].mxu0
        %v3799 = vadd.f32 %v3053, %v3798
        %v3800 = vpop.f32.mrb[0].mxu0
        %v3801 = vadd.f32 %v3057, %v3800
        %3802 = vmatprep.mubr.bf16.mxu0 %v2913
        %3803 = vmatmul.mubr.bf16.gmra.mrb[0].mxu0 %v2912
        %v3804 = vpop.f32.mrb[0].mxu0
        %v3805 = vadd.f32 %v3053, %v3804
        %v3806 = vpop.f32.mrb[0].mxu0
        %v3807 = vadd.f32 %v3057, %v3806
        %v3808 = vpop.f32.mrb[0].mxu0
        %v3809 = vadd.f32 %v3053, %v3808
        %v3810 = vpop.f32.mrb[0].mxu0
        %v3811 = vadd.f32 %v3057, %v3810
        %3812 = vmatprep.mubr.bf16.mxu0 %v2917
        %3813 = vmatmul.mubr.bf16.gmra.mrb[0].mxu0 %v2916
        %v3814 = vpop.f32.mrb[0].mxu0
        %v3815 = vadd.f32 %v3053, %v3814
        %v3816 = vpop.f32.mrb[0].mxu0
        %v3817 = vadd.f32 %v3057, %v3816
        %v3818 = vpop.f32.mrb[0].mxu0
        %v3819 = vadd.f32 %v3053, %v3818
        %v3820 = vpop.f32.mrb[0].mxu0
        %v3821 = vadd.f32 %v3057, %v3820
        %3822 = vdwg.mxu0
        %3823 = vmatprep.subr.bf16.mxu0 %v3519
        %3824 = vmatpush1.bf16.msra.mxu0 %v3518
        %3825 = vmatprep.subr.bf16.mxu0 %v3523
        %3826 = vmatpush1.bf16.msra.mxu0 %v3522
        %3827 = vmatprep.subr.bf16.mxu0 %v3527
        %3828 = vmatpush1.bf16.msra.mxu0 %v3526
        %3829 = vmatprep.subr.bf16.mxu0 %v3531
        %3830 = vmatpush1.bf16.msra.mxu0 %v3530
        %3831 = vmatprep.subr.bf16.mxu0 %v3535
        %3832 = vmatpush1.bf16.msra.mxu0 %v3534
        %3833 = vmatprep.subr.bf16.mxu0 %v3539
        %3834 = vmatpush1.bf16.msra.mxu0 %v3538
        %3835 = vmatprep.subr.bf16.mxu0 %v3543
        %3836 = vmatpush1.bf16.msra.mxu0 %v3542
        %3837 = vmatprep.subr.bf16.mxu0 %v3547
        %3838 = vmatpush1.bf16.msra.mxu0 %v3546
        %3839 = vmatprep.subr.bf16.mxu0 %v3551
        %3840 = vmatpush1.bf16.msra.mxu0 %v3550
        %3841 = vmatprep.subr.bf16.mxu0 %v3555
        %3842 = vmatpush1.bf16.msra.mxu0 %v3554
        %3843 = vmatprep.subr.bf16.mxu0 %v3559
        %3844 = vmatpush1.bf16.msra.mxu0 %v3558
        %3845 = vmatprep.subr.bf16.mxu0 %v3563
        %3846 = vmatpush1.bf16.msra.mxu0 %v3562
        %3847 = vmatprep.subr.bf16.mxu0 %v3567
        %3848 = vmatpush1.bf16.msra.mxu0 %v3566
        %3849 = vmatprep.subr.bf16.mxu0 %v3571
        %3850 = vmatpush1.bf16.msra.mxu0 %v3570
        %3851 = vmatprep.subr.bf16.mxu0 %v3575
        %3852 = vmatpush1.bf16.msra.mxu0 %v3574
        %3853 = vmatprep.subr.bf16.mxu0 %v3579
        %3854 = vmatpush1.bf16.msra.mxu0 %v3578
        %3855 = vmatprep.mubr.bf16.mxu0 %v2891
        %3856 = vmatmul.mubr.bf16.gmra.mrb[0].mxu0 %v2890
        %v3857 = vpop.f32.mrb[0].mxu0
        %v3858 = vadd.f32 %v3745, %v3857
        %v3859 = vpop.f32.mrb[0].mxu0
        %v3860 = vadd.f32 %v3747, %v3859
        %v3861 = vpop.f32.mrb[0].mxu0
        %v3862 = vadd.f32 %v3749, %v3861
        %v3863 = vpop.f32.mrb[0].mxu0
        %v3864 = vadd.f32 %v3751, %v3863
        %3865 = vmatprep.mubr.bf16.mxu0 %v2895
        %3866 = vmatmul.mubr.bf16.gmra.mrb[0].mxu0 %v2894
        %v3867 = vpop.f32.mrb[0].mxu0
        %v3868 = vadd.f32 %v3755, %v3867
        %v3869 = vpop.f32.mrb[0].mxu0
        %v3870 = vadd.f32 %v3757, %v3869
        %v3871 = vpop.f32.mrb[0].mxu0
        %v3872 = vadd.f32 %v3759, %v3871
        %v3873 = vpop.f32.mrb[0].mxu0
        %v3874 = vadd.f32 %v3761, %v3873
        %3875 = vmatprep.mubr.bf16.mxu0 %v2899
        %3876 = vmatmul.mubr.bf16.gmra.mrb[0].mxu0 %v2898
        %v3877 = vpop.f32.mrb[0].mxu0
        %v3878 = vadd.f32 %v3765, %v3877
        %v3879 = vpop.f32.mrb[0].mxu0
        %v3880 = vadd.f32 %v3767, %v3879
        %v3881 = vpop.f32.mrb[0].mxu0
        %v3882 = vadd.f32 %v3769, %v3881
        %v3883 = vpop.f32.mrb[0].mxu0
        %v3884 = vadd.f32 %v3771, %v3883
        %3885 = vmatprep.mubr.bf16.mxu0 %v2903
        %3886 = vmatmul.mubr.bf16.gmra.mrb[0].mxu0 %v2902
        %v3887 = vpop.f32.mrb[0].mxu0
        %v3888 = vadd.f32 %v3775, %v3887
        %v3889 = vpop.f32.mrb[0].mxu0
        %v3890 = vadd.f32 %v3777, %v3889
        %v3891 = vpop.f32.mrb[0].mxu0
        %v3892 = vadd.f32 %v3779, %v3891
        %v3893 = vpop.f32.mrb[0].mxu0
        %v3894 = vadd.f32 %v3781, %v3893
        %3895 = vmatprep.mubr.bf16.mxu0 %v2907
        %3896 = vmatmul.mubr.bf16.gmra.mrb[0].mxu0 %v2906
        %v3897 = vpop.f32.mrb[0].mxu0
        %v3898 = vadd.f32 %v3785, %v3897
        %v3899 = vpop.f32.mrb[0].mxu0
        %v3900 = vadd.f32 %v3787, %v3899
        %v3901 = vpop.f32.mrb[0].mxu0
        %v3902 = vadd.f32 %v3789, %v3901
        %v3903 = vpop.f32.mrb[0].mxu0
        %v3904 = vadd.f32 %v3791, %v3903
        %3905 = vmatprep.mubr.bf16.mxu0 %v2911
        %3906 = vmatmul.mubr.bf16.gmra.mrb[0].mxu0 %v2910
        %v3907 = vpop.f32.mrb[0].mxu0
        %v3908 = vadd.f32 %v3795, %v3907
        %v3909 = vpop.f32.mrb[0].mxu0
        %v3910 = vadd.f32 %v3797, %v3909
        %v3911 = vpop.f32.mrb[0].mxu0
        %v3912 = vadd.f32 %v3799, %v3911
        %v3913 = vpop.f32.mrb[0].mxu0
        %v3914 = vadd.f32 %v3801, %v3913
        %3915 = vmatprep.mubr.bf16.mxu0 %v2915
        %3916 = vmatmul.mubr.bf16.gmra.mrb[0].mxu0 %v2914
        %v3917 = vpop.f32.mrb[0].mxu0
        %v3918 = vadd.f32 %v3805, %v3917
        %v3919 = vpop.f32.mrb[0].mxu0
        %v3920 = vadd.f32 %v3807, %v3919
        %v3921 = vpop.f32.mrb[0].mxu0
        %v3922 = vadd.f32 %v3809, %v3921
        %v3923 = vpop.f32.mrb[0].mxu0
        %v3924 = vadd.f32 %v3811, %v3923
        %3925 = vmatprep.mubr.bf16.mxu0 %v2919
        %3926 = vmatmul.mubr.bf16.gmra.mrb[0].mxu0 %v2918
        %v3927 = vpop.f32.mrb[0].mxu0
        %v3928 = vadd.f32 %v3815, %v3927
        %v3929 = vpop.f32.mrb[0].mxu0
        %v3930 = vadd.f32 %v3817, %v3929
        %v3931 = vpop.f32.mrb[0].mxu0
        %v3932 = vadd.f32 %v3819, %v3931
        %v3933 = vpop.f32.mrb[0].mxu0
        %v3934 = vadd.f32 %v3821, %v3933
        %3935 = vdwg.mxu0
        %3936 = vmatprep.subr.bf16.mxu0 %v3457
        %3937 = vmatpush1.bf16.msra.mxu0 %v3456
        %3938 = vmatprep.subr.bf16.mxu0 %v3461
        %3939 = vmatpush1.bf16.msra.mxu0 %v3460
        %3940 = vmatprep.subr.bf16.mxu0 %v3465
        %3941 = vmatpush1.bf16.msra.mxu0 %v3464
        %3942 = vmatprep.subr.bf16.mxu0 %v3469
        %3943 = vmatpush1.bf16.msra.mxu0 %v3468
        %3944 = vmatprep.subr.bf16.mxu0 %v3473
        %3945 = vmatpush1.bf16.msra.mxu0 %v3472
        %3946 = vmatprep.subr.bf16.mxu0 %v3477
        %3947 = vmatpush1.bf16.msra.mxu0 %v3476
        %3948 = vmatprep.subr.bf16.mxu0 %v3481
        %3949 = vmatpush1.bf16.msra.mxu0 %v3480
        %3950 = vmatprep.subr.bf16.mxu0 %v3485
        %3951 = vmatpush1.bf16.msra.mxu0 %v3484
        %3952 = vmatprep.subr.bf16.mxu0 %v3489
        %3953 = vmatpush1.bf16.msra.mxu0 %v3488
        %3954 = vmatprep.subr.bf16.mxu0 %v3493
        %3955 = vmatpush1.bf16.msra.mxu0 %v3492
        %3956 = vmatprep.subr.bf16.mxu0 %v3497
        %3957 = vmatpush1.bf16.msra.mxu0 %v3496
        %3958 = vmatprep.subr.bf16.mxu0 %v3501
        %3959 = vmatpush1.bf16.msra.mxu0 %v3500
        %3960 = vmatprep.subr.bf16.mxu0 %v3505
        %3961 = vmatpush1.bf16.msra.mxu0 %v3504
        %3962 = vmatprep.subr.bf16.mxu0 %v3509
        %3963 = vmatpush1.bf16.msra.mxu0 %v3508
        %3964 = vmatprep.subr.bf16.mxu0 %v3513
        %3965 = vmatpush1.bf16.msra.mxu0 %v3512
        %3966 = vmatprep.subr.bf16.mxu0 %v3517
        %3967 = vmatpush1.bf16.msra.mxu0 %v3516
        %3968 = vmatprep.mubr.bf16.mxu0 %v2889
        %3969 = vmatmul.mubr.bf16.gmra.mrb[0].mxu0 %v2888
        %v3970 = vpop.f32.mrb[0].mxu0
        %v3971 = vadd.f32 %v3061, %v3970
        %v3972 = vpop.f32.mrb[0].mxu0
        %v3973 = vadd.f32 %v3065, %v3972
        %v3974 = vpop.f32.mrb[0].mxu0
        %v3975 = vadd.f32 %v3061, %v3974
        %v3976 = vpop.f32.mrb[0].mxu0
        %v3977 = vadd.f32 %v3065, %v3976
        %3978 = vmatprep.mubr.bf16.mxu0 %v2893
        %3979 = vmatmul.mubr.bf16.gmra.mrb[0].mxu0 %v2892
        %v3980 = vpop.f32.mrb[0].mxu0
        %v3981 = vadd.f32 %v3061, %v3980
        %v3982 = vpop.f32.mrb[0].mxu0
        %v3983 = vadd.f32 %v3065, %v3982
        %v3984 = vpop.f32.mrb[0].mxu0
        %v3985 = vadd.f32 %v3061, %v3984
        %v3986 = vpop.f32.mrb[0].mxu0
        %v3987 = vadd.f32 %v3065, %v3986
        %3988 = vmatprep.mubr.bf16.mxu0 %v2897
        %3989 = vmatmul.mubr.bf16.gmra.mrb[0].mxu0 %v2896
        %v3990 = vpop.f32.mrb[0].mxu0
        %v3991 = vadd.f32 %v3061, %v3990
        %v3992 = vpop.f32.mrb[0].mxu0
        %v3993 = vadd.f32 %v3065, %v3992
        %v3994 = vpop.f32.mrb[0].mxu0
        %v3995 = vadd.f32 %v3061, %v3994
        %v3996 = vpop.f32.mrb[0].mxu0
        %v3997 = vadd.f32 %v3065, %v3996
        %3998 = vmatprep.mubr.bf16.mxu0 %v2901
        %3999 = vmatmul.mubr.bf16.gmra.mrb[0].mxu0 %v2900
        %v4000 = vpop.f32.mrb[0].mxu0
        %v4001 = vadd.f32 %v3061, %v4000
        %v4002 = vpop.f32.mrb[0].mxu0
        %v4003 = vadd.f32 %v3065, %v4002
        %v4004 = vpop.f32.mrb[0].mxu0
        %v4005 = vadd.f32 %v3061, %v4004
        %v4006 = vpop.f32.mrb[0].mxu0
        %v4007 = vadd.f32 %v3065, %v4006
        %4008 = vmatprep.mubr.bf16.mxu0 %v2905
        %4009 = vmatmul.mubr.bf16.gmra.mrb[0].mxu0 %v2904
        %v4010 = vpop.f32.mrb[0].mxu0
        %v4011 = vadd.f32 %v3061, %v4010
        %v4012 = vpop.f32.mrb[0].mxu0
        %v4013 = vadd.f32 %v3065, %v4012
        %v4014 = vpop.f32.mrb[0].mxu0
        %v4015 = vadd.f32 %v3061, %v4014
        %v4016 = vpop.f32.mrb[0].mxu0
        %v4017 = vadd.f32 %v3065, %v4016
        %4018 = vmatprep.mubr.bf16.mxu0 %v2909
        %4019 = vmatmul.mubr.bf16.gmra.mrb[0].mxu0 %v2908
        %v4020 = vpop.f32.mrb[0].mxu0
        %v4021 = vadd.f32 %v3061, %v4020
        %v4022 = vpop.f32.mrb[0].mxu0
        %v4023 = vadd.f32 %v3065, %v4022
        %v4024 = vpop.f32.mrb[0].mxu0
        %v4025 = vadd.f32 %v3061, %v4024
        %v4026 = vpop.f32.mrb[0].mxu0
        %v4027 = vadd.f32 %v3065, %v4026
        %4028 = vmatprep.mubr.bf16.mxu0 %v2913
        %4029 = vmatmul.mubr.bf16.gmra.mrb[0].mxu0 %v2912
        %v4030 = vpop.f32.mrb[0].mxu0
        %v4031 = vadd.f32 %v3061, %v4030
        %v4032 = vpop.f32.mrb[0].mxu0
        %v4033 = vadd.f32 %v3065, %v4032
        %v4034 = vpop.f32.mrb[0].mxu0
        %v4035 = vadd.f32 %v3061, %v4034
        %v4036 = vpop.f32.mrb[0].mxu0
        %v4037 = vadd.f32 %v3065, %v4036
        %4038 = vmatprep.mubr.bf16.mxu0 %v2917
        %4039 = vmatmul.mubr.bf16.gmra.mrb[0].mxu0 %v2916
        %v4040 = vpop.f32.mrb[0].mxu0
        %v4041 = vadd.f32 %v3061, %v4040
        %v4042 = vpop.f32.mrb[0].mxu0
        %v4043 = vadd.f32 %v3065, %v4042
        %v4044 = vpop.f32.mrb[0].mxu0
        %v4045 = vadd.f32 %v3061, %v4044
        %v4046 = vpop.f32.mrb[0].mxu0
        %v4047 = vadd.f32 %v3065, %v4046
        %4048 = vdwg.mxu0
        %4049 = vmatprep.subr.bf16.mxu0 %v3521
        %4050 = vmatpush1.bf16.msra.mxu0 %v3520
        %4051 = vmatprep.subr.bf16.mxu0 %v3525
        %4052 = vmatpush1.bf16.msra.mxu0 %v3524
        %4053 = vmatprep.subr.bf16.mxu0 %v3529
        %4054 = vmatpush1.bf16.msra.mxu0 %v3528
        %4055 = vmatprep.subr.bf16.mxu0 %v3533
        %4056 = vmatpush1.bf16.msra.mxu0 %v3532
        %4057 = vmatprep.subr.bf16.mxu0 %v3537
        %4058 = vmatpush1.bf16.msra.mxu0 %v3536
        %4059 = vmatprep.subr.bf16.mxu0 %v3541
        %4060 = vmatpush1.bf16.msra.mxu0 %v3540
        %4061 = vmatprep.subr.bf16.mxu0 %v3545
        %4062 = vmatpush1.bf16.msra.mxu0 %v3544
        %4063 = vmatprep.subr.bf16.mxu0 %v3549
        %4064 = vmatpush1.bf16.msra.mxu0 %v3548
        %4065 = vmatprep.subr.bf16.mxu0 %v3553
        %4066 = vmatpush1.bf16.msra.mxu0 %v3552
        %4067 = vmatprep.subr.bf16.mxu0 %v3557
        %4068 = vmatpush1.bf16.msra.mxu0 %v3556
        %4069 = vmatprep.subr.bf16.mxu0 %v3561
        %4070 = vmatpush1.bf16.msra.mxu0 %v3560
        %4071 = vmatprep.subr.bf16.mxu0 %v3565
        %4072 = vmatpush1.bf16.msra.mxu0 %v3564
        %4073 = vmatprep.subr.bf16.mxu0 %v3569
        %4074 = vmatpush1.bf16.msra.mxu0 %v3568
        %4075 = vmatprep.subr.bf16.mxu0 %v3573
        %4076 = vmatpush1.bf16.msra.mxu0 %v3572
        %4077 = vmatprep.subr.bf16.mxu0 %v3577
        %4078 = vmatpush1.bf16.msra.mxu0 %v3576
        %4079 = vmatprep.subr.bf16.mxu0 %v3581
        %4080 = vmatpush1.bf16.msra.mxu0 %v3580
        %4081 = vmatprep.mubr.bf16.mxu0 %v2891
        %4082 = vmatmul.mubr.bf16.gmra.mrb[0].mxu0 %v2890
        %v4083 = vpop.f32.mrb[0].mxu0
        %v4084 = vadd.f32 %v3971, %v4083
        %v4085 = vpop.f32.mrb[0].mxu0
        %v4086 = vadd.f32 %v3973, %v4085
        %v4087 = vpop.f32.mrb[0].mxu0
        %v4088 = vadd.f32 %v3975, %v4087
        %v4089 = vpop.f32.mrb[0].mxu0
        %v4090 = vadd.f32 %v3977, %v4089
        %4091 = vmatprep.mubr.bf16.mxu0 %v2895
        %4092 = vmatmul.mubr.bf16.gmra.mrb[0].mxu0 %v2894
        %v4093 = vpop.f32.mrb[0].mxu0
        %v4094 = vadd.f32 %v3981, %v4093
        %v4095 = vpop.f32.mrb[0].mxu0
        %v4096 = vadd.f32 %v3983, %v4095
        %v4097 = vpop.f32.mrb[0].mxu0
        %v4098 = vadd.f32 %v3985, %v4097
        %v4099 = vpop.f32.mrb[0].mxu0
        %v4100 = vadd.f32 %v3987, %v4099
        %4101 = vmatprep.mubr.bf16.mxu0 %v2899
        %4102 = vmatmul.mubr.bf16.gmra.mrb[0].mxu0 %v2898
        %v4103 = vpop.f32.mrb[0].mxu0
        %v4104 = vadd.f32 %v3991, %v4103
        %v4105 = vpop.f32.mrb[0].mxu0
        %v4106 = vadd.f32 %v3993, %v4105
        %v4107 = vpop.f32.mrb[0].mxu0
        %v4108 = vadd.f32 %v3995, %v4107
        %v4109 = vpop.f32.mrb[0].mxu0
        %v4110 = vadd.f32 %v3997, %v4109
        %4111 = vmatprep.mubr.bf16.mxu0 %v2903
        %4112 = vmatmul.mubr.bf16.gmra.mrb[0].mxu0 %v2902
        %v4113 = vpop.f32.mrb[0].mxu0
        %v4114 = vadd.f32 %v4001, %v4113
        %v4115 = vpop.f32.mrb[0].mxu0
        %v4116 = vadd.f32 %v4003, %v4115
        %v4117 = vpop.f32.mrb[0].mxu0
        %v4118 = vadd.f32 %v4005, %v4117
        %v4119 = vpop.f32.mrb[0].mxu0
        %v4120 = vadd.f32 %v4007, %v4119
        %4121 = vmatprep.mubr.bf16.mxu0 %v2907
        %4122 = vmatmul.mubr.bf16.gmra.mrb[0].mxu0 %v2906
        %v4123 = vpop.f32.mrb[0].mxu0
        %v4124 = vadd.f32 %v4011, %v4123
        %v4125 = vpop.f32.mrb[0].mxu0
        %v4126 = vadd.f32 %v4013, %v4125
        %v4127 = vpop.f32.mrb[0].mxu0
        %v4128 = vadd.f32 %v4015, %v4127
        %v4129 = vpop.f32.mrb[0].mxu0
        %v4130 = vadd.f32 %v4017, %v4129
        %4131 = vmatprep.mubr.bf16.mxu0 %v2911
        %4132 = vmatmul.mubr.bf16.gmra.mrb[0].mxu0 %v2910
        %v4133 = vpop.f32.mrb[0].mxu0
        %v4134 = vadd.f32 %v4021, %v4133
        %v4135 = vpop.f32.mrb[0].mxu0
        %v4136 = vadd.f32 %v4023, %v4135
        %v4137 = vpop.f32.mrb[0].mxu0
        %v4138 = vadd.f32 %v4025, %v4137
        %v4139 = vpop.f32.mrb[0].mxu0
        %v4140 = vadd.f32 %v4027, %v4139
        %4141 = vmatprep.mubr.bf16.mxu0 %v2915
        %4142 = vmatmul.mubr.bf16.gmra.mrb[0].mxu0 %v2914
        %v4143 = vpop.f32.mrb[0].mxu0
        %v4144 = vadd.f32 %v4031, %v4143
        %v4145 = vpop.f32.mrb[0].mxu0
        %v4146 = vadd.f32 %v4033, %v4145
        %v4147 = vpop.f32.mrb[0].mxu0
        %v4148 = vadd.f32 %v4035, %v4147
        %v4149 = vpop.f32.mrb[0].mxu0
        %v4150 = vadd.f32 %v4037, %v4149
        %4151 = vmatprep.mubr.bf16.mxu0 %v2919
        %4152 = vmatmul.mubr.bf16.gmra.mrb[0].mxu0 %v2918
        %v4153 = vpop.f32.mrb[0].mxu0
        %v4154 = vadd.f32 %v4041, %v4153
        %v4155 = vpop.f32.mrb[0].mxu0
        %v4156 = vadd.f32 %v4043, %v4155
        %v4157 = vpop.f32.mrb[0].mxu0
        %v4158 = vadd.f32 %v4045, %v4157
        %v4159 = vpop.f32.mrb[0].mxu0
        %v4160 = vadd.f32 %v4047, %v4159
        %4161 = vdwg.mxu0
        %v4162 = vmax.f32 %v3858, 0.0
        %v4163 = vmax.f32 %v3860, 0.0
        %v4164 = vmax.f32 %v4084, 0.0
        %v4165 = vmax.f32 %v4086, 0.0
        %v4166 = vmax.f32 %v3862, 0.0
        %v4167 = vmax.f32 %v3864, 0.0
        %v4168 = vmax.f32 %v4088, 0.0
        %v4169 = vmax.f32 %v4090, 0.0
        %v4170 = vmax.f32 %v3868, 0.0
        %v4171 = vmax.f32 %v3870, 0.0
        %v4172 = vmax.f32 %v4094, 0.0
        %v4173 = vmax.f32 %v4096, 0.0
        %v4174 = vmax.f32 %v3872, 0.0
        %v4175 = vmax.f32 %v3874, 0.0
        %v4176 = vmax.f32 %v4098, 0.0
        %v4177 = vmax.f32 %v4100, 0.0
        %v4178 = vmax.f32 %v3878, 0.0
        %v4179 = vmax.f32 %v3880, 0.0
        %v4180 = vmax.f32 %v4104, 0.0
        %v4181 = vmax.f32 %v4106, 0.0
        %v4182 = vmax.f32 %v3882, 0.0
        %v4183 = vmax.f32 %v3884, 0.0
        %v4184 = vmax.f32 %v4108, 0.0
        %v4185 = vmax.f32 %v4110, 0.0
        %v4186 = vmax.f32 %v3888, 0.0
        %v4187 = vmax.f32 %v3890, 0.0
        %v4188 = vmax.f32 %v4114, 0.0
        %v4189 = vmax.f32 %v4116, 0.0
        %v4190 = vmax.f32 %v3892, 0.0
        %v4191 = vmax.f32 %v3894, 0.0
        %v4192 = vmax.f32 %v4118, 0.0
        %v4193 = vmax.f32 %v4120, 0.0
        %v4194 = vmax.f32 %v3898, 0.0
        %v4195 = vmax.f32 %v3900, 0.0
        %v4196 = vmax.f32 %v4124, 0.0
        %v4197 = vmax.f32 %v4126, 0.0
        %v4198 = vmax.f32 %v3902, 0.0
        %v4199 = vmax.f32 %v3904, 0.0
        %v4200 = vmax.f32 %v4128, 0.0
        %v4201 = vmax.f32 %v4130, 0.0
        %v4202 = vmax.f32 %v3908, 0.0
        %v4203 = vmax.f32 %v3910, 0.0
        %v4204 = vmax.f32 %v4134, 0.0
        %v4205 = vmax.f32 %v4136, 0.0
        %v4206 = vmax.f32 %v3912, 0.0
        %v4207 = vmax.f32 %v3914, 0.0
        %v4208 = vmax.f32 %v4138, 0.0
        %v4209 = vmax.f32 %v4140, 0.0
        %v4210 = vmax.f32 %v3918, 0.0
        %v4211 = vmax.f32 %v3920, 0.0
        %v4212 = vmax.f32 %v4144, 0.0
        %v4213 = vmax.f32 %v4146, 0.0
        %v4214 = vmax.f32 %v3922, 0.0
        %v4215 = vmax.f32 %v3924, 0.0
        %v4216 = vmax.f32 %v4148, 0.0
        %v4217 = vmax.f32 %v4150, 0.0
        %v4218 = vmax.f32 %v3928, 0.0
        %v4219 = vmax.f32 %v3930, 0.0
        %v4220 = vmax.f32 %v4154, 0.0
        %v4221 = vmax.f32 %v4156, 0.0
        %v4222 = vmax.f32 %v3932, 0.0
        %v4223 = vmax.f32 %v3934, 0.0
        %v4224 = vmax.f32 %v4158, 0.0
        %v4225 = vmax.f32 %v4160, 0.0
        %v4226 = vld [vmem:[%s6] sm:$0xff]
        %v4227 = vld [vmem:[%s6 + $0x8] sm:$0xff]
        %v4228 = vld [vmem:[%s6 + $0x10] sm:$0xff]
        %v4229 = vld [vmem:[%s6 + $0x18] sm:$0xff]
        %v4230 = vld [vmem:[%s6 + $0x20] sm:$0xff]
        %v4231 = vld [vmem:[%s6 + $0x28] sm:$0xff]
        %v4232 = vld [vmem:[%s6 + $0x30] sm:$0xff]
        %v4233 = vld [vmem:[%s6 + $0x38] sm:$0xff]
        %v4234 = vld [vmem:[%s6 + $0x40] sm:$0xff]
        %v4235 = vld [vmem:[%s6 + $0x48] sm:$0xff]
        %v4236 = vld [vmem:[%s6 + $0x50] sm:$0xff]
        %v4237 = vld [vmem:[%s6 + $0x58] sm:$0xff]
        %v4238 = vld [vmem:[%s6 + $0x60] sm:$0xff]
        %v4239 = vld [vmem:[%s6 + $0x68] sm:$0xff]
        %v4240 = vld [vmem:[%s6 + $0x70] sm:$0xff]
        %v4241 = vld [vmem:[%s6 + $0x78] sm:$0xff]
        %v4242 = vld [vmem:[%s6 + $0x80] sm:$0xff]
        %v4243 = vld [vmem:[%s6 + $0x88] sm:$0xff]
        %v4244 = vld [vmem:[%s6 + $0x90] sm:$0xff]
        %v4245 = vld [vmem:[%s6 + $0x98] sm:$0xff]
        %v4246 = vld [vmem:[%s6 + $0xa0] sm:$0xff]
        %v4247 = vld [vmem:[%s6 + $0xa8] sm:$0xff]
        %v4248 = vld [vmem:[%s6 + $0xb0] sm:$0xff]
        %v4249 = vld [vmem:[%s6 + $0xb8] sm:$0xff]
        %v4250 = vld [vmem:[%s6 + $0xc0] sm:$0xff]
        %v4251 = vld [vmem:[%s6 + $0xc8] sm:$0xff]
        %v4252 = vld [vmem:[%s6 + $0xd0] sm:$0xff]
        %v4253 = vld [vmem:[%s6 + $0xd8] sm:$0xff]
        %v4254 = vld [vmem:[%s6 + $0xe0] sm:$0xff]
        %v4255 = vld [vmem:[%s6 + $0xe8] sm:$0xff]
        %v4256 = vld [vmem:[%s6 + $0xf0] sm:$0xff]
        %v4257 = vld [vmem:[%s6 + $0xf8] sm:$0xff]
        %v4258 = vld [vmem:[%s6 + $0x100] sm:$0xff]
        %v4259 = vld [vmem:[%s6 + $0x108] sm:$0xff]
        %v4260 = vld [vmem:[%s6 + $0x110] sm:$0xff]
        %v4261 = vld [vmem:[%s6 + $0x118] sm:$0xff]
        %v4262 = vld [vmem:[%s6 + $0x120] sm:$0xff]
        %v4263 = vld [vmem:[%s6 + $0x128] sm:$0xff]
        %v4264 = vld [vmem:[%s6 + $0x130] sm:$0xff]
        %v4265 = vld [vmem:[%s6 + $0x138] sm:$0xff]
        %v4266 = vld [vmem:[%s6 + $0x140] sm:$0xff]
        %v4267 = vld [vmem:[%s6 + $0x148] sm:$0xff]
        %v4268 = vld [vmem:[%s6 + $0x150] sm:$0xff]
        %v4269 = vld [vmem:[%s6 + $0x158] sm:$0xff]
        %v4270 = vld [vmem:[%s6 + $0x160] sm:$0xff]
        %v4271 = vld [vmem:[%s6 + $0x168] sm:$0xff]
        %v4272 = vld [vmem:[%s6 + $0x170] sm:$0xff]
        %v4273 = vld [vmem:[%s6 + $0x178] sm:$0xff]
        %v4274 = vld [vmem:[%s6 + $0x180] sm:$0xff]
        %v4275 = vld [vmem:[%s6 + $0x188] sm:$0xff]
        %v4276 = vld [vmem:[%s6 + $0x190] sm:$0xff]
        %v4277 = vld [vmem:[%s6 + $0x198] sm:$0xff]
        %v4278 = vld [vmem:[%s6 + $0x1a0] sm:$0xff]
        %v4279 = vld [vmem:[%s6 + $0x1a8] sm:$0xff]
        %v4280 = vld [vmem:[%s6 + $0x1b0] sm:$0xff]
        %v4281 = vld [vmem:[%s6 + $0x1b8] sm:$0xff]
        %v4282 = vld [vmem:[%s6 + $0x1c0] sm:$0xff]
        %v4283 = vld [vmem:[%s6 + $0x1c8] sm:$0xff]
        %v4284 = vld [vmem:[%s6 + $0x1d0] sm:$0xff]
        %v4285 = vld [vmem:[%s6 + $0x1d8] sm:$0xff]
        %v4286 = vld [vmem:[%s6 + $0x1e0] sm:$0xff]
        %v4287 = vld [vmem:[%s6 + $0x1e8] sm:$0xff]
        %v4288 = vld [vmem:[%s6 + $0x1f0] sm:$0xff]
        %v4289 = vld [vmem:[%s6 + $0x1f8] sm:$0xff]
        %v4290 = vld [vmem:[%s7] sm:$0x1]
        %v4292 = vlaneseq
        %v4293 = vshrl.u32 %v4292, 7
        %v4294 = vsub.s32 0, %v4293
        %v4295 = vrot.slane %v4290, %v4294
        %4297 = vmatprep.subr.mxu0 0.0
        %4298 = vmatpush1.msra.mxu0 %v4226
        %4299 = vmatprep.subr.mxu0 0.0
        %4300 = vmatpush1.msra.mxu0 %v4227
        %4301 = vmatprep.subr.mxu0 0.0
        %4302 = vmatpush1.msra.mxu0 %v4228
        %4303 = vmatprep.subr.mxu0 0.0
        %4304 = vmatpush1.msra.mxu0 %v4229
        %4305 = vmatprep.subr.mxu0 0.0
        %4306 = vmatpush1.msra.mxu0 %v4230
        %4307 = vmatprep.subr.mxu0 0.0
        %4308 = vmatpush1.msra.mxu0 %v4231
        %4309 = vmatprep.subr.mxu0 0.0
        %4310 = vmatpush1.msra.mxu0 %v4232
        %4311 = vmatprep.subr.mxu0 0.0
        %4312 = vmatpush1.msra.mxu0 %v4233
        %4313 = vmatprep.subr.mxu0 0.0
        %4314 = vmatpush1.msra.mxu0 %v4234
        %4315 = vmatprep.subr.mxu0 0.0
        %4316 = vmatpush1.msra.mxu0 %v4235
        %4317 = vmatprep.subr.mxu0 0.0
        %4318 = vmatpush1.msra.mxu0 %v4236
        %4319 = vmatprep.subr.mxu0 0.0
        %4320 = vmatpush1.msra.mxu0 %v4237
        %4321 = vmatprep.subr.mxu0 0.0
        %4322 = vmatpush1.msra.mxu0 %v4238
        %4323 = vmatprep.subr.mxu0 0.0
        %4324 = vmatpush1.msra.mxu0 %v4239
        %4325 = vmatprep.subr.mxu0 0.0
        %4326 = vmatpush1.msra.mxu0 %v4240
        %4327 = vmatprep.subr.mxu0 0.0
        %4328 = vmatpush1.msra.mxu0 %v4241
        %4329 = vmatprep.subr.mxu0 0.0
        %4330 = vmatpush1.msra.mxu0 %v4242
        %4331 = vmatprep.subr.mxu0 0.0
        %4332 = vmatpush1.msra.mxu0 %v4243
        %4333 = vmatprep.subr.mxu0 0.0
        %4334 = vmatpush1.msra.mxu0 %v4244
        %4335 = vmatprep.subr.mxu0 0.0
        %4336 = vmatpush1.msra.mxu0 %v4245
        %4337 = vmatprep.subr.mxu0 0.0
        %4338 = vmatpush1.msra.mxu0 %v4246
        %4339 = vmatprep.subr.mxu0 0.0
        %4340 = vmatpush1.msra.mxu0 %v4247
        %4341 = vmatprep.subr.mxu0 0.0
        %4342 = vmatpush1.msra.mxu0 %v4248
        %4343 = vmatprep.subr.mxu0 0.0
        %4344 = vmatpush1.msra.mxu0 %v4249
        %4345 = vmatprep.subr.mxu0 0.0
        %4346 = vmatpush1.msra.mxu0 %v4250
        %4347 = vmatprep.subr.mxu0 0.0
        %4348 = vmatpush1.msra.mxu0 %v4251
        %4349 = vmatprep.subr.mxu0 0.0
        %4350 = vmatpush1.msra.mxu0 %v4252
        %4351 = vmatprep.subr.mxu0 0.0
        %4352 = vmatpush1.msra.mxu0 %v4253
        %4353 = vmatprep.subr.mxu0 0.0
        %4354 = vmatpush1.msra.mxu0 %v4254
        %4355 = vmatprep.subr.mxu0 0.0
        %4356 = vmatpush1.msra.mxu0 %v4255
        %4357 = vmatprep.subr.mxu0 0.0
        %4358 = vmatpush1.msra.mxu0 %v4256
        %4359 = vmatprep.subr.mxu0 0.0
        %4360 = vmatpush1.msra.mxu0 %v4257
        %4361 = vmatprep.mubr.f32.mxu0 %v4163
        %4362 = vmatmul.mubr.f32.gmra.mrb[0].mxu0 %v4162
        %v4363 = vpop.f32.mrb[0].mxu0
        %v4364 = vadd.f32 %v4295, %v4363
        %v4365 = vpop.f32.mrb[0].mxu0
        %4366 = vmatprep.mubr.f32.mxu0 %v4167
        %4367 = vmatmul.mubr.f32.gmra.mrb[0].mxu0 %v4166
        %v4368 = vpop.f32.mrb[0].mxu0
        %v4369 = vadd.f32 %v4295, %v4368
        %v4370 = vpop.f32.mrb[0].mxu0
        %4371 = vmatprep.mubr.f32.mxu0 %v4171
        %4372 = vmatmul.mubr.f32.gmra.mrb[0].mxu0 %v4170
        %v4373 = vpop.f32.mrb[0].mxu0
        %v4374 = vadd.f32 %v4295, %v4373
        %v4375 = vpop.f32.mrb[0].mxu0
        %4376 = vmatprep.mubr.f32.mxu0 %v4175
        %4377 = vmatmul.mubr.f32.gmra.mrb[0].mxu0 %v4174
        %v4378 = vpop.f32.mrb[0].mxu0
        %v4379 = vadd.f32 %v4295, %v4378
        %v4380 = vpop.f32.mrb[0].mxu0
        %4381 = vmatprep.mubr.f32.mxu0 %v4179
        %4382 = vmatmul.mubr.f32.gmra.mrb[0].mxu0 %v4178
        %v4383 = vpop.f32.mrb[0].mxu0
        %v4384 = vadd.f32 %v4295, %v4383
        %v4385 = vpop.f32.mrb[0].mxu0
        %4386 = vmatprep.mubr.f32.mxu0 %v4183
        %4387 = vmatmul.mubr.f32.gmra.mrb[0].mxu0 %v4182
        %v4388 = vpop.f32.mrb[0].mxu0
        %v4389 = vadd.f32 %v4295, %v4388
        %v4390 = vpop.f32.mrb[0].mxu0
        %4391 = vmatprep.mubr.f32.mxu0 %v4187
        %4392 = vmatmul.mubr.f32.gmra.mrb[0].mxu0 %v4186
        %v4393 = vpop.f32.mrb[0].mxu0
        %v4394 = vadd.f32 %v4295, %v4393
        %v4395 = vpop.f32.mrb[0].mxu0
        %4396 = vmatprep.mubr.f32.mxu0 %v4191
        %4397 = vmatmul.mubr.f32.gmra.mrb[0].mxu0 %v4190
        %v4398 = vpop.f32.mrb[0].mxu0
        %v4399 = vadd.f32 %v4295, %v4398
        %v4400 = vpop.f32.mrb[0].mxu0
        %4401 = vmatprep.mubr.f32.mxu0 %v4195
        %4402 = vmatmul.mubr.f32.gmra.mrb[0].mxu0 %v4194
        %v4403 = vpop.f32.mrb[0].mxu0
        %v4404 = vadd.f32 %v4295, %v4403
        %v4405 = vpop.f32.mrb[0].mxu0
        %4406 = vmatprep.mubr.f32.mxu0 %v4199
        %4407 = vmatmul.mubr.f32.gmra.mrb[0].mxu0 %v4198
        %v4408 = vpop.f32.mrb[0].mxu0
        %v4409 = vadd.f32 %v4295, %v4408
        %v4410 = vpop.f32.mrb[0].mxu0
        %4411 = vmatprep.mubr.f32.mxu0 %v4203
        %4412 = vmatmul.mubr.f32.gmra.mrb[0].mxu0 %v4202
        %v4413 = vpop.f32.mrb[0].mxu0
        %v4414 = vadd.f32 %v4295, %v4413
        %v4415 = vpop.f32.mrb[0].mxu0
        %4416 = vmatprep.mubr.f32.mxu0 %v4207
        %4417 = vmatmul.mubr.f32.gmra.mrb[0].mxu0 %v4206
        %v4418 = vpop.f32.mrb[0].mxu0
        %v4419 = vadd.f32 %v4295, %v4418
        %v4420 = vpop.f32.mrb[0].mxu0
        %4421 = vmatprep.mubr.f32.mxu0 %v4211
        %4422 = vmatmul.mubr.f32.gmra.mrb[0].mxu0 %v4210
        %v4423 = vpop.f32.mrb[0].mxu0
        %v4424 = vadd.f32 %v4295, %v4423
        %v4425 = vpop.f32.mrb[0].mxu0
        %4426 = vmatprep.mubr.f32.mxu0 %v4215
        %4427 = vmatmul.mubr.f32.gmra.mrb[0].mxu0 %v4214
        %v4428 = vpop.f32.mrb[0].mxu0
        %v4429 = vadd.f32 %v4295, %v4428
        %v4430 = vpop.f32.mrb[0].mxu0
        %4431 = vmatprep.mubr.f32.mxu0 %v4219
        %4432 = vmatmul.mubr.f32.gmra.mrb[0].mxu0 %v4218
        %v4433 = vpop.f32.mrb[0].mxu0
        %v4434 = vadd.f32 %v4295, %v4433
        %v4435 = vpop.f32.mrb[0].mxu0
        %4436 = vmatprep.mubr.f32.mxu0 %v4223
        %4437 = vmatmul.mubr.f32.gmra.mrb[0].mxu0 %v4222
        %v4438 = vpop.f32.mrb[0].mxu0
        %v4439 = vadd.f32 %v4295, %v4438
        %v4440 = vpop.f32.mrb[0].mxu0
        %4441 = vdwg.mxu0
        %4442 = vmatprep.subr.mxu0 0.0
        %4443 = vmatpush1.msra.mxu0 %v4258
        %4444 = vmatprep.subr.mxu0 0.0
        %4445 = vmatpush1.msra.mxu0 %v4259
        %4446 = vmatprep.subr.mxu0 0.0
        %4447 = vmatpush1.msra.mxu0 %v4260
        %4448 = vmatprep.subr.mxu0 0.0
        %4449 = vmatpush1.msra.mxu0 %v4261
        %4450 = vmatprep.subr.mxu0 0.0
        %4451 = vmatpush1.msra.mxu0 %v4262
        %4452 = vmatprep.subr.mxu0 0.0
        %4453 = vmatpush1.msra.mxu0 %v4263
        %4454 = vmatprep.subr.mxu0 0.0
        %4455 = vmatpush1.msra.mxu0 %v4264
        %4456 = vmatprep.subr.mxu0 0.0
        %4457 = vmatpush1.msra.mxu0 %v4265
        %4458 = vmatprep.subr.mxu0 0.0
        %4459 = vmatpush1.msra.mxu0 %v4266
        %4460 = vmatprep.subr.mxu0 0.0
        %4461 = vmatpush1.msra.mxu0 %v4267
        %4462 = vmatprep.subr.mxu0 0.0
        %4463 = vmatpush1.msra.mxu0 %v4268
        %4464 = vmatprep.subr.mxu0 0.0
        %4465 = vmatpush1.msra.mxu0 %v4269
        %4466 = vmatprep.subr.mxu0 0.0
        %4467 = vmatpush1.msra.mxu0 %v4270
        %4468 = vmatprep.subr.mxu0 0.0
        %4469 = vmatpush1.msra.mxu0 %v4271
        %4470 = vmatprep.subr.mxu0 0.0
        %4471 = vmatpush1.msra.mxu0 %v4272
        %4472 = vmatprep.subr.mxu0 0.0
        %4473 = vmatpush1.msra.mxu0 %v4273
        %4474 = vmatprep.subr.mxu0 0.0
        %4475 = vmatpush1.msra.mxu0 %v4274
        %4476 = vmatprep.subr.mxu0 0.0
        %4477 = vmatpush1.msra.mxu0 %v4275
        %4478 = vmatprep.subr.mxu0 0.0
        %4479 = vmatpush1.msra.mxu0 %v4276
        %4480 = vmatprep.subr.mxu0 0.0
        %4481 = vmatpush1.msra.mxu0 %v4277
        %4482 = vmatprep.subr.mxu0 0.0
        %4483 = vmatpush1.msra.mxu0 %v4278
        %4484 = vmatprep.subr.mxu0 0.0
        %4485 = vmatpush1.msra.mxu0 %v4279
        %4486 = vmatprep.subr.mxu0 0.0
        %4487 = vmatpush1.msra.mxu0 %v4280
        %4488 = vmatprep.subr.mxu0 0.0
        %4489 = vmatpush1.msra.mxu0 %v4281
        %4490 = vmatprep.subr.mxu0 0.0
        %4491 = vmatpush1.msra.mxu0 %v4282
        %4492 = vmatprep.subr.mxu0 0.0
        %4493 = vmatpush1.msra.mxu0 %v4283
        %4494 = vmatprep.subr.mxu0 0.0
        %4495 = vmatpush1.msra.mxu0 %v4284
        %4496 = vmatprep.subr.mxu0 0.0
        %4497 = vmatpush1.msra.mxu0 %v4285
        %4498 = vmatprep.subr.mxu0 0.0
        %4499 = vmatpush1.msra.mxu0 %v4286
        %4500 = vmatprep.subr.mxu0 0.0
        %4501 = vmatpush1.msra.mxu0 %v4287
        %4502 = vmatprep.subr.mxu0 0.0
        %4503 = vmatpush1.msra.mxu0 %v4288
        %4504 = vmatprep.subr.mxu0 0.0
        %4505 = vmatpush1.msra.mxu0 %v4289
        %4506 = vmatprep.mubr.f32.mxu0 %v4165
        %4507 = vmatmul.mubr.f32.gmra.mrb[0].mxu0 %v4164
        %v4508 = vpop.f32.mrb[0].mxu0
        %v4509 = vadd.f32 %v4364, %v4508
        %v4510 = vpop.f32.mrb[0].mxu0
        %4511 = vmatprep.mubr.f32.mxu0 %v4169
        %4512 = vmatmul.mubr.f32.gmra.mrb[0].mxu0 %v4168
        %v4513 = vpop.f32.mrb[0].mxu0
        %v4514 = vadd.f32 %v4369, %v4513
        %v4515 = vpop.f32.mrb[0].mxu0
        %4516 = vmatprep.mubr.f32.mxu0 %v4173
        %4517 = vmatmul.mubr.f32.gmra.mrb[0].mxu0 %v4172
        %v4518 = vpop.f32.mrb[0].mxu0
        %v4519 = vadd.f32 %v4374, %v4518
        %v4520 = vpop.f32.mrb[0].mxu0
        %4521 = vmatprep.mubr.f32.mxu0 %v4177
        %4522 = vmatmul.mubr.f32.gmra.mrb[0].mxu0 %v4176
        %v4523 = vpop.f32.mrb[0].mxu0
        %v4524 = vadd.f32 %v4379, %v4523
        %v4525 = vpop.f32.mrb[0].mxu0
        %4526 = vmatprep.mubr.f32.mxu0 %v4181
        %4527 = vmatmul.mubr.f32.gmra.mrb[0].mxu0 %v4180
        %v4528 = vpop.f32.mrb[0].mxu0
        %v4529 = vadd.f32 %v4384, %v4528
        %v4530 = vpop.f32.mrb[0].mxu0
        %4531 = vmatprep.mubr.f32.mxu0 %v4185
        %4532 = vmatmul.mubr.f32.gmra.mrb[0].mxu0 %v4184
        %v4533 = vpop.f32.mrb[0].mxu0
        %v4534 = vadd.f32 %v4389, %v4533
        %v4535 = vpop.f32.mrb[0].mxu0
        %4536 = vmatprep.mubr.f32.mxu0 %v4189
        %4537 = vmatmul.mubr.f32.gmra.mrb[0].mxu0 %v4188
        %v4538 = vpop.f32.mrb[0].mxu0
        %v4539 = vadd.f32 %v4394, %v4538
        %v4540 = vpop.f32.mrb[0].mxu0
        %4541 = vmatprep.mubr.f32.mxu0 %v4193
        %4542 = vmatmul.mubr.f32.gmra.mrb[0].mxu0 %v4192
        %v4543 = vpop.f32.mrb[0].mxu0
        %v4544 = vadd.f32 %v4399, %v4543
        %v4545 = vpop.f32.mrb[0].mxu0
        %4546 = vmatprep.mubr.f32.mxu0 %v4197
        %4547 = vmatmul.mubr.f32.gmra.mrb[0].mxu0 %v4196
        %v4548 = vpop.f32.mrb[0].mxu0
        %v4549 = vadd.f32 %v4404, %v4548
        %v4550 = vpop.f32.mrb[0].mxu0
        %4551 = vmatprep.mubr.f32.mxu0 %v4201
        %4552 = vmatmul.mubr.f32.gmra.mrb[0].mxu0 %v4200
        %v4553 = vpop.f32.mrb[0].mxu0
        %v4554 = vadd.f32 %v4409, %v4553
        %v4555 = vpop.f32.mrb[0].mxu0
        %4556 = vmatprep.mubr.f32.mxu0 %v4205
        %4557 = vmatmul.mubr.f32.gmra.mrb[0].mxu0 %v4204
        %v4558 = vpop.f32.mrb[0].mxu0
        %v4559 = vadd.f32 %v4414, %v4558
        %v4560 = vpop.f32.mrb[0].mxu0
        %4561 = vmatprep.mubr.f32.mxu0 %v4209
        %4562 = vmatmul.mubr.f32.gmra.mrb[0].mxu0 %v4208
        %v4563 = vpop.f32.mrb[0].mxu0
        %v4564 = vadd.f32 %v4419, %v4563
        %v4565 = vpop.f32.mrb[0].mxu0
        %4566 = vmatprep.mubr.f32.mxu0 %v4213
        %4567 = vmatmul.mubr.f32.gmra.mrb[0].mxu0 %v4212
        %v4568 = vpop.f32.mrb[0].mxu0
        %v4569 = vadd.f32 %v4424, %v4568
        %v4570 = vpop.f32.mrb[0].mxu0
        %4571 = vmatprep.mubr.f32.mxu0 %v4217
        %4572 = vmatmul.mubr.f32.gmra.mrb[0].mxu0 %v4216
        %v4573 = vpop.f32.mrb[0].mxu0
        %v4574 = vadd.f32 %v4429, %v4573
        %v4575 = vpop.f32.mrb[0].mxu0
        %4576 = vmatprep.mubr.f32.mxu0 %v4221
        %4577 = vmatmul.mubr.f32.gmra.mrb[0].mxu0 %v4220
        %v4578 = vpop.f32.mrb[0].mxu0
        %v4579 = vadd.f32 %v4434, %v4578
        %v4580 = vpop.f32.mrb[0].mxu0
        %4581 = vmatprep.mubr.f32.mxu0 %v4225
        %4582 = vmatmul.mubr.f32.gmra.mrb[0].mxu0 %v4224
        %v4583 = vpop.f32.mrb[0].mxu0
        %v4584 = vadd.f32 %v4439, %v4583
        %v4585 = vpop.f32.mrb[0].mxu0
        %4586 = vdwg.mxu0
        %v4587 = vld [vmem:[%s519] sm:$0xff]
        %v4588 = vld [vmem:[%s519 + $0x8] sm:$0xff]
        %v4589 = vld [vmem:[%s519 + $0x10] sm:$0xff]
        %v4590 = vld [vmem:[%s519 + $0x18] sm:$0xff]
        %v4591 = vld [vmem:[%s519 + $0x20] sm:$0xff]
        %v4592 = vld [vmem:[%s519 + $0x28] sm:$0xff]
        %v4593 = vld [vmem:[%s519 + $0x30] sm:$0xff]
        %v4594 = vld [vmem:[%s519 + $0x38] sm:$0xff]
        %v4595 = vld [vmem:[%s519 + $0x40] sm:$0xff]
        %v4596 = vld [vmem:[%s519 + $0x48] sm:$0xff]
        %v4597 = vld [vmem:[%s519 + $0x50] sm:$0xff]
        %v4598 = vld [vmem:[%s519 + $0x58] sm:$0xff]
        %v4599 = vld [vmem:[%s519 + $0x60] sm:$0xff]
        %v4600 = vld [vmem:[%s519 + $0x68] sm:$0xff]
        %v4601 = vld [vmem:[%s519 + $0x70] sm:$0xff]
        %v4602 = vld [vmem:[%s519 + $0x78] sm:$0xff]
        %v4603 = vmul.f32 %v4509, 0.5
        %v4604 = vmul.f32 %v4514, 0.5
        %v4605 = vmul.f32 %v4519, 0.5
        %v4606 = vmul.f32 %v4524, 0.5
        %v4607 = vmul.f32 %v4529, 0.5
        %v4608 = vmul.f32 %v4534, 0.5
        %v4609 = vmul.f32 %v4539, 0.5
        %v4610 = vmul.f32 %v4544, 0.5
        %v4611 = vmul.f32 %v4549, 0.5
        %v4612 = vmul.f32 %v4554, 0.5
        %v4613 = vmul.f32 %v4559, 0.5
        %v4614 = vmul.f32 %v4564, 0.5
        %v4615 = vmul.f32 %v4569, 0.5
        %v4616 = vmul.f32 %v4574, 0.5
        %v4617 = vmul.f32 %v4579, 0.5
        %v4618 = vmul.f32 %v4584, 0.5
        %v4619 = vmul.f32 %v4603, 1.442695
        %v4620 = vpow.pop %v4619
        %v4621 = vmul.f32 %v4604, 1.442695
        %v4622 = vpow.pop %v4621
        %v4623 = vmul.f32 %v4605, 1.442695
        %v4624 = vpow.pop %v4623
        %v4625 = vmul.f32 %v4606, 1.442695
        %v4626 = vpow.pop %v4625
        %v4627 = vmul.f32 %v4607, 1.442695
        %v4628 = vpow.pop %v4627
        %v4629 = vmul.f32 %v4608, 1.442695
        %v4630 = vpow.pop %v4629
        %v4631 = vmul.f32 %v4609, 1.442695
        %v4632 = vpow.pop %v4631
        %v4633 = vmul.f32 %v4610, 1.442695
        %v4634 = vpow.pop %v4633
        %v4635 = vmul.f32 %v4611, 1.442695
        %v4636 = vpow.pop %v4635
        %v4637 = vmul.f32 %v4612, 1.442695
        %v4638 = vpow.pop %v4637
        %v4639 = vmul.f32 %v4613, 1.442695
        %v4640 = vpow.pop %v4639
        %v4641 = vmul.f32 %v4614, 1.442695
        %v4642 = vpow.pop %v4641
        %v4643 = vmul.f32 %v4615, 1.442695
        %v4644 = vpow.pop %v4643
        %v4645 = vmul.f32 %v4616, 1.442695
        %v4646 = vpow.pop %v4645
        %v4647 = vmul.f32 %v4617, 1.442695
        %v4648 = vpow.pop %v4647
        %v4649 = vmul.f32 %v4618, 1.442695
        %v4650 = vpow.pop %v4649
        %4667 = vrot.lane.b32.xlu0 %v4620, 126
        %v4668 = vpop.permute.xlu0 %4667
        %4669 = vrot.lane.b32.xlu0 %v4622, 126
        %v4670 = vpop.permute.xlu0 %4669
        %4671 = vrot.lane.b32.xlu0 %v4624, 126
        %v4672 = vpop.permute.xlu0 %4671
        %4673 = vrot.lane.b32.xlu0 %v4626, 126
        %v4674 = vpop.permute.xlu0 %4673
        %4675 = vrot.lane.b32.xlu0 %v4628, 126
        %v4676 = vpop.permute.xlu0 %4675
        %4677 = vrot.lane.b32.xlu0 %v4630, 126
        %v4678 = vpop.permute.xlu0 %4677
        %4679 = vrot.lane.b32.xlu0 %v4632, 126
        %v4680 = vpop.permute.xlu0 %4679
        %4681 = vrot.lane.b32.xlu0 %v4634, 126
        %v4682 = vpop.permute.xlu0 %4681
        %4683 = vrot.lane.b32.xlu0 %v4636, 126
        %v4684 = vpop.permute.xlu0 %4683
        %4685 = vrot.lane.b32.xlu0 %v4638, 126
        %v4686 = vpop.permute.xlu0 %4685
        %4687 = vrot.lane.b32.xlu0 %v4640, 126
        %v4688 = vpop.permute.xlu0 %4687
        %4689 = vrot.lane.b32.xlu0 %v4642, 126
        %v4690 = vpop.permute.xlu0 %4689
        %4691 = vrot.lane.b32.xlu0 %v4644, 126
        %v4692 = vpop.permute.xlu0 %4691
        %4693 = vrot.lane.b32.xlu0 %v4646, 126
        %v4694 = vpop.permute.xlu0 %4693
        %4695 = vrot.lane.b32.xlu0 %v4648, 126
        %v4696 = vpop.permute.xlu0 %4695
        %4697 = vrot.lane.b32.xlu0 %v4650, 126
        %v4698 = vpop.permute.xlu0 %4697
        %v4715 = vmul.f32 %v4587, %v4668
        %v4716 = vmul.f32 %v4588, %v4670
        %v4717 = vmul.f32 %v4589, %v4672
        %v4718 = vmul.f32 %v4590, %v4674
        %v4719 = vmul.f32 %v4591, %v4676
        %v4720 = vmul.f32 %v4592, %v4678
        %v4721 = vmul.f32 %v4593, %v4680
        %v4722 = vmul.f32 %v4594, %v4682
        %v4723 = vmul.f32 %v4595, %v4684
        %v4724 = vmul.f32 %v4596, %v4686
        %v4725 = vmul.f32 %v4597, %v4688
        %v4726 = vmul.f32 %v4598, %v4690
        %v4727 = vmul.f32 %v4599, %v4692
        %v4728 = vmul.f32 %v4600, %v4694
        %v4729 = vmul.f32 %v4601, %v4696
        %v4730 = vmul.f32 %v4602, %v4698
        %v4731 = vadd.f32 %v4509, %v4715
        %v4732 = vadd.f32 %v4514, %v4716
        %v4733 = vadd.f32 %v4519, %v4717
        %v4734 = vadd.f32 %v4524, %v4718
        %v4735 = vadd.f32 %v4529, %v4719
        %v4736 = vadd.f32 %v4534, %v4720
        %v4737 = vadd.f32 %v4539, %v4721
        %v4738 = vadd.f32 %v4544, %v4722
        %v4739 = vadd.f32 %v4549, %v4723
        %v4740 = vadd.f32 %v4554, %v4724
        %v4741 = vadd.f32 %v4559, %v4725
        %v4742 = vadd.f32 %v4564, %v4726
        %v4743 = vadd.f32 %v4569, %v4727
        %v4744 = vadd.f32 %v4574, %v4728
        %v4745 = vadd.f32 %v4579, %v4729
        %v4746 = vadd.f32 %v4584, %v4730
        %v4747 = vld [vmem:[%s8] sm:$0xff]
        %v4748 = vld [vmem:[%s9] sm:$0xf]
        %4750 = vset.pattern.permute.xlu0 0
        %4751 = vperm.xlu0 %4750, %v4731
        %v4752 = vpop.permute.xlu0 %4751
        %4755 = vset.pattern.permute.xlu0 0
        %4756 = vperm.xlu0 %4755, %v4732
        %v4757 = vpop.permute.xlu0 %4756
        %4760 = vset.pattern.permute.xlu0 0
        %4761 = vperm.xlu0 %4760, %v4733
        %v4762 = vpop.permute.xlu0 %4761
        %4765 = vset.pattern.permute.xlu0 0
        %4766 = vperm.xlu0 %4765, %v4734
        %v4767 = vpop.permute.xlu0 %4766
        %4770 = vset.pattern.permute.xlu0 0
        %4771 = vperm.xlu0 %4770, %v4735
        %v4772 = vpop.permute.xlu0 %4771
        %4775 = vset.pattern.permute.xlu0 0
        %4776 = vperm.xlu0 %4775, %v4736
        %v4777 = vpop.permute.xlu0 %4776
        %4780 = vset.pattern.permute.xlu0 0
        %4781 = vperm.xlu0 %4780, %v4737
        %v4782 = vpop.permute.xlu0 %4781
        %4785 = vset.pattern.permute.xlu0 0
        %4786 = vperm.xlu0 %4785, %v4738
        %v4787 = vpop.permute.xlu0 %4786
        %4790 = vset.pattern.permute.xlu0 0
        %4791 = vperm.xlu0 %4790, %v4739
        %v4792 = vpop.permute.xlu0 %4791
        %4795 = vset.pattern.permute.xlu0 0
        %4796 = vperm.xlu0 %4795, %v4740
        %v4797 = vpop.permute.xlu0 %4796
        %4800 = vset.pattern.permute.xlu0 0
        %4801 = vperm.xlu0 %4800, %v4741
        %v4802 = vpop.permute.xlu0 %4801
        %4805 = vset.pattern.permute.xlu0 0
        %4806 = vperm.xlu0 %4805, %v4742
        %v4807 = vpop.permute.xlu0 %4806
        %4810 = vset.pattern.permute.xlu0 0
        %4811 = vperm.xlu0 %4810, %v4743
        %v4812 = vpop.permute.xlu0 %4811
        %4815 = vset.pattern.permute.xlu0 0
        %4816 = vperm.xlu0 %4815, %v4744
        %v4817 = vpop.permute.xlu0 %4816
        %4820 = vset.pattern.permute.xlu0 0
        %4821 = vperm.xlu0 %4820, %v4745
        %v4822 = vpop.permute.xlu0 %4821
        %4825 = vset.pattern.permute.xlu0 0
        %4826 = vperm.xlu0 %4825, %v4746
        %v4827 = vpop.permute.xlu0 %4826
        %v4830 = vlaneseq
        %v4831 = vshrl.u32 %v4830, 7
        %v4832 = vsub.s32 0, %v4831
        %v4833 = vrot.slane %v4747, %v4832
        %v4834 = vlaneseq
        %v4835 = vshrl.u32 %v4834, 7
        %v4836 = vsub.s32 2, %v4835
        %v4837 = vrot.slane %v4747, %v4836
        %v4838 = vlaneseq
        %v4839 = vshrl.u32 %v4838, 7
        %v4840 = vsub.s32 4, %v4839
        %v4841 = vrot.slane %v4747, %v4840
        %v4842 = vlaneseq
        %v4843 = vshrl.u32 %v4842, 7
        %v4844 = vsub.s32 6, %v4843
        %v4845 = vrot.slane %v4747, %v4844
        %v4850 = vlaneseq
        %v4851 = vshrl.u32 %v4850, 7
        %v4852 = vsub.s32 0, %v4851
        %v4853 = vrot.slane %v4833, %v4852
        %v4854 = vlaneseq
        %v4855 = vshrl.u32 %v4854, 7
        %v4856 = vsub.s32 0, %v4855
        %v4857 = vrot.slane %v4837, %v4856
        %v4858 = vlaneseq
        %v4859 = vshrl.u32 %v4858, 7
        %v4860 = vsub.s32 0, %v4859
        %v4861 = vrot.slane %v4841, %v4860
        %v4862 = vlaneseq
        %v4863 = vshrl.u32 %v4862, 7
        %v4864 = vsub.s32 0, %v4863
        %v4865 = vrot.slane %v4845, %v4864
        %v4866 = vmul.f32 %v4752, %v4853
        %v4867 = vmul.f32 %v4752, %v4857
        %v4868 = vmul.f32 %v4752, %v4861
        %v4869 = vmul.f32 %v4752, %v4865
        %v4870 = vmul.f32 %v4757, %v4853
        %v4871 = vmul.f32 %v4757, %v4857
        %v4872 = vmul.f32 %v4757, %v4861
        %v4873 = vmul.f32 %v4757, %v4865
        %v4874 = vmul.f32 %v4762, %v4853
        %v4875 = vmul.f32 %v4762, %v4857
        %v4876 = vmul.f32 %v4762, %v4861
        %v4877 = vmul.f32 %v4762, %v4865
        %v4878 = vmul.f32 %v4767, %v4853
        %v4879 = vmul.f32 %v4767, %v4857
        %v4880 = vmul.f32 %v4767, %v4861
        %v4881 = vmul.f32 %v4767, %v4865
        %v4882 = vmul.f32 %v4772, %v4853
        %v4883 = vmul.f32 %v4772, %v4857
        %v4884 = vmul.f32 %v4772, %v4861
        %v4885 = vmul.f32 %v4772, %v4865
        %v4886 = vmul.f32 %v4777, %v4853
        %v4887 = vmul.f32 %v4777, %v4857
        %v4888 = vmul.f32 %v4777, %v4861
        %v4889 = vmul.f32 %v4777, %v4865
        %v4890 = vmul.f32 %v4782, %v4853
        %v4891 = vmul.f32 %v4782, %v4857
        %v4892 = vmul.f32 %v4782, %v4861
        %v4893 = vmul.f32 %v4782, %v4865
        %v4894 = vmul.f32 %v4787, %v4853
        %v4895 = vmul.f32 %v4787, %v4857
        %v4896 = vmul.f32 %v4787, %v4861
        %v4897 = vmul.f32 %v4787, %v4865
        %v4898 = vmul.f32 %v4792, %v4853
        %v4899 = vmul.f32 %v4792, %v4857
        %v4900 = vmul.f32 %v4792, %v4861
        %v4901 = vmul.f32 %v4792, %v4865
        %v4902 = vmul.f32 %v4797, %v4853
        %v4903 = vmul.f32 %v4797, %v4857
        %v4904 = vmul.f32 %v4797, %v4861
        %v4905 = vmul.f32 %v4797, %v4865
        %v4906 = vmul.f32 %v4802, %v4853
        %v4907 = vmul.f32 %v4802, %v4857
        %v4908 = vmul.f32 %v4802, %v4861
        %v4909 = vmul.f32 %v4802, %v4865
        %v4910 = vmul.f32 %v4807, %v4853
        %v4911 = vmul.f32 %v4807, %v4857
        %v4912 = vmul.f32 %v4807, %v4861
        %v4913 = vmul.f32 %v4807, %v4865
        %v4914 = vmul.f32 %v4812, %v4853
        %v4915 = vmul.f32 %v4812, %v4857
        %v4916 = vmul.f32 %v4812, %v4861
        %v4917 = vmul.f32 %v4812, %v4865
        %v4918 = vmul.f32 %v4817, %v4853
        %v4919 = vmul.f32 %v4817, %v4857
        %v4920 = vmul.f32 %v4817, %v4861
        %v4921 = vmul.f32 %v4817, %v4865
        %v4922 = vmul.f32 %v4822, %v4853
        %v4923 = vmul.f32 %v4822, %v4857
        %v4924 = vmul.f32 %v4822, %v4861
        %v4925 = vmul.f32 %v4822, %v4865
        %v4926 = vmul.f32 %v4827, %v4853
        %v4927 = vmul.f32 %v4827, %v4857
        %v4928 = vmul.f32 %v4827, %v4861
        %v4929 = vmul.f32 %v4827, %v4865
        %v4931 = vlaneseq
        %v4932 = vshrl.u32 %v4931, 7
        %v4933 = vsub.s32 0, %v4932
        %v4934 = vrot.slane %v4748, %v4933
        %v4935 = vlaneseq
        %v4936 = vshrl.u32 %v4935, 7
        %v4937 = vsub.s32 1, %v4936
        %v4938 = vrot.slane %v4748, %v4937
        %v4939 = vlaneseq
        %v4940 = vshrl.u32 %v4939, 7
        %v4941 = vsub.s32 2, %v4940
        %v4942 = vrot.slane %v4748, %v4941
        %v4943 = vlaneseq
        %v4944 = vshrl.u32 %v4943, 7
        %v4945 = vsub.s32 3, %v4944
        %v4946 = vrot.slane %v4748, %v4945
        %v4951 = vadd.f32 %v4934, %v4866
        %v4952 = vadd.f32 %v4938, %v4867
        %v4953 = vadd.f32 %v4942, %v4868
        %v4954 = vadd.f32 %v4946, %v4869
        %v4955 = vadd.f32 %v4934, %v4870
        %v4956 = vadd.f32 %v4938, %v4871
        %v4957 = vadd.f32 %v4942, %v4872
        %v4958 = vadd.f32 %v4946, %v4873
        %v4959 = vadd.f32 %v4934, %v4874
        %v4960 = vadd.f32 %v4938, %v4875
        %v4961 = vadd.f32 %v4942, %v4876
        %v4962 = vadd.f32 %v4946, %v4877
        %v4963 = vadd.f32 %v4934, %v4878
        %v4964 = vadd.f32 %v4938, %v4879
        %v4965 = vadd.f32 %v4942, %v4880
        %v4966 = vadd.f32 %v4946, %v4881
        %v4967 = vadd.f32 %v4934, %v4882
        %v4968 = vadd.f32 %v4938, %v4883
        %v4969 = vadd.f32 %v4942, %v4884
        %v4970 = vadd.f32 %v4946, %v4885
        %v4971 = vadd.f32 %v4934, %v4886
        %v4972 = vadd.f32 %v4938, %v4887
        %v4973 = vadd.f32 %v4942, %v4888
        %v4974 = vadd.f32 %v4946, %v4889
        %v4975 = vadd.f32 %v4934, %v4890
        %v4976 = vadd.f32 %v4938, %v4891
        %v4977 = vadd.f32 %v4942, %v4892
        %v4978 = vadd.f32 %v4946, %v4893
        %v4979 = vadd.f32 %v4934, %v4894
        %v4980 = vadd.f32 %v4938, %v4895
        %v4981 = vadd.f32 %v4942, %v4896
        %v4982 = vadd.f32 %v4946, %v4897
        %v4983 = vadd.f32 %v4934, %v4898
        %v4984 = vadd.f32 %v4938, %v4899
        %v4985 = vadd.f32 %v4942, %v4900
        %v4986 = vadd.f32 %v4946, %v4901
        %v4987 = vadd.f32 %v4934, %v4902
        %v4988 = vadd.f32 %v4938, %v4903
        %v4989 = vadd.f32 %v4942, %v4904
        %v4990 = vadd.f32 %v4946, %v4905
        %v4991 = vadd.f32 %v4934, %v4906
        %v4992 = vadd.f32 %v4938, %v4907
        %v4993 = vadd.f32 %v4942, %v4908
        %v4994 = vadd.f32 %v4946, %v4909
        %v4995 = vadd.f32 %v4934, %v4910
        %v4996 = vadd.f32 %v4938, %v4911
        %v4997 = vadd.f32 %v4942, %v4912
        %v4998 = vadd.f32 %v4946, %v4913
        %v4999 = vadd.f32 %v4934, %v4914
        %v5000 = vadd.f32 %v4938, %v4915
        %v5001 = vadd.f32 %v4942, %v4916
        %v5002 = vadd.f32 %v4946, %v4917
        %v5003 = vadd.f32 %v4934, %v4918
        %v5004 = vadd.f32 %v4938, %v4919
        %v5005 = vadd.f32 %v4942, %v4920
        %v5006 = vadd.f32 %v4946, %v4921
        %v5007 = vadd.f32 %v4934, %v4922
        %v5008 = vadd.f32 %v4938, %v4923
        %v5009 = vadd.f32 %v4942, %v4924
        %v5010 = vadd.f32 %v4946, %v4925
        %v5011 = vadd.f32 %v4934, %v4926
        %v5012 = vadd.f32 %v4938, %v4927
        %v5013 = vadd.f32 %v4942, %v4928
        %v5014 = vadd.f32 %v4946, %v4929
        %5015 = vset.pattern.permute.xlu0 1
        %5016 = vperm.xlu0 %5015, %v4731
        %v5017 = vpop.permute.xlu0 %5016
        %5019 = vset.pattern.permute.xlu0 1
        %5020 = vperm.xlu0 %5019, %v4732
        %v5021 = vpop.permute.xlu0 %5020
        %5023 = vset.pattern.permute.xlu0 1
        %5024 = vperm.xlu0 %5023, %v4733
        %v5025 = vpop.permute.xlu0 %5024
        %5027 = vset.pattern.permute.xlu0 1
        %5028 = vperm.xlu0 %5027, %v4734
        %v5029 = vpop.permute.xlu0 %5028
        %5031 = vset.pattern.permute.xlu0 1
        %5032 = vperm.xlu0 %5031, %v4735
        %v5033 = vpop.permute.xlu0 %5032
        %5035 = vset.pattern.permute.xlu0 1
        %5036 = vperm.xlu0 %5035, %v4736
        %v5037 = vpop.permute.xlu0 %5036
        %5039 = vset.pattern.permute.xlu0 1
        %5040 = vperm.xlu0 %5039, %v4737
        %v5041 = vpop.permute.xlu0 %5040
        %5043 = vset.pattern.permute.xlu0 1
        %5044 = vperm.xlu0 %5043, %v4738
        %v5045 = vpop.permute.xlu0 %5044
        %5047 = vset.pattern.permute.xlu0 1
        %5048 = vperm.xlu0 %5047, %v4739
        %v5049 = vpop.permute.xlu0 %5048
        %5051 = vset.pattern.permute.xlu0 1
        %5052 = vperm.xlu0 %5051, %v4740
        %v5053 = vpop.permute.xlu0 %5052
        %5055 = vset.pattern.permute.xlu0 1
        %5056 = vperm.xlu0 %5055, %v4741
        %v5057 = vpop.permute.xlu0 %5056
        %5059 = vset.pattern.permute.xlu0 1
        %5060 = vperm.xlu0 %5059, %v4742
        %v5061 = vpop.permute.xlu0 %5060
        %5063 = vset.pattern.permute.xlu0 1
        %5064 = vperm.xlu0 %5063, %v4743
        %v5065 = vpop.permute.xlu0 %5064
        %5067 = vset.pattern.permute.xlu0 1
        %5068 = vperm.xlu0 %5067, %v4744
        %v5069 = vpop.permute.xlu0 %5068
        %5071 = vset.pattern.permute.xlu0 1
        %5072 = vperm.xlu0 %5071, %v4745
        %v5073 = vpop.permute.xlu0 %5072
        %5075 = vset.pattern.permute.xlu0 1
        %5076 = vperm.xlu0 %5075, %v4746
        %v5077 = vpop.permute.xlu0 %5076
        %v5079 = vlaneseq
        %v5080 = vshrl.u32 %v5079, 7
        %v5081 = vsub.s32 1, %v5080
        %v5082 = vrot.slane %v4747, %v5081
        %v5083 = vlaneseq
        %v5084 = vshrl.u32 %v5083, 7
        %v5085 = vsub.s32 3, %v5084
        %v5086 = vrot.slane %v4747, %v5085
        %v5087 = vlaneseq
        %v5088 = vshrl.u32 %v5087, 7
        %v5089 = vsub.s32 5, %v5088
        %v5090 = vrot.slane %v4747, %v5089
        %v5091 = vlaneseq
        %v5092 = vshrl.u32 %v5091, 7
        %v5093 = vsub.s32 7, %v5092
        %v5094 = vrot.slane %v4747, %v5093
        %v5099 = vlaneseq
        %v5100 = vshrl.u32 %v5099, 7
        %v5101 = vsub.s32 1, %v5100
        %v5102 = vrot.slane %v5082, %v5101
        %v5103 = vlaneseq
        %v5104 = vshrl.u32 %v5103, 7
        %v5105 = vsub.s32 1, %v5104
        %v5106 = vrot.slane %v5086, %v5105
        %v5107 = vlaneseq
        %v5108 = vshrl.u32 %v5107, 7
        %v5109 = vsub.s32 1, %v5108
        %v5110 = vrot.slane %v5090, %v5109
        %v5111 = vlaneseq
        %v5112 = vshrl.u32 %v5111, 7
        %v5113 = vsub.s32 1, %v5112
        %v5114 = vrot.slane %v5094, %v5113
        %v5115 = vmul.f32 %v5017, %v5102
        %v5116 = vmul.f32 %v5017, %v5106
        %v5117 = vmul.f32 %v5017, %v5110
        %v5118 = vmul.f32 %v5017, %v5114
        %v5119 = vmul.f32 %v5021, %v5102
        %v5120 = vmul.f32 %v5021, %v5106
        %v5121 = vmul.f32 %v5021, %v5110
        %v5122 = vmul.f32 %v5021, %v5114
        %v5123 = vmul.f32 %v5025, %v5102
        %v5124 = vmul.f32 %v5025, %v5106
        %v5125 = vmul.f32 %v5025, %v5110
        %v5126 = vmul.f32 %v5025, %v5114
        %v5127 = vmul.f32 %v5029, %v5102
        %v5128 = vmul.f32 %v5029, %v5106
        %v5129 = vmul.f32 %v5029, %v5110
        %v5130 = vmul.f32 %v5029, %v5114
        %v5131 = vmul.f32 %v5033, %v5102
        %v5132 = vmul.f32 %v5033, %v5106
        %v5133 = vmul.f32 %v5033, %v5110
        %v5134 = vmul.f32 %v5033, %v5114
        %v5135 = vmul.f32 %v5037, %v5102
        %v5136 = vmul.f32 %v5037, %v5106
        %v5137 = vmul.f32 %v5037, %v5110
        %v5138 = vmul.f32 %v5037, %v5114
        %v5139 = vmul.f32 %v5041, %v5102
        %v5140 = vmul.f32 %v5041, %v5106
        %v5141 = vmul.f32 %v5041, %v5110
        %v5142 = vmul.f32 %v5041, %v5114
        %v5143 = vmul.f32 %v5045, %v5102
        %v5144 = vmul.f32 %v5045, %v5106
        %v5145 = vmul.f32 %v5045, %v5110
        %v5146 = vmul.f32 %v5045, %v5114
        %v5147 = vmul.f32 %v5049, %v5102
        %v5148 = vmul.f32 %v5049, %v5106
        %v5149 = vmul.f32 %v5049, %v5110
        %v5150 = vmul.f32 %v5049, %v5114
        %v5151 = vmul.f32 %v5053, %v5102
        %v5152 = vmul.f32 %v5053, %v5106
        %v5153 = vmul.f32 %v5053, %v5110
        %v5154 = vmul.f32 %v5053, %v5114
        %v5155 = vmul.f32 %v5057, %v5102
        %v5156 = vmul.f32 %v5057, %v5106
        %v5157 = vmul.f32 %v5057, %v5110
        %v5158 = vmul.f32 %v5057, %v5114
        %v5159 = vmul.f32 %v5061, %v5102
        %v5160 = vmul.f32 %v5061, %v5106
        %v5161 = vmul.f32 %v5061, %v5110
        %v5162 = vmul.f32 %v5061, %v5114
        %v5163 = vmul.f32 %v5065, %v5102
        %v5164 = vmul.f32 %v5065, %v5106
        %v5165 = vmul.f32 %v5065, %v5110
        %v5166 = vmul.f32 %v5065, %v5114
        %v5167 = vmul.f32 %v5069, %v5102
        %v5168 = vmul.f32 %v5069, %v5106
        %v5169 = vmul.f32 %v5069, %v5110
        %v5170 = vmul.f32 %v5069, %v5114
        %v5171 = vmul.f32 %v5073, %v5102
        %v5172 = vmul.f32 %v5073, %v5106
        %v5173 = vmul.f32 %v5073, %v5110
        %v5174 = vmul.f32 %v5073, %v5114
        %v5175 = vmul.f32 %v5077, %v5102
        %v5176 = vmul.f32 %v5077, %v5106
        %v5177 = vmul.f32 %v5077, %v5110
        %v5178 = vmul.f32 %v5077, %v5114
        %v5179 = vadd.f32 %v4951, %v5115
        %v5180 = vadd.f32 %v4952, %v5116
        %v5181 = vadd.f32 %v4953, %v5117
        %v5182 = vadd.f32 %v4954, %v5118
        %v5183 = vadd.f32 %v4955, %v5119
        %v5184 = vadd.f32 %v4956, %v5120
        %v5185 = vadd.f32 %v4957, %v5121
        %v5186 = vadd.f32 %v4958, %v5122
        %v5187 = vadd.f32 %v4959, %v5123
        %v5188 = vadd.f32 %v4960, %v5124
        %v5189 = vadd.f32 %v4961, %v5125
        %v5190 = vadd.f32 %v4962, %v5126
        %v5191 = vadd.f32 %v4963, %v5127
        %v5192 = vadd.f32 %v4964, %v5128
        %v5193 = vadd.f32 %v4965, %v5129
        %v5194 = vadd.f32 %v4966, %v5130
        %v5195 = vadd.f32 %v4967, %v5131
        %v5196 = vadd.f32 %v4968, %v5132
        %v5197 = vadd.f32 %v4969, %v5133
        %v5198 = vadd.f32 %v4970, %v5134
        %v5199 = vadd.f32 %v4971, %v5135
        %v5200 = vadd.f32 %v4972, %v5136
        %v5201 = vadd.f32 %v4973, %v5137
        %v5202 = vadd.f32 %v4974, %v5138
        %v5203 = vadd.f32 %v4975, %v5139
        %v5204 = vadd.f32 %v4976, %v5140
        %v5205 = vadd.f32 %v4977, %v5141
        %v5206 = vadd.f32 %v4978, %v5142
        %v5207 = vadd.f32 %v4979, %v5143
        %v5208 = vadd.f32 %v4980, %v5144
        %v5209 = vadd.f32 %v4981, %v5145
        %v5210 = vadd.f32 %v4982, %v5146
        %v5211 = vadd.f32 %v4983, %v5147
        %v5212 = vadd.f32 %v4984, %v5148
        %v5213 = vadd.f32 %v4985, %v5149
        %v5214 = vadd.f32 %v4986, %v5150
        %v5215 = vadd.f32 %v4987, %v5151
        %v5216 = vadd.f32 %v4988, %v5152
        %v5217 = vadd.f32 %v4989, %v5153
        %v5218 = vadd.f32 %v4990, %v5154
        %v5219 = vadd.f32 %v4991, %v5155
        %v5220 = vadd.f32 %v4992, %v5156
        %v5221 = vadd.f32 %v4993, %v5157
        %v5222 = vadd.f32 %v4994, %v5158
        %v5223 = vadd.f32 %v4995, %v5159
        %v5224 = vadd.f32 %v4996, %v5160
        %v5225 = vadd.f32 %v4997, %v5161
        %v5226 = vadd.f32 %v4998, %v5162
        %v5227 = vadd.f32 %v4999, %v5163
        %v5228 = vadd.f32 %v5000, %v5164
        %v5229 = vadd.f32 %v5001, %v5165
        %v5230 = vadd.f32 %v5002, %v5166
        %v5231 = vadd.f32 %v5003, %v5167
        %v5232 = vadd.f32 %v5004, %v5168
        %v5233 = vadd.f32 %v5005, %v5169
        %v5234 = vadd.f32 %v5006, %v5170
        %v5235 = vadd.f32 %v5007, %v5171
        %v5236 = vadd.f32 %v5008, %v5172
        %v5237 = vadd.f32 %v5009, %v5173
        %v5238 = vadd.f32 %v5010, %v5174
        %v5239 = vadd.f32 %v5011, %v5175
        %v5240 = vadd.f32 %v5012, %v5176
        %v5241 = vadd.f32 %v5013, %v5177
        %v5242 = vadd.f32 %v5014, %v5178
        %v5243 = vmax.f32 %v5179, 0.0
        %v5244 = vmax.f32 %v5180, 0.0
        %v5245 = vmax.f32 %v5181, 0.0
        %v5246 = vmax.f32 %v5182, 0.0
        %v5247 = vmax.f32 %v5183, 0.0
        %v5248 = vmax.f32 %v5184, 0.0
        %v5249 = vmax.f32 %v5185, 0.0
        %v5250 = vmax.f32 %v5186, 0.0
        %v5251 = vmax.f32 %v5187, 0.0
        %v5252 = vmax.f32 %v5188, 0.0
        %v5253 = vmax.f32 %v5189, 0.0
        %v5254 = vmax.f32 %v5190, 0.0
        %v5255 = vmax.f32 %v5191, 0.0
        %v5256 = vmax.f32 %v5192, 0.0
        %v5257 = vmax.f32 %v5193, 0.0
        %v5258 = vmax.f32 %v5194, 0.0
        %v5259 = vmax.f32 %v5195, 0.0
        %v5260 = vmax.f32 %v5196, 0.0
        %v5261 = vmax.f32 %v5197, 0.0
        %v5262 = vmax.f32 %v5198, 0.0
        %v5263 = vmax.f32 %v5199, 0.0
        %v5264 = vmax.f32 %v5200, 0.0
        %v5265 = vmax.f32 %v5201, 0.0
        %v5266 = vmax.f32 %v5202, 0.0
        %v5267 = vmax.f32 %v5203, 0.0
        %v5268 = vmax.f32 %v5204, 0.0
        %v5269 = vmax.f32 %v5205, 0.0
        %v5270 = vmax.f32 %v5206, 0.0
        %v5271 = vmax.f32 %v5207, 0.0
        %v5272 = vmax.f32 %v5208, 0.0
        %v5273 = vmax.f32 %v5209, 0.0
        %v5274 = vmax.f32 %v5210, 0.0
        %v5275 = vmax.f32 %v5211, 0.0
        %v5276 = vmax.f32 %v5212, 0.0
        %v5277 = vmax.f32 %v5213, 0.0
        %v5278 = vmax.f32 %v5214, 0.0
        %v5279 = vmax.f32 %v5215, 0.0
        %v5280 = vmax.f32 %v5216, 0.0
        %v5281 = vmax.f32 %v5217, 0.0
        %v5282 = vmax.f32 %v5218, 0.0
        %v5283 = vmax.f32 %v5219, 0.0
        %v5284 = vmax.f32 %v5220, 0.0
        %v5285 = vmax.f32 %v5221, 0.0
        %v5286 = vmax.f32 %v5222, 0.0
        %v5287 = vmax.f32 %v5223, 0.0
        %v5288 = vmax.f32 %v5224, 0.0
        %v5289 = vmax.f32 %v5225, 0.0
        %v5290 = vmax.f32 %v5226, 0.0
        %v5291 = vmax.f32 %v5227, 0.0
        %v5292 = vmax.f32 %v5228, 0.0
        %v5293 = vmax.f32 %v5229, 0.0
        %v5294 = vmax.f32 %v5230, 0.0
        %v5295 = vmax.f32 %v5231, 0.0
        %v5296 = vmax.f32 %v5232, 0.0
        %v5297 = vmax.f32 %v5233, 0.0
        %v5298 = vmax.f32 %v5234, 0.0
        %v5299 = vmax.f32 %v5235, 0.0
        %v5300 = vmax.f32 %v5236, 0.0
        %v5301 = vmax.f32 %v5237, 0.0
        %v5302 = vmax.f32 %v5238, 0.0
        %v5303 = vmax.f32 %v5239, 0.0
        %v5304 = vmax.f32 %v5240, 0.0
        %v5305 = vmax.f32 %v5241, 0.0
        %v5306 = vmax.f32 %v5242, 0.0
        %v5307 = vpack.c.bf16 %v5247, %v5243
        %v5308 = vpack.c.bf16 %v5248, %v5244
        %v5309 = vpack.c.bf16 %v5249, %v5245
        %v5310 = vpack.c.bf16 %v5250, %v5246
        %v5311 = vpack.c.bf16 %v5255, %v5251
        %v5312 = vpack.c.bf16 %v5256, %v5252
        %v5313 = vpack.c.bf16 %v5257, %v5253
        %v5314 = vpack.c.bf16 %v5258, %v5254
        %v5315 = vpack.c.bf16 %v5263, %v5259
        %v5316 = vpack.c.bf16 %v5264, %v5260
        %v5317 = vpack.c.bf16 %v5265, %v5261
        %v5318 = vpack.c.bf16 %v5266, %v5262
        %v5319 = vpack.c.bf16 %v5271, %v5267
        %v5320 = vpack.c.bf16 %v5272, %v5268
        %v5321 = vpack.c.bf16 %v5273, %v5269
        %v5322 = vpack.c.bf16 %v5274, %v5270
        %v5323 = vpack.c.bf16 %v5279, %v5275
        %v5324 = vpack.c.bf16 %v5280, %v5276
        %v5325 = vpack.c.bf16 %v5281, %v5277
        %v5326 = vpack.c.bf16 %v5282, %v5278
        %v5327 = vpack.c.bf16 %v5287, %v5283
        %v5328 = vpack.c.bf16 %v5288, %v5284
        %v5329 = vpack.c.bf16 %v5289, %v5285
        %v5330 = vpack.c.bf16 %v5290, %v5286
        %v5331 = vpack.c.bf16 %v5295, %v5291
        %v5332 = vpack.c.bf16 %v5296, %v5292
        %v5333 = vpack.c.bf16 %v5297, %v5293
        %v5334 = vpack.c.bf16 %v5298, %v5294
        %v5335 = vpack.c.bf16 %v5303, %v5299
        %v5336 = vpack.c.bf16 %v5304, %v5300
        %v5337 = vpack.c.bf16 %v5305, %v5301
        %v5338 = vpack.c.bf16 %v5306, %v5302
        %v5339 = vld [vmem:[#allocation4] sm:$0xff]
        %v5340 = vld [vmem:[#allocation4 + $0x8] sm:$0xff]
        %v5341 = vld [vmem:[#allocation4 + $0x10] sm:$0xff]
        %v5342 = vld [vmem:[#allocation4 + $0x18] sm:$0xff]
        %v5343 = vld [vmem:[#allocation4 + $0x20] sm:$0xff]
        %v5344 = vld [vmem:[#allocation4 + $0x28] sm:$0xff]
        %v5345 = vld [vmem:[#allocation4 + $0x30] sm:$0xff]
        %v5346 = vld [vmem:[#allocation4 + $0x38] sm:$0xff]
        %v5347 = vld [vmem:[#allocation4 + $0x40] sm:$0xff]
        %v5348 = vld [vmem:[#allocation4 + $0x48] sm:$0xff]
        %v5349 = vld [vmem:[#allocation4 + $0x50] sm:$0xff]
        %v5350 = vld [vmem:[#allocation4 + $0x58] sm:$0xff]
        %v5351 = vld [vmem:[#allocation4 + $0x60] sm:$0xff]
        %v5352 = vld [vmem:[#allocation4 + $0x68] sm:$0xff]
        %v5353 = vld [vmem:[#allocation4 + $0x70] sm:$0xff]
        %v5354 = vld [vmem:[#allocation4 + $0x78] sm:$0xff]
        %v5355 = vld [vmem:[#allocation4 + $0x80] sm:$0xff]
        %v5356 = vld [vmem:[#allocation4 + $0x88] sm:$0xff]
        %v5357 = vld [vmem:[#allocation4 + $0x90] sm:$0xff]
        %v5358 = vld [vmem:[#allocation4 + $0x98] sm:$0xff]
        %v5359 = vld [vmem:[#allocation4 + $0xa0] sm:$0xff]
        %v5360 = vld [vmem:[#allocation4 + $0xa8] sm:$0xff]
        %v5361 = vld [vmem:[#allocation4 + $0xb0] sm:$0xff]
        %v5362 = vld [vmem:[#allocation4 + $0xb8] sm:$0xff]
        %v5363 = vld [vmem:[#allocation4 + $0xc0] sm:$0xff]
        %v5364 = vld [vmem:[#allocation4 + $0xc8] sm:$0xff]
        %v5365 = vld [vmem:[#allocation4 + $0xd0] sm:$0xff]
        %v5366 = vld [vmem:[#allocation4 + $0xd8] sm:$0xff]
        %v5367 = vld [vmem:[#allocation4 + $0xe0] sm:$0xff]
        %v5368 = vld [vmem:[#allocation4 + $0xe8] sm:$0xff]
        %v5369 = vld [vmem:[#allocation4 + $0xf0] sm:$0xff]
        %v5370 = vld [vmem:[#allocation4 + $0xf8] sm:$0xff]
        %v5371 = vld [vmem:[#allocation4 + $0x100] sm:$0xff]
        %v5372 = vld [vmem:[#allocation4 + $0x108] sm:$0xff]
        %v5373 = vld [vmem:[#allocation4 + $0x110] sm:$0xff]
        %v5374 = vld [vmem:[#allocation4 + $0x118] sm:$0xff]
        %v5375 = vld [vmem:[#allocation4 + $0x120] sm:$0xff]
        %v5376 = vld [vmem:[#allocation4 + $0x128] sm:$0xff]
        %v5377 = vld [vmem:[#allocation4 + $0x130] sm:$0xff]
        %v5378 = vld [vmem:[#allocation4 + $0x138] sm:$0xff]
        %v5379 = vld [vmem:[#allocation4 + $0x140] sm:$0xff]
        %v5380 = vld [vmem:[#allocation4 + $0x148] sm:$0xff]
        %v5381 = vld [vmem:[#allocation4 + $0x150] sm:$0xff]
        %v5382 = vld [vmem:[#allocation4 + $0x158] sm:$0xff]
        %v5383 = vld [vmem:[#allocation4 + $0x160] sm:$0xff]
        %v5384 = vld [vmem:[#allocation4 + $0x168] sm:$0xff]
        %v5385 = vld [vmem:[#allocation4 + $0x170] sm:$0xff]
        %v5386 = vld [vmem:[#allocation4 + $0x178] sm:$0xff]
        %v5387 = vld [vmem:[#allocation4 + $0x180] sm:$0xff]
        %v5388 = vld [vmem:[#allocation4 + $0x188] sm:$0xff]
        %v5389 = vld [vmem:[#allocation4 + $0x190] sm:$0xff]
        %v5390 = vld [vmem:[#allocation4 + $0x198] sm:$0xff]
        %v5391 = vld [vmem:[#allocation4 + $0x1a0] sm:$0xff]
        %v5392 = vld [vmem:[#allocation4 + $0x1a8] sm:$0xff]
        %v5393 = vld [vmem:[#allocation4 + $0x1b0] sm:$0xff]
        %v5394 = vld [vmem:[#allocation4 + $0x1b8] sm:$0xff]
        %v5395 = vld [vmem:[#allocation4 + $0x1c0] sm:$0xff]
        %v5396 = vld [vmem:[#allocation4 + $0x1c8] sm:$0xff]
        %v5397 = vld [vmem:[#allocation4 + $0x1d0] sm:$0xff]
        %v5398 = vld [vmem:[#allocation4 + $0x1d8] sm:$0xff]
        %v5399 = vld [vmem:[#allocation4 + $0x1e0] sm:$0xff]
        %v5400 = vld [vmem:[#allocation4 + $0x1e8] sm:$0xff]
        %v5401 = vld [vmem:[#allocation4 + $0x1f0] sm:$0xff]
        %v5402 = vld [vmem:[#allocation4 + $0x1f8] sm:$0xff]
        %v5403 = vld [vmem:[#allocation4 + $0x200] sm:$0xff]
        %v5404 = vld [vmem:[#allocation4 + $0x208] sm:$0xff]
        %v5405 = vld [vmem:[#allocation4 + $0x210] sm:$0xff]
        %v5406 = vld [vmem:[#allocation4 + $0x218] sm:$0xff]
        %v5407 = vld [vmem:[#allocation4 + $0x220] sm:$0xff]
        %v5408 = vld [vmem:[#allocation4 + $0x228] sm:$0xff]
        %v5409 = vld [vmem:[#allocation4 + $0x230] sm:$0xff]
        %v5410 = vld [vmem:[#allocation4 + $0x238] sm:$0xff]
        %v5411 = vld [vmem:[#allocation4 + $0x240] sm:$0xff]
        %v5412 = vld [vmem:[#allocation4 + $0x248] sm:$0xff]
        %v5413 = vld [vmem:[#allocation4 + $0x250] sm:$0xff]
        %v5414 = vld [vmem:[#allocation4 + $0x258] sm:$0xff]
        %v5415 = vld [vmem:[#allocation4 + $0x260] sm:$0xff]
        %v5416 = vld [vmem:[#allocation4 + $0x268] sm:$0xff]
        %v5417 = vld [vmem:[#allocation4 + $0x270] sm:$0xff]
        %v5418 = vld [vmem:[#allocation4 + $0x278] sm:$0xff]
        %v5419 = vld [vmem:[#allocation4 + $0x280] sm:$0xff]
        %v5420 = vld [vmem:[#allocation4 + $0x288] sm:$0xff]
        %v5421 = vld [vmem:[#allocation4 + $0x290] sm:$0xff]
        %v5422 = vld [vmem:[#allocation4 + $0x298] sm:$0xff]
        %v5423 = vld [vmem:[#allocation4 + $0x2a0] sm:$0xff]
        %v5424 = vld [vmem:[#allocation4 + $0x2a8] sm:$0xff]
        %v5425 = vld [vmem:[#allocation4 + $0x2b0] sm:$0xff]
        %v5426 = vld [vmem:[#allocation4 + $0x2b8] sm:$0xff]
        %v5427 = vld [vmem:[#allocation4 + $0x2c0] sm:$0xff]
        %v5428 = vld [vmem:[#allocation4 + $0x2c8] sm:$0xff]
        %v5429 = vld [vmem:[#allocation4 + $0x2d0] sm:$0xff]
        %v5430 = vld [vmem:[#allocation4 + $0x2d8] sm:$0xff]
        %v5431 = vld [vmem:[#allocation4 + $0x2e0] sm:$0xff]
        %v5432 = vld [vmem:[#allocation4 + $0x2e8] sm:$0xff]
        %v5433 = vld [vmem:[#allocation4 + $0x2f0] sm:$0xff]
        %v5434 = vld [vmem:[#allocation4 + $0x2f8] sm:$0xff]
        %v5435 = vld [vmem:[#allocation4 + $0x300] sm:$0xff]
        %v5436 = vld [vmem:[#allocation4 + $0x308] sm:$0xff]
        %v5437 = vld [vmem:[#allocation4 + $0x310] sm:$0xff]
        %v5438 = vld [vmem:[#allocation4 + $0x318] sm:$0xff]
        %v5439 = vld [vmem:[#allocation4 + $0x320] sm:$0xff]
        %v5440 = vld [vmem:[#allocation4 + $0x328] sm:$0xff]
        %v5441 = vld [vmem:[#allocation4 + $0x330] sm:$0xff]
        %v5442 = vld [vmem:[#allocation4 + $0x338] sm:$0xff]
        %v5443 = vld [vmem:[#allocation4 + $0x340] sm:$0xff]
        %v5444 = vld [vmem:[#allocation4 + $0x348] sm:$0xff]
        %v5445 = vld [vmem:[#allocation4 + $0x350] sm:$0xff]
        %v5446 = vld [vmem:[#allocation4 + $0x358] sm:$0xff]
        %v5447 = vld [vmem:[#allocation4 + $0x360] sm:$0xff]
        %v5448 = vld [vmem:[#allocation4 + $0x368] sm:$0xff]
        %v5449 = vld [vmem:[#allocation4 + $0x370] sm:$0xff]
        %v5450 = vld [vmem:[#allocation4 + $0x378] sm:$0xff]
        %v5451 = vld [vmem:[#allocation4 + $0x380] sm:$0xff]
        %v5452 = vld [vmem:[#allocation4 + $0x388] sm:$0xff]
        %v5453 = vld [vmem:[#allocation4 + $0x390] sm:$0xff]
        %v5454 = vld [vmem:[#allocation4 + $0x398] sm:$0xff]
        %v5455 = vld [vmem:[#allocation4 + $0x3a0] sm:$0xff]
        %v5456 = vld [vmem:[#allocation4 + $0x3a8] sm:$0xff]
        %v5457 = vld [vmem:[#allocation4 + $0x3b0] sm:$0xff]
        %v5458 = vld [vmem:[#allocation4 + $0x3b8] sm:$0xff]
        %v5459 = vld [vmem:[#allocation4 + $0x3c0] sm:$0xff]
        %v5460 = vld [vmem:[#allocation4 + $0x3c8] sm:$0xff]
        %v5461 = vld [vmem:[#allocation4 + $0x3d0] sm:$0xff]
        %v5462 = vld [vmem:[#allocation4 + $0x3d8] sm:$0xff]
        %v5463 = vld [vmem:[#allocation4 + $0x3e0] sm:$0xff]
        %v5464 = vld [vmem:[#allocation4 + $0x3e8] sm:$0xff]
        %v5465 = vld [vmem:[#allocation4 + $0x3f0] sm:$0xff]
        %v5466 = vld [vmem:[#allocation4 + $0x3f8] sm:$0xff]
        %v5467 = vld [vmem:[%s11] sm:$0xf]
        %v5469 = vlaneseq
        %v5470 = vshrl.u32 %v5469, 7
        %v5471 = vsub.s32 0, %v5470
        %v5472 = vrot.slane %v5467, %v5471
        %v5473 = vlaneseq
        %v5474 = vshrl.u32 %v5473, 7
        %v5475 = vsub.s32 1, %v5474
        %v5476 = vrot.slane %v5467, %v5475
        %v5477 = vlaneseq
        %v5478 = vshrl.u32 %v5477, 7
        %v5479 = vsub.s32 2, %v5478
        %v5480 = vrot.slane %v5467, %v5479
        %v5481 = vlaneseq
        %v5482 = vshrl.u32 %v5481, 7
        %v5483 = vsub.s32 3, %v5482
        %v5484 = vrot.slane %v5467, %v5483
        %v5617 = vunpack.c.l.b16 %v5339
        %v5618 = vunpack.c.h.b16 %v5339
        %v5619 = vunpack.c.l.b16 %v5340
        %v5620 = vunpack.c.h.b16 %v5340
        %v5621 = vunpack.c.l.b16 %v5341
        %v5622 = vunpack.c.h.b16 %v5341
        %v5623 = vunpack.c.l.b16 %v5342
        %v5624 = vunpack.c.h.b16 %v5342
        %v5625 = vunpack.c.l.b16 %v5343
        %v5626 = vunpack.c.h.b16 %v5343
        %v5627 = vunpack.c.l.b16 %v5344
        %v5628 = vunpack.c.h.b16 %v5344
        %v5629 = vunpack.c.l.b16 %v5345
        %v5630 = vunpack.c.h.b16 %v5345
        %v5631 = vunpack.c.l.b16 %v5346
        %v5632 = vunpack.c.h.b16 %v5346
        %v5633 = vunpack.c.l.b16 %v5347
        %v5634 = vunpack.c.h.b16 %v5347
        %v5635 = vunpack.c.l.b16 %v5348
        %v5636 = vunpack.c.h.b16 %v5348
        %v5637 = vunpack.c.l.b16 %v5349
        %v5638 = vunpack.c.h.b16 %v5349
        %v5639 = vunpack.c.l.b16 %v5350
        %v5640 = vunpack.c.h.b16 %v5350
        %v5641 = vunpack.c.l.b16 %v5351
        %v5642 = vunpack.c.h.b16 %v5351
        %v5643 = vunpack.c.l.b16 %v5352
        %v5644 = vunpack.c.h.b16 %v5352
        %v5645 = vunpack.c.l.b16 %v5353
        %v5646 = vunpack.c.h.b16 %v5353
        %v5647 = vunpack.c.l.b16 %v5354
        %v5648 = vunpack.c.h.b16 %v5354
        %v5649 = vunpack.c.l.b16 %v5355
        %v5650 = vunpack.c.h.b16 %v5355
        %v5651 = vunpack.c.l.b16 %v5356
        %v5652 = vunpack.c.h.b16 %v5356
        %v5653 = vunpack.c.l.b16 %v5357
        %v5654 = vunpack.c.h.b16 %v5357
        %v5655 = vunpack.c.l.b16 %v5358
        %v5656 = vunpack.c.h.b16 %v5358
        %v5657 = vunpack.c.l.b16 %v5359
        %v5658 = vunpack.c.h.b16 %v5359
        %v5659 = vunpack.c.l.b16 %v5360
        %v5660 = vunpack.c.h.b16 %v5360
        %v5661 = vunpack.c.l.b16 %v5361
        %v5662 = vunpack.c.h.b16 %v5361
        %v5663 = vunpack.c.l.b16 %v5362
        %v5664 = vunpack.c.h.b16 %v5362
        %v5665 = vunpack.c.l.b16 %v5363
        %v5666 = vunpack.c.h.b16 %v5363
        %v5667 = vunpack.c.l.b16 %v5364
        %v5668 = vunpack.c.h.b16 %v5364
        %v5669 = vunpack.c.l.b16 %v5365
        %v5670 = vunpack.c.h.b16 %v5365
        %v5671 = vunpack.c.l.b16 %v5366
        %v5672 = vunpack.c.h.b16 %v5366
        %v5673 = vunpack.c.l.b16 %v5367
        %v5674 = vunpack.c.h.b16 %v5367
        %v5675 = vunpack.c.l.b16 %v5368
        %v5676 = vunpack.c.h.b16 %v5368
        %v5677 = vunpack.c.l.b16 %v5369
        %v5678 = vunpack.c.h.b16 %v5369
        %v5679 = vunpack.c.l.b16 %v5370
        %v5680 = vunpack.c.h.b16 %v5370
        %v5681 = vunpack.c.l.b16 %v5371
        %v5682 = vunpack.c.h.b16 %v5371
        %v5683 = vunpack.c.l.b16 %v5372
        %v5684 = vunpack.c.h.b16 %v5372
        %v5685 = vunpack.c.l.b16 %v5373
        %v5686 = vunpack.c.h.b16 %v5373
        %v5687 = vunpack.c.l.b16 %v5374
        %v5688 = vunpack.c.h.b16 %v5374
        %v5689 = vunpack.c.l.b16 %v5375
        %v5690 = vunpack.c.h.b16 %v5375
        %v5691 = vunpack.c.l.b16 %v5376
        %v5692 = vunpack.c.h.b16 %v5376
        %v5693 = vunpack.c.l.b16 %v5377
        %v5694 = vunpack.c.h.b16 %v5377
        %v5695 = vunpack.c.l.b16 %v5378
        %v5696 = vunpack.c.h.b16 %v5378
        %v5697 = vunpack.c.l.b16 %v5379
        %v5698 = vunpack.c.h.b16 %v5379
        %v5699 = vunpack.c.l.b16 %v5380
        %v5700 = vunpack.c.h.b16 %v5380
        %v5701 = vunpack.c.l.b16 %v5381
        %v5702 = vunpack.c.h.b16 %v5381
        %v5703 = vunpack.c.l.b16 %v5382
        %v5704 = vunpack.c.h.b16 %v5382
        %v5705 = vunpack.c.l.b16 %v5383
        %v5706 = vunpack.c.h.b16 %v5383
        %v5707 = vunpack.c.l.b16 %v5384
        %v5708 = vunpack.c.h.b16 %v5384
        %v5709 = vunpack.c.l.b16 %v5385
        %v5710 = vunpack.c.h.b16 %v5385
        %v5711 = vunpack.c.l.b16 %v5386
        %v5712 = vunpack.c.h.b16 %v5386
        %v5713 = vunpack.c.l.b16 %v5387
        %v5714 = vunpack.c.h.b16 %v5387
        %v5715 = vunpack.c.l.b16 %v5388
        %v5716 = vunpack.c.h.b16 %v5388
        %v5717 = vunpack.c.l.b16 %v5389
        %v5718 = vunpack.c.h.b16 %v5389
        %v5719 = vunpack.c.l.b16 %v5390
        %v5720 = vunpack.c.h.b16 %v5390
        %v5721 = vunpack.c.l.b16 %v5391
        %v5722 = vunpack.c.h.b16 %v5391
        %v5723 = vunpack.c.l.b16 %v5392
        %v5724 = vunpack.c.h.b16 %v5392
        %v5725 = vunpack.c.l.b16 %v5393
        %v5726 = vunpack.c.h.b16 %v5393
        %v5727 = vunpack.c.l.b16 %v5394
        %v5728 = vunpack.c.h.b16 %v5394
        %v5729 = vunpack.c.l.b16 %v5395
        %v5730 = vunpack.c.h.b16 %v5395
        %v5731 = vunpack.c.l.b16 %v5396
        %v5732 = vunpack.c.h.b16 %v5396
        %v5733 = vunpack.c.l.b16 %v5397
        %v5734 = vunpack.c.h.b16 %v5397
        %v5735 = vunpack.c.l.b16 %v5398
        %v5736 = vunpack.c.h.b16 %v5398
        %v5737 = vunpack.c.l.b16 %v5399
        %v5738 = vunpack.c.h.b16 %v5399
        %v5739 = vunpack.c.l.b16 %v5400
        %v5740 = vunpack.c.h.b16 %v5400
        %v5741 = vunpack.c.l.b16 %v5401
        %v5742 = vunpack.c.h.b16 %v5401
        %v5743 = vunpack.c.l.b16 %v5402
        %v5744 = vunpack.c.h.b16 %v5402
        %v5745 = vunpack.c.l.b16 %v5403
        %v5746 = vunpack.c.h.b16 %v5403
        %v5747 = vunpack.c.l.b16 %v5404
        %v5748 = vunpack.c.h.b16 %v5404
        %v5749 = vunpack.c.l.b16 %v5405
        %v5750 = vunpack.c.h.b16 %v5405
        %v5751 = vunpack.c.l.b16 %v5406
        %v5752 = vunpack.c.h.b16 %v5406
        %v5753 = vunpack.c.l.b16 %v5407
        %v5754 = vunpack.c.h.b16 %v5407
        %v5755 = vunpack.c.l.b16 %v5408
        %v5756 = vunpack.c.h.b16 %v5408
        %v5757 = vunpack.c.l.b16 %v5409
        %v5758 = vunpack.c.h.b16 %v5409
        %v5759 = vunpack.c.l.b16 %v5410
        %v5760 = vunpack.c.h.b16 %v5410
        %v5761 = vunpack.c.l.b16 %v5411
        %v5762 = vunpack.c.h.b16 %v5411
        %v5763 = vunpack.c.l.b16 %v5412
        %v5764 = vunpack.c.h.b16 %v5412
        %v5765 = vunpack.c.l.b16 %v5413
        %v5766 = vunpack.c.h.b16 %v5413
        %v5767 = vunpack.c.l.b16 %v5414
        %v5768 = vunpack.c.h.b16 %v5414
        %v5769 = vunpack.c.l.b16 %v5415
        %v5770 = vunpack.c.h.b16 %v5415
        %v5771 = vunpack.c.l.b16 %v5416
        %v5772 = vunpack.c.h.b16 %v5416
        %v5773 = vunpack.c.l.b16 %v5417
        %v5774 = vunpack.c.h.b16 %v5417
        %v5775 = vunpack.c.l.b16 %v5418
        %v5776 = vunpack.c.h.b16 %v5418
        %v5777 = vunpack.c.l.b16 %v5419
        %v5778 = vunpack.c.h.b16 %v5419
        %v5779 = vunpack.c.l.b16 %v5420
        %v5780 = vunpack.c.h.b16 %v5420
        %v5781 = vunpack.c.l.b16 %v5421
        %v5782 = vunpack.c.h.b16 %v5421
        %v5783 = vunpack.c.l.b16 %v5422
        %v5784 = vunpack.c.h.b16 %v5422
        %v5785 = vunpack.c.l.b16 %v5423
        %v5786 = vunpack.c.h.b16 %v5423
        %v5787 = vunpack.c.l.b16 %v5424
        %v5788 = vunpack.c.h.b16 %v5424
        %v5789 = vunpack.c.l.b16 %v5425
        %v5790 = vunpack.c.h.b16 %v5425
        %v5791 = vunpack.c.l.b16 %v5426
        %v5792 = vunpack.c.h.b16 %v5426
        %v5793 = vunpack.c.l.b16 %v5427
        %v5794 = vunpack.c.h.b16 %v5427
        %v5795 = vunpack.c.l.b16 %v5428
        %v5796 = vunpack.c.h.b16 %v5428
        %v5797 = vunpack.c.l.b16 %v5429
        %v5798 = vunpack.c.h.b16 %v5429
        %v5799 = vunpack.c.l.b16 %v5430
        %v5800 = vunpack.c.h.b16 %v5430
        %v5801 = vunpack.c.l.b16 %v5431
        %v5802 = vunpack.c.h.b16 %v5431
        %v5803 = vunpack.c.l.b16 %v5432
        %v5804 = vunpack.c.h.b16 %v5432
        %v5805 = vunpack.c.l.b16 %v5433
        %v5806 = vunpack.c.h.b16 %v5433
        %v5807 = vunpack.c.l.b16 %v5434
        %v5808 = vunpack.c.h.b16 %v5434
        %v5809 = vunpack.c.l.b16 %v5435
        %v5810 = vunpack.c.h.b16 %v5435
        %v5811 = vunpack.c.l.b16 %v5436
        %v5812 = vunpack.c.h.b16 %v5436
        %v5813 = vunpack.c.l.b16 %v5437
        %v5814 = vunpack.c.h.b16 %v5437
        %v5815 = vunpack.c.l.b16 %v5438
        %v5816 = vunpack.c.h.b16 %v5438
        %v5817 = vunpack.c.l.b16 %v5439
        %v5818 = vunpack.c.h.b16 %v5439
        %v5819 = vunpack.c.l.b16 %v5440
        %v5820 = vunpack.c.h.b16 %v5440
        %v5821 = vunpack.c.l.b16 %v5441
        %v5822 = vunpack.c.h.b16 %v5441
        %v5823 = vunpack.c.l.b16 %v5442
        %v5824 = vunpack.c.h.b16 %v5442
        %v5825 = vunpack.c.l.b16 %v5443
        %v5826 = vunpack.c.h.b16 %v5443
        %v5827 = vunpack.c.l.b16 %v5444
        %v5828 = vunpack.c.h.b16 %v5444
        %v5829 = vunpack.c.l.b16 %v5445
        %v5830 = vunpack.c.h.b16 %v5445
        %v5831 = vunpack.c.l.b16 %v5446
        %v5832 = vunpack.c.h.b16 %v5446
        %v5833 = vunpack.c.l.b16 %v5447
        %v5834 = vunpack.c.h.b16 %v5447
        %v5835 = vunpack.c.l.b16 %v5448
        %v5836 = vunpack.c.h.b16 %v5448
        %v5837 = vunpack.c.l.b16 %v5449
        %v5838 = vunpack.c.h.b16 %v5449
        %v5839 = vunpack.c.l.b16 %v5450
        %v5840 = vunpack.c.h.b16 %v5450
        %v5841 = vunpack.c.l.b16 %v5451
        %v5842 = vunpack.c.h.b16 %v5451
        %v5843 = vunpack.c.l.b16 %v5452
        %v5844 = vunpack.c.h.b16 %v5452
        %v5845 = vunpack.c.l.b16 %v5453
        %v5846 = vunpack.c.h.b16 %v5453
        %v5847 = vunpack.c.l.b16 %v5454
        %v5848 = vunpack.c.h.b16 %v5454
        %v5849 = vunpack.c.l.b16 %v5455
        %v5850 = vunpack.c.h.b16 %v5455
        %v5851 = vunpack.c.l.b16 %v5456
        %v5852 = vunpack.c.h.b16 %v5456
        %v5853 = vunpack.c.l.b16 %v5457
        %v5854 = vunpack.c.h.b16 %v5457
        %v5855 = vunpack.c.l.b16 %v5458
        %v5856 = vunpack.c.h.b16 %v5458
        %v5857 = vunpack.c.l.b16 %v5459
        %v5858 = vunpack.c.h.b16 %v5459
        %v5859 = vunpack.c.l.b16 %v5460
        %v5860 = vunpack.c.h.b16 %v5460
        %v5861 = vunpack.c.l.b16 %v5461
        %v5862 = vunpack.c.h.b16 %v5461
        %v5863 = vunpack.c.l.b16 %v5462
        %v5864 = vunpack.c.h.b16 %v5462
        %v5865 = vunpack.c.l.b16 %v5463
        %v5866 = vunpack.c.h.b16 %v5463
        %v5867 = vunpack.c.l.b16 %v5464
        %v5868 = vunpack.c.h.b16 %v5464
        %v5869 = vunpack.c.l.b16 %v5465
        %v5870 = vunpack.c.h.b16 %v5465
        %v5871 = vunpack.c.l.b16 %v5466
        %v5872 = vunpack.c.h.b16 %v5466
        %v5873 = vpack.c.b16 %v5621, %v5617
        %v5874 = vpack.c.b16 %v5622, %v5618
        %v5875 = vpack.c.b16 %v5623, %v5619
        %v5876 = vpack.c.b16 %v5624, %v5620
        %v5877 = vpack.c.b16 %v5629, %v5625
        %v5878 = vpack.c.b16 %v5630, %v5626
        %v5879 = vpack.c.b16 %v5631, %v5627
        %v5880 = vpack.c.b16 %v5632, %v5628
        %v5881 = vpack.c.b16 %v5637, %v5633
        %v5882 = vpack.c.b16 %v5638, %v5634
        %v5883 = vpack.c.b16 %v5639, %v5635
        %v5884 = vpack.c.b16 %v5640, %v5636
        %v5885 = vpack.c.b16 %v5645, %v5641
        %v5886 = vpack.c.b16 %v5646, %v5642
        %v5887 = vpack.c.b16 %v5647, %v5643
        %v5888 = vpack.c.b16 %v5648, %v5644
        %v5889 = vpack.c.b16 %v5653, %v5649
        %v5890 = vpack.c.b16 %v5654, %v5650
        %v5891 = vpack.c.b16 %v5655, %v5651
        %v5892 = vpack.c.b16 %v5656, %v5652
        %v5893 = vpack.c.b16 %v5661, %v5657
        %v5894 = vpack.c.b16 %v5662, %v5658
        %v5895 = vpack.c.b16 %v5663, %v5659
        %v5896 = vpack.c.b16 %v5664, %v5660
        %v5897 = vpack.c.b16 %v5669, %v5665
        %v5898 = vpack.c.b16 %v5670, %v5666
        %v5899 = vpack.c.b16 %v5671, %v5667
        %v5900 = vpack.c.b16 %v5672, %v5668
        %v5901 = vpack.c.b16 %v5677, %v5673
        %v5902 = vpack.c.b16 %v5678, %v5674
        %v5903 = vpack.c.b16 %v5679, %v5675
        %v5904 = vpack.c.b16 %v5680, %v5676
        %v5905 = vpack.c.b16 %v5685, %v5681
        %v5906 = vpack.c.b16 %v5686, %v5682
        %v5907 = vpack.c.b16 %v5687, %v5683
        %v5908 = vpack.c.b16 %v5688, %v5684
        %v5909 = vpack.c.b16 %v5693, %v5689
        %v5910 = vpack.c.b16 %v5694, %v5690
        %v5911 = vpack.c.b16 %v5695, %v5691
        %v5912 = vpack.c.b16 %v5696, %v5692
        %v5913 = vpack.c.b16 %v5701, %v5697
        %v5914 = vpack.c.b16 %v5702, %v5698
        %v5915 = vpack.c.b16 %v5703, %v5699
        %v5916 = vpack.c.b16 %v5704, %v5700
        %v5917 = vpack.c.b16 %v5709, %v5705
        %v5918 = vpack.c.b16 %v5710, %v5706
        %v5919 = vpack.c.b16 %v5711, %v5707
        %v5920 = vpack.c.b16 %v5712, %v5708
        %v5921 = vpack.c.b16 %v5717, %v5713
        %v5922 = vpack.c.b16 %v5718, %v5714
        %v5923 = vpack.c.b16 %v5719, %v5715
        %v5924 = vpack.c.b16 %v5720, %v5716
        %v5925 = vpack.c.b16 %v5725, %v5721
        %v5926 = vpack.c.b16 %v5726, %v5722
        %v5927 = vpack.c.b16 %v5727, %v5723
        %v5928 = vpack.c.b16 %v5728, %v5724
        %v5929 = vpack.c.b16 %v5733, %v5729
        %v5930 = vpack.c.b16 %v5734, %v5730
        %v5931 = vpack.c.b16 %v5735, %v5731
        %v5932 = vpack.c.b16 %v5736, %v5732
        %v5933 = vpack.c.b16 %v5741, %v5737
        %v5934 = vpack.c.b16 %v5742, %v5738
        %v5935 = vpack.c.b16 %v5743, %v5739
        %v5936 = vpack.c.b16 %v5744, %v5740
        %v5937 = vpack.c.b16 %v5749, %v5745
        %v5938 = vpack.c.b16 %v5750, %v5746
        %v5939 = vpack.c.b16 %v5751, %v5747
        %v5940 = vpack.c.b16 %v5752, %v5748
        %v5941 = vpack.c.b16 %v5757, %v5753
        %v5942 = vpack.c.b16 %v5758, %v5754
        %v5943 = vpack.c.b16 %v5759, %v5755
        %v5944 = vpack.c.b16 %v5760, %v5756
        %v5945 = vpack.c.b16 %v5765, %v5761
        %v5946 = vpack.c.b16 %v5766, %v5762
        %v5947 = vpack.c.b16 %v5767, %v5763
        %v5948 = vpack.c.b16 %v5768, %v5764
        %v5949 = vpack.c.b16 %v5773, %v5769
        %v5950 = vpack.c.b16 %v5774, %v5770
        %v5951 = vpack.c.b16 %v5775, %v5771
        %v5952 = vpack.c.b16 %v5776, %v5772
        %v5953 = vpack.c.b16 %v5781, %v5777
        %v5954 = vpack.c.b16 %v5782, %v5778
        %v5955 = vpack.c.b16 %v5783, %v5779
        %v5956 = vpack.c.b16 %v5784, %v5780
        %v5957 = vpack.c.b16 %v5789, %v5785
        %v5958 = vpack.c.b16 %v5790, %v5786
        %v5959 = vpack.c.b16 %v5791, %v5787
        %v5960 = vpack.c.b16 %v5792, %v5788
        %v5961 = vpack.c.b16 %v5797, %v5793
        %v5962 = vpack.c.b16 %v5798, %v5794
        %v5963 = vpack.c.b16 %v5799, %v5795
        %v5964 = vpack.c.b16 %v5800, %v5796
        %v5965 = vpack.c.b16 %v5805, %v5801
        %v5966 = vpack.c.b16 %v5806, %v5802
        %v5967 = vpack.c.b16 %v5807, %v5803
        %v5968 = vpack.c.b16 %v5808, %v5804
        %v5969 = vpack.c.b16 %v5813, %v5809
        %v5970 = vpack.c.b16 %v5814, %v5810
        %v5971 = vpack.c.b16 %v5815, %v5811
        %v5972 = vpack.c.b16 %v5816, %v5812
        %v5973 = vpack.c.b16 %v5821, %v5817
        %v5974 = vpack.c.b16 %v5822, %v5818
        %v5975 = vpack.c.b16 %v5823, %v5819
        %v5976 = vpack.c.b16 %v5824, %v5820
        %v5977 = vpack.c.b16 %v5829, %v5825
        %v5978 = vpack.c.b16 %v5830, %v5826
        %v5979 = vpack.c.b16 %v5831, %v5827
        %v5980 = vpack.c.b16 %v5832, %v5828
        %v5981 = vpack.c.b16 %v5837, %v5833
        %v5982 = vpack.c.b16 %v5838, %v5834
        %v5983 = vpack.c.b16 %v5839, %v5835
        %v5984 = vpack.c.b16 %v5840, %v5836
        %v5985 = vpack.c.b16 %v5845, %v5841
        %v5986 = vpack.c.b16 %v5846, %v5842
        %v5987 = vpack.c.b16 %v5847, %v5843
        %v5988 = vpack.c.b16 %v5848, %v5844
        %v5989 = vpack.c.b16 %v5853, %v5849
        %v5990 = vpack.c.b16 %v5854, %v5850
        %v5991 = vpack.c.b16 %v5855, %v5851
        %v5992 = vpack.c.b16 %v5856, %v5852
        %v5993 = vpack.c.b16 %v5861, %v5857
        %v5994 = vpack.c.b16 %v5862, %v5858
        %v5995 = vpack.c.b16 %v5863, %v5859
        %v5996 = vpack.c.b16 %v5864, %v5860
        %v5997 = vpack.c.b16 %v5869, %v5865
        %v5998 = vpack.c.b16 %v5870, %v5866
        %v5999 = vpack.c.b16 %v5871, %v5867
        %v6000 = vpack.c.b16 %v5872, %v5868
        %6129 = vmatprep.subr.bf16.mxu0 %v5874
        %6130 = vmatpush1.bf16.msra.mxu0 %v5873
        %6131 = vmatprep.subr.bf16.mxu0 %v5878
        %6132 = vmatpush1.bf16.msra.mxu0 %v5877
        %6133 = vmatprep.subr.bf16.mxu0 %v5882
        %6134 = vmatpush1.bf16.msra.mxu0 %v5881
        %6135 = vmatprep.subr.bf16.mxu0 %v5886
        %6136 = vmatpush1.bf16.msra.mxu0 %v5885
        %6137 = vmatprep.subr.bf16.mxu0 %v5890
        %6138 = vmatpush1.bf16.msra.mxu0 %v5889
        %6139 = vmatprep.subr.bf16.mxu0 %v5894
        %6140 = vmatpush1.bf16.msra.mxu0 %v5893
        %6141 = vmatprep.subr.bf16.mxu0 %v5898
        %6142 = vmatpush1.bf16.msra.mxu0 %v5897
        %6143 = vmatprep.subr.bf16.mxu0 %v5902
        %6144 = vmatpush1.bf16.msra.mxu0 %v5901
        %6145 = vmatprep.subr.bf16.mxu0 %v5906
        %6146 = vmatpush1.bf16.msra.mxu0 %v5905
        %6147 = vmatprep.subr.bf16.mxu0 %v5910
        %6148 = vmatpush1.bf16.msra.mxu0 %v5909
        %6149 = vmatprep.subr.bf16.mxu0 %v5914
        %6150 = vmatpush1.bf16.msra.mxu0 %v5913
        %6151 = vmatprep.subr.bf16.mxu0 %v5918
        %6152 = vmatpush1.bf16.msra.mxu0 %v5917
        %6153 = vmatprep.subr.bf16.mxu0 %v5922
        %6154 = vmatpush1.bf16.msra.mxu0 %v5921
        %6155 = vmatprep.subr.bf16.mxu0 %v5926
        %6156 = vmatpush1.bf16.msra.mxu0 %v5925
        %6157 = vmatprep.subr.bf16.mxu0 %v5930
        %6158 = vmatpush1.bf16.msra.mxu0 %v5929
        %6159 = vmatprep.subr.bf16.mxu0 %v5934
        %6160 = vmatpush1.bf16.msra.mxu0 %v5933
        %6161 = vmatprep.mubr.bf16.mxu0 %v5308
        %6162 = vmatmul.mubr.bf16.gmra.mrb[0].mxu0 %v5307
        %v6163 = vpop.f32.mrb[0].mxu0
        %v6164 = vadd.f32 %v5472, %v6163
        %v6165 = vpop.f32.mrb[0].mxu0
        %v6166 = vadd.f32 %v5476, %v6165
        %v6167 = vpop.f32.mrb[0].mxu0
        %v6168 = vadd.f32 %v5472, %v6167
        %v6169 = vpop.f32.mrb[0].mxu0
        %v6170 = vadd.f32 %v5476, %v6169
        %6171 = vmatprep.mubr.bf16.mxu0 %v5312
        %6172 = vmatmul.mubr.bf16.gmra.mrb[0].mxu0 %v5311
        %v6173 = vpop.f32.mrb[0].mxu0
        %v6174 = vadd.f32 %v5472, %v6173
        %v6175 = vpop.f32.mrb[0].mxu0
        %v6176 = vadd.f32 %v5476, %v6175
        %v6177 = vpop.f32.mrb[0].mxu0
        %v6178 = vadd.f32 %v5472, %v6177
        %v6179 = vpop.f32.mrb[0].mxu0
        %v6180 = vadd.f32 %v5476, %v6179
        %6181 = vmatprep.mubr.bf16.mxu0 %v5316
        %6182 = vmatmul.mubr.bf16.gmra.mrb[0].mxu0 %v5315
        %v6183 = vpop.f32.mrb[0].mxu0
        %v6184 = vadd.f32 %v5472, %v6183
        %v6185 = vpop.f32.mrb[0].mxu0
        %v6186 = vadd.f32 %v5476, %v6185
        %v6187 = vpop.f32.mrb[0].mxu0
        %v6188 = vadd.f32 %v5472, %v6187
        %v6189 = vpop.f32.mrb[0].mxu0
        %v6190 = vadd.f32 %v5476, %v6189
        %6191 = vmatprep.mubr.bf16.mxu0 %v5320
        %6192 = vmatmul.mubr.bf16.gmra.mrb[0].mxu0 %v5319
        %v6193 = vpop.f32.mrb[0].mxu0
        %v6194 = vadd.f32 %v5472, %v6193
        %v6195 = vpop.f32.mrb[0].mxu0
        %v6196 = vadd.f32 %v5476, %v6195
        %v6197 = vpop.f32.mrb[0].mxu0
        %v6198 = vadd.f32 %v5472, %v6197
        %v6199 = vpop.f32.mrb[0].mxu0
        %v6200 = vadd.f32 %v5476, %v6199
        %6201 = vmatprep.mubr.bf16.mxu0 %v5324
        %6202 = vmatmul.mubr.bf16.gmra.mrb[0].mxu0 %v5323
        %v6203 = vpop.f32.mrb[0].mxu0
        %v6204 = vadd.f32 %v5472, %v6203
        %v6205 = vpop.f32.mrb[0].mxu0
        %v6206 = vadd.f32 %v5476, %v6205
        %v6207 = vpop.f32.mrb[0].mxu0
        %v6208 = vadd.f32 %v5472, %v6207
        %v6209 = vpop.f32.mrb[0].mxu0
        %v6210 = vadd.f32 %v5476, %v6209
        %6211 = vmatprep.mubr.bf16.mxu0 %v5328
        %6212 = vmatmul.mubr.bf16.gmra.mrb[0].mxu0 %v5327
        %v6213 = vpop.f32.mrb[0].mxu0
        %v6214 = vadd.f32 %v5472, %v6213
        %v6215 = vpop.f32.mrb[0].mxu0
        %v6216 = vadd.f32 %v5476, %v6215
        %v6217 = vpop.f32.mrb[0].mxu0
        %v6218 = vadd.f32 %v5472, %v6217
        %v6219 = vpop.f32.mrb[0].mxu0
        %v6220 = vadd.f32 %v5476, %v6219
        %6221 = vmatprep.mubr.bf16.mxu0 %v5332
        %6222 = vmatmul.mubr.bf16.gmra.mrb[0].mxu0 %v5331
        %v6223 = vpop.f32.mrb[0].mxu0
        %v6224 = vadd.f32 %v5472, %v6223
        %v6225 = vpop.f32.mrb[0].mxu0
        %v6226 = vadd.f32 %v5476, %v6225
        %v6227 = vpop.f32.mrb[0].mxu0
        %v6228 = vadd.f32 %v5472, %v6227
        %v6229 = vpop.f32.mrb[0].mxu0
        %v6230 = vadd.f32 %v5476, %v6229
        %6231 = vmatprep.mubr.bf16.mxu0 %v5336
        %6232 = vmatmul.mubr.bf16.gmra.mrb[0].mxu0 %v5335
        %v6233 = vpop.f32.mrb[0].mxu0
        %v6234 = vadd.f32 %v5472, %v6233
        %v6235 = vpop.f32.mrb[0].mxu0
        %v6236 = vadd.f32 %v5476, %v6235
        %v6237 = vpop.f32.mrb[0].mxu0
        %v6238 = vadd.f32 %v5472, %v6237
        %v6239 = vpop.f32.mrb[0].mxu0
        %v6240 = vadd.f32 %v5476, %v6239
        %6241 = vdwg.mxu0
        %6242 = vmatprep.subr.bf16.mxu0 %v5938
        %6243 = vmatpush1.bf16.msra.mxu0 %v5937
        %6244 = vmatprep.subr.bf16.mxu0 %v5942
        %6245 = vmatpush1.bf16.msra.mxu0 %v5941
        %6246 = vmatprep.subr.bf16.mxu0 %v5946
        %6247 = vmatpush1.bf16.msra.mxu0 %v5945
        %6248 = vmatprep.subr.bf16.mxu0 %v5950
        %6249 = vmatpush1.bf16.msra.mxu0 %v5949
        %6250 = vmatprep.subr.bf16.mxu0 %v5954
        %6251 = vmatpush1.bf16.msra.mxu0 %v5953
        %6252 = vmatprep.subr.bf16.mxu0 %v5958
        %6253 = vmatpush1.bf16.msra.mxu0 %v5957
        %6254 = vmatprep.subr.bf16.mxu0 %v5962
        %6255 = vmatpush1.bf16.msra.mxu0 %v5961
        %6256 = vmatprep.subr.bf16.mxu0 %v5966
        %6257 = vmatpush1.bf16.msra.mxu0 %v5965
        %6258 = vmatprep.subr.bf16.mxu0 %v5970
        %6259 = vmatpush1.bf16.msra.mxu0 %v5969
        %6260 = vmatprep.subr.bf16.mxu0 %v5974
        %6261 = vmatpush1.bf16.msra.mxu0 %v5973
        %6262 = vmatprep.subr.bf16.mxu0 %v5978
        %6263 = vmatpush1.bf16.msra.mxu0 %v5977
        %6264 = vmatprep.subr.bf16.mxu0 %v5982
        %6265 = vmatpush1.bf16.msra.mxu0 %v5981
        %6266 = vmatprep.subr.bf16.mxu0 %v5986
        %6267 = vmatpush1.bf16.msra.mxu0 %v5985
        %6268 = vmatprep.subr.bf16.mxu0 %v5990
        %6269 = vmatpush1.bf16.msra.mxu0 %v5989
        %6270 = vmatprep.subr.bf16.mxu0 %v5994
        %6271 = vmatpush1.bf16.msra.mxu0 %v5993
        %6272 = vmatprep.subr.bf16.mxu0 %v5998
        %6273 = vmatpush1.bf16.msra.mxu0 %v5997
        %6274 = vmatprep.mubr.bf16.mxu0 %v5310
        %6275 = vmatmul.mubr.bf16.gmra.mrb[0].mxu0 %v5309
        %v6276 = vpop.f32.mrb[0].mxu0
        %v6277 = vadd.f32 %v6164, %v6276
        %v6278 = vpop.f32.mrb[0].mxu0
        %v6279 = vadd.f32 %v6166, %v6278
        %v6280 = vpop.f32.mrb[0].mxu0
        %v6281 = vadd.f32 %v6168, %v6280
        %v6282 = vpop.f32.mrb[0].mxu0
        %v6283 = vadd.f32 %v6170, %v6282
        %6284 = vmatprep.mubr.bf16.mxu0 %v5314
        %6285 = vmatmul.mubr.bf16.gmra.mrb[0].mxu0 %v5313
        %v6286 = vpop.f32.mrb[0].mxu0
        %v6287 = vadd.f32 %v6174, %v6286
        %v6288 = vpop.f32.mrb[0].mxu0
        %v6289 = vadd.f32 %v6176, %v6288
        %v6290 = vpop.f32.mrb[0].mxu0
        %v6291 = vadd.f32 %v6178, %v6290
        %v6292 = vpop.f32.mrb[0].mxu0
        %v6293 = vadd.f32 %v6180, %v6292
        %6294 = vmatprep.mubr.bf16.mxu0 %v5318
        %6295 = vmatmul.mubr.bf16.gmra.mrb[0].mxu0 %v5317
        %v6296 = vpop.f32.mrb[0].mxu0
        %v6297 = vadd.f32 %v6184, %v6296
        %v6298 = vpop.f32.mrb[0].mxu0
        %v6299 = vadd.f32 %v6186, %v6298
        %v6300 = vpop.f32.mrb[0].mxu0
        %v6301 = vadd.f32 %v6188, %v6300
        %v6302 = vpop.f32.mrb[0].mxu0
        %v6303 = vadd.f32 %v6190, %v6302
        %6304 = vmatprep.mubr.bf16.mxu0 %v5322
        %6305 = vmatmul.mubr.bf16.gmra.mrb[0].mxu0 %v5321
        %v6306 = vpop.f32.mrb[0].mxu0
        %v6307 = vadd.f32 %v6194, %v6306
        %v6308 = vpop.f32.mrb[0].mxu0
        %v6309 = vadd.f32 %v6196, %v6308
        %v6310 = vpop.f32.mrb[0].mxu0
        %v6311 = vadd.f32 %v6198, %v6310
        %v6312 = vpop.f32.mrb[0].mxu0
        %v6313 = vadd.f32 %v6200, %v6312
        %6314 = vmatprep.mubr.bf16.mxu0 %v5326
        %6315 = vmatmul.mubr.bf16.gmra.mrb[0].mxu0 %v5325
        %v6316 = vpop.f32.mrb[0].mxu0
        %v6317 = vadd.f32 %v6204, %v6316
        %v6318 = vpop.f32.mrb[0].mxu0
        %v6319 = vadd.f32 %v6206, %v6318
        %v6320 = vpop.f32.mrb[0].mxu0
        %v6321 = vadd.f32 %v6208, %v6320
        %v6322 = vpop.f32.mrb[0].mxu0
        %v6323 = vadd.f32 %v6210, %v6322
        %6324 = vmatprep.mubr.bf16.mxu0 %v5330
        %6325 = vmatmul.mubr.bf16.gmra.mrb[0].mxu0 %v5329
        %v6326 = vpop.f32.mrb[0].mxu0
        %v6327 = vadd.f32 %v6214, %v6326
        %v6328 = vpop.f32.mrb[0].mxu0
        %v6329 = vadd.f32 %v6216, %v6328
        %v6330 = vpop.f32.mrb[0].mxu0
        %v6331 = vadd.f32 %v6218, %v6330
        %v6332 = vpop.f32.mrb[0].mxu0
        %v6333 = vadd.f32 %v6220, %v6332
        %6334 = vmatprep.mubr.bf16.mxu0 %v5334
        %6335 = vmatmul.mubr.bf16.gmra.mrb[0].mxu0 %v5333
        %v6336 = vpop.f32.mrb[0].mxu0
        %v6337 = vadd.f32 %v6224, %v6336
        %v6338 = vpop.f32.mrb[0].mxu0
        %v6339 = vadd.f32 %v6226, %v6338
        %v6340 = vpop.f32.mrb[0].mxu0
        %v6341 = vadd.f32 %v6228, %v6340
        %v6342 = vpop.f32.mrb[0].mxu0
        %v6343 = vadd.f32 %v6230, %v6342
        %6344 = vmatprep.mubr.bf16.mxu0 %v5338
        %6345 = vmatmul.mubr.bf16.gmra.mrb[0].mxu0 %v5337
        %v6346 = vpop.f32.mrb[0].mxu0
        %v6347 = vadd.f32 %v6234, %v6346
        %v6348 = vpop.f32.mrb[0].mxu0
        %v6349 = vadd.f32 %v6236, %v6348
        %v6350 = vpop.f32.mrb[0].mxu0
        %v6351 = vadd.f32 %v6238, %v6350
        %v6352 = vpop.f32.mrb[0].mxu0
        %v6353 = vadd.f32 %v6240, %v6352
        %6354 = vdwg.mxu0
        %6355 = vmatprep.subr.bf16.mxu0 %v5876
        %6356 = vmatpush1.bf16.msra.mxu0 %v5875
        %6357 = vmatprep.subr.bf16.mxu0 %v5880
        %6358 = vmatpush1.bf16.msra.mxu0 %v5879
        %6359 = vmatprep.subr.bf16.mxu0 %v5884
        %6360 = vmatpush1.bf16.msra.mxu0 %v5883
        %6361 = vmatprep.subr.bf16.mxu0 %v5888
        %6362 = vmatpush1.bf16.msra.mxu0 %v5887
        %6363 = vmatprep.subr.bf16.mxu0 %v5892
        %6364 = vmatpush1.bf16.msra.mxu0 %v5891
        %6365 = vmatprep.subr.bf16.mxu0 %v5896
        %6366 = vmatpush1.bf16.msra.mxu0 %v5895
        %6367 = vmatprep.subr.bf16.mxu0 %v5900
        %6368 = vmatpush1.bf16.msra.mxu0 %v5899
        %6369 = vmatprep.subr.bf16.mxu0 %v5904
        %6370 = vmatpush1.bf16.msra.mxu0 %v5903
        %6371 = vmatprep.subr.bf16.mxu0 %v5908
        %6372 = vmatpush1.bf16.msra.mxu0 %v5907
        %6373 = vmatprep.subr.bf16.mxu0 %v5912
        %6374 = vmatpush1.bf16.msra.mxu0 %v5911
        %6375 = vmatprep.subr.bf16.mxu0 %v5916
        %6376 = vmatpush1.bf16.msra.mxu0 %v5915
        %6377 = vmatprep.subr.bf16.mxu0 %v5920
        %6378 = vmatpush1.bf16.msra.mxu0 %v5919
        %6379 = vmatprep.subr.bf16.mxu0 %v5924
        %6380 = vmatpush1.bf16.msra.mxu0 %v5923
        %6381 = vmatprep.subr.bf16.mxu0 %v5928
        %6382 = vmatpush1.bf16.msra.mxu0 %v5927
        %6383 = vmatprep.subr.bf16.mxu0 %v5932
        %6384 = vmatpush1.bf16.msra.mxu0 %v5931
        %6385 = vmatprep.subr.bf16.mxu0 %v5936
        %6386 = vmatpush1.bf16.msra.mxu0 %v5935
        %6387 = vmatprep.mubr.bf16.mxu0 %v5308
        %6388 = vmatmul.mubr.bf16.gmra.mrb[0].mxu0 %v5307
        %v6389 = vpop.f32.mrb[0].mxu0
        %v6390 = vadd.f32 %v5480, %v6389
        %v6391 = vpop.f32.mrb[0].mxu0
        %v6392 = vadd.f32 %v5484, %v6391
        %v6393 = vpop.f32.mrb[0].mxu0
        %v6394 = vadd.f32 %v5480, %v6393
        %v6395 = vpop.f32.mrb[0].mxu0
        %v6396 = vadd.f32 %v5484, %v6395
        %6397 = vmatprep.mubr.bf16.mxu0 %v5312
        %6398 = vmatmul.mubr.bf16.gmra.mrb[0].mxu0 %v5311
        %v6399 = vpop.f32.mrb[0].mxu0
        %v6400 = vadd.f32 %v5480, %v6399
        %v6401 = vpop.f32.mrb[0].mxu0
        %v6402 = vadd.f32 %v5484, %v6401
        %v6403 = vpop.f32.mrb[0].mxu0
        %v6404 = vadd.f32 %v5480, %v6403
        %v6405 = vpop.f32.mrb[0].mxu0
        %v6406 = vadd.f32 %v5484, %v6405
        %6407 = vmatprep.mubr.bf16.mxu0 %v5316
        %6408 = vmatmul.mubr.bf16.gmra.mrb[0].mxu0 %v5315
        %v6409 = vpop.f32.mrb[0].mxu0
        %v6410 = vadd.f32 %v5480, %v6409
        %v6411 = vpop.f32.mrb[0].mxu0
        %v6412 = vadd.f32 %v5484, %v6411
        %v6413 = vpop.f32.mrb[0].mxu0
        %v6414 = vadd.f32 %v5480, %v6413
        %v6415 = vpop.f32.mrb[0].mxu0
        %v6416 = vadd.f32 %v5484, %v6415
        %6417 = vmatprep.mubr.bf16.mxu0 %v5320
        %6418 = vmatmul.mubr.bf16.gmra.mrb[0].mxu0 %v5319
        %v6419 = vpop.f32.mrb[0].mxu0
        %v6420 = vadd.f32 %v5480, %v6419
        %v6421 = vpop.f32.mrb[0].mxu0
        %v6422 = vadd.f32 %v5484, %v6421
        %v6423 = vpop.f32.mrb[0].mxu0
        %v6424 = vadd.f32 %v5480, %v6423
        %v6425 = vpop.f32.mrb[0].mxu0
        %v6426 = vadd.f32 %v5484, %v6425
        %6427 = vmatprep.mubr.bf16.mxu0 %v5324
        %6428 = vmatmul.mubr.bf16.gmra.mrb[0].mxu0 %v5323
        %v6429 = vpop.f32.mrb[0].mxu0
        %v6430 = vadd.f32 %v5480, %v6429
        %v6431 = vpop.f32.mrb[0].mxu0
        %v6432 = vadd.f32 %v5484, %v6431
        %v6433 = vpop.f32.mrb[0].mxu0
        %v6434 = vadd.f32 %v5480, %v6433
        %v6435 = vpop.f32.mrb[0].mxu0
        %v6436 = vadd.f32 %v5484, %v6435
        %6437 = vmatprep.mubr.bf16.mxu0 %v5328
        %6438 = vmatmul.mubr.bf16.gmra.mrb[0].mxu0 %v5327
        %v6439 = vpop.f32.mrb[0].mxu0
        %v6440 = vadd.f32 %v5480, %v6439
        %v6441 = vpop.f32.mrb[0].mxu0
        %v6442 = vadd.f32 %v5484, %v6441
        %v6443 = vpop.f32.mrb[0].mxu0
        %v6444 = vadd.f32 %v5480, %v6443
        %v6445 = vpop.f32.mrb[0].mxu0
        %v6446 = vadd.f32 %v5484, %v6445
        %6447 = vmatprep.mubr.bf16.mxu0 %v5332
        %6448 = vmatmul.mubr.bf16.gmra.mrb[0].mxu0 %v5331
        %v6449 = vpop.f32.mrb[0].mxu0
        %v6450 = vadd.f32 %v5480, %v6449
        %v6451 = vpop.f32.mrb[0].mxu0
        %v6452 = vadd.f32 %v5484, %v6451
        %v6453 = vpop.f32.mrb[0].mxu0
        %v6454 = vadd.f32 %v5480, %v6453
        %v6455 = vpop.f32.mrb[0].mxu0
        %v6456 = vadd.f32 %v5484, %v6455
        %6457 = vmatprep.mubr.bf16.mxu0 %v5336
        %6458 = vmatmul.mubr.bf16.gmra.mrb[0].mxu0 %v5335
        %v6459 = vpop.f32.mrb[0].mxu0
        %v6460 = vadd.f32 %v5480, %v6459
        %v6461 = vpop.f32.mrb[0].mxu0
        %v6462 = vadd.f32 %v5484, %v6461
        %v6463 = vpop.f32.mrb[0].mxu0
        %v6464 = vadd.f32 %v5480, %v6463
        %v6465 = vpop.f32.mrb[0].mxu0
        %v6466 = vadd.f32 %v5484, %v6465
        %6467 = vdwg.mxu0
        %6468 = vmatprep.subr.bf16.mxu0 %v5940
        %6469 = vmatpush1.bf16.msra.mxu0 %v5939
        %6470 = vmatprep.subr.bf16.mxu0 %v5944
        %6471 = vmatpush1.bf16.msra.mxu0 %v5943
        %6472 = vmatprep.subr.bf16.mxu0 %v5948
        %6473 = vmatpush1.bf16.msra.mxu0 %v5947
        %6474 = vmatprep.subr.bf16.mxu0 %v5952
        %6475 = vmatpush1.bf16.msra.mxu0 %v5951
        %6476 = vmatprep.subr.bf16.mxu0 %v5956
        %6477 = vmatpush1.bf16.msra.mxu0 %v5955
        %6478 = vmatprep.subr.bf16.mxu0 %v5960
        %6479 = vmatpush1.bf16.msra.mxu0 %v5959
        %6480 = vmatprep.subr.bf16.mxu0 %v5964
        %6481 = vmatpush1.bf16.msra.mxu0 %v5963
        %6482 = vmatprep.subr.bf16.mxu0 %v5968
        %6483 = vmatpush1.bf16.msra.mxu0 %v5967
        %6484 = vmatprep.subr.bf16.mxu0 %v5972
        %6485 = vmatpush1.bf16.msra.mxu0 %v5971
        %6486 = vmatprep.subr.bf16.mxu0 %v5976
        %6487 = vmatpush1.bf16.msra.mxu0 %v5975
        %6488 = vmatprep.subr.bf16.mxu0 %v5980
        %6489 = vmatpush1.bf16.msra.mxu0 %v5979
        %6490 = vmatprep.subr.bf16.mxu0 %v5984
        %6491 = vmatpush1.bf16.msra.mxu0 %v5983
        %6492 = vmatprep.subr.bf16.mxu0 %v5988
        %6493 = vmatpush1.bf16.msra.mxu0 %v5987
        %6494 = vmatprep.subr.bf16.mxu0 %v5992
        %6495 = vmatpush1.bf16.msra.mxu0 %v5991
        %6496 = vmatprep.subr.bf16.mxu0 %v5996
        %6497 = vmatpush1.bf16.msra.mxu0 %v5995
        %6498 = vmatprep.subr.bf16.mxu0 %v6000
        %6499 = vmatpush1.bf16.msra.mxu0 %v5999
        %6500 = vmatprep.mubr.bf16.mxu0 %v5310
        %6501 = vmatmul.mubr.bf16.gmra.mrb[0].mxu0 %v5309
        %v6502 = vpop.f32.mrb[0].mxu0
        %v6503 = vadd.f32 %v6390, %v6502
        %v6504 = vpop.f32.mrb[0].mxu0
        %v6505 = vadd.f32 %v6392, %v6504
        %v6506 = vpop.f32.mrb[0].mxu0
        %v6507 = vadd.f32 %v6394, %v6506
        %v6508 = vpop.f32.mrb[0].mxu0
        %v6509 = vadd.f32 %v6396, %v6508
        %6510 = vmatprep.mubr.bf16.mxu0 %v5314
        %6511 = vmatmul.mubr.bf16.gmra.mrb[0].mxu0 %v5313
        %v6512 = vpop.f32.mrb[0].mxu0
        %v6513 = vadd.f32 %v6400, %v6512
        %v6514 = vpop.f32.mrb[0].mxu0
        %v6515 = vadd.f32 %v6402, %v6514
        %v6516 = vpop.f32.mrb[0].mxu0
        %v6517 = vadd.f32 %v6404, %v6516
        %v6518 = vpop.f32.mrb[0].mxu0
        %v6519 = vadd.f32 %v6406, %v6518
        %6520 = vmatprep.mubr.bf16.mxu0 %v5318
        %6521 = vmatmul.mubr.bf16.gmra.mrb[0].mxu0 %v5317
        %v6522 = vpop.f32.mrb[0].mxu0
        %v6523 = vadd.f32 %v6410, %v6522
        %v6524 = vpop.f32.mrb[0].mxu0
        %v6525 = vadd.f32 %v6412, %v6524
        %v6526 = vpop.f32.mrb[0].mxu0
        %v6527 = vadd.f32 %v6414, %v6526
        %v6528 = vpop.f32.mrb[0].mxu0
        %v6529 = vadd.f32 %v6416, %v6528
        %6530 = vmatprep.mubr.bf16.mxu0 %v5322
        %6531 = vmatmul.mubr.bf16.gmra.mrb[0].mxu0 %v5321
        %v6532 = vpop.f32.mrb[0].mxu0
        %v6533 = vadd.f32 %v6420, %v6532
        %v6534 = vpop.f32.mrb[0].mxu0
        %v6535 = vadd.f32 %v6422, %v6534
        %v6536 = vpop.f32.mrb[0].mxu0
        %v6537 = vadd.f32 %v6424, %v6536
        %v6538 = vpop.f32.mrb[0].mxu0
        %v6539 = vadd.f32 %v6426, %v6538
        %6540 = vmatprep.mubr.bf16.mxu0 %v5326
        %6541 = vmatmul.mubr.bf16.gmra.mrb[0].mxu0 %v5325
        %v6542 = vpop.f32.mrb[0].mxu0
        %v6543 = vadd.f32 %v6430, %v6542
        %v6544 = vpop.f32.mrb[0].mxu0
        %v6545 = vadd.f32 %v6432, %v6544
        %v6546 = vpop.f32.mrb[0].mxu0
        %v6547 = vadd.f32 %v6434, %v6546
        %v6548 = vpop.f32.mrb[0].mxu0
        %v6549 = vadd.f32 %v6436, %v6548
        %6550 = vmatprep.mubr.bf16.mxu0 %v5330
        %6551 = vmatmul.mubr.bf16.gmra.mrb[0].mxu0 %v5329
        %v6552 = vpop.f32.mrb[0].mxu0
        %v6553 = vadd.f32 %v6440, %v6552
        %v6554 = vpop.f32.mrb[0].mxu0
        %v6555 = vadd.f32 %v6442, %v6554
        %v6556 = vpop.f32.mrb[0].mxu0
        %v6557 = vadd.f32 %v6444, %v6556
        %v6558 = vpop.f32.mrb[0].mxu0
        %v6559 = vadd.f32 %v6446, %v6558
        %6560 = vmatprep.mubr.bf16.mxu0 %v5334
        %6561 = vmatmul.mubr.bf16.gmra.mrb[0].mxu0 %v5333
        %v6562 = vpop.f32.mrb[0].mxu0
        %v6563 = vadd.f32 %v6450, %v6562
        %v6564 = vpop.f32.mrb[0].mxu0
        %v6565 = vadd.f32 %v6452, %v6564
        %v6566 = vpop.f32.mrb[0].mxu0
        %v6567 = vadd.f32 %v6454, %v6566
        %v6568 = vpop.f32.mrb[0].mxu0
        %v6569 = vadd.f32 %v6456, %v6568
        %6570 = vmatprep.mubr.bf16.mxu0 %v5338
        %6571 = vmatmul.mubr.bf16.gmra.mrb[0].mxu0 %v5337
        %v6572 = vpop.f32.mrb[0].mxu0
        %v6573 = vadd.f32 %v6460, %v6572
        %v6574 = vpop.f32.mrb[0].mxu0
        %v6575 = vadd.f32 %v6462, %v6574
        %v6576 = vpop.f32.mrb[0].mxu0
        %v6577 = vadd.f32 %v6464, %v6576
        %v6578 = vpop.f32.mrb[0].mxu0
        %v6579 = vadd.f32 %v6466, %v6578
        %6580 = vdwg.mxu0
        %v6581 = vmax.f32 %v6277, 0.0
        %v6582 = vmax.f32 %v6279, 0.0
        %v6583 = vmax.f32 %v6503, 0.0
        %v6584 = vmax.f32 %v6505, 0.0
        %v6585 = vmax.f32 %v6281, 0.0
        %v6586 = vmax.f32 %v6283, 0.0
        %v6587 = vmax.f32 %v6507, 0.0
        %v6588 = vmax.f32 %v6509, 0.0
        %v6589 = vmax.f32 %v6287, 0.0
        %v6590 = vmax.f32 %v6289, 0.0
        %v6591 = vmax.f32 %v6513, 0.0
        %v6592 = vmax.f32 %v6515, 0.0
        %v6593 = vmax.f32 %v6291, 0.0
        %v6594 = vmax.f32 %v6293, 0.0
        %v6595 = vmax.f32 %v6517, 0.0
        %v6596 = vmax.f32 %v6519, 0.0
        %v6597 = vmax.f32 %v6297, 0.0
        %v6598 = vmax.f32 %v6299, 0.0
        %v6599 = vmax.f32 %v6523, 0.0
        %v6600 = vmax.f32 %v6525, 0.0
        %v6601 = vmax.f32 %v6301, 0.0
        %v6602 = vmax.f32 %v6303, 0.0
        %v6603 = vmax.f32 %v6527, 0.0
        %v6604 = vmax.f32 %v6529, 0.0
        %v6605 = vmax.f32 %v6307, 0.0
        %v6606 = vmax.f32 %v6309, 0.0
        %v6607 = vmax.f32 %v6533, 0.0
        %v6608 = vmax.f32 %v6535, 0.0
        %v6609 = vmax.f32 %v6311, 0.0
        %v6610 = vmax.f32 %v6313, 0.0
        %v6611 = vmax.f32 %v6537, 0.0
        %v6612 = vmax.f32 %v6539, 0.0
        %v6613 = vmax.f32 %v6317, 0.0
        %v6614 = vmax.f32 %v6319, 0.0
        %v6615 = vmax.f32 %v6543, 0.0
        %v6616 = vmax.f32 %v6545, 0.0
        %v6617 = vmax.f32 %v6321, 0.0
        %v6618 = vmax.f32 %v6323, 0.0
        %v6619 = vmax.f32 %v6547, 0.0
        %v6620 = vmax.f32 %v6549, 0.0
        %v6621 = vmax.f32 %v6327, 0.0
        %v6622 = vmax.f32 %v6329, 0.0
        %v6623 = vmax.f32 %v6553, 0.0
        %v6624 = vmax.f32 %v6555, 0.0
        %v6625 = vmax.f32 %v6331, 0.0
        %v6626 = vmax.f32 %v6333, 0.0
        %v6627 = vmax.f32 %v6557, 0.0
        %v6628 = vmax.f32 %v6559, 0.0
        %v6629 = vmax.f32 %v6337, 0.0
        %v6630 = vmax.f32 %v6339, 0.0
        %v6631 = vmax.f32 %v6563, 0.0
        %v6632 = vmax.f32 %v6565, 0.0
        %v6633 = vmax.f32 %v6341, 0.0
        %v6634 = vmax.f32 %v6343, 0.0
        %v6635 = vmax.f32 %v6567, 0.0
        %v6636 = vmax.f32 %v6569, 0.0
        %v6637 = vmax.f32 %v6347, 0.0
        %v6638 = vmax.f32 %v6349, 0.0
        %v6639 = vmax.f32 %v6573, 0.0
        %v6640 = vmax.f32 %v6575, 0.0
        %v6641 = vmax.f32 %v6351, 0.0
        %v6642 = vmax.f32 %v6353, 0.0
        %v6643 = vmax.f32 %v6577, 0.0
        %v6644 = vmax.f32 %v6579, 0.0
        %v6645 = vpack.c.bf16 %v6585, %v6581
        %v6646 = vpack.c.bf16 %v6586, %v6582
        %v6647 = vpack.c.bf16 %v6587, %v6583
        %v6648 = vpack.c.bf16 %v6588, %v6584
        %v6649 = vpack.c.bf16 %v6593, %v6589
        %v6650 = vpack.c.bf16 %v6594, %v6590
        %v6651 = vpack.c.bf16 %v6595, %v6591
        %v6652 = vpack.c.bf16 %v6596, %v6592
        %v6653 = vpack.c.bf16 %v6601, %v6597
        %v6654 = vpack.c.bf16 %v6602, %v6598
        %v6655 = vpack.c.bf16 %v6603, %v6599
        %v6656 = vpack.c.bf16 %v6604, %v6600
        %v6657 = vpack.c.bf16 %v6609, %v6605
        %v6658 = vpack.c.bf16 %v6610, %v6606
        %v6659 = vpack.c.bf16 %v6611, %v6607
        %v6660 = vpack.c.bf16 %v6612, %v6608
        %v6661 = vpack.c.bf16 %v6617, %v6613
        %v6662 = vpack.c.bf16 %v6618, %v6614
        %v6663 = vpack.c.bf16 %v6619, %v6615
        %v6664 = vpack.c.bf16 %v6620, %v6616
        %v6665 = vpack.c.bf16 %v6625, %v6621
        %v6666 = vpack.c.bf16 %v6626, %v6622
        %v6667 = vpack.c.bf16 %v6627, %v6623
        %v6668 = vpack.c.bf16 %v6628, %v6624
        %v6669 = vpack.c.bf16 %v6633, %v6629
        %v6670 = vpack.c.bf16 %v6634, %v6630
        %v6671 = vpack.c.bf16 %v6635, %v6631
        %v6672 = vpack.c.bf16 %v6636, %v6632
        %v6673 = vpack.c.bf16 %v6641, %v6637
        %v6674 = vpack.c.bf16 %v6642, %v6638
        %v6675 = vpack.c.bf16 %v6643, %v6639
        %v6676 = vpack.c.bf16 %v6644, %v6640
        %v6677 = vld [vmem:[%s12] sm:$0xff]
        %v6678 = vld [vmem:[%s12 + $0x8] sm:$0xff]
        %v6679 = vld [vmem:[%s12 + $0x10] sm:$0xff]
        %v6680 = vld [vmem:[%s12 + $0x18] sm:$0xf]
        %v6681 = vld [vmem:[%s12 + $0x1c] sm:$0xff]
        %v6682 = vld [vmem:[%s12 + $0x24] sm:$0xff]
        %v6683 = vld [vmem:[%s12 + $0x2c] sm:$0xff]
        %v6684 = vld [vmem:[%s12 + $0x34] sm:$0xf]
        %v6685 = vld [vmem:[%s12 + $0x38] sm:$0xff]
        %v6686 = vld [vmem:[%s12 + $0x40] sm:$0xff]
        %v6687 = vld [vmem:[%s12 + $0x48] sm:$0xff]
        %v6688 = vld [vmem:[%s12 + $0x50] sm:$0xf]
        %v6689 = vld [vmem:[%s12 + $0x54] sm:$0xff]
        %v6690 = vld [vmem:[%s12 + $0x5c] sm:$0xff]
        %v6691 = vld [vmem:[%s12 + $0x64] sm:$0xff]
        %v6692 = vld [vmem:[%s12 + $0x6c] sm:$0xf]
        %v6693 = vld [vmem:[%s12 + $0x70] sm:$0xff]
        %v6694 = vld [vmem:[%s12 + $0x78] sm:$0xff]
        %v6695 = vld [vmem:[%s12 + $0x80] sm:$0xff]
        %v6696 = vld [vmem:[%s12 + $0x88] sm:$0xf]
        %v6697 = vld [vmem:[%s12 + $0x8c] sm:$0xff]
        %v6698 = vld [vmem:[%s12 + $0x94] sm:$0xff]
        %v6699 = vld [vmem:[%s12 + $0x9c] sm:$0xff]
        %v6700 = vld [vmem:[%s12 + $0xa4] sm:$0xf]
        %v6701 = vld [vmem:[%s12 + $0xa8] sm:$0xff]
        %v6702 = vld [vmem:[%s12 + $0xb0] sm:$0xff]
        %v6703 = vld [vmem:[%s12 + $0xb8] sm:$0xff]
        %v6704 = vld [vmem:[%s12 + $0xc0] sm:$0xf]
        %v6705 = vld [vmem:[%s12 + $0xc4] sm:$0xff]
        %v6706 = vld [vmem:[%s12 + $0xcc] sm:$0xff]
        %v6707 = vld [vmem:[%s12 + $0xd4] sm:$0xff]
        %v6708 = vld [vmem:[%s12 + $0xdc] sm:$0xf]
        %v6709 = vld [vmem:[%s12 + $0xe0] sm:$0xff]
        %v6710 = vld [vmem:[%s12 + $0xe8] sm:$0xff]
        %v6711 = vld [vmem:[%s12 + $0xf0] sm:$0xff]
        %v6712 = vld [vmem:[%s12 + $0xf8] sm:$0xf]
        %v6713 = vld [vmem:[%s12 + $0xfc] sm:$0xff]
        %v6714 = vld [vmem:[%s12 + $0x104] sm:$0xff]
        %v6715 = vld [vmem:[%s12 + $0x10c] sm:$0xff]
        %v6716 = vld [vmem:[%s12 + $0x114] sm:$0xf]
        %v6717 = vld [vmem:[%s12 + $0x118] sm:$0xff]
        %v6718 = vld [vmem:[%s12 + $0x120] sm:$0xff]
        %v6719 = vld [vmem:[%s12 + $0x128] sm:$0xff]
        %v6720 = vld [vmem:[%s12 + $0x130] sm:$0xf]
        %v6721 = vld [vmem:[%s12 + $0x134] sm:$0xff]
        %v6722 = vld [vmem:[%s12 + $0x13c] sm:$0xff]
        %v6723 = vld [vmem:[%s12 + $0x144] sm:$0xff]
        %v6724 = vld [vmem:[%s12 + $0x14c] sm:$0xf]
        %v6725 = vld [vmem:[%s12 + $0x150] sm:$0xff]
        %v6726 = vld [vmem:[%s12 + $0x158] sm:$0xff]
        %v6727 = vld [vmem:[%s12 + $0x160] sm:$0xff]
        %v6728 = vld [vmem:[%s12 + $0x168] sm:$0xf]
        %v6729 = vld [vmem:[%s12 + $0x16c] sm:$0xff]
        %v6730 = vld [vmem:[%s12 + $0x174] sm:$0xff]
        %v6731 = vld [vmem:[%s12 + $0x17c] sm:$0xff]
        %v6732 = vld [vmem:[%s12 + $0x184] sm:$0xf]
        %v6733 = vld [vmem:[%s12 + $0x188] sm:$0xff]
        %v6734 = vld [vmem:[%s12 + $0x190] sm:$0xff]
        %v6735 = vld [vmem:[%s12 + $0x198] sm:$0xff]
        %v6736 = vld [vmem:[%s12 + $0x1a0] sm:$0xf]
        %v6737 = vld [vmem:[%s12 + $0x1a4] sm:$0xff]
        %v6738 = vld [vmem:[%s12 + $0x1ac] sm:$0xff]
        %v6739 = vld [vmem:[%s12 + $0x1b4] sm:$0xff]
        %v6740 = vld [vmem:[%s12 + $0x1bc] sm:$0xf]
        %v6741 = vld [vmem:[%s12 + $0x1c0] sm:$0xff]
        %v6742 = vld [vmem:[%s12 + $0x1c8] sm:$0xff]
        %v6743 = vld [vmem:[%s12 + $0x1d0] sm:$0xff]
        %v6744 = vld [vmem:[%s12 + $0x1d8] sm:$0xf]
        %v6745 = vld [vmem:[%s12 + $0x1dc] sm:$0xff]
        %v6746 = vld [vmem:[%s12 + $0x1e4] sm:$0xff]
        %v6747 = vld [vmem:[%s12 + $0x1ec] sm:$0xff]
        %v6748 = vld [vmem:[%s12 + $0x1f4] sm:$0xf]
        %v6749 = vld [vmem:[%s12 + $0x1f8] sm:$0xff]
        %v6750 = vld [vmem:[%s12 + $0x200] sm:$0xff]
        %v6751 = vld [vmem:[%s12 + $0x208] sm:$0xff]
        %v6752 = vld [vmem:[%s12 + $0x210] sm:$0xf]
        %v6753 = vld [vmem:[%s12 + $0x214] sm:$0xff]
        %v6754 = vld [vmem:[%s12 + $0x21c] sm:$0xff]
        %v6755 = vld [vmem:[%s12 + $0x224] sm:$0xff]
        %v6756 = vld [vmem:[%s12 + $0x22c] sm:$0xf]
        %v6757 = vld [vmem:[%s12 + $0x230] sm:$0xff]
        %v6758 = vld [vmem:[%s12 + $0x238] sm:$0xff]
        %v6759 = vld [vmem:[%s12 + $0x240] sm:$0xff]
        %v6760 = vld [vmem:[%s12 + $0x248] sm:$0xf]
        %v6761 = vld [vmem:[%s12 + $0x24c] sm:$0xff]
        %v6762 = vld [vmem:[%s12 + $0x254] sm:$0xff]
        %v6763 = vld [vmem:[%s12 + $0x25c] sm:$0xff]
        %v6764 = vld [vmem:[%s12 + $0x264] sm:$0xf]
        %v6765 = vld [vmem:[%s12 + $0x268] sm:$0xff]
        %v6766 = vld [vmem:[%s12 + $0x270] sm:$0xff]
        %v6767 = vld [vmem:[%s12 + $0x278] sm:$0xff]
        %v6768 = vld [vmem:[%s12 + $0x280] sm:$0xf]
        %v6769 = vld [vmem:[%s12 + $0x284] sm:$0xff]
        %v6770 = vld [vmem:[%s12 + $0x28c] sm:$0xff]
        %v6771 = vld [vmem:[%s12 + $0x294] sm:$0xff]
        %v6772 = vld [vmem:[%s12 + $0x29c] sm:$0xf]
        %v6773 = vld [vmem:[%s12 + $0x2a0] sm:$0xff]
        %v6774 = vld [vmem:[%s12 + $0x2a8] sm:$0xff]
        %v6775 = vld [vmem:[%s12 + $0x2b0] sm:$0xff]
        %v6776 = vld [vmem:[%s12 + $0x2b8] sm:$0xf]
        %v6777 = vld [vmem:[%s12 + $0x2bc] sm:$0xff]
        %v6778 = vld [vmem:[%s12 + $0x2c4] sm:$0xff]
        %v6779 = vld [vmem:[%s12 + $0x2cc] sm:$0xff]
        %v6780 = vld [vmem:[%s12 + $0x2d4] sm:$0xf]
        %v6781 = vld [vmem:[%s12 + $0x2d8] sm:$0xff]
        %v6782 = vld [vmem:[%s12 + $0x2e0] sm:$0xff]
        %v6783 = vld [vmem:[%s12 + $0x2e8] sm:$0xff]
        %v6784 = vld [vmem:[%s12 + $0x2f0] sm:$0xf]
        %v6785 = vld [vmem:[%s12 + $0x2f4] sm:$0xff]
        %v6786 = vld [vmem:[%s12 + $0x2fc] sm:$0xff]
        %v6787 = vld [vmem:[%s12 + $0x304] sm:$0xff]
        %v6788 = vld [vmem:[%s12 + $0x30c] sm:$0xf]
        %v6789 = vld [vmem:[%s12 + $0x310] sm:$0xff]
        %v6790 = vld [vmem:[%s12 + $0x318] sm:$0xff]
        %v6791 = vld [vmem:[%s12 + $0x320] sm:$0xff]
        %v6792 = vld [vmem:[%s12 + $0x328] sm:$0xf]
        %v6793 = vld [vmem:[%s12 + $0x32c] sm:$0xff]
        %v6794 = vld [vmem:[%s12 + $0x334] sm:$0xff]
        %v6795 = vld [vmem:[%s12 + $0x33c] sm:$0xff]
        %v6796 = vld [vmem:[%s12 + $0x344] sm:$0xf]
        %v6797 = vld [vmem:[%s12 + $0x348] sm:$0xff]
        %v6798 = vld [vmem:[%s12 + $0x350] sm:$0xff]
        %v6799 = vld [vmem:[%s12 + $0x358] sm:$0xff]
        %v6800 = vld [vmem:[%s12 + $0x360] sm:$0xf]
        %v6801 = vld [vmem:[%s12 + $0x364] sm:$0xff]
        %v6802 = vld [vmem:[%s12 + $0x36c] sm:$0xff]
        %v6803 = vld [vmem:[%s12 + $0x374] sm:$0xff]
        %v6804 = vld [vmem:[%s12 + $0x37c] sm:$0xf]
        %v6805 = vld [vmem:[%s12 + $0x380] sm:$0xff]
        %v6806 = vld [vmem:[%s12 + $0x388] sm:$0xff]
        %v6807 = vld [vmem:[%s12 + $0x390] sm:$0xff]
        %v6808 = vld [vmem:[%s12 + $0x398] sm:$0xf]
        %v6809 = vld [vmem:[%s12 + $0x39c] sm:$0xff]
        %v6810 = vld [vmem:[%s12 + $0x3a4] sm:$0xff]
        %v6811 = vld [vmem:[%s12 + $0x3ac] sm:$0xff]
        %v6812 = vld [vmem:[%s12 + $0x3b4] sm:$0xf]
        %v6813 = vld [vmem:[%s12 + $0x3b8] sm:$0xff]
        %v6814 = vld [vmem:[%s12 + $0x3c0] sm:$0xff]
        %v6815 = vld [vmem:[%s12 + $0x3c8] sm:$0xff]
        %v6816 = vld [vmem:[%s12 + $0x3d0] sm:$0xf]
        %v6817 = vld [vmem:[%s12 + $0x3d4] sm:$0xff]
        %v6818 = vld [vmem:[%s12 + $0x3dc] sm:$0xff]
        %v6819 = vld [vmem:[%s12 + $0x3e4] sm:$0xff]
        %v6820 = vld [vmem:[%s12 + $0x3ec] sm:$0xf]
        %v6821 = vld [vmem:[%s12 + $0x3f0] sm:$0xff]
        %v6822 = vld [vmem:[%s12 + $0x3f8] sm:$0xff]
        %v6823 = vld [vmem:[%s12 + $0x400] sm:$0xff]
        %v6824 = vld [vmem:[%s12 + $0x408] sm:$0xf]
        %v6825 = vld [vmem:[%s12 + $0x40c] sm:$0xff]
        %v6826 = vld [vmem:[%s12 + $0x414] sm:$0xff]
        %v6827 = vld [vmem:[%s12 + $0x41c] sm:$0xff]
        %v6828 = vld [vmem:[%s12 + $0x424] sm:$0xf]
        %v6829 = vld [vmem:[%s12 + $0x428] sm:$0xff]
        %v6830 = vld [vmem:[%s12 + $0x430] sm:$0xff]
        %v6831 = vld [vmem:[%s12 + $0x438] sm:$0xff]
        %v6832 = vld [vmem:[%s12 + $0x440] sm:$0xf]
        %v6833 = vld [vmem:[%s12 + $0x444] sm:$0xff]
        %v6834 = vld [vmem:[%s12 + $0x44c] sm:$0xff]
        %v6835 = vld [vmem:[%s12 + $0x454] sm:$0xff]
        %v6836 = vld [vmem:[%s12 + $0x45c] sm:$0xf]
        %v6837 = vld [vmem:[%s12 + $0x460] sm:$0xff]
        %v6838 = vld [vmem:[%s12 + $0x468] sm:$0xff]
        %v6839 = vld [vmem:[%s12 + $0x470] sm:$0xff]
        %v6840 = vld [vmem:[%s12 + $0x478] sm:$0xf]
        %v6841 = vld [vmem:[%s12 + $0x47c] sm:$0xff]
        %v6842 = vld [vmem:[%s12 + $0x484] sm:$0xff]
        %v6843 = vld [vmem:[%s12 + $0x48c] sm:$0xff]
        %v6844 = vld [vmem:[%s12 + $0x494] sm:$0xf]
        %v6845 = vld [vmem:[%s12 + $0x498] sm:$0xff]
        %v6846 = vld [vmem:[%s12 + $0x4a0] sm:$0xff]
        %v6847 = vld [vmem:[%s12 + $0x4a8] sm:$0xff]
        %v6848 = vld [vmem:[%s12 + $0x4b0] sm:$0xf]
        %v6849 = vld [vmem:[%s12 + $0x4b4] sm:$0xff]
        %v6850 = vld [vmem:[%s12 + $0x4bc] sm:$0xff]
        %v6851 = vld [vmem:[%s12 + $0x4c4] sm:$0xff]
        %v6852 = vld [vmem:[%s12 + $0x4cc] sm:$0xf]
        %v6853 = vld [vmem:[%s12 + $0x4d0] sm:$0xff]
        %v6854 = vld [vmem:[%s12 + $0x4d8] sm:$0xff]
        %v6855 = vld [vmem:[%s12 + $0x4e0] sm:$0xff]
        %v6856 = vld [vmem:[%s12 + $0x4e8] sm:$0xf]
        %v6857 = vld [vmem:[%s12 + $0x4ec] sm:$0xff]
        %v6858 = vld [vmem:[%s12 + $0x4f4] sm:$0xff]
        %v6859 = vld [vmem:[%s12 + $0x4fc] sm:$0xff]
        %v6860 = vld [vmem:[%s12 + $0x504] sm:$0xf]
        %v6861 = vld [vmem:[%s12 + $0x508] sm:$0xff]
        %v6862 = vld [vmem:[%s12 + $0x510] sm:$0xff]
        %v6863 = vld [vmem:[%s12 + $0x518] sm:$0xff]
        %v6864 = vld [vmem:[%s12 + $0x520] sm:$0xf]
        %v6865 = vld [vmem:[%s12 + $0x524] sm:$0xff]
        %v6866 = vld [vmem:[%s12 + $0x52c] sm:$0xff]
        %v6867 = vld [vmem:[%s12 + $0x534] sm:$0xff]
        %v6868 = vld [vmem:[%s12 + $0x53c] sm:$0xf]
        %v6869 = vld [vmem:[%s12 + $0x540] sm:$0xff]
        %v6870 = vld [vmem:[%s12 + $0x548] sm:$0xff]
        %v6871 = vld [vmem:[%s12 + $0x550] sm:$0xff]
        %v6872 = vld [vmem:[%s12 + $0x558] sm:$0xf]
        %v6873 = vld [vmem:[%s12 + $0x55c] sm:$0xff]
        %v6874 = vld [vmem:[%s12 + $0x564] sm:$0xff]
        %v6875 = vld [vmem:[%s12 + $0x56c] sm:$0xff]
        %v6876 = vld [vmem:[%s12 + $0x574] sm:$0xf]
        %v6877 = vld [vmem:[%s12 + $0x578] sm:$0xff]
        %v6878 = vld [vmem:[%s12 + $0x580] sm:$0xff]
        %v6879 = vld [vmem:[%s12 + $0x588] sm:$0xff]
        %v6880 = vld [vmem:[%s12 + $0x590] sm:$0xf]
        %v6881 = vld [vmem:[%s12 + $0x594] sm:$0xff]
        %v6882 = vld [vmem:[%s12 + $0x59c] sm:$0xff]
        %v6883 = vld [vmem:[%s12 + $0x5a4] sm:$0xff]
        %v6884 = vld [vmem:[%s12 + $0x5ac] sm:$0xf]
        %v6885 = vld [vmem:[%s12 + $0x5b0] sm:$0xff]
        %v6886 = vld [vmem:[%s12 + $0x5b8] sm:$0xff]
        %v6887 = vld [vmem:[%s12 + $0x5c0] sm:$0xff]
        %v6888 = vld [vmem:[%s12 + $0x5c8] sm:$0xf]
        %v6889 = vld [vmem:[%s12 + $0x5cc] sm:$0xff]
        %v6890 = vld [vmem:[%s12 + $0x5d4] sm:$0xff]
        %v6891 = vld [vmem:[%s12 + $0x5dc] sm:$0xff]
        %v6892 = vld [vmem:[%s12 + $0x5e4] sm:$0xf]
        %v6893 = vld [vmem:[%s12 + $0x5e8] sm:$0xff]
        %v6894 = vld [vmem:[%s12 + $0x5f0] sm:$0xff]
        %v6895 = vld [vmem:[%s12 + $0x5f8] sm:$0xff]
        %v6896 = vld [vmem:[%s12 + $0x600] sm:$0xf]
        %v6897 = vld [vmem:[%s12 + $0x604] sm:$0xff]
        %v6898 = vld [vmem:[%s12 + $0x60c] sm:$0xff]
        %v6899 = vld [vmem:[%s12 + $0x614] sm:$0xff]
        %v6900 = vld [vmem:[%s12 + $0x61c] sm:$0xf]
        %v6901 = vld [vmem:[%s12 + $0x620] sm:$0xff]
        %v6902 = vld [vmem:[%s12 + $0x628] sm:$0xff]
        %v6903 = vld [vmem:[%s12 + $0x630] sm:$0xff]
        %v6904 = vld [vmem:[%s12 + $0x638] sm:$0xf]
        %v6905 = vld [vmem:[%s12 + $0x63c] sm:$0xff]
        %v6906 = vld [vmem:[%s12 + $0x644] sm:$0xff]
        %v6907 = vld [vmem:[%s12 + $0x64c] sm:$0xff]
        %v6908 = vld [vmem:[%s12 + $0x654] sm:$0xf]
        %v6909 = vld [vmem:[%s12 + $0x658] sm:$0xff]
        %v6910 = vld [vmem:[%s12 + $0x660] sm:$0xff]
        %v6911 = vld [vmem:[%s12 + $0x668] sm:$0xff]
        %v6912 = vld [vmem:[%s12 + $0x670] sm:$0xf]
        %v6913 = vld [vmem:[%s12 + $0x674] sm:$0xff]
        %v6914 = vld [vmem:[%s12 + $0x67c] sm:$0xff]
        %v6915 = vld [vmem:[%s12 + $0x684] sm:$0xff]
        %v6916 = vld [vmem:[%s12 + $0x68c] sm:$0xf]
        %v6917 = vld [vmem:[%s12 + $0x690] sm:$0xff]
        %v6918 = vld [vmem:[%s12 + $0x698] sm:$0xff]
        %v6919 = vld [vmem:[%s12 + $0x6a0] sm:$0xff]
        %v6920 = vld [vmem:[%s12 + $0x6a8] sm:$0xf]
        %v6921 = vld [vmem:[%s12 + $0x6ac] sm:$0xff]
        %v6922 = vld [vmem:[%s12 + $0x6b4] sm:$0xff]
        %v6923 = vld [vmem:[%s12 + $0x6bc] sm:$0xff]
        %v6924 = vld [vmem:[%s12 + $0x6c4] sm:$0xf]
        %v6925 = vld [vmem:[%s12 + $0x6c8] sm:$0xff]
        %v6926 = vld [vmem:[%s12 + $0x6d0] sm:$0xff]
        %v6927 = vld [vmem:[%s12 + $0x6d8] sm:$0xff]
        %v6928 = vld [vmem:[%s12 + $0x6e0] sm:$0xf]
        %v6929 = vld [vmem:[%s12 + $0x6e4] sm:$0xff]
        %v6930 = vld [vmem:[%s12 + $0x6ec] sm:$0xff]
        %v6931 = vld [vmem:[%s12 + $0x6f4] sm:$0xff]
        %v6932 = vld [vmem:[%s12 + $0x6fc] sm:$0xf]
        %v6933 = vld [vmem:[%s13] sm:$0xff]
        %v6935 = vlaneseq
        %v6936 = vshrl.u32 %v6935, 7
        %v6937 = vsub.s32 0, %v6936
        %v6938 = vrot.slane %v6933, %v6937
        %v6939 = vlaneseq
        %v6940 = vshrl.u32 %v6939, 7
        %v6941 = vsub.s32 1, %v6940
        %v6942 = vrot.slane %v6933, %v6941
        %v6943 = vlaneseq
        %v6944 = vshrl.u32 %v6943, 7
        %v6945 = vsub.s32 2, %v6944
        %v6946 = vrot.slane %v6933, %v6945
        %v6947 = vlaneseq
        %v6948 = vshrl.u32 %v6947, 7
        %v6949 = vsub.s32 3, %v6948
        %v6950 = vrot.slane %v6933, %v6949
        %v6951 = vlaneseq
        %v6952 = vshrl.u32 %v6951, 7
        %v6953 = vsub.s32 4, %v6952
        %v6954 = vrot.slane %v6933, %v6953
        %v6955 = vlaneseq
        %v6956 = vshrl.u32 %v6955, 7
        %v6957 = vsub.s32 5, %v6956
        %v6958 = vrot.slane %v6933, %v6957
        %v6959 = vlaneseq
        %v6960 = vshrl.u32 %v6959, 7
        %v6961 = vsub.s32 6, %v6960
        %v6962 = vrot.slane %v6933, %v6961
        %v7226 = vunpack.c.l.b16 %v6677
        %v7227 = vunpack.c.h.b16 %v6677
        %v7228 = vunpack.c.l.b16 %v6678
        %v7229 = vunpack.c.h.b16 %v6678
        %v7230 = vunpack.c.l.b16 %v6679
        %v7231 = vunpack.c.h.b16 %v6679
        %v7232 = vunpack.c.l.b16 %v6680
        %v7233 = vunpack.c.l.b16 %v6681
        %v7234 = vunpack.c.h.b16 %v6681
        %v7235 = vunpack.c.l.b16 %v6682
        %v7236 = vunpack.c.h.b16 %v6682
        %v7237 = vunpack.c.l.b16 %v6683
        %v7238 = vunpack.c.h.b16 %v6683
        %v7239 = vunpack.c.l.b16 %v6684
        %v7240 = vunpack.c.l.b16 %v6685
        %v7241 = vunpack.c.h.b16 %v6685
        %v7242 = vunpack.c.l.b16 %v6686
        %v7243 = vunpack.c.h.b16 %v6686
        %v7244 = vunpack.c.l.b16 %v6687
        %v7245 = vunpack.c.h.b16 %v6687
        %v7246 = vunpack.c.l.b16 %v6688
        %v7247 = vunpack.c.l.b16 %v6689
        %v7248 = vunpack.c.h.b16 %v6689
        %v7249 = vunpack.c.l.b16 %v6690
        %v7250 = vunpack.c.h.b16 %v6690
        %v7251 = vunpack.c.l.b16 %v6691
        %v7252 = vunpack.c.h.b16 %v6691
        %v7253 = vunpack.c.l.b16 %v6692
        %v7254 = vunpack.c.l.b16 %v6693
        %v7255 = vunpack.c.h.b16 %v6693
        %v7256 = vunpack.c.l.b16 %v6694
        %v7257 = vunpack.c.h.b16 %v6694
        %v7258 = vunpack.c.l.b16 %v6695
        %v7259 = vunpack.c.h.b16 %v6695
        %v7260 = vunpack.c.l.b16 %v6696
        %v7261 = vunpack.c.l.b16 %v6697
        %v7262 = vunpack.c.h.b16 %v6697
        %v7263 = vunpack.c.l.b16 %v6698
        %v7264 = vunpack.c.h.b16 %v6698
        %v7265 = vunpack.c.l.b16 %v6699
        %v7266 = vunpack.c.h.b16 %v6699
        %v7267 = vunpack.c.l.b16 %v6700
        %v7268 = vunpack.c.l.b16 %v6701
        %v7269 = vunpack.c.h.b16 %v6701
        %v7270 = vunpack.c.l.b16 %v6702
        %v7271 = vunpack.c.h.b16 %v6702
        %v7272 = vunpack.c.l.b16 %v6703
        %v7273 = vunpack.c.h.b16 %v6703
        %v7274 = vunpack.c.l.b16 %v6704
        %v7275 = vunpack.c.l.b16 %v6705
        %v7276 = vunpack.c.h.b16 %v6705
        %v7277 = vunpack.c.l.b16 %v6706
        %v7278 = vunpack.c.h.b16 %v6706
        %v7279 = vunpack.c.l.b16 %v6707
        %v7280 = vunpack.c.h.b16 %v6707
        %v7281 = vunpack.c.l.b16 %v6708
        %v7282 = vunpack.c.l.b16 %v6709
        %v7283 = vunpack.c.h.b16 %v6709
        %v7284 = vunpack.c.l.b16 %v6710
        %v7285 = vunpack.c.h.b16 %v6710
        %v7286 = vunpack.c.l.b16 %v6711
        %v7287 = vunpack.c.h.b16 %v6711
        %v7288 = vunpack.c.l.b16 %v6712
        %v7289 = vunpack.c.l.b16 %v6713
        %v7290 = vunpack.c.h.b16 %v6713
        %v7291 = vunpack.c.l.b16 %v6714
        %v7292 = vunpack.c.h.b16 %v6714
        %v7293 = vunpack.c.l.b16 %v6715
        %v7294 = vunpack.c.h.b16 %v6715
        %v7295 = vunpack.c.l.b16 %v6716
        %v7296 = vunpack.c.l.b16 %v6717
        %v7297 = vunpack.c.h.b16 %v6717
        %v7298 = vunpack.c.l.b16 %v6718
        %v7299 = vunpack.c.h.b16 %v6718
        %v7300 = vunpack.c.l.b16 %v6719
        %v7301 = vunpack.c.h.b16 %v6719
        %v7302 = vunpack.c.l.b16 %v6720
        %v7303 = vunpack.c.l.b16 %v6721
        %v7304 = vunpack.c.h.b16 %v6721
        %v7305 = vunpack.c.l.b16 %v6722
        %v7306 = vunpack.c.h.b16 %v6722
        %v7307 = vunpack.c.l.b16 %v6723
        %v7308 = vunpack.c.h.b16 %v6723
        %v7309 = vunpack.c.l.b16 %v6724
        %v7310 = vunpack.c.l.b16 %v6725
        %v7311 = vunpack.c.h.b16 %v6725
        %v7312 = vunpack.c.l.b16 %v6726
        %v7313 = vunpack.c.h.b16 %v6726
        %v7314 = vunpack.c.l.b16 %v6727
        %v7315 = vunpack.c.h.b16 %v6727
        %v7316 = vunpack.c.l.b16 %v6728
        %v7317 = vunpack.c.l.b16 %v6729
        %v7318 = vunpack.c.h.b16 %v6729
        %v7319 = vunpack.c.l.b16 %v6730
        %v7320 = vunpack.c.h.b16 %v6730
        %v7321 = vunpack.c.l.b16 %v6731
        %v7322 = vunpack.c.h.b16 %v6731
        %v7323 = vunpack.c.l.b16 %v6732
        %v7324 = vunpack.c.l.b16 %v6733
        %v7325 = vunpack.c.h.b16 %v6733
        %v7326 = vunpack.c.l.b16 %v6734
        %v7327 = vunpack.c.h.b16 %v6734
        %v7328 = vunpack.c.l.b16 %v6735
        %v7329 = vunpack.c.h.b16 %v6735
        %v7330 = vunpack.c.l.b16 %v6736
        %v7331 = vunpack.c.l.b16 %v6737
        %v7332 = vunpack.c.h.b16 %v6737
        %v7333 = vunpack.c.l.b16 %v6738
        %v7334 = vunpack.c.h.b16 %v6738
        %v7335 = vunpack.c.l.b16 %v6739
        %v7336 = vunpack.c.h.b16 %v6739
        %v7337 = vunpack.c.l.b16 %v6740
        %v7338 = vunpack.c.l.b16 %v6741
        %v7339 = vunpack.c.h.b16 %v6741
        %v7340 = vunpack.c.l.b16 %v6742
        %v7341 = vunpack.c.h.b16 %v6742
        %v7342 = vunpack.c.l.b16 %v6743
        %v7343 = vunpack.c.h.b16 %v6743
        %v7344 = vunpack.c.l.b16 %v6744
        %v7345 = vunpack.c.l.b16 %v6745
        %v7346 = vunpack.c.h.b16 %v6745
        %v7347 = vunpack.c.l.b16 %v6746
        %v7348 = vunpack.c.h.b16 %v6746
        %v7349 = vunpack.c.l.b16 %v6747
        %v7350 = vunpack.c.h.b16 %v6747
        %v7351 = vunpack.c.l.b16 %v6748
        %v7352 = vunpack.c.l.b16 %v6749
        %v7353 = vunpack.c.h.b16 %v6749
        %v7354 = vunpack.c.l.b16 %v6750
        %v7355 = vunpack.c.h.b16 %v6750
        %v7356 = vunpack.c.l.b16 %v6751
        %v7357 = vunpack.c.h.b16 %v6751
        %v7358 = vunpack.c.l.b16 %v6752
        %v7359 = vunpack.c.l.b16 %v6753
        %v7360 = vunpack.c.h.b16 %v6753
        %v7361 = vunpack.c.l.b16 %v6754
        %v7362 = vunpack.c.h.b16 %v6754
        %v7363 = vunpack.c.l.b16 %v6755
        %v7364 = vunpack.c.h.b16 %v6755
        %v7365 = vunpack.c.l.b16 %v6756
        %v7366 = vunpack.c.l.b16 %v6757
        %v7367 = vunpack.c.h.b16 %v6757
        %v7368 = vunpack.c.l.b16 %v6758
        %v7369 = vunpack.c.h.b16 %v6758
        %v7370 = vunpack.c.l.b16 %v6759
        %v7371 = vunpack.c.h.b16 %v6759
        %v7372 = vunpack.c.l.b16 %v6760
        %v7373 = vunpack.c.l.b16 %v6761
        %v7374 = vunpack.c.h.b16 %v6761
        %v7375 = vunpack.c.l.b16 %v6762
        %v7376 = vunpack.c.h.b16 %v6762
        %v7377 = vunpack.c.l.b16 %v6763
        %v7378 = vunpack.c.h.b16 %v6763
        %v7379 = vunpack.c.l.b16 %v6764
        %v7380 = vunpack.c.l.b16 %v6765
        %v7381 = vunpack.c.h.b16 %v6765
        %v7382 = vunpack.c.l.b16 %v6766
        %v7383 = vunpack.c.h.b16 %v6766
        %v7384 = vunpack.c.l.b16 %v6767
        %v7385 = vunpack.c.h.b16 %v6767
        %v7386 = vunpack.c.l.b16 %v6768
        %v7387 = vunpack.c.l.b16 %v6769
        %v7388 = vunpack.c.h.b16 %v6769
        %v7389 = vunpack.c.l.b16 %v6770
        %v7390 = vunpack.c.h.b16 %v6770
        %v7391 = vunpack.c.l.b16 %v6771
        %v7392 = vunpack.c.h.b16 %v6771
        %v7393 = vunpack.c.l.b16 %v6772
        %v7394 = vunpack.c.l.b16 %v6773
        %v7395 = vunpack.c.h.b16 %v6773
        %v7396 = vunpack.c.l.b16 %v6774
        %v7397 = vunpack.c.h.b16 %v6774
        %v7398 = vunpack.c.l.b16 %v6775
        %v7399 = vunpack.c.h.b16 %v6775
        %v7400 = vunpack.c.l.b16 %v6776
        %v7401 = vunpack.c.l.b16 %v6777
        %v7402 = vunpack.c.h.b16 %v6777
        %v7403 = vunpack.c.l.b16 %v6778
        %v7404 = vunpack.c.h.b16 %v6778
        %v7405 = vunpack.c.l.b16 %v6779
        %v7406 = vunpack.c.h.b16 %v6779
        %v7407 = vunpack.c.l.b16 %v6780
        %v7408 = vunpack.c.l.b16 %v6781
        %v7409 = vunpack.c.h.b16 %v6781
        %v7410 = vunpack.c.l.b16 %v6782
        %v7411 = vunpack.c.h.b16 %v6782
        %v7412 = vunpack.c.l.b16 %v6783
        %v7413 = vunpack.c.h.b16 %v6783
        %v7414 = vunpack.c.l.b16 %v6784
        %v7415 = vunpack.c.l.b16 %v6785
        %v7416 = vunpack.c.h.b16 %v6785
        %v7417 = vunpack.c.l.b16 %v6786
        %v7418 = vunpack.c.h.b16 %v6786
        %v7419 = vunpack.c.l.b16 %v6787
        %v7420 = vunpack.c.h.b16 %v6787
        %v7421 = vunpack.c.l.b16 %v6788
        %v7422 = vunpack.c.l.b16 %v6789
        %v7423 = vunpack.c.h.b16 %v6789
        %v7424 = vunpack.c.l.b16 %v6790
        %v7425 = vunpack.c.h.b16 %v6790
        %v7426 = vunpack.c.l.b16 %v6791
        %v7427 = vunpack.c.h.b16 %v6791
        %v7428 = vunpack.c.l.b16 %v6792
        %v7429 = vunpack.c.l.b16 %v6793
        %v7430 = vunpack.c.h.b16 %v6793
        %v7431 = vunpack.c.l.b16 %v6794
        %v7432 = vunpack.c.h.b16 %v6794
        %v7433 = vunpack.c.l.b16 %v6795
        %v7434 = vunpack.c.h.b16 %v6795
        %v7435 = vunpack.c.l.b16 %v6796
        %v7436 = vunpack.c.l.b16 %v6797
        %v7437 = vunpack.c.h.b16 %v6797
        %v7438 = vunpack.c.l.b16 %v6798
        %v7439 = vunpack.c.h.b16 %v6798
        %v7440 = vunpack.c.l.b16 %v6799
        %v7441 = vunpack.c.h.b16 %v6799
        %v7442 = vunpack.c.l.b16 %v6800
        %v7443 = vunpack.c.l.b16 %v6801
        %v7444 = vunpack.c.h.b16 %v6801
        %v7445 = vunpack.c.l.b16 %v6802
        %v7446 = vunpack.c.h.b16 %v6802
        %v7447 = vunpack.c.l.b16 %v6803
        %v7448 = vunpack.c.h.b16 %v6803
        %v7449 = vunpack.c.l.b16 %v6804
        %v7450 = vunpack.c.l.b16 %v6805
        %v7451 = vunpack.c.h.b16 %v6805
        %v7452 = vunpack.c.l.b16 %v6806
        %v7453 = vunpack.c.h.b16 %v6806
        %v7454 = vunpack.c.l.b16 %v6807
        %v7455 = vunpack.c.h.b16 %v6807
        %v7456 = vunpack.c.l.b16 %v6808
        %v7457 = vunpack.c.l.b16 %v6809
        %v7458 = vunpack.c.h.b16 %v6809
        %v7459 = vunpack.c.l.b16 %v6810
        %v7460 = vunpack.c.h.b16 %v6810
        %v7461 = vunpack.c.l.b16 %v6811
        %v7462 = vunpack.c.h.b16 %v6811
        %v7463 = vunpack.c.l.b16 %v6812
        %v7464 = vunpack.c.l.b16 %v6813
        %v7465 = vunpack.c.h.b16 %v6813
        %v7466 = vunpack.c.l.b16 %v6814
        %v7467 = vunpack.c.h.b16 %v6814
        %v7468 = vunpack.c.l.b16 %v6815
        %v7469 = vunpack.c.h.b16 %v6815
        %v7470 = vunpack.c.l.b16 %v6816
        %v7471 = vunpack.c.l.b16 %v6817
        %v7472 = vunpack.c.h.b16 %v6817
        %v7473 = vunpack.c.l.b16 %v6818
        %v7474 = vunpack.c.h.b16 %v6818
        %v7475 = vunpack.c.l.b16 %v6819
        %v7476 = vunpack.c.h.b16 %v6819
        %v7477 = vunpack.c.l.b16 %v6820
        %v7478 = vunpack.c.l.b16 %v6821
        %v7479 = vunpack.c.h.b16 %v6821
        %v7480 = vunpack.c.l.b16 %v6822
        %v7481 = vunpack.c.h.b16 %v6822
        %v7482 = vunpack.c.l.b16 %v6823
        %v7483 = vunpack.c.h.b16 %v6823
        %v7484 = vunpack.c.l.b16 %v6824
        %v7485 = vunpack.c.l.b16 %v6825
        %v7486 = vunpack.c.h.b16 %v6825
        %v7487 = vunpack.c.l.b16 %v6826
        %v7488 = vunpack.c.h.b16 %v6826
        %v7489 = vunpack.c.l.b16 %v6827
        %v7490 = vunpack.c.h.b16 %v6827
        %v7491 = vunpack.c.l.b16 %v6828
        %v7492 = vunpack.c.l.b16 %v6829
        %v7493 = vunpack.c.h.b16 %v6829
        %v7494 = vunpack.c.l.b16 %v6830
        %v7495 = vunpack.c.h.b16 %v6830
        %v7496 = vunpack.c.l.b16 %v6831
        %v7497 = vunpack.c.h.b16 %v6831
        %v7498 = vunpack.c.l.b16 %v6832
        %v7499 = vunpack.c.l.b16 %v6833
        %v7500 = vunpack.c.h.b16 %v6833
        %v7501 = vunpack.c.l.b16 %v6834
        %v7502 = vunpack.c.h.b16 %v6834
        %v7503 = vunpack.c.l.b16 %v6835
        %v7504 = vunpack.c.h.b16 %v6835
        %v7505 = vunpack.c.l.b16 %v6836
        %v7506 = vunpack.c.l.b16 %v6837
        %v7507 = vunpack.c.h.b16 %v6837
        %v7508 = vunpack.c.l.b16 %v6838
        %v7509 = vunpack.c.h.b16 %v6838
        %v7510 = vunpack.c.l.b16 %v6839
        %v7511 = vunpack.c.h.b16 %v6839
        %v7512 = vunpack.c.l.b16 %v6840
        %v7513 = vunpack.c.l.b16 %v6841
        %v7514 = vunpack.c.h.b16 %v6841
        %v7515 = vunpack.c.l.b16 %v6842
        %v7516 = vunpack.c.h.b16 %v6842
        %v7517 = vunpack.c.l.b16 %v6843
        %v7518 = vunpack.c.h.b16 %v6843
        %v7519 = vunpack.c.l.b16 %v6844
        %v7520 = vunpack.c.l.b16 %v6845
        %v7521 = vunpack.c.h.b16 %v6845
        %v7522 = vunpack.c.l.b16 %v6846
        %v7523 = vunpack.c.h.b16 %v6846
        %v7524 = vunpack.c.l.b16 %v6847
        %v7525 = vunpack.c.h.b16 %v6847
        %v7526 = vunpack.c.l.b16 %v6848
        %v7527 = vunpack.c.l.b16 %v6849
        %v7528 = vunpack.c.h.b16 %v6849
        %v7529 = vunpack.c.l.b16 %v6850
        %v7530 = vunpack.c.h.b16 %v6850
        %v7531 = vunpack.c.l.b16 %v6851
        %v7532 = vunpack.c.h.b16 %v6851
        %v7533 = vunpack.c.l.b16 %v6852
        %v7534 = vunpack.c.l.b16 %v6853
        %v7535 = vunpack.c.h.b16 %v6853
        %v7536 = vunpack.c.l.b16 %v6854
        %v7537 = vunpack.c.h.b16 %v6854
        %v7538 = vunpack.c.l.b16 %v6855
        %v7539 = vunpack.c.h.b16 %v6855
        %v7540 = vunpack.c.l.b16 %v6856
        %v7541 = vunpack.c.l.b16 %v6857
        %v7542 = vunpack.c.h.b16 %v6857
        %v7543 = vunpack.c.l.b16 %v6858
        %v7544 = vunpack.c.h.b16 %v6858
        %v7545 = vunpack.c.l.b16 %v6859
        %v7546 = vunpack.c.h.b16 %v6859
        %v7547 = vunpack.c.l.b16 %v6860
        %v7548 = vunpack.c.l.b16 %v6861
        %v7549 = vunpack.c.h.b16 %v6861
        %v7550 = vunpack.c.l.b16 %v6862
        %v7551 = vunpack.c.h.b16 %v6862
        %v7552 = vunpack.c.l.b16 %v6863
        %v7553 = vunpack.c.h.b16 %v6863
        %v7554 = vunpack.c.l.b16 %v6864
        %v7555 = vunpack.c.l.b16 %v6865
        %v7556 = vunpack.c.h.b16 %v6865
        %v7557 = vunpack.c.l.b16 %v6866
        %v7558 = vunpack.c.h.b16 %v6866
        %v7559 = vunpack.c.l.b16 %v6867
        %v7560 = vunpack.c.h.b16 %v6867
        %v7561 = vunpack.c.l.b16 %v6868
        %v7562 = vunpack.c.l.b16 %v6869
        %v7563 = vunpack.c.h.b16 %v6869
        %v7564 = vunpack.c.l.b16 %v6870
        %v7565 = vunpack.c.h.b16 %v6870
        %v7566 = vunpack.c.l.b16 %v6871
        %v7567 = vunpack.c.h.b16 %v6871
        %v7568 = vunpack.c.l.b16 %v6872
        %v7569 = vunpack.c.l.b16 %v6873
        %v7570 = vunpack.c.h.b16 %v6873
        %v7571 = vunpack.c.l.b16 %v6874
        %v7572 = vunpack.c.h.b16 %v6874
        %v7573 = vunpack.c.l.b16 %v6875
        %v7574 = vunpack.c.h.b16 %v6875
        %v7575 = vunpack.c.l.b16 %v6876
        %v7576 = vunpack.c.l.b16 %v6877
        %v7577 = vunpack.c.h.b16 %v6877
        %v7578 = vunpack.c.l.b16 %v6878
        %v7579 = vunpack.c.h.b16 %v6878
        %v7580 = vunpack.c.l.b16 %v6879
        %v7581 = vunpack.c.h.b16 %v6879
        %v7582 = vunpack.c.l.b16 %v6880
        %v7583 = vunpack.c.l.b16 %v6881
        %v7584 = vunpack.c.h.b16 %v6881
        %v7585 = vunpack.c.l.b16 %v6882
        %v7586 = vunpack.c.h.b16 %v6882
        %v7587 = vunpack.c.l.b16 %v6883
        %v7588 = vunpack.c.h.b16 %v6883
        %v7589 = vunpack.c.l.b16 %v6884
        %v7590 = vunpack.c.l.b16 %v6885
        %v7591 = vunpack.c.h.b16 %v6885
        %v7592 = vunpack.c.l.b16 %v6886
        %v7593 = vunpack.c.h.b16 %v6886
        %v7594 = vunpack.c.l.b16 %v6887
        %v7595 = vunpack.c.h.b16 %v6887
        %v7596 = vunpack.c.l.b16 %v6888
        %v7597 = vunpack.c.l.b16 %v6889
        %v7598 = vunpack.c.h.b16 %v6889
        %v7599 = vunpack.c.l.b16 %v6890
        %v7600 = vunpack.c.h.b16 %v6890
        %v7601 = vunpack.c.l.b16 %v6891
        %v7602 = vunpack.c.h.b16 %v6891
        %v7603 = vunpack.c.l.b16 %v6892
        %v7604 = vunpack.c.l.b16 %v6893
        %v7605 = vunpack.c.h.b16 %v6893
        %v7606 = vunpack.c.l.b16 %v6894
        %v7607 = vunpack.c.h.b16 %v6894
        %v7608 = vunpack.c.l.b16 %v6895
        %v7609 = vunpack.c.h.b16 %v6895
        %v7610 = vunpack.c.l.b16 %v6896
        %v7611 = vunpack.c.l.b16 %v6897
        %v7612 = vunpack.c.h.b16 %v6897
        %v7613 = vunpack.c.l.b16 %v6898
        %v7614 = vunpack.c.h.b16 %v6898
        %v7615 = vunpack.c.l.b16 %v6899
        %v7616 = vunpack.c.h.b16 %v6899
        %v7617 = vunpack.c.l.b16 %v6900
        %v7618 = vunpack.c.l.b16 %v6901
        %v7619 = vunpack.c.h.b16 %v6901
        %v7620 = vunpack.c.l.b16 %v6902
        %v7621 = vunpack.c.h.b16 %v6902
        %v7622 = vunpack.c.l.b16 %v6903
        %v7623 = vunpack.c.h.b16 %v6903
        %v7624 = vunpack.c.l.b16 %v6904
        %v7625 = vunpack.c.l.b16 %v6905
        %v7626 = vunpack.c.h.b16 %v6905
        %v7627 = vunpack.c.l.b16 %v6906
        %v7628 = vunpack.c.h.b16 %v6906
        %v7629 = vunpack.c.l.b16 %v6907
        %v7630 = vunpack.c.h.b16 %v6907
        %v7631 = vunpack.c.l.b16 %v6908
        %v7632 = vunpack.c.l.b16 %v6909
        %v7633 = vunpack.c.h.b16 %v6909
        %v7634 = vunpack.c.l.b16 %v6910
        %v7635 = vunpack.c.h.b16 %v6910
        %v7636 = vunpack.c.l.b16 %v6911
        %v7637 = vunpack.c.h.b16 %v6911
        %v7638 = vunpack.c.l.b16 %v6912
        %v7639 = vunpack.c.l.b16 %v6913
        %v7640 = vunpack.c.h.b16 %v6913
        %v7641 = vunpack.c.l.b16 %v6914
        %v7642 = vunpack.c.h.b16 %v6914
        %v7643 = vunpack.c.l.b16 %v6915
        %v7644 = vunpack.c.h.b16 %v6915
        %v7645 = vunpack.c.l.b16 %v6916
        %v7646 = vunpack.c.l.b16 %v6917
        %v7647 = vunpack.c.h.b16 %v6917
        %v7648 = vunpack.c.l.b16 %v6918
        %v7649 = vunpack.c.h.b16 %v6918
        %v7650 = vunpack.c.l.b16 %v6919
        %v7651 = vunpack.c.h.b16 %v6919
        %v7652 = vunpack.c.l.b16 %v6920
        %v7653 = vunpack.c.l.b16 %v6921
        %v7654 = vunpack.c.h.b16 %v6921
        %v7655 = vunpack.c.l.b16 %v6922
        %v7656 = vunpack.c.h.b16 %v6922
        %v7657 = vunpack.c.l.b16 %v6923
        %v7658 = vunpack.c.h.b16 %v6923
        %v7659 = vunpack.c.l.b16 %v6924
        %v7660 = vunpack.c.l.b16 %v6925
        %v7661 = vunpack.c.h.b16 %v6925
        %v7662 = vunpack.c.l.b16 %v6926
        %v7663 = vunpack.c.h.b16 %v6926
        %v7664 = vunpack.c.l.b16 %v6927
        %v7665 = vunpack.c.h.b16 %v6927
        %v7666 = vunpack.c.l.b16 %v6928
        %v7667 = vunpack.c.l.b16 %v6929
        %v7668 = vunpack.c.h.b16 %v6929
        %v7669 = vunpack.c.l.b16 %v6930
        %v7670 = vunpack.c.h.b16 %v6930
        %v7671 = vunpack.c.l.b16 %v6931
        %v7672 = vunpack.c.h.b16 %v6931
        %v7673 = vunpack.c.l.b16 %v6932
        %v7674 = vpack.c.b16 %v7233, %v7226
        %v7675 = vpack.c.b16 %v7234, %v7227
        %v7676 = vpack.c.b16 %v7235, %v7228
        %v7677 = vpack.c.b16 %v7236, %v7229
        %v7678 = vpack.c.b16 %v7237, %v7230
        %v7679 = vpack.c.b16 %v7238, %v7231
        %v7680 = vpack.c.b16 %v7239, %v7232
        %v7681 = vpack.c.b16 %v7247, %v7240
        %v7682 = vpack.c.b16 %v7248, %v7241
        %v7683 = vpack.c.b16 %v7249, %v7242
        %v7684 = vpack.c.b16 %v7250, %v7243
        %v7685 = vpack.c.b16 %v7251, %v7244
        %v7686 = vpack.c.b16 %v7252, %v7245
        %v7687 = vpack.c.b16 %v7253, %v7246
        %v7688 = vpack.c.b16 %v7261, %v7254
        %v7689 = vpack.c.b16 %v7262, %v7255
        %v7690 = vpack.c.b16 %v7263, %v7256
        %v7691 = vpack.c.b16 %v7264, %v7257
        %v7692 = vpack.c.b16 %v7265, %v7258
        %v7693 = vpack.c.b16 %v7266, %v7259
        %v7694 = vpack.c.b16 %v7267, %v7260
        %v7695 = vpack.c.b16 %v7275, %v7268
        %v7696 = vpack.c.b16 %v7276, %v7269
        %v7697 = vpack.c.b16 %v7277, %v7270
        %v7698 = vpack.c.b16 %v7278, %v7271
        %v7699 = vpack.c.b16 %v7279, %v7272
        %v7700 = vpack.c.b16 %v7280, %v7273
        %v7701 = vpack.c.b16 %v7281, %v7274
        %v7702 = vpack.c.b16 %v7289, %v7282
        %v7703 = vpack.c.b16 %v7290, %v7283
        %v7704 = vpack.c.b16 %v7291, %v7284
        %v7705 = vpack.c.b16 %v7292, %v7285
        %v7706 = vpack.c.b16 %v7293, %v7286
        %v7707 = vpack.c.b16 %v7294, %v7287
        %v7708 = vpack.c.b16 %v7295, %v7288
        %v7709 = vpack.c.b16 %v7303, %v7296
        %v7710 = vpack.c.b16 %v7304, %v7297
        %v7711 = vpack.c.b16 %v7305, %v7298
        %v7712 = vpack.c.b16 %v7306, %v7299
        %v7713 = vpack.c.b16 %v7307, %v7300
        %v7714 = vpack.c.b16 %v7308, %v7301
        %v7715 = vpack.c.b16 %v7309, %v7302
        %v7716 = vpack.c.b16 %v7317, %v7310
        %v7717 = vpack.c.b16 %v7318, %v7311
        %v7718 = vpack.c.b16 %v7319, %v7312
        %v7719 = vpack.c.b16 %v7320, %v7313
        %v7720 = vpack.c.b16 %v7321, %v7314
        %v7721 = vpack.c.b16 %v7322, %v7315
        %v7722 = vpack.c.b16 %v7323, %v7316
        %v7723 = vpack.c.b16 %v7331, %v7324
        %v7724 = vpack.c.b16 %v7332, %v7325
        %v7725 = vpack.c.b16 %v7333, %v7326
        %v7726 = vpack.c.b16 %v7334, %v7327
        %v7727 = vpack.c.b16 %v7335, %v7328
        %v7728 = vpack.c.b16 %v7336, %v7329
        %v7729 = vpack.c.b16 %v7337, %v7330
        %v7730 = vpack.c.b16 %v7345, %v7338
        %v7731 = vpack.c.b16 %v7346, %v7339
        %v7732 = vpack.c.b16 %v7347, %v7340
        %v7733 = vpack.c.b16 %v7348, %v7341
        %v7734 = vpack.c.b16 %v7349, %v7342
        %v7735 = vpack.c.b16 %v7350, %v7343
        %v7736 = vpack.c.b16 %v7351, %v7344
        %v7737 = vpack.c.b16 %v7359, %v7352
        %v7738 = vpack.c.b16 %v7360, %v7353
        %v7739 = vpack.c.b16 %v7361, %v7354
        %v7740 = vpack.c.b16 %v7362, %v7355
        %v7741 = vpack.c.b16 %v7363, %v7356
        %v7742 = vpack.c.b16 %v7364, %v7357
        %v7743 = vpack.c.b16 %v7365, %v7358
        %v7744 = vpack.c.b16 %v7373, %v7366
        %v7745 = vpack.c.b16 %v7374, %v7367
        %v7746 = vpack.c.b16 %v7375, %v7368
        %v7747 = vpack.c.b16 %v7376, %v7369
        %v7748 = vpack.c.b16 %v7377, %v7370
        %v7749 = vpack.c.b16 %v7378, %v7371
        %v7750 = vpack.c.b16 %v7379, %v7372
        %v7751 = vpack.c.b16 %v7387, %v7380
        %v7752 = vpack.c.b16 %v7388, %v7381
        %v7753 = vpack.c.b16 %v7389, %v7382
        %v7754 = vpack.c.b16 %v7390, %v7383
        %v7755 = vpack.c.b16 %v7391, %v7384
        %v7756 = vpack.c.b16 %v7392, %v7385
        %v7757 = vpack.c.b16 %v7393, %v7386
        %v7758 = vpack.c.b16 %v7401, %v7394
        %v7759 = vpack.c.b16 %v7402, %v7395
        %v7760 = vpack.c.b16 %v7403, %v7396
        %v7761 = vpack.c.b16 %v7404, %v7397
        %v7762 = vpack.c.b16 %v7405, %v7398
        %v7763 = vpack.c.b16 %v7406, %v7399
        %v7764 = vpack.c.b16 %v7407, %v7400
        %v7765 = vpack.c.b16 %v7415, %v7408
        %v7766 = vpack.c.b16 %v7416, %v7409
        %v7767 = vpack.c.b16 %v7417, %v7410
        %v7768 = vpack.c.b16 %v7418, %v7411
        %v7769 = vpack.c.b16 %v7419, %v7412
        %v7770 = vpack.c.b16 %v7420, %v7413
        %v7771 = vpack.c.b16 %v7421, %v7414
        %v7772 = vpack.c.b16 %v7429, %v7422
        %v7773 = vpack.c.b16 %v7430, %v7423
        %v7774 = vpack.c.b16 %v7431, %v7424
        %v7775 = vpack.c.b16 %v7432, %v7425
        %v7776 = vpack.c.b16 %v7433, %v7426
        %v7777 = vpack.c.b16 %v7434, %v7427
        %v7778 = vpack.c.b16 %v7435, %v7428
        %v7779 = vpack.c.b16 %v7443, %v7436
        %v7780 = vpack.c.b16 %v7444, %v7437
        %v7781 = vpack.c.b16 %v7445, %v7438
        %v7782 = vpack.c.b16 %v7446, %v7439
        %v7783 = vpack.c.b16 %v7447, %v7440
        %v7784 = vpack.c.b16 %v7448, %v7441
        %v7785 = vpack.c.b16 %v7449, %v7442
        %v7786 = vpack.c.b16 %v7457, %v7450
        %v7787 = vpack.c.b16 %v7458, %v7451
        %v7788 = vpack.c.b16 %v7459, %v7452
        %v7789 = vpack.c.b16 %v7460, %v7453
        %v7790 = vpack.c.b16 %v7461, %v7454
        %v7791 = vpack.c.b16 %v7462, %v7455
        %v7792 = vpack.c.b16 %v7463, %v7456
        %v7793 = vpack.c.b16 %v7471, %v7464
        %v7794 = vpack.c.b16 %v7472, %v7465
        %v7795 = vpack.c.b16 %v7473, %v7466
        %v7796 = vpack.c.b16 %v7474, %v7467
        %v7797 = vpack.c.b16 %v7475, %v7468
        %v7798 = vpack.c.b16 %v7476, %v7469
        %v7799 = vpack.c.b16 %v7477, %v7470
        %v7800 = vpack.c.b16 %v7485, %v7478
        %v7801 = vpack.c.b16 %v7486, %v7479
        %v7802 = vpack.c.b16 %v7487, %v7480
        %v7803 = vpack.c.b16 %v7488, %v7481
        %v7804 = vpack.c.b16 %v7489, %v7482
        %v7805 = vpack.c.b16 %v7490, %v7483
        %v7806 = vpack.c.b16 %v7491, %v7484
        %v7807 = vpack.c.b16 %v7499, %v7492
        %v7808 = vpack.c.b16 %v7500, %v7493
        %v7809 = vpack.c.b16 %v7501, %v7494
        %v7810 = vpack.c.b16 %v7502, %v7495
        %v7811 = vpack.c.b16 %v7503, %v7496
        %v7812 = vpack.c.b16 %v7504, %v7497
        %v7813 = vpack.c.b16 %v7505, %v7498
        %v7814 = vpack.c.b16 %v7513, %v7506
        %v7815 = vpack.c.b16 %v7514, %v7507
        %v7816 = vpack.c.b16 %v7515, %v7508
        %v7817 = vpack.c.b16 %v7516, %v7509
        %v7818 = vpack.c.b16 %v7517, %v7510
        %v7819 = vpack.c.b16 %v7518, %v7511
        %v7820 = vpack.c.b16 %v7519, %v7512
        %v7821 = vpack.c.b16 %v7527, %v7520
        %v7822 = vpack.c.b16 %v7528, %v7521
        %v7823 = vpack.c.b16 %v7529, %v7522
        %v7824 = vpack.c.b16 %v7530, %v7523
        %v7825 = vpack.c.b16 %v7531, %v7524
        %v7826 = vpack.c.b16 %v7532, %v7525
        %v7827 = vpack.c.b16 %v7533, %v7526
        %v7828 = vpack.c.b16 %v7541, %v7534
        %v7829 = vpack.c.b16 %v7542, %v7535
        %v7830 = vpack.c.b16 %v7543, %v7536
        %v7831 = vpack.c.b16 %v7544, %v7537
        %v7832 = vpack.c.b16 %v7545, %v7538
        %v7833 = vpack.c.b16 %v7546, %v7539
        %v7834 = vpack.c.b16 %v7547, %v7540
        %v7835 = vpack.c.b16 %v7555, %v7548
        %v7836 = vpack.c.b16 %v7556, %v7549
        %v7837 = vpack.c.b16 %v7557, %v7550
        %v7838 = vpack.c.b16 %v7558, %v7551
        %v7839 = vpack.c.b16 %v7559, %v7552
        %v7840 = vpack.c.b16 %v7560, %v7553
        %v7841 = vpack.c.b16 %v7561, %v7554
        %v7842 = vpack.c.b16 %v7569, %v7562
        %v7843 = vpack.c.b16 %v7570, %v7563
        %v7844 = vpack.c.b16 %v7571, %v7564
        %v7845 = vpack.c.b16 %v7572, %v7565
        %v7846 = vpack.c.b16 %v7573, %v7566
        %v7847 = vpack.c.b16 %v7574, %v7567
        %v7848 = vpack.c.b16 %v7575, %v7568
        %v7849 = vpack.c.b16 %v7583, %v7576
        %v7850 = vpack.c.b16 %v7584, %v7577
        %v7851 = vpack.c.b16 %v7585, %v7578
        %v7852 = vpack.c.b16 %v7586, %v7579
        %v7853 = vpack.c.b16 %v7587, %v7580
        %v7854 = vpack.c.b16 %v7588, %v7581
        %v7855 = vpack.c.b16 %v7589, %v7582
        %v7856 = vpack.c.b16 %v7597, %v7590
        %v7857 = vpack.c.b16 %v7598, %v7591
        %v7858 = vpack.c.b16 %v7599, %v7592
        %v7859 = vpack.c.b16 %v7600, %v7593
        %v7860 = vpack.c.b16 %v7601, %v7594
        %v7861 = vpack.c.b16 %v7602, %v7595
        %v7862 = vpack.c.b16 %v7603, %v7596
        %v7863 = vpack.c.b16 %v7611, %v7604
        %v7864 = vpack.c.b16 %v7612, %v7605
        %v7865 = vpack.c.b16 %v7613, %v7606
        %v7866 = vpack.c.b16 %v7614, %v7607
        %v7867 = vpack.c.b16 %v7615, %v7608
        %v7868 = vpack.c.b16 %v7616, %v7609
        %v7869 = vpack.c.b16 %v7617, %v7610
        %v7870 = vpack.c.b16 %v7625, %v7618
        %v7871 = vpack.c.b16 %v7626, %v7619
        %v7872 = vpack.c.b16 %v7627, %v7620
        %v7873 = vpack.c.b16 %v7628, %v7621
        %v7874 = vpack.c.b16 %v7629, %v7622
        %v7875 = vpack.c.b16 %v7630, %v7623
        %v7876 = vpack.c.b16 %v7631, %v7624
        %v7877 = vpack.c.b16 %v7639, %v7632
        %v7878 = vpack.c.b16 %v7640, %v7633
        %v7879 = vpack.c.b16 %v7641, %v7634
        %v7880 = vpack.c.b16 %v7642, %v7635
        %v7881 = vpack.c.b16 %v7643, %v7636
        %v7882 = vpack.c.b16 %v7644, %v7637
        %v7883 = vpack.c.b16 %v7645, %v7638
        %v7884 = vpack.c.b16 %v7653, %v7646
        %v7885 = vpack.c.b16 %v7654, %v7647
        %v7886 = vpack.c.b16 %v7655, %v7648
        %v7887 = vpack.c.b16 %v7656, %v7649
        %v7888 = vpack.c.b16 %v7657, %v7650
        %v7889 = vpack.c.b16 %v7658, %v7651
        %v7890 = vpack.c.b16 %v7659, %v7652
        %v7891 = vpack.c.b16 %v7667, %v7660
        %v7892 = vpack.c.b16 %v7668, %v7661
        %v7893 = vpack.c.b16 %v7669, %v7662
        %v7894 = vpack.c.b16 %v7670, %v7663
        %v7895 = vpack.c.b16 %v7671, %v7664
        %v7896 = vpack.c.b16 %v7672, %v7665
        %v7897 = vpack.c.b16 %v7673, %v7666
        %8122 = vmatprep.subr.bf16.mxu0 %v7675
        %8123 = vmatpush1.bf16.msra.mxu0 %v7674
        %8124 = vmatprep.subr.bf16.mxu0 %v7682
        %8125 = vmatpush1.bf16.msra.mxu0 %v7681
        %8126 = vmatprep.subr.bf16.mxu0 %v7689
        %8127 = vmatpush1.bf16.msra.mxu0 %v7688
        %8128 = vmatprep.subr.bf16.mxu0 %v7696
        %8129 = vmatpush1.bf16.msra.mxu0 %v7695
        %8130 = vmatprep.subr.bf16.mxu0 %v7703
        %8131 = vmatpush1.bf16.msra.mxu0 %v7702
        %8132 = vmatprep.subr.bf16.mxu0 %v7710
        %8133 = vmatpush1.bf16.msra.mxu0 %v7709
        %8134 = vmatprep.subr.bf16.mxu0 %v7717
        %8135 = vmatpush1.bf16.msra.mxu0 %v7716
        %8136 = vmatprep.subr.bf16.mxu0 %v7724
        %8137 = vmatpush1.bf16.msra.mxu0 %v7723
        %8138 = vmatprep.subr.bf16.mxu0 %v7731
        %8139 = vmatpush1.bf16.msra.mxu0 %v7730
        %8140 = vmatprep.subr.bf16.mxu0 %v7738
        %8141 = vmatpush1.bf16.msra.mxu0 %v7737
        %8142 = vmatprep.subr.bf16.mxu0 %v7745
        %8143 = vmatpush1.bf16.msra.mxu0 %v7744
        %8144 = vmatprep.subr.bf16.mxu0 %v7752
        %8145 = vmatpush1.bf16.msra.mxu0 %v7751
        %8146 = vmatprep.subr.bf16.mxu0 %v7759
        %8147 = vmatpush1.bf16.msra.mxu0 %v7758
        %8148 = vmatprep.subr.bf16.mxu0 %v7766
        %8149 = vmatpush1.bf16.msra.mxu0 %v7765
        %8150 = vmatprep.subr.bf16.mxu0 %v7773
        %8151 = vmatpush1.bf16.msra.mxu0 %v7772
        %8152 = vmatprep.subr.bf16.mxu0 %v7780
        %8153 = vmatpush1.bf16.msra.mxu0 %v7779
        %8154 = vmatprep.mubr.bf16.mxu0 %v6646
        %8155 = vmatmul.mubr.bf16.gmra.mrb[0].mxu0 %v6645
        %v8156 = vpop.f32.mrb[0].mxu0
        %v8157 = vadd.f32 %v6938, %v8156
        %v8158 = vpop.f32.mrb[0].mxu0
        %v8159 = vadd.f32 %v6942, %v8158
        %v8160 = vpop.f32.mrb[0].mxu0
        %v8161 = vadd.f32 %v6938, %v8160
        %v8162 = vpop.f32.mrb[0].mxu0
        %v8163 = vadd.f32 %v6942, %v8162
        %8164 = vmatprep.mubr.bf16.mxu0 %v6650
        %8165 = vmatmul.mubr.bf16.gmra.mrb[0].mxu0 %v6649
        %v8166 = vpop.f32.mrb[0].mxu0
        %v8167 = vadd.f32 %v6938, %v8166
        %v8168 = vpop.f32.mrb[0].mxu0
        %v8169 = vadd.f32 %v6942, %v8168
        %v8170 = vpop.f32.mrb[0].mxu0
        %v8171 = vadd.f32 %v6938, %v8170
        %v8172 = vpop.f32.mrb[0].mxu0
        %v8173 = vadd.f32 %v6942, %v8172
        %8174 = vmatprep.mubr.bf16.mxu0 %v6654
        %8175 = vmatmul.mubr.bf16.gmra.mrb[0].mxu0 %v6653
        %v8176 = vpop.f32.mrb[0].mxu0
        %v8177 = vadd.f32 %v6938, %v8176
        %v8178 = vpop.f32.mrb[0].mxu0
        %v8179 = vadd.f32 %v6942, %v8178
        %v8180 = vpop.f32.mrb[0].mxu0
        %v8181 = vadd.f32 %v6938, %v8180
        %v8182 = vpop.f32.mrb[0].mxu0
        %v8183 = vadd.f32 %v6942, %v8182
        %8184 = vmatprep.mubr.bf16.mxu0 %v6658
        %8185 = vmatmul.mubr.bf16.gmra.mrb[0].mxu0 %v6657
        %v8186 = vpop.f32.mrb[0].mxu0
        %v8187 = vadd.f32 %v6938, %v8186
        %v8188 = vpop.f32.mrb[0].mxu0
        %v8189 = vadd.f32 %v6942, %v8188
        %v8190 = vpop.f32.mrb[0].mxu0
        %v8191 = vadd.f32 %v6938, %v8190
        %v8192 = vpop.f32.mrb[0].mxu0
        %v8193 = vadd.f32 %v6942, %v8192
        %8194 = vmatprep.mubr.bf16.mxu0 %v6662
        %8195 = vmatmul.mubr.bf16.gmra.mrb[0].mxu0 %v6661
        %v8196 = vpop.f32.mrb[0].mxu0
        %v8197 = vadd.f32 %v6938, %v8196
        %v8198 = vpop.f32.mrb[0].mxu0
        %v8199 = vadd.f32 %v6942, %v8198
        %v8200 = vpop.f32.mrb[0].mxu0
        %v8201 = vadd.f32 %v6938, %v8200
        %v8202 = vpop.f32.mrb[0].mxu0
        %v8203 = vadd.f32 %v6942, %v8202
        %8204 = vmatprep.mubr.bf16.mxu0 %v6666
        %8205 = vmatmul.mubr.bf16.gmra.mrb[0].mxu0 %v6665
        %v8206 = vpop.f32.mrb[0].mxu0
        %v8207 = vadd.f32 %v6938, %v8206
        %v8208 = vpop.f32.mrb[0].mxu0
        %v8209 = vadd.f32 %v6942, %v8208
        %v8210 = vpop.f32.mrb[0].mxu0
        %v8211 = vadd.f32 %v6938, %v8210
        %v8212 = vpop.f32.mrb[0].mxu0
        %v8213 = vadd.f32 %v6942, %v8212
        %8214 = vmatprep.mubr.bf16.mxu0 %v6670
        %8215 = vmatmul.mubr.bf16.gmra.mrb[0].mxu0 %v6669
        %v8216 = vpop.f32.mrb[0].mxu0
        %v8217 = vadd.f32 %v6938, %v8216
        %v8218 = vpop.f32.mrb[0].mxu0
        %v8219 = vadd.f32 %v6942, %v8218
        %v8220 = vpop.f32.mrb[0].mxu0
        %v8221 = vadd.f32 %v6938, %v8220
        %v8222 = vpop.f32.mrb[0].mxu0
        %v8223 = vadd.f32 %v6942, %v8222
        %8224 = vmatprep.mubr.bf16.mxu0 %v6674
        %8225 = vmatmul.mubr.bf16.gmra.mrb[0].mxu0 %v6673
        %v8226 = vpop.f32.mrb[0].mxu0
        %v8227 = vadd.f32 %v6938, %v8226
        %v8228 = vpop.f32.mrb[0].mxu0
        %v8229 = vadd.f32 %v6942, %v8228
        %v8230 = vpop.f32.mrb[0].mxu0
        %v8231 = vadd.f32 %v6938, %v8230
        %v8232 = vpop.f32.mrb[0].mxu0
        %v8233 = vadd.f32 %v6942, %v8232
        %8234 = vdwg.mxu0
        %8235 = vmatprep.subr.bf16.mxu0 %v7787
        %8236 = vmatpush1.bf16.msra.mxu0 %v7786
        %8237 = vmatprep.subr.bf16.mxu0 %v7794
        %8238 = vmatpush1.bf16.msra.mxu0 %v7793
        %8239 = vmatprep.subr.bf16.mxu0 %v7801
        %8240 = vmatpush1.bf16.msra.mxu0 %v7800
        %8241 = vmatprep.subr.bf16.mxu0 %v7808
        %8242 = vmatpush1.bf16.msra.mxu0 %v7807
        %8243 = vmatprep.subr.bf16.mxu0 %v7815
        %8244 = vmatpush1.bf16.msra.mxu0 %v7814
        %8245 = vmatprep.subr.bf16.mxu0 %v7822
        %8246 = vmatpush1.bf16.msra.mxu0 %v7821
        %8247 = vmatprep.subr.bf16.mxu0 %v7829
        %8248 = vmatpush1.bf16.msra.mxu0 %v7828
        %8249 = vmatprep.subr.bf16.mxu0 %v7836
        %8250 = vmatpush1.bf16.msra.mxu0 %v7835
        %8251 = vmatprep.subr.bf16.mxu0 %v7843
        %8252 = vmatpush1.bf16.msra.mxu0 %v7842
        %8253 = vmatprep.subr.bf16.mxu0 %v7850
        %8254 = vmatpush1.bf16.msra.mxu0 %v7849
        %8255 = vmatprep.subr.bf16.mxu0 %v7857
        %8256 = vmatpush1.bf16.msra.mxu0 %v7856
        %8257 = vmatprep.subr.bf16.mxu0 %v7864
        %8258 = vmatpush1.bf16.msra.mxu0 %v7863
        %8259 = vmatprep.subr.bf16.mxu0 %v7871
        %8260 = vmatpush1.bf16.msra.mxu0 %v7870
        %8261 = vmatprep.subr.bf16.mxu0 %v7878
        %8262 = vmatpush1.bf16.msra.mxu0 %v7877
        %8263 = vmatprep.subr.bf16.mxu0 %v7885
        %8264 = vmatpush1.bf16.msra.mxu0 %v7884
        %8265 = vmatprep.subr.bf16.mxu0 %v7892
        %8266 = vmatpush1.bf16.msra.mxu0 %v7891
        %8267 = vmatprep.mubr.bf16.mxu0 %v6648
        %8268 = vmatmul.mubr.bf16.gmra.mrb[0].mxu0 %v6647
        %v8269 = vpop.f32.mrb[0].mxu0
        %v8270 = vadd.f32 %v8157, %v8269
        %v8271 = vpop.f32.mrb[0].mxu0
        %v8272 = vadd.f32 %v8159, %v8271
        %v8273 = vpop.f32.mrb[0].mxu0
        %v8274 = vadd.f32 %v8161, %v8273
        %v8275 = vpop.f32.mrb[0].mxu0
        %v8276 = vadd.f32 %v8163, %v8275
        %8277 = vmatprep.mubr.bf16.mxu0 %v6652
        %8278 = vmatmul.mubr.bf16.gmra.mrb[0].mxu0 %v6651
        %v8279 = vpop.f32.mrb[0].mxu0
        %v8280 = vadd.f32 %v8167, %v8279
        %v8281 = vpop.f32.mrb[0].mxu0
        %v8282 = vadd.f32 %v8169, %v8281
        %v8283 = vpop.f32.mrb[0].mxu0
        %v8284 = vadd.f32 %v8171, %v8283
        %v8285 = vpop.f32.mrb[0].mxu0
        %v8286 = vadd.f32 %v8173, %v8285
        %8287 = vmatprep.mubr.bf16.mxu0 %v6656
        %8288 = vmatmul.mubr.bf16.gmra.mrb[0].mxu0 %v6655
        %v8289 = vpop.f32.mrb[0].mxu0
        %v8290 = vadd.f32 %v8177, %v8289
        %v8291 = vpop.f32.mrb[0].mxu0
        %v8292 = vadd.f32 %v8179, %v8291
        %v8293 = vpop.f32.mrb[0].mxu0
        %v8294 = vadd.f32 %v8181, %v8293
        %v8295 = vpop.f32.mrb[0].mxu0
        %v8296 = vadd.f32 %v8183, %v8295
        %8297 = vmatprep.mubr.bf16.mxu0 %v6660
        %8298 = vmatmul.mubr.bf16.gmra.mrb[0].mxu0 %v6659
        %v8299 = vpop.f32.mrb[0].mxu0
        %v8300 = vadd.f32 %v8187, %v8299
        %v8301 = vpop.f32.mrb[0].mxu0
        %v8302 = vadd.f32 %v8189, %v8301
        %v8303 = vpop.f32.mrb[0].mxu0
        %v8304 = vadd.f32 %v8191, %v8303
        %v8305 = vpop.f32.mrb[0].mxu0
        %v8306 = vadd.f32 %v8193, %v8305
        %8307 = vmatprep.mubr.bf16.mxu0 %v6664
        %8308 = vmatmul.mubr.bf16.gmra.mrb[0].mxu0 %v6663
        %v8309 = vpop.f32.mrb[0].mxu0
        %v8310 = vadd.f32 %v8197, %v8309
        %v8311 = vpop.f32.mrb[0].mxu0
        %v8312 = vadd.f32 %v8199, %v8311
        %v8313 = vpop.f32.mrb[0].mxu0
        %v8314 = vadd.f32 %v8201, %v8313
        %v8315 = vpop.f32.mrb[0].mxu0
        %v8316 = vadd.f32 %v8203, %v8315
        %8317 = vmatprep.mubr.bf16.mxu0 %v6668
        %8318 = vmatmul.mubr.bf16.gmra.mrb[0].mxu0 %v6667
        %v8319 = vpop.f32.mrb[0].mxu0
        %v8320 = vadd.f32 %v8207, %v8319
        %v8321 = vpop.f32.mrb[0].mxu0
        %v8322 = vadd.f32 %v8209, %v8321
        %v8323 = vpop.f32.mrb[0].mxu0
        %v8324 = vadd.f32 %v8211, %v8323
        %v8325 = vpop.f32.mrb[0].mxu0
        %v8326 = vadd.f32 %v8213, %v8325
        %8327 = vmatprep.mubr.bf16.mxu0 %v6672
        %8328 = vmatmul.mubr.bf16.gmra.mrb[0].mxu0 %v6671
        %v8329 = vpop.f32.mrb[0].mxu0
        %v8330 = vadd.f32 %v8217, %v8329
        %v8331 = vpop.f32.mrb[0].mxu0
        %v8332 = vadd.f32 %v8219, %v8331
        %v8333 = vpop.f32.mrb[0].mxu0
        %v8334 = vadd.f32 %v8221, %v8333
        %v8335 = vpop.f32.mrb[0].mxu0
        %v8336 = vadd.f32 %v8223, %v8335
        %8337 = vmatprep.mubr.bf16.mxu0 %v6676
        %8338 = vmatmul.mubr.bf16.gmra.mrb[0].mxu0 %v6675
        %v8339 = vpop.f32.mrb[0].mxu0
        %v8340 = vadd.f32 %v8227, %v8339
        %v8341 = vpop.f32.mrb[0].mxu0
        %v8342 = vadd.f32 %v8229, %v8341
        %v8343 = vpop.f32.mrb[0].mxu0
        %v8344 = vadd.f32 %v8231, %v8343
        %v8345 = vpop.f32.mrb[0].mxu0
        %v8346 = vadd.f32 %v8233, %v8345
        %8347 = vdwg.mxu0
        %8348 = vmatprep.subr.bf16.mxu0 %v7677
        %8349 = vmatpush1.bf16.msra.mxu0 %v7676
        %8350 = vmatprep.subr.bf16.mxu0 %v7684
        %8351 = vmatpush1.bf16.msra.mxu0 %v7683
        %8352 = vmatprep.subr.bf16.mxu0 %v7691
        %8353 = vmatpush1.bf16.msra.mxu0 %v7690
        %8354 = vmatprep.subr.bf16.mxu0 %v7698
        %8355 = vmatpush1.bf16.msra.mxu0 %v7697
        %8356 = vmatprep.subr.bf16.mxu0 %v7705
        %8357 = vmatpush1.bf16.msra.mxu0 %v7704
        %8358 = vmatprep.subr.bf16.mxu0 %v7712
        %8359 = vmatpush1.bf16.msra.mxu0 %v7711
        %8360 = vmatprep.subr.bf16.mxu0 %v7719
        %8361 = vmatpush1.bf16.msra.mxu0 %v7718
        %8362 = vmatprep.subr.bf16.mxu0 %v7726
        %8363 = vmatpush1.bf16.msra.mxu0 %v7725
        %8364 = vmatprep.subr.bf16.mxu0 %v7733
        %8365 = vmatpush1.bf16.msra.mxu0 %v7732
        %8366 = vmatprep.subr.bf16.mxu0 %v7740
        %8367 = vmatpush1.bf16.msra.mxu0 %v7739
        %8368 = vmatprep.subr.bf16.mxu0 %v7747
        %8369 = vmatpush1.bf16.msra.mxu0 %v7746
        %8370 = vmatprep.subr.bf16.mxu0 %v7754
        %8371 = vmatpush1.bf16.msra.mxu0 %v7753
        %8372 = vmatprep.subr.bf16.mxu0 %v7761
        %8373 = vmatpush1.bf16.msra.mxu0 %v7760
        %8374 = vmatprep.subr.bf16.mxu0 %v7768
        %8375 = vmatpush1.bf16.msra.mxu0 %v7767
        %8376 = vmatprep.subr.bf16.mxu0 %v7775
        %8377 = vmatpush1.bf16.msra.mxu0 %v7774
        %8378 = vmatprep.subr.bf16.mxu0 %v7782
        %8379 = vmatpush1.bf16.msra.mxu0 %v7781
        %8380 = vmatprep.mubr.bf16.mxu0 %v6646
        %8381 = vmatmul.mubr.bf16.gmra.mrb[0].mxu0 %v6645
        %v8382 = vpop.f32.mrb[0].mxu0
        %v8383 = vadd.f32 %v6946, %v8382
        %v8384 = vpop.f32.mrb[0].mxu0
        %v8385 = vadd.f32 %v6950, %v8384
        %v8386 = vpop.f32.mrb[0].mxu0
        %v8387 = vadd.f32 %v6946, %v8386
        %v8388 = vpop.f32.mrb[0].mxu0
        %v8389 = vadd.f32 %v6950, %v8388
        %8390 = vmatprep.mubr.bf16.mxu0 %v6650
        %8391 = vmatmul.mubr.bf16.gmra.mrb[0].mxu0 %v6649
        %v8392 = vpop.f32.mrb[0].mxu0
        %v8393 = vadd.f32 %v6946, %v8392
        %v8394 = vpop.f32.mrb[0].mxu0
        %v8395 = vadd.f32 %v6950, %v8394
        %v8396 = vpop.f32.mrb[0].mxu0
        %v8397 = vadd.f32 %v6946, %v8396
        %v8398 = vpop.f32.mrb[0].mxu0
        %v8399 = vadd.f32 %v6950, %v8398
        %8400 = vmatprep.mubr.bf16.mxu0 %v6654
        %8401 = vmatmul.mubr.bf16.gmra.mrb[0].mxu0 %v6653
        %v8402 = vpop.f32.mrb[0].mxu0
        %v8403 = vadd.f32 %v6946, %v8402
        %v8404 = vpop.f32.mrb[0].mxu0
        %v8405 = vadd.f32 %v6950, %v8404
        %v8406 = vpop.f32.mrb[0].mxu0
        %v8407 = vadd.f32 %v6946, %v8406
        %v8408 = vpop.f32.mrb[0].mxu0
        %v8409 = vadd.f32 %v6950, %v8408
        %8410 = vmatprep.mubr.bf16.mxu0 %v6658
        %8411 = vmatmul.mubr.bf16.gmra.mrb[0].mxu0 %v6657
        %v8412 = vpop.f32.mrb[0].mxu0
        %v8413 = vadd.f32 %v6946, %v8412
        %v8414 = vpop.f32.mrb[0].mxu0
        %v8415 = vadd.f32 %v6950, %v8414
        %v8416 = vpop.f32.mrb[0].mxu0
        %v8417 = vadd.f32 %v6946, %v8416
        %v8418 = vpop.f32.mrb[0].mxu0
        %v8419 = vadd.f32 %v6950, %v8418
        %8420 = vmatprep.mubr.bf16.mxu0 %v6662
        %8421 = vmatmul.mubr.bf16.gmra.mrb[0].mxu0 %v6661
        %v8422 = vpop.f32.mrb[0].mxu0
        %v8423 = vadd.f32 %v6946, %v8422
        %v8424 = vpop.f32.mrb[0].mxu0
        %v8425 = vadd.f32 %v6950, %v8424
        %v8426 = vpop.f32.mrb[0].mxu0
        %v8427 = vadd.f32 %v6946, %v8426
        %v8428 = vpop.f32.mrb[0].mxu0
        %v8429 = vadd.f32 %v6950, %v8428
        %8430 = vmatprep.mubr.bf16.mxu0 %v6666
        %8431 = vmatmul.mubr.bf16.gmra.mrb[0].mxu0 %v6665
        %v8432 = vpop.f32.mrb[0].mxu0
        %v8433 = vadd.f32 %v6946, %v8432
        %v8434 = vpop.f32.mrb[0].mxu0
        %v8435 = vadd.f32 %v6950, %v8434
        %v8436 = vpop.f32.mrb[0].mxu0
        %v8437 = vadd.f32 %v6946, %v8436
        %v8438 = vpop.f32.mrb[0].mxu0
        %v8439 = vadd.f32 %v6950, %v8438
        %8440 = vmatprep.mubr.bf16.mxu0 %v6670
        %8441 = vmatmul.mubr.bf16.gmra.mrb[0].mxu0 %v6669
        %v8442 = vpop.f32.mrb[0].mxu0
        %v8443 = vadd.f32 %v6946, %v8442
        %v8444 = vpop.f32.mrb[0].mxu0
        %v8445 = vadd.f32 %v6950, %v8444
        %v8446 = vpop.f32.mrb[0].mxu0
        %v8447 = vadd.f32 %v6946, %v8446
        %v8448 = vpop.f32.mrb[0].mxu0
        %v8449 = vadd.f32 %v6950, %v8448
        %8450 = vmatprep.mubr.bf16.mxu0 %v6674
        %8451 = vmatmul.mubr.bf16.gmra.mrb[0].mxu0 %v6673
        %v8452 = vpop.f32.mrb[0].mxu0
        %v8453 = vadd.f32 %v6946, %v8452
        %v8454 = vpop.f32.mrb[0].mxu0
        %v8455 = vadd.f32 %v6950, %v8454
        %v8456 = vpop.f32.mrb[0].mxu0
        %v8457 = vadd.f32 %v6946, %v8456
        %v8458 = vpop.f32.mrb[0].mxu0
        %v8459 = vadd.f32 %v6950, %v8458
        %8460 = vdwg.mxu0
        %8461 = vmatprep.subr.bf16.mxu0 %v7789
        %8462 = vmatpush1.bf16.msra.mxu0 %v7788
        %8463 = vmatprep.subr.bf16.mxu0 %v7796
        %8464 = vmatpush1.bf16.msra.mxu0 %v7795
        %8465 = vmatprep.subr.bf16.mxu0 %v7803
        %8466 = vmatpush1.bf16.msra.mxu0 %v7802
        %8467 = vmatprep.subr.bf16.mxu0 %v7810
        %8468 = vmatpush1.bf16.msra.mxu0 %v7809
        %8469 = vmatprep.subr.bf16.mxu0 %v7817
        %8470 = vmatpush1.bf16.msra.mxu0 %v7816
        %8471 = vmatprep.subr.bf16.mxu0 %v7824
        %8472 = vmatpush1.bf16.msra.mxu0 %v7823
        %8473 = vmatprep.subr.bf16.mxu0 %v7831
        %8474 = vmatpush1.bf16.msra.mxu0 %v7830
        %8475 = vmatprep.subr.bf16.mxu0 %v7838
        %8476 = vmatpush1.bf16.msra.mxu0 %v7837
        %8477 = vmatprep.subr.bf16.mxu0 %v7845
        %8478 = vmatpush1.bf16.msra.mxu0 %v7844
        %8479 = vmatprep.subr.bf16.mxu0 %v7852
        %8480 = vmatpush1.bf16.msra.mxu0 %v7851
        %8481 = vmatprep.subr.bf16.mxu0 %v7859
        %8482 = vmatpush1.bf16.msra.mxu0 %v7858
        %8483 = vmatprep.subr.bf16.mxu0 %v7866
        %8484 = vmatpush1.bf16.msra.mxu0 %v7865
        %8485 = vmatprep.subr.bf16.mxu0 %v7873
        %8486 = vmatpush1.bf16.msra.mxu0 %v7872
        %8487 = vmatprep.subr.bf16.mxu0 %v7880
        %8488 = vmatpush1.bf16.msra.mxu0 %v7879
        %8489 = vmatprep.subr.bf16.mxu0 %v7887
        %8490 = vmatpush1.bf16.msra.mxu0 %v7886
        %8491 = vmatprep.subr.bf16.mxu0 %v7894
        %8492 = vmatpush1.bf16.msra.mxu0 %v7893
        %8493 = vmatprep.mubr.bf16.mxu0 %v6648
        %8494 = vmatmul.mubr.bf16.gmra.mrb[0].mxu0 %v6647
        %v8495 = vpop.f32.mrb[0].mxu0
        %v8496 = vadd.f32 %v8383, %v8495
        %v8497 = vpop.f32.mrb[0].mxu0
        %v8498 = vadd.f32 %v8385, %v8497
        %v8499 = vpop.f32.mrb[0].mxu0
        %v8500 = vadd.f32 %v8387, %v8499
        %v8501 = vpop.f32.mrb[0].mxu0
        %v8502 = vadd.f32 %v8389, %v8501
        %8503 = vmatprep.mubr.bf16.mxu0 %v6652
        %8504 = vmatmul.mubr.bf16.gmra.mrb[0].mxu0 %v6651
        %v8505 = vpop.f32.mrb[0].mxu0
        %v8506 = vadd.f32 %v8393, %v8505
        %v8507 = vpop.f32.mrb[0].mxu0
        %v8508 = vadd.f32 %v8395, %v8507
        %v8509 = vpop.f32.mrb[0].mxu0
        %v8510 = vadd.f32 %v8397, %v8509
        %v8511 = vpop.f32.mrb[0].mxu0
        %v8512 = vadd.f32 %v8399, %v8511
        %8513 = vmatprep.mubr.bf16.mxu0 %v6656
        %8514 = vmatmul.mubr.bf16.gmra.mrb[0].mxu0 %v6655
        %v8515 = vpop.f32.mrb[0].mxu0
        %v8516 = vadd.f32 %v8403, %v8515
        %v8517 = vpop.f32.mrb[0].mxu0
        %v8518 = vadd.f32 %v8405, %v8517
        %v8519 = vpop.f32.mrb[0].mxu0
        %v8520 = vadd.f32 %v8407, %v8519
        %v8521 = vpop.f32.mrb[0].mxu0
        %v8522 = vadd.f32 %v8409, %v8521
        %8523 = vmatprep.mubr.bf16.mxu0 %v6660
        %8524 = vmatmul.mubr.bf16.gmra.mrb[0].mxu0 %v6659
        %v8525 = vpop.f32.mrb[0].mxu0
        %v8526 = vadd.f32 %v8413, %v8525
        %v8527 = vpop.f32.mrb[0].mxu0
        %v8528 = vadd.f32 %v8415, %v8527
        %v8529 = vpop.f32.mrb[0].mxu0
        %v8530 = vadd.f32 %v8417, %v8529
        %v8531 = vpop.f32.mrb[0].mxu0
        %v8532 = vadd.f32 %v8419, %v8531
        %8533 = vmatprep.mubr.bf16.mxu0 %v6664
        %8534 = vmatmul.mubr.bf16.gmra.mrb[0].mxu0 %v6663
        %v8535 = vpop.f32.mrb[0].mxu0
        %v8536 = vadd.f32 %v8423, %v8535
        %v8537 = vpop.f32.mrb[0].mxu0
        %v8538 = vadd.f32 %v8425, %v8537
        %v8539 = vpop.f32.mrb[0].mxu0
        %v8540 = vadd.f32 %v8427, %v8539
        %v8541 = vpop.f32.mrb[0].mxu0
        %v8542 = vadd.f32 %v8429, %v8541
        %8543 = vmatprep.mubr.bf16.mxu0 %v6668
        %8544 = vmatmul.mubr.bf16.gmra.mrb[0].mxu0 %v6667
        %v8545 = vpop.f32.mrb[0].mxu0
        %v8546 = vadd.f32 %v8433, %v8545
        %v8547 = vpop.f32.mrb[0].mxu0
        %v8548 = vadd.f32 %v8435, %v8547
        %v8549 = vpop.f32.mrb[0].mxu0
        %v8550 = vadd.f32 %v8437, %v8549
        %v8551 = vpop.f32.mrb[0].mxu0
        %v8552 = vadd.f32 %v8439, %v8551
        %8553 = vmatprep.mubr.bf16.mxu0 %v6672
        %8554 = vmatmul.mubr.bf16.gmra.mrb[0].mxu0 %v6671
        %v8555 = vpop.f32.mrb[0].mxu0
        %v8556 = vadd.f32 %v8443, %v8555
        %v8557 = vpop.f32.mrb[0].mxu0
        %v8558 = vadd.f32 %v8445, %v8557
        %v8559 = vpop.f32.mrb[0].mxu0
        %v8560 = vadd.f32 %v8447, %v8559
        %v8561 = vpop.f32.mrb[0].mxu0
        %v8562 = vadd.f32 %v8449, %v8561
        %8563 = vmatprep.mubr.bf16.mxu0 %v6676
        %8564 = vmatmul.mubr.bf16.gmra.mrb[0].mxu0 %v6675
        %v8565 = vpop.f32.mrb[0].mxu0
        %v8566 = vadd.f32 %v8453, %v8565
        %v8567 = vpop.f32.mrb[0].mxu0
        %v8568 = vadd.f32 %v8455, %v8567
        %v8569 = vpop.f32.mrb[0].mxu0
        %v8570 = vadd.f32 %v8457, %v8569
        %v8571 = vpop.f32.mrb[0].mxu0
        %v8572 = vadd.f32 %v8459, %v8571
        %8573 = vdwg.mxu0
        %8574 = vmatprep.subr.bf16.mxu0 %v7679
        %8575 = vmatpush1.bf16.msra.mxu0 %v7678
        %8576 = vmatprep.subr.bf16.mxu0 %v7686
        %8577 = vmatpush1.bf16.msra.mxu0 %v7685
        %8578 = vmatprep.subr.bf16.mxu0 %v7693
        %8579 = vmatpush1.bf16.msra.mxu0 %v7692
        %8580 = vmatprep.subr.bf16.mxu0 %v7700
        %8581 = vmatpush1.bf16.msra.mxu0 %v7699
        %8582 = vmatprep.subr.bf16.mxu0 %v7707
        %8583 = vmatpush1.bf16.msra.mxu0 %v7706
        %8584 = vmatprep.subr.bf16.mxu0 %v7714
        %8585 = vmatpush1.bf16.msra.mxu0 %v7713
        %8586 = vmatprep.subr.bf16.mxu0 %v7721
        %8587 = vmatpush1.bf16.msra.mxu0 %v7720
        %8588 = vmatprep.subr.bf16.mxu0 %v7728
        %8589 = vmatpush1.bf16.msra.mxu0 %v7727
        %8590 = vmatprep.subr.bf16.mxu0 %v7735
        %8591 = vmatpush1.bf16.msra.mxu0 %v7734
        %8592 = vmatprep.subr.bf16.mxu0 %v7742
        %8593 = vmatpush1.bf16.msra.mxu0 %v7741
        %8594 = vmatprep.subr.bf16.mxu0 %v7749
        %8595 = vmatpush1.bf16.msra.mxu0 %v7748
        %8596 = vmatprep.subr.bf16.mxu0 %v7756
        %8597 = vmatpush1.bf16.msra.mxu0 %v7755
        %8598 = vmatprep.subr.bf16.mxu0 %v7763
        %8599 = vmatpush1.bf16.msra.mxu0 %v7762
        %8600 = vmatprep.subr.bf16.mxu0 %v7770
        %8601 = vmatpush1.bf16.msra.mxu0 %v7769
        %8602 = vmatprep.subr.bf16.mxu0 %v7777
        %8603 = vmatpush1.bf16.msra.mxu0 %v7776
        %8604 = vmatprep.subr.bf16.mxu0 %v7784
        %8605 = vmatpush1.bf16.msra.mxu0 %v7783
        %8606 = vmatprep.mubr.bf16.mxu0 %v6646
        %8607 = vmatmul.mubr.bf16.gmra.mrb[0].mxu0 %v6645
        %v8608 = vpop.f32.mrb[0].mxu0
        %v8609 = vadd.f32 %v6954, %v8608
        %v8610 = vpop.f32.mrb[0].mxu0
        %v8611 = vadd.f32 %v6958, %v8610
        %v8612 = vpop.f32.mrb[0].mxu0
        %v8613 = vadd.f32 %v6954, %v8612
        %v8614 = vpop.f32.mrb[0].mxu0
        %v8615 = vadd.f32 %v6958, %v8614
        %8616 = vmatprep.mubr.bf16.mxu0 %v6650
        %8617 = vmatmul.mubr.bf16.gmra.mrb[0].mxu0 %v6649
        %v8618 = vpop.f32.mrb[0].mxu0
        %v8619 = vadd.f32 %v6954, %v8618
        %v8620 = vpop.f32.mrb[0].mxu0
        %v8621 = vadd.f32 %v6958, %v8620
        %v8622 = vpop.f32.mrb[0].mxu0
        %v8623 = vadd.f32 %v6954, %v8622
        %v8624 = vpop.f32.mrb[0].mxu0
        %v8625 = vadd.f32 %v6958, %v8624
        %8626 = vmatprep.mubr.bf16.mxu0 %v6654
        %8627 = vmatmul.mubr.bf16.gmra.mrb[0].mxu0 %v6653
        %v8628 = vpop.f32.mrb[0].mxu0
        %v8629 = vadd.f32 %v6954, %v8628
        %v8630 = vpop.f32.mrb[0].mxu0
        %v8631 = vadd.f32 %v6958, %v8630
        %v8632 = vpop.f32.mrb[0].mxu0
        %v8633 = vadd.f32 %v6954, %v8632
        %v8634 = vpop.f32.mrb[0].mxu0
        %v8635 = vadd.f32 %v6958, %v8634
        %8636 = vmatprep.mubr.bf16.mxu0 %v6658
        %8637 = vmatmul.mubr.bf16.gmra.mrb[0].mxu0 %v6657
        %v8638 = vpop.f32.mrb[0].mxu0
        %v8639 = vadd.f32 %v6954, %v8638
        %v8640 = vpop.f32.mrb[0].mxu0
        %v8641 = vadd.f32 %v6958, %v8640
        %v8642 = vpop.f32.mrb[0].mxu0
        %v8643 = vadd.f32 %v6954, %v8642
        %v8644 = vpop.f32.mrb[0].mxu0
        %v8645 = vadd.f32 %v6958, %v8644
        %8646 = vmatprep.mubr.bf16.mxu0 %v6662
        %8647 = vmatmul.mubr.bf16.gmra.mrb[0].mxu0 %v6661
        %v8648 = vpop.f32.mrb[0].mxu0
        %v8649 = vadd.f32 %v6954, %v8648
        %v8650 = vpop.f32.mrb[0].mxu0
        %v8651 = vadd.f32 %v6958, %v8650
        %v8652 = vpop.f32.mrb[0].mxu0
        %v8653 = vadd.f32 %v6954, %v8652
        %v8654 = vpop.f32.mrb[0].mxu0
        %v8655 = vadd.f32 %v6958, %v8654
        %8656 = vmatprep.mubr.bf16.mxu0 %v6666
        %8657 = vmatmul.mubr.bf16.gmra.mrb[0].mxu0 %v6665
        %v8658 = vpop.f32.mrb[0].mxu0
        %v8659 = vadd.f32 %v6954, %v8658
        %v8660 = vpop.f32.mrb[0].mxu0
        %v8661 = vadd.f32 %v6958, %v8660
        %v8662 = vpop.f32.mrb[0].mxu0
        %v8663 = vadd.f32 %v6954, %v8662
        %v8664 = vpop.f32.mrb[0].mxu0
        %v8665 = vadd.f32 %v6958, %v8664
        %8666 = vmatprep.mubr.bf16.mxu0 %v6670
        %8667 = vmatmul.mubr.bf16.gmra.mrb[0].mxu0 %v6669
        %v8668 = vpop.f32.mrb[0].mxu0
        %v8669 = vadd.f32 %v6954, %v8668
        %v8670 = vpop.f32.mrb[0].mxu0
        %v8671 = vadd.f32 %v6958, %v8670
        %v8672 = vpop.f32.mrb[0].mxu0
        %v8673 = vadd.f32 %v6954, %v8672
        %v8674 = vpop.f32.mrb[0].mxu0
        %v8675 = vadd.f32 %v6958, %v8674
        %8676 = vmatprep.mubr.bf16.mxu0 %v6674
        %8677 = vmatmul.mubr.bf16.gmra.mrb[0].mxu0 %v6673
        %v8678 = vpop.f32.mrb[0].mxu0
        %v8679 = vadd.f32 %v6954, %v8678
        %v8680 = vpop.f32.mrb[0].mxu0
        %v8681 = vadd.f32 %v6958, %v8680
        %v8682 = vpop.f32.mrb[0].mxu0
        %v8683 = vadd.f32 %v6954, %v8682
        %v8684 = vpop.f32.mrb[0].mxu0
        %v8685 = vadd.f32 %v6958, %v8684
        %8686 = vdwg.mxu0
        %8687 = vmatprep.subr.bf16.mxu0 %v7791
        %8688 = vmatpush1.bf16.msra.mxu0 %v7790
        %8689 = vmatprep.subr.bf16.mxu0 %v7798
        %8690 = vmatpush1.bf16.msra.mxu0 %v7797
        %8691 = vmatprep.subr.bf16.mxu0 %v7805
        %8692 = vmatpush1.bf16.msra.mxu0 %v7804
        %8693 = vmatprep.subr.bf16.mxu0 %v7812
        %8694 = vmatpush1.bf16.msra.mxu0 %v7811
        %8695 = vmatprep.subr.bf16.mxu0 %v7819
        %8696 = vmatpush1.bf16.msra.mxu0 %v7818
        %8697 = vmatprep.subr.bf16.mxu0 %v7826
        %8698 = vmatpush1.bf16.msra.mxu0 %v7825
        %8699 = vmatprep.subr.bf16.mxu0 %v7833
        %8700 = vmatpush1.bf16.msra.mxu0 %v7832
        %8701 = vmatprep.subr.bf16.mxu0 %v7840
        %8702 = vmatpush1.bf16.msra.mxu0 %v7839
        %8703 = vmatprep.subr.bf16.mxu0 %v7847
        %8704 = vmatpush1.bf16.msra.mxu0 %v7846
        %8705 = vmatprep.subr.bf16.mxu0 %v7854
        %8706 = vmatpush1.bf16.msra.mxu0 %v7853
        %8707 = vmatprep.subr.bf16.mxu0 %v7861
        %8708 = vmatpush1.bf16.msra.mxu0 %v7860
        %8709 = vmatprep.subr.bf16.mxu0 %v7868
        %8710 = vmatpush1.bf16.msra.mxu0 %v7867
        %8711 = vmatprep.subr.bf16.mxu0 %v7875
        %8712 = vmatpush1.bf16.msra.mxu0 %v7874
        %8713 = vmatprep.subr.bf16.mxu0 %v7882
        %8714 = vmatpush1.bf16.msra.mxu0 %v7881
        %8715 = vmatprep.subr.bf16.mxu0 %v7889
        %8716 = vmatpush1.bf16.msra.mxu0 %v7888
        %8717 = vmatprep.subr.bf16.mxu0 %v7896
        %8718 = vmatpush1.bf16.msra.mxu0 %v7895
        %8719 = vmatprep.mubr.bf16.mxu0 %v6648
        %8720 = vmatmul.mubr.bf16.gmra.mrb[0].mxu0 %v6647
        %v8721 = vpop.f32.mrb[0].mxu0
        %v8722 = vadd.f32 %v8609, %v8721
        %v8723 = vpop.f32.mrb[0].mxu0
        %v8724 = vadd.f32 %v8611, %v8723
        %v8725 = vpop.f32.mrb[0].mxu0
        %v8726 = vadd.f32 %v8613, %v8725
        %v8727 = vpop.f32.mrb[0].mxu0
        %v8728 = vadd.f32 %v8615, %v8727
        %8729 = vmatprep.mubr.bf16.mxu0 %v6652
        %8730 = vmatmul.mubr.bf16.gmra.mrb[0].mxu0 %v6651
        %v8731 = vpop.f32.mrb[0].mxu0
        %v8732 = vadd.f32 %v8619, %v8731
        %v8733 = vpop.f32.mrb[0].mxu0
        %v8734 = vadd.f32 %v8621, %v8733
        %v8735 = vpop.f32.mrb[0].mxu0
        %v8736 = vadd.f32 %v8623, %v8735
        %v8737 = vpop.f32.mrb[0].mxu0
        %v8738 = vadd.f32 %v8625, %v8737
        %8739 = vmatprep.mubr.bf16.mxu0 %v6656
        %8740 = vmatmul.mubr.bf16.gmra.mrb[0].mxu0 %v6655
        %v8741 = vpop.f32.mrb[0].mxu0
        %v8742 = vadd.f32 %v8629, %v8741
        %v8743 = vpop.f32.mrb[0].mxu0
        %v8744 = vadd.f32 %v8631, %v8743
        %v8745 = vpop.f32.mrb[0].mxu0
        %v8746 = vadd.f32 %v8633, %v8745
        %v8747 = vpop.f32.mrb[0].mxu0
        %v8748 = vadd.f32 %v8635, %v8747
        %8749 = vmatprep.mubr.bf16.mxu0 %v6660
        %8750 = vmatmul.mubr.bf16.gmra.mrb[0].mxu0 %v6659
        %v8751 = vpop.f32.mrb[0].mxu0
        %v8752 = vadd.f32 %v8639, %v8751
        %v8753 = vpop.f32.mrb[0].mxu0
        %v8754 = vadd.f32 %v8641, %v8753
        %v8755 = vpop.f32.mrb[0].mxu0
        %v8756 = vadd.f32 %v8643, %v8755
        %v8757 = vpop.f32.mrb[0].mxu0
        %v8758 = vadd.f32 %v8645, %v8757
        %8759 = vmatprep.mubr.bf16.mxu0 %v6664
        %8760 = vmatmul.mubr.bf16.gmra.mrb[0].mxu0 %v6663
        %v8761 = vpop.f32.mrb[0].mxu0
        %v8762 = vadd.f32 %v8649, %v8761
        %v8763 = vpop.f32.mrb[0].mxu0
        %v8764 = vadd.f32 %v8651, %v8763
        %v8765 = vpop.f32.mrb[0].mxu0
        %v8766 = vadd.f32 %v8653, %v8765
        %v8767 = vpop.f32.mrb[0].mxu0
        %v8768 = vadd.f32 %v8655, %v8767
        %8769 = vmatprep.mubr.bf16.mxu0 %v6668
        %8770 = vmatmul.mubr.bf16.gmra.mrb[0].mxu0 %v6667
        %v8771 = vpop.f32.mrb[0].mxu0
        %v8772 = vadd.f32 %v8659, %v8771
        %v8773 = vpop.f32.mrb[0].mxu0
        %v8774 = vadd.f32 %v8661, %v8773
        %v8775 = vpop.f32.mrb[0].mxu0
        %v8776 = vadd.f32 %v8663, %v8775
        %v8777 = vpop.f32.mrb[0].mxu0
        %v8778 = vadd.f32 %v8665, %v8777
        %8779 = vmatprep.mubr.bf16.mxu0 %v6672
        %8780 = vmatmul.mubr.bf16.gmra.mrb[0].mxu0 %v6671
        %v8781 = vpop.f32.mrb[0].mxu0
        %v8782 = vadd.f32 %v8669, %v8781
        %v8783 = vpop.f32.mrb[0].mxu0
        %v8784 = vadd.f32 %v8671, %v8783
        %v8785 = vpop.f32.mrb[0].mxu0
        %v8786 = vadd.f32 %v8673, %v8785
        %v8787 = vpop.f32.mrb[0].mxu0
        %v8788 = vadd.f32 %v8675, %v8787
        %8789 = vmatprep.mubr.bf16.mxu0 %v6676
        %8790 = vmatmul.mubr.bf16.gmra.mrb[0].mxu0 %v6675
        %v8791 = vpop.f32.mrb[0].mxu0
        %v8792 = vadd.f32 %v8679, %v8791
        %v8793 = vpop.f32.mrb[0].mxu0
        %v8794 = vadd.f32 %v8681, %v8793
        %v8795 = vpop.f32.mrb[0].mxu0
        %v8796 = vadd.f32 %v8683, %v8795
        %v8797 = vpop.f32.mrb[0].mxu0
        %v8798 = vadd.f32 %v8685, %v8797
        %8799 = vdwg.mxu0
        %8800 = vmatprep.subr.bf16.mxu0 0
        %8801 = vmatpush1.bf16.msra.mxu0 %v7680
        %8802 = vmatprep.subr.bf16.mxu0 0
        %8803 = vmatpush1.bf16.msra.mxu0 %v7687
        %8804 = vmatprep.subr.bf16.mxu0 0
        %8805 = vmatpush1.bf16.msra.mxu0 %v7694
        %8806 = vmatprep.subr.bf16.mxu0 0
        %8807 = vmatpush1.bf16.msra.mxu0 %v7701
        %8808 = vmatprep.subr.bf16.mxu0 0
        %8809 = vmatpush1.bf16.msra.mxu0 %v7708
        %8810 = vmatprep.subr.bf16.mxu0 0
        %8811 = vmatpush1.bf16.msra.mxu0 %v7715
        %8812 = vmatprep.subr.bf16.mxu0 0
        %8813 = vmatpush1.bf16.msra.mxu0 %v7722
        %8814 = vmatprep.subr.bf16.mxu0 0
        %8815 = vmatpush1.bf16.msra.mxu0 %v7729
        %8816 = vmatprep.subr.bf16.mxu0 0
        %8817 = vmatpush1.bf16.msra.mxu0 %v7736
        %8818 = vmatprep.subr.bf16.mxu0 0
        %8819 = vmatpush1.bf16.msra.mxu0 %v7743
        %8820 = vmatprep.subr.bf16.mxu0 0
        %8821 = vmatpush1.bf16.msra.mxu0 %v7750
        %8822 = vmatprep.subr.bf16.mxu0 0
        %8823 = vmatpush1.bf16.msra.mxu0 %v7757
        %8824 = vmatprep.subr.bf16.mxu0 0
        %8825 = vmatpush1.bf16.msra.mxu0 %v7764
        %8826 = vmatprep.subr.bf16.mxu0 0
        %8827 = vmatpush1.bf16.msra.mxu0 %v7771
        %8828 = vmatprep.subr.bf16.mxu0 0
        %8829 = vmatpush1.bf16.msra.mxu0 %v7778
        %8830 = vmatprep.subr.bf16.mxu0 0
        %8831 = vmatpush1.bf16.msra.mxu0 %v7785
        %8832 = vmatprep.mubr.bf16.mxu0 %v6646
        %8833 = vmatmul.mubr.bf16.gmra.mrb[0].mxu0 %v6645
        %v8834 = vpop.f32.mrb[0].mxu0
        %v8835 = vadd.f32 %v6962, %v8834
        %v8836 = vpop.f32.mrb[0].mxu0
        %v8837 = vpop.f32.mrb[0].mxu0
        %v8838 = vadd.f32 %v6962, %v8837
        %v8839 = vpop.f32.mrb[0].mxu0
        %8840 = vmatprep.mubr.bf16.mxu0 %v6650
        %8841 = vmatmul.mubr.bf16.gmra.mrb[0].mxu0 %v6649
        %v8842 = vpop.f32.mrb[0].mxu0
        %v8843 = vadd.f32 %v6962, %v8842
        %v8844 = vpop.f32.mrb[0].mxu0
        %v8845 = vpop.f32.mrb[0].mxu0
        %v8846 = vadd.f32 %v6962, %v8845
        %v8847 = vpop.f32.mrb[0].mxu0
        %8848 = vmatprep.mubr.bf16.mxu0 %v6654
        %8849 = vmatmul.mubr.bf16.gmra.mrb[0].mxu0 %v6653
        %v8850 = vpop.f32.mrb[0].mxu0
        %v8851 = vadd.f32 %v6962, %v8850
        %v8852 = vpop.f32.mrb[0].mxu0
        %v8853 = vpop.f32.mrb[0].mxu0
        %v8854 = vadd.f32 %v6962, %v8853
        %v8855 = vpop.f32.mrb[0].mxu0
        %8856 = vmatprep.mubr.bf16.mxu0 %v6658
        %8857 = vmatmul.mubr.bf16.gmra.mrb[0].mxu0 %v6657
        %v8858 = vpop.f32.mrb[0].mxu0
        %v8859 = vadd.f32 %v6962, %v8858
        %v8860 = vpop.f32.mrb[0].mxu0
        %v8861 = vpop.f32.mrb[0].mxu0
        %v8862 = vadd.f32 %v6962, %v8861
        %v8863 = vpop.f32.mrb[0].mxu0
        %8864 = vmatprep.mubr.bf16.mxu0 %v6662
        %8865 = vmatmul.mubr.bf16.gmra.mrb[0].mxu0 %v6661
        %v8866 = vpop.f32.mrb[0].mxu0
        %v8867 = vadd.f32 %v6962, %v8866
        %v8868 = vpop.f32.mrb[0].mxu0
        %v8869 = vpop.f32.mrb[0].mxu0
        %v8870 = vadd.f32 %v6962, %v8869
        %v8871 = vpop.f32.mrb[0].mxu0
        %8872 = vmatprep.mubr.bf16.mxu0 %v6666
        %8873 = vmatmul.mubr.bf16.gmra.mrb[0].mxu0 %v6665
        %v8874 = vpop.f32.mrb[0].mxu0
        %v8875 = vadd.f32 %v6962, %v8874
        %v8876 = vpop.f32.mrb[0].mxu0
        %v8877 = vpop.f32.mrb[0].mxu0
        %v8878 = vadd.f32 %v6962, %v8877
        %v8879 = vpop.f32.mrb[0].mxu0
        %8880 = vmatprep.mubr.bf16.mxu0 %v6670
        %8881 = vmatmul.mubr.bf16.gmra.mrb[0].mxu0 %v6669
        %v8882 = vpop.f32.mrb[0].mxu0
        %v8883 = vadd.f32 %v6962, %v8882
        %v8884 = vpop.f32.mrb[0].mxu0
        %v8885 = vpop.f32.mrb[0].mxu0
        %v8886 = vadd.f32 %v6962, %v8885
        %v8887 = vpop.f32.mrb[0].mxu0
        %8888 = vmatprep.mubr.bf16.mxu0 %v6674
        %8889 = vmatmul.mubr.bf16.gmra.mrb[0].mxu0 %v6673
        %v8890 = vpop.f32.mrb[0].mxu0
        %v8891 = vadd.f32 %v6962, %v8890
        %v8892 = vpop.f32.mrb[0].mxu0
        %v8893 = vpop.f32.mrb[0].mxu0
        %v8894 = vadd.f32 %v6962, %v8893
        %v8895 = vpop.f32.mrb[0].mxu0
        %8896 = vdwg.mxu0
        %8897 = vmatprep.subr.bf16.mxu0 0
        %8898 = vmatpush1.bf16.msra.mxu0 %v7792
        %8899 = vmatprep.subr.bf16.mxu0 0
        %8900 = vmatpush1.bf16.msra.mxu0 %v7799
        %8901 = vmatprep.subr.bf16.mxu0 0
        %8902 = vmatpush1.bf16.msra.mxu0 %v7806
        %8903 = vmatprep.subr.bf16.mxu0 0
        %8904 = vmatpush1.bf16.msra.mxu0 %v7813
        %8905 = vmatprep.subr.bf16.mxu0 0
        %8906 = vmatpush1.bf16.msra.mxu0 %v7820
        %8907 = vmatprep.subr.bf16.mxu0 0
        %8908 = vmatpush1.bf16.msra.mxu0 %v7827
        %8909 = vmatprep.subr.bf16.mxu0 0
        %8910 = vmatpush1.bf16.msra.mxu0 %v7834
        %8911 = vmatprep.subr.bf16.mxu0 0
        %8912 = vmatpush1.bf16.msra.mxu0 %v7841
        %8913 = vmatprep.subr.bf16.mxu0 0
        %8914 = vmatpush1.bf16.msra.mxu0 %v7848
        %8915 = vmatprep.subr.bf16.mxu0 0
        %8916 = vmatpush1.bf16.msra.mxu0 %v7855
        %8917 = vmatprep.subr.bf16.mxu0 0
        %8918 = vmatpush1.bf16.msra.mxu0 %v7862
        %8919 = vmatprep.subr.bf16.mxu0 0
        %8920 = vmatpush1.bf16.msra.mxu0 %v7869
        %8921 = vmatprep.subr.bf16.mxu0 0
        %8922 = vmatpush1.bf16.msra.mxu0 %v7876
        %8923 = vmatprep.subr.bf16.mxu0 0
        %8924 = vmatpush1.bf16.msra.mxu0 %v7883
        %8925 = vmatprep.subr.bf16.mxu0 0
        %8926 = vmatpush1.bf16.msra.mxu0 %v7890
        %8927 = vmatprep.subr.bf16.mxu0 0
        %8928 = vmatpush1.bf16.msra.mxu0 %v7897
        %8929 = vmatprep.mubr.bf16.mxu0 %v6648
        %8930 = vmatmul.mubr.bf16.gmra.mrb[0].mxu0 %v6647
        %v8931 = vpop.f32.mrb[0].mxu0
        %v8932 = vadd.f32 %v8835, %v8931
        %v8933 = vpop.f32.mrb[0].mxu0
        %v8934 = vpop.f32.mrb[0].mxu0
        %v8935 = vadd.f32 %v8838, %v8934
        %v8936 = vpop.f32.mrb[0].mxu0
        %8937 = vmatprep.mubr.bf16.mxu0 %v6652
        %8938 = vmatmul.mubr.bf16.gmra.mrb[0].mxu0 %v6651
        %v8939 = vpop.f32.mrb[0].mxu0
        %v8940 = vadd.f32 %v8843, %v8939
        %v8941 = vpop.f32.mrb[0].mxu0
        %v8942 = vpop.f32.mrb[0].mxu0
        %v8943 = vadd.f32 %v8846, %v8942
        %v8944 = vpop.f32.mrb[0].mxu0
        %8945 = vmatprep.mubr.bf16.mxu0 %v6656
        %8946 = vmatmul.mubr.bf16.gmra.mrb[0].mxu0 %v6655
        %v8947 = vpop.f32.mrb[0].mxu0
        %v8948 = vadd.f32 %v8851, %v8947
        %v8949 = vpop.f32.mrb[0].mxu0
        %v8950 = vpop.f32.mrb[0].mxu0
        %v8951 = vadd.f32 %v8854, %v8950
        %v8952 = vpop.f32.mrb[0].mxu0
        %8953 = vmatprep.mubr.bf16.mxu0 %v6660
        %8954 = vmatmul.mubr.bf16.gmra.mrb[0].mxu0 %v6659
        %v8955 = vpop.f32.mrb[0].mxu0
        %v8956 = vadd.f32 %v8859, %v8955
        %v8957 = vpop.f32.mrb[0].mxu0
        %v8958 = vpop.f32.mrb[0].mxu0
        %v8959 = vadd.f32 %v8862, %v8958
        %v8960 = vpop.f32.mrb[0].mxu0
        %8961 = vmatprep.mubr.bf16.mxu0 %v6664
        %8962 = vmatmul.mubr.bf16.gmra.mrb[0].mxu0 %v6663
        %v8963 = vpop.f32.mrb[0].mxu0
        %v8964 = vadd.f32 %v8867, %v8963
        %v8965 = vpop.f32.mrb[0].mxu0
        %v8966 = vpop.f32.mrb[0].mxu0
        %v8967 = vadd.f32 %v8870, %v8966
        %v8968 = vpop.f32.mrb[0].mxu0
        %8969 = vmatprep.mubr.bf16.mxu0 %v6668
        %8970 = vmatmul.mubr.bf16.gmra.mrb[0].mxu0 %v6667
        %v8971 = vpop.f32.mrb[0].mxu0
        %v8972 = vadd.f32 %v8875, %v8971
        %v8973 = vpop.f32.mrb[0].mxu0
        %v8974 = vpop.f32.mrb[0].mxu0
        %v8975 = vadd.f32 %v8878, %v8974
        %v8976 = vpop.f32.mrb[0].mxu0
        %8977 = vmatprep.mubr.bf16.mxu0 %v6672
        %8978 = vmatmul.mubr.bf16.gmra.mrb[0].mxu0 %v6671
        %v8979 = vpop.f32.mrb[0].mxu0
        %v8980 = vadd.f32 %v8883, %v8979
        %v8981 = vpop.f32.mrb[0].mxu0
        %v8982 = vpop.f32.mrb[0].mxu0
        %v8983 = vadd.f32 %v8886, %v8982
        %v8984 = vpop.f32.mrb[0].mxu0
        %8985 = vmatprep.mubr.bf16.mxu0 %v6676
        %8986 = vmatmul.mubr.bf16.gmra.mrb[0].mxu0 %v6675
        %v8987 = vpop.f32.mrb[0].mxu0
        %v8988 = vadd.f32 %v8891, %v8987
        %v8989 = vpop.f32.mrb[0].mxu0
        %v8990 = vpop.f32.mrb[0].mxu0
        %v8991 = vadd.f32 %v8894, %v8990
        %v8992 = vpop.f32.mrb[0].mxu0
        %8993 = vdwg.mxu0
        %v8994 = vmul.f32 %v8270, 0.5
        %v8995 = vmul.f32 %v8272, 0.5
        %v8996 = vmul.f32 %v8496, 0.5
        %v8997 = vmul.f32 %v8498, 0.5
        %v8998 = vmul.f32 %v8722, 0.5
        %v8999 = vmul.f32 %v8724, 0.5
        %v9000 = vmul.f32 %v8932, 0.5
        %v9001 = vmul.f32 %v8274, 0.5
        %v9002 = vmul.f32 %v8276, 0.5
        %v9003 = vmul.f32 %v8500, 0.5
        %v9004 = vmul.f32 %v8502, 0.5
        %v9005 = vmul.f32 %v8726, 0.5
        %v9006 = vmul.f32 %v8728, 0.5
        %v9007 = vmul.f32 %v8935, 0.5
        %v9008 = vmul.f32 %v8280, 0.5
        %v9009 = vmul.f32 %v8282, 0.5
        %v9010 = vmul.f32 %v8506, 0.5
        %v9011 = vmul.f32 %v8508, 0.5
        %v9012 = vmul.f32 %v8732, 0.5
        %v9013 = vmul.f32 %v8734, 0.5
        %v9014 = vmul.f32 %v8940, 0.5
        %v9015 = vmul.f32 %v8284, 0.5
        %v9016 = vmul.f32 %v8286, 0.5
        %v9017 = vmul.f32 %v8510, 0.5
        %v9018 = vmul.f32 %v8512, 0.5
        %v9019 = vmul.f32 %v8736, 0.5
        %v9020 = vmul.f32 %v8738, 0.5
        %v9021 = vmul.f32 %v8943, 0.5
        %v9022 = vmul.f32 %v8290, 0.5
        %v9023 = vmul.f32 %v8292, 0.5
        %v9024 = vmul.f32 %v8516, 0.5
        %v9025 = vmul.f32 %v8518, 0.5
        %v9026 = vmul.f32 %v8742, 0.5
        %v9027 = vmul.f32 %v8744, 0.5
        %v9028 = vmul.f32 %v8948, 0.5
        %v9029 = vmul.f32 %v8294, 0.5
        %v9030 = vmul.f32 %v8296, 0.5
        %v9031 = vmul.f32 %v8520, 0.5
        %v9032 = vmul.f32 %v8522, 0.5
        %v9033 = vmul.f32 %v8746, 0.5
        %v9034 = vmul.f32 %v8748, 0.5
        %v9035 = vmul.f32 %v8951, 0.5
        %v9036 = vmul.f32 %v8300, 0.5
        %v9037 = vmul.f32 %v8302, 0.5
        %v9038 = vmul.f32 %v8526, 0.5
        %v9039 = vmul.f32 %v8528, 0.5
        %v9040 = vmul.f32 %v8752, 0.5
        %v9041 = vmul.f32 %v8754, 0.5
        %v9042 = vmul.f32 %v8956, 0.5
        %v9043 = vmul.f32 %v8304, 0.5
        %v9044 = vmul.f32 %v8306, 0.5
        %v9045 = vmul.f32 %v8530, 0.5
        %v9046 = vmul.f32 %v8532, 0.5
        %v9047 = vmul.f32 %v8756, 0.5
        %v9048 = vmul.f32 %v8758, 0.5
        %v9049 = vmul.f32 %v8959, 0.5
        %v9050 = vmul.f32 %v8310, 0.5
        %v9051 = vmul.f32 %v8312, 0.5
        %v9052 = vmul.f32 %v8536, 0.5
        %v9053 = vmul.f32 %v8538, 0.5
        %v9054 = vmul.f32 %v8762, 0.5
        %v9055 = vmul.f32 %v8764, 0.5
        %v9056 = vmul.f32 %v8964, 0.5
        %v9057 = vmul.f32 %v8314, 0.5
        %v9058 = vmul.f32 %v8316, 0.5
        %v9059 = vmul.f32 %v8540, 0.5
        %v9060 = vmul.f32 %v8542, 0.5
        %v9061 = vmul.f32 %v8766, 0.5
        %v9062 = vmul.f32 %v8768, 0.5
        %v9063 = vmul.f32 %v8967, 0.5
        %v9064 = vmul.f32 %v8320, 0.5
        %v9065 = vmul.f32 %v8322, 0.5
        %v9066 = vmul.f32 %v8546, 0.5
        %v9067 = vmul.f32 %v8548, 0.5
        %v9068 = vmul.f32 %v8772, 0.5
        %v9069 = vmul.f32 %v8774, 0.5
        %v9070 = vmul.f32 %v8972, 0.5
        %v9071 = vmul.f32 %v8324, 0.5
        %v9072 = vmul.f32 %v8326, 0.5
        %v9073 = vmul.f32 %v8550, 0.5
        %v9074 = vmul.f32 %v8552, 0.5
        %v9075 = vmul.f32 %v8776, 0.5
        %v9076 = vmul.f32 %v8778, 0.5
        %v9077 = vmul.f32 %v8975, 0.5
        %v9078 = vmul.f32 %v8330, 0.5
        %v9079 = vmul.f32 %v8332, 0.5
        %v9080 = vmul.f32 %v8556, 0.5
        %v9081 = vmul.f32 %v8558, 0.5
        %v9082 = vmul.f32 %v8782, 0.5
        %v9083 = vmul.f32 %v8784, 0.5
        %v9084 = vmul.f32 %v8980, 0.5
        %v9085 = vmul.f32 %v8334, 0.5
        %v9086 = vmul.f32 %v8336, 0.5
        %v9087 = vmul.f32 %v8560, 0.5
        %v9088 = vmul.f32 %v8562, 0.5
        %v9089 = vmul.f32 %v8786, 0.5
        %v9090 = vmul.f32 %v8788, 0.5
        %v9091 = vmul.f32 %v8983, 0.5
        %v9092 = vmul.f32 %v8340, 0.5
        %v9093 = vmul.f32 %v8342, 0.5
        %v9094 = vmul.f32 %v8566, 0.5
        %v9095 = vmul.f32 %v8568, 0.5
        %v9096 = vmul.f32 %v8792, 0.5
        %v9097 = vmul.f32 %v8794, 0.5
        %v9098 = vmul.f32 %v8988, 0.5
        %v9099 = vmul.f32 %v8344, 0.5
        %v9100 = vmul.f32 %v8346, 0.5
        %v9101 = vmul.f32 %v8570, 0.5
        %v9102 = vmul.f32 %v8572, 0.5
        %v9103 = vmul.f32 %v8796, 0.5
        %v9104 = vmul.f32 %v8798, 0.5
        %v9105 = vmul.f32 %v8991, 0.5
        %v9106 = vtanh.pop %v8994
        %v9107 = vtanh.pop %v8995
        %v9108 = vtanh.pop %v8996
        %v9109 = vtanh.pop %v8997
        %v9110 = vtanh.pop %v8998
        %v9111 = vtanh.pop %v8999
        %v9112 = vtanh.pop %v9000
        %v9113 = vtanh.pop %v9001
        %v9114 = vtanh.pop %v9002
        %v9115 = vtanh.pop %v9003
        %v9116 = vtanh.pop %v9004
        %v9117 = vtanh.pop %v9005
        %v9118 = vtanh.pop %v9006
        %v9119 = vtanh.pop %v9007
        %v9120 = vtanh.pop %v9008
        %v9121 = vtanh.pop %v9009
        %v9122 = vtanh.pop %v9010
        %v9123 = vtanh.pop %v9011
        %v9124 = vtanh.pop %v9012
        %v9125 = vtanh.pop %v9013
        %v9126 = vtanh.pop %v9014
        %v9127 = vtanh.pop %v9015
        %v9128 = vtanh.pop %v9016
        %v9129 = vtanh.pop %v9017
        %v9130 = vtanh.pop %v9018
        %v9131 = vtanh.pop %v9019
        %v9132 = vtanh.pop %v9020
        %v9133 = vtanh.pop %v9021
        %v9134 = vtanh.pop %v9022
        %v9135 = vtanh.pop %v9023
        %v9136 = vtanh.pop %v9024
        %v9137 = vtanh.pop %v9025
        %v9138 = vtanh.pop %v9026
        %v9139 = vtanh.pop %v9027
        %v9140 = vtanh.pop %v9028
        %v9141 = vtanh.pop %v9029
        %v9142 = vtanh.pop %v9030
        %v9143 = vtanh.pop %v9031
        %v9144 = vtanh.pop %v9032
        %v9145 = vtanh.pop %v9033
        %v9146 = vtanh.pop %v9034
        %v9147 = vtanh.pop %v9035
        %v9148 = vtanh.pop %v9036
        %v9149 = vtanh.pop %v9037
        %v9150 = vtanh.pop %v9038
        %v9151 = vtanh.pop %v9039
        %v9152 = vtanh.pop %v9040
        %v9153 = vtanh.pop %v9041
        %v9154 = vtanh.pop %v9042
        %v9155 = vtanh.pop %v9043
        %v9156 = vtanh.pop %v9044
        %v9157 = vtanh.pop %v9045
        %v9158 = vtanh.pop %v9046
        %v9159 = vtanh.pop %v9047
        %v9160 = vtanh.pop %v9048
        %v9161 = vtanh.pop %v9049
        %v9162 = vtanh.pop %v9050
        %v9163 = vtanh.pop %v9051
        %v9164 = vtanh.pop %v9052
        %v9165 = vtanh.pop %v9053
        %v9166 = vtanh.pop %v9054
        %v9167 = vtanh.pop %v9055
        %v9168 = vtanh.pop %v9056
        %v9169 = vtanh.pop %v9057
        %v9170 = vtanh.pop %v9058
        %v9171 = vtanh.pop %v9059
        %v9172 = vtanh.pop %v9060
        %v9173 = vtanh.pop %v9061
        %v9174 = vtanh.pop %v9062
        %v9175 = vtanh.pop %v9063
        %v9176 = vtanh.pop %v9064
        %v9177 = vtanh.pop %v9065
        %v9178 = vtanh.pop %v9066
        %v9179 = vtanh.pop %v9067
        %v9180 = vtanh.pop %v9068
        %v9181 = vtanh.pop %v9069
        %v9182 = vtanh.pop %v9070
        %v9183 = vtanh.pop %v9071
        %v9184 = vtanh.pop %v9072
        %v9185 = vtanh.pop %v9073
        %v9186 = vtanh.pop %v9074
        %v9187 = vtanh.pop %v9075
        %v9188 = vtanh.pop %v9076
        %v9189 = vtanh.pop %v9077
        %v9190 = vtanh.pop %v9078
        %v9191 = vtanh.pop %v9079
        %v9192 = vtanh.pop %v9080
        %v9193 = vtanh.pop %v9081
        %v9194 = vtanh.pop %v9082
        %v9195 = vtanh.pop %v9083
        %v9196 = vtanh.pop %v9084
        %v9197 = vtanh.pop %v9085
        %v9198 = vtanh.pop %v9086
        %v9199 = vtanh.pop %v9087
        %v9200 = vtanh.pop %v9088
        %v9201 = vtanh.pop %v9089
        %v9202 = vtanh.pop %v9090
        %v9203 = vtanh.pop %v9091
        %v9204 = vtanh.pop %v9092
        %v9205 = vtanh.pop %v9093
        %v9206 = vtanh.pop %v9094
        %v9207 = vtanh.pop %v9095
        %v9208 = vtanh.pop %v9096
        %v9209 = vtanh.pop %v9097
        %v9210 = vtanh.pop %v9098
        %v9211 = vtanh.pop %v9099
        %v9212 = vtanh.pop %v9100
        %v9213 = vtanh.pop %v9101
        %v9214 = vtanh.pop %v9102
        %v9215 = vtanh.pop %v9103
        %v9216 = vtanh.pop %v9104
        %v9217 = vtanh.pop %v9105
        %v9218 = vmul.f32 %v9106, 0.5
        %v9219 = vmul.f32 %v9107, 0.5
        %v9220 = vmul.f32 %v9108, 0.5
        %v9221 = vmul.f32 %v9109, 0.5
        %v9222 = vmul.f32 %v9110, 0.5
        %v9223 = vmul.f32 %v9111, 0.5
        %v9224 = vmul.f32 %v9112, 0.5
        %v9225 = vmul.f32 %v9113, 0.5
        %v9226 = vmul.f32 %v9114, 0.5
        %v9227 = vmul.f32 %v9115, 0.5
        %v9228 = vmul.f32 %v9116, 0.5
        %v9229 = vmul.f32 %v9117, 0.5
        %v9230 = vmul.f32 %v9118, 0.5
        %v9231 = vmul.f32 %v9119, 0.5
        %v9232 = vmul.f32 %v9120, 0.5
        %v9233 = vmul.f32 %v9121, 0.5
        %v9234 = vmul.f32 %v9122, 0.5
        %v9235 = vmul.f32 %v9123, 0.5
        %v9236 = vmul.f32 %v9124, 0.5
        %v9237 = vmul.f32 %v9125, 0.5
        %v9238 = vmul.f32 %v9126, 0.5
        %v9239 = vmul.f32 %v9127, 0.5
        %v9240 = vmul.f32 %v9128, 0.5
        %v9241 = vmul.f32 %v9129, 0.5
        %v9242 = vmul.f32 %v9130, 0.5
        %v9243 = vmul.f32 %v9131, 0.5
        %v9244 = vmul.f32 %v9132, 0.5
        %v9245 = vmul.f32 %v9133, 0.5
        %v9246 = vmul.f32 %v9134, 0.5
        %v9247 = vmul.f32 %v9135, 0.5
        %v9248 = vmul.f32 %v9136, 0.5
        %v9249 = vmul.f32 %v9137, 0.5
        %v9250 = vmul.f32 %v9138, 0.5
        %v9251 = vmul.f32 %v9139, 0.5
        %v9252 = vmul.f32 %v9140, 0.5
        %v9253 = vmul.f32 %v9141, 0.5
        %v9254 = vmul.f32 %v9142, 0.5
        %v9255 = vmul.f32 %v9143, 0.5
        %v9256 = vmul.f32 %v9144, 0.5
        %v9257 = vmul.f32 %v9145, 0.5
        %v9258 = vmul.f32 %v9146, 0.5
        %v9259 = vmul.f32 %v9147, 0.5
        %v9260 = vmul.f32 %v9148, 0.5
        %v9261 = vmul.f32 %v9149, 0.5
        %v9262 = vmul.f32 %v9150, 0.5
        %v9263 = vmul.f32 %v9151, 0.5
        %v9264 = vmul.f32 %v9152, 0.5
        %v9265 = vmul.f32 %v9153, 0.5
        %v9266 = vmul.f32 %v9154, 0.5
        %v9267 = vmul.f32 %v9155, 0.5
        %v9268 = vmul.f32 %v9156, 0.5
        %v9269 = vmul.f32 %v9157, 0.5
        %v9270 = vmul.f32 %v9158, 0.5
        %v9271 = vmul.f32 %v9159, 0.5
        %v9272 = vmul.f32 %v9160, 0.5
        %v9273 = vmul.f32 %v9161, 0.5
        %v9274 = vmul.f32 %v9162, 0.5
        %v9275 = vmul.f32 %v9163, 0.5
        %v9276 = vmul.f32 %v9164, 0.5
        %v9277 = vmul.f32 %v9165, 0.5
        %v9278 = vmul.f32 %v9166, 0.5
        %v9279 = vmul.f32 %v9167, 0.5
        %v9280 = vmul.f32 %v9168, 0.5
        %v9281 = vmul.f32 %v9169, 0.5
        %v9282 = vmul.f32 %v9170, 0.5
        %v9283 = vmul.f32 %v9171, 0.5
        %v9284 = vmul.f32 %v9172, 0.5
        %v9285 = vmul.f32 %v9173, 0.5
        %v9286 = vmul.f32 %v9174, 0.5
        %v9287 = vmul.f32 %v9175, 0.5
        %v9288 = vmul.f32 %v9176, 0.5
        %v9289 = vmul.f32 %v9177, 0.5
        %v9290 = vmul.f32 %v9178, 0.5
        %v9291 = vmul.f32 %v9179, 0.5
        %v9292 = vmul.f32 %v9180, 0.5
        %v9293 = vmul.f32 %v9181, 0.5
        %v9294 = vmul.f32 %v9182, 0.5
        %v9295 = vmul.f32 %v9183, 0.5
        %v9296 = vmul.f32 %v9184, 0.5
        %v9297 = vmul.f32 %v9185, 0.5
        %v9298 = vmul.f32 %v9186, 0.5
        %v9299 = vmul.f32 %v9187, 0.5
        %v9300 = vmul.f32 %v9188, 0.5
        %v9301 = vmul.f32 %v9189, 0.5
        %v9302 = vmul.f32 %v9190, 0.5
        %v9303 = vmul.f32 %v9191, 0.5
        %v9304 = vmul.f32 %v9192, 0.5
        %v9305 = vmul.f32 %v9193, 0.5
        %v9306 = vmul.f32 %v9194, 0.5
        %v9307 = vmul.f32 %v9195, 0.5
        %v9308 = vmul.f32 %v9196, 0.5
        %v9309 = vmul.f32 %v9197, 0.5
        %v9310 = vmul.f32 %v9198, 0.5
        %v9311 = vmul.f32 %v9199, 0.5
        %v9312 = vmul.f32 %v9200, 0.5
        %v9313 = vmul.f32 %v9201, 0.5
        %v9314 = vmul.f32 %v9202, 0.5
        %v9315 = vmul.f32 %v9203, 0.5
        %v9316 = vmul.f32 %v9204, 0.5
        %v9317 = vmul.f32 %v9205, 0.5
        %v9318 = vmul.f32 %v9206, 0.5
        %v9319 = vmul.f32 %v9207, 0.5
        %v9320 = vmul.f32 %v9208, 0.5
        %v9321 = vmul.f32 %v9209, 0.5
        %v9322 = vmul.f32 %v9210, 0.5
        %v9323 = vmul.f32 %v9211, 0.5
        %v9324 = vmul.f32 %v9212, 0.5
        %v9325 = vmul.f32 %v9213, 0.5
        %v9326 = vmul.f32 %v9214, 0.5
        %v9327 = vmul.f32 %v9215, 0.5
        %v9328 = vmul.f32 %v9216, 0.5
        %v9329 = vmul.f32 %v9217, 0.5
        %v9330 = vadd.f32 %v9218, 0.5
        %v9331 = vadd.f32 %v9219, 0.5
        %v9332 = vadd.f32 %v9220, 0.5
        %v9333 = vadd.f32 %v9221, 0.5
        %v9334 = vadd.f32 %v9222, 0.5
        %v9335 = vadd.f32 %v9223, 0.5
        %v9336 = vadd.f32 %v9224, 0.5
        %v9337 = vadd.f32 %v9225, 0.5
        %v9338 = vadd.f32 %v9226, 0.5
        %v9339 = vadd.f32 %v9227, 0.5
        %v9340 = vadd.f32 %v9228, 0.5
        %v9341 = vadd.f32 %v9229, 0.5
        %v9342 = vadd.f32 %v9230, 0.5
        %v9343 = vadd.f32 %v9231, 0.5
        %v9344 = vadd.f32 %v9232, 0.5
        %v9345 = vadd.f32 %v9233, 0.5
        %v9346 = vadd.f32 %v9234, 0.5
        %v9347 = vadd.f32 %v9235, 0.5
        %v9348 = vadd.f32 %v9236, 0.5
        %v9349 = vadd.f32 %v9237, 0.5
        %v9350 = vadd.f32 %v9238, 0.5
        %v9351 = vadd.f32 %v9239, 0.5
        %v9352 = vadd.f32 %v9240, 0.5
        %v9353 = vadd.f32 %v9241, 0.5
        %v9354 = vadd.f32 %v9242, 0.5
        %v9355 = vadd.f32 %v9243, 0.5
        %v9356 = vadd.f32 %v9244, 0.5
        %v9357 = vadd.f32 %v9245, 0.5
        %v9358 = vadd.f32 %v9246, 0.5
        %v9359 = vadd.f32 %v9247, 0.5
        %v9360 = vadd.f32 %v9248, 0.5
        %v9361 = vadd.f32 %v9249, 0.5
        %v9362 = vadd.f32 %v9250, 0.5
        %v9363 = vadd.f32 %v9251, 0.5
        %v9364 = vadd.f32 %v9252, 0.5
        %v9365 = vadd.f32 %v9253, 0.5
        %v9366 = vadd.f32 %v9254, 0.5
        %v9367 = vadd.f32 %v9255, 0.5
        %v9368 = vadd.f32 %v9256, 0.5
        %v9369 = vadd.f32 %v9257, 0.5
        %v9370 = vadd.f32 %v9258, 0.5
        %v9371 = vadd.f32 %v9259, 0.5
        %v9372 = vadd.f32 %v9260, 0.5
        %v9373 = vadd.f32 %v9261, 0.5
        %v9374 = vadd.f32 %v9262, 0.5
        %v9375 = vadd.f32 %v9263, 0.5
        %v9376 = vadd.f32 %v9264, 0.5
        %v9377 = vadd.f32 %v9265, 0.5
        %v9378 = vadd.f32 %v9266, 0.5
        %v9379 = vadd.f32 %v9267, 0.5
        %v9380 = vadd.f32 %v9268, 0.5
        %v9381 = vadd.f32 %v9269, 0.5
        %v9382 = vadd.f32 %v9270, 0.5
        %v9383 = vadd.f32 %v9271, 0.5
        %v9384 = vadd.f32 %v9272, 0.5
        %v9385 = vadd.f32 %v9273, 0.5
        %v9386 = vadd.f32 %v9274, 0.5
        %v9387 = vadd.f32 %v9275, 0.5
        %v9388 = vadd.f32 %v9276, 0.5
        %v9389 = vadd.f32 %v9277, 0.5
        %v9390 = vadd.f32 %v9278, 0.5
        %v9391 = vadd.f32 %v9279, 0.5
        %v9392 = vadd.f32 %v9280, 0.5
        %v9393 = vadd.f32 %v9281, 0.5
        %v9394 = vadd.f32 %v9282, 0.5
        %v9395 = vadd.f32 %v9283, 0.5
        %v9396 = vadd.f32 %v9284, 0.5
        %v9397 = vadd.f32 %v9285, 0.5
        %v9398 = vadd.f32 %v9286, 0.5
        %v9399 = vadd.f32 %v9287, 0.5
        %v9400 = vadd.f32 %v9288, 0.5
        %v9401 = vadd.f32 %v9289, 0.5
        %v9402 = vadd.f32 %v9290, 0.5
        %v9403 = vadd.f32 %v9291, 0.5
        %v9404 = vadd.f32 %v9292, 0.5
        %v9405 = vadd.f32 %v9293, 0.5
        %v9406 = vadd.f32 %v9294, 0.5
        %v9407 = vadd.f32 %v9295, 0.5
        %v9408 = vadd.f32 %v9296, 0.5
        %v9409 = vadd.f32 %v9297, 0.5
        %v9410 = vadd.f32 %v9298, 0.5
        %v9411 = vadd.f32 %v9299, 0.5
        %v9412 = vadd.f32 %v9300, 0.5
        %v9413 = vadd.f32 %v9301, 0.5
        %v9414 = vadd.f32 %v9302, 0.5
        %v9415 = vadd.f32 %v9303, 0.5
        %v9416 = vadd.f32 %v9304, 0.5
        %v9417 = vadd.f32 %v9305, 0.5
        %v9418 = vadd.f32 %v9306, 0.5
        %v9419 = vadd.f32 %v9307, 0.5
        %v9420 = vadd.f32 %v9308, 0.5
        %v9421 = vadd.f32 %v9309, 0.5
        %v9422 = vadd.f32 %v9310, 0.5
        %v9423 = vadd.f32 %v9311, 0.5
        %v9424 = vadd.f32 %v9312, 0.5
        %v9425 = vadd.f32 %v9313, 0.5
        %v9426 = vadd.f32 %v9314, 0.5
        %v9427 = vadd.f32 %v9315, 0.5
        %v9428 = vadd.f32 %v9316, 0.5
        %v9429 = vadd.f32 %v9317, 0.5
        %v9430 = vadd.f32 %v9318, 0.5
        %v9431 = vadd.f32 %v9319, 0.5
        %v9432 = vadd.f32 %v9320, 0.5
        %v9433 = vadd.f32 %v9321, 0.5
        %v9434 = vadd.f32 %v9322, 0.5
        %v9435 = vadd.f32 %v9323, 0.5
        %v9436 = vadd.f32 %v9324, 0.5
        %v9437 = vadd.f32 %v9325, 0.5
        %v9438 = vadd.f32 %v9326, 0.5
        %v9439 = vadd.f32 %v9327, 0.5
        %v9440 = vadd.f32 %v9328, 0.5
        %v9441 = vadd.f32 %v9329, 0.5
        %9442 = vst [vmem:[%s526] sm:$0xff] %v9330
        %9443 = vst [vmem:[%s526 + $0x8] sm:$0xff] %v9331
        %9444 = vst [vmem:[%s526 + $0x10] sm:$0xff] %v9332
        %9445 = vst [vmem:[%s526 + $0x18] sm:$0xff] %v9333
        %9446 = vst [vmem:[%s526 + $0x20] sm:$0xff] %v9334
        %9447 = vst [vmem:[%s526 + $0x28] sm:$0xff] %v9335
        %9448 = vst [vmem:[%s526 + $0x30] sm:$0xff] %v9336
        %9449 = vst [vmem:[%s526 + $0x38] sm:$0xff] %v9337
        %9450 = vst [vmem:[%s526 + $0x40] sm:$0xff] %v9338
        %9451 = vst [vmem:[%s526 + $0x48] sm:$0xff] %v9339
        %9452 = vst [vmem:[%s526 + $0x50] sm:$0xff] %v9340
        %9453 = vst [vmem:[%s526 + $0x58] sm:$0xff] %v9341
        %9454 = vst [vmem:[%s526 + $0x60] sm:$0xff] %v9342
        %9455 = vst [vmem:[%s526 + $0x68] sm:$0xff] %v9343
        %9456 = vst [vmem:[%s526 + $0x70] sm:$0xff] %v9344
        %9457 = vst [vmem:[%s526 + $0x78] sm:$0xff] %v9345
        %9458 = vst [vmem:[%s526 + $0x80] sm:$0xff] %v9346
        %9459 = vst [vmem:[%s526 + $0x88] sm:$0xff] %v9347
        %9460 = vst [vmem:[%s526 + $0x90] sm:$0xff] %v9348
        %9461 = vst [vmem:[%s526 + $0x98] sm:$0xff] %v9349
        %9462 = vst [vmem:[%s526 + $0xa0] sm:$0xff] %v9350
        %9463 = vst [vmem:[%s526 + $0xa8] sm:$0xff] %v9351
        %9464 = vst [vmem:[%s526 + $0xb0] sm:$0xff] %v9352
        %9465 = vst [vmem:[%s526 + $0xb8] sm:$0xff] %v9353
        %9466 = vst [vmem:[%s526 + $0xc0] sm:$0xff] %v9354
        %9467 = vst [vmem:[%s526 + $0xc8] sm:$0xff] %v9355
        %9468 = vst [vmem:[%s526 + $0xd0] sm:$0xff] %v9356
        %9469 = vst [vmem:[%s526 + $0xd8] sm:$0xff] %v9357
        %9470 = vst [vmem:[%s526 + $0xe0] sm:$0xff] %v9358
        %9471 = vst [vmem:[%s526 + $0xe8] sm:$0xff] %v9359
        %9472 = vst [vmem:[%s526 + $0xf0] sm:$0xff] %v9360
        %9473 = vst [vmem:[%s526 + $0xf8] sm:$0xff] %v9361
        %9474 = vst [vmem:[%s526 + $0x100] sm:$0xff] %v9362
        %9475 = vst [vmem:[%s526 + $0x108] sm:$0xff] %v9363
        %9476 = vst [vmem:[%s526 + $0x110] sm:$0xff] %v9364
        %9477 = vst [vmem:[%s526 + $0x118] sm:$0xff] %v9365
        %9478 = vst [vmem:[%s526 + $0x120] sm:$0xff] %v9366
        %9479 = vst [vmem:[%s526 + $0x128] sm:$0xff] %v9367
        %9480 = vst [vmem:[%s526 + $0x130] sm:$0xff] %v9368
        %9481 = vst [vmem:[%s526 + $0x138] sm:$0xff] %v9369
        %9482 = vst [vmem:[%s526 + $0x140] sm:$0xff] %v9370
        %9483 = vst [vmem:[%s526 + $0x148] sm:$0xff] %v9371
        %9484 = vst [vmem:[%s526 + $0x150] sm:$0xff] %v9372
        %9485 = vst [vmem:[%s526 + $0x158] sm:$0xff] %v9373
        %9486 = vst [vmem:[%s526 + $0x160] sm:$0xff] %v9374
        %9487 = vst [vmem:[%s526 + $0x168] sm:$0xff] %v9375
        %9488 = vst [vmem:[%s526 + $0x170] sm:$0xff] %v9376
        %9489 = vst [vmem:[%s526 + $0x178] sm:$0xff] %v9377
        %9490 = vst [vmem:[%s526 + $0x180] sm:$0xff] %v9378
        %9491 = vst [vmem:[%s526 + $0x188] sm:$0xff] %v9379
        %9492 = vst [vmem:[%s526 + $0x190] sm:$0xff] %v9380
        %9493 = vst [vmem:[%s526 + $0x198] sm:$0xff] %v9381
        %9494 = vst [vmem:[%s526 + $0x1a0] sm:$0xff] %v9382
        %9495 = vst [vmem:[%s526 + $0x1a8] sm:$0xff] %v9383
        %9496 = vst [vmem:[%s526 + $0x1b0] sm:$0xff] %v9384
        %9497 = vst [vmem:[%s526 + $0x1b8] sm:$0xff] %v9385
        %9498 = vst [vmem:[%s526 + $0x1c0] sm:$0xff] %v9386
        %9499 = vst [vmem:[%s526 + $0x1c8] sm:$0xff] %v9387
        %9500 = vst [vmem:[%s526 + $0x1d0] sm:$0xff] %v9388
        %9501 = vst [vmem:[%s526 + $0x1d8] sm:$0xff] %v9389
        %9502 = vst [vmem:[%s526 + $0x1e0] sm:$0xff] %v9390
        %9503 = vst [vmem:[%s526 + $0x1e8] sm:$0xff] %v9391
        %9504 = vst [vmem:[%s526 + $0x1f0] sm:$0xff] %v9392
        %9505 = vst [vmem:[%s526 + $0x1f8] sm:$0xff] %v9393
        %9506 = vst [vmem:[%s526 + $0x200] sm:$0xff] %v9394
        %9507 = vst [vmem:[%s526 + $0x208] sm:$0xff] %v9395
        %9508 = vst [vmem:[%s526 + $0x210] sm:$0xff] %v9396
        %9509 = vst [vmem:[%s526 + $0x218] sm:$0xff] %v9397
        %9510 = vst [vmem:[%s526 + $0x220] sm:$0xff] %v9398
        %9511 = vst [vmem:[%s526 + $0x228] sm:$0xff] %v9399
        %9512 = vst [vmem:[%s526 + $0x230] sm:$0xff] %v9400
        %9513 = vst [vmem:[%s526 + $0x238] sm:$0xff] %v9401
        %9514 = vst [vmem:[%s526 + $0x240] sm:$0xff] %v9402
        %9515 = vst [vmem:[%s526 + $0x248] sm:$0xff] %v9403
        %9516 = vst [vmem:[%s526 + $0x250] sm:$0xff] %v9404
        %9517 = vst [vmem:[%s526 + $0x258] sm:$0xff] %v9405
        %9518 = vst [vmem:[%s526 + $0x260] sm:$0xff] %v9406
        %9519 = vst [vmem:[%s526 + $0x268] sm:$0xff] %v9407
        %9520 = vst [vmem:[%s526 + $0x270] sm:$0xff] %v9408
        %9521 = vst [vmem:[%s526 + $0x278] sm:$0xff] %v9409
        %9522 = vst [vmem:[%s526 + $0x280] sm:$0xff] %v9410
        %9523 = vst [vmem:[%s526 + $0x288] sm:$0xff] %v9411
        %9524 = vst [vmem:[%s526 + $0x290] sm:$0xff] %v9412
        %9525 = vst [vmem:[%s526 + $0x298] sm:$0xff] %v9413
        %9526 = vst [vmem:[%s526 + $0x2a0] sm:$0xff] %v9414
        %9527 = vst [vmem:[%s526 + $0x2a8] sm:$0xff] %v9415
        %9528 = vst [vmem:[%s526 + $0x2b0] sm:$0xff] %v9416
        %9529 = vst [vmem:[%s526 + $0x2b8] sm:$0xff] %v9417
        %9530 = vst [vmem:[%s526 + $0x2c0] sm:$0xff] %v9418
        %9531 = vst [vmem:[%s526 + $0x2c8] sm:$0xff] %v9419
        %9532 = vst [vmem:[%s526 + $0x2d0] sm:$0xff] %v9420
        %9533 = vst [vmem:[%s526 + $0x2d8] sm:$0xff] %v9421
        %9534 = vst [vmem:[%s526 + $0x2e0] sm:$0xff] %v9422
        %9535 = vst [vmem:[%s526 + $0x2e8] sm:$0xff] %v9423
        %9536 = vst [vmem:[%s526 + $0x2f0] sm:$0xff] %v9424
        %9537 = vst [vmem:[%s526 + $0x2f8] sm:$0xff] %v9425
        %9538 = vst [vmem:[%s526 + $0x300] sm:$0xff] %v9426
        %9539 = vst [vmem:[%s526 + $0x308] sm:$0xff] %v9427
        %9540 = vst [vmem:[%s526 + $0x310] sm:$0xff] %v9428
        %9541 = vst [vmem:[%s526 + $0x318] sm:$0xff] %v9429
        %9542 = vst [vmem:[%s526 + $0x320] sm:$0xff] %v9430
        %9543 = vst [vmem:[%s526 + $0x328] sm:$0xff] %v9431
        %9544 = vst [vmem:[%s526 + $0x330] sm:$0xff] %v9432
        %9545 = vst [vmem:[%s526 + $0x338] sm:$0xff] %v9433
        %9546 = vst [vmem:[%s526 + $0x340] sm:$0xff] %v9434
        %9547 = vst [vmem:[%s526 + $0x348] sm:$0xff] %v9435
        %9548 = vst [vmem:[%s526 + $0x350] sm:$0xff] %v9436
        %9549 = vst [vmem:[%s526 + $0x358] sm:$0xff] %v9437
        %9550 = vst [vmem:[%s526 + $0x360] sm:$0xff] %v9438
        %9551 = vst [vmem:[%s526 + $0x368] sm:$0xff] %v9439
        %9552 = vst [vmem:[%s526 + $0x370] sm:$0xff] %v9440
        %9553 = vst [vmem:[%s526 + $0x378] sm:$0xff] %v9441
        %9570 = vrot.lane.b32.xlu0 %v4509, 16
        %v9571 = vpop.permute.xlu0 %9570
        %9572 = vrot.lane.b32.xlu0 %v4514, 16
        %v9573 = vpop.permute.xlu0 %9572
        %9574 = vrot.lane.b32.xlu0 %v4519, 16
        %v9575 = vpop.permute.xlu0 %9574
        %9576 = vrot.lane.b32.xlu0 %v4524, 16
        %v9577 = vpop.permute.xlu0 %9576
        %9578 = vrot.lane.b32.xlu0 %v4529, 16
        %v9579 = vpop.permute.xlu0 %9578
        %9580 = vrot.lane.b32.xlu0 %v4534, 16
        %v9581 = vpop.permute.xlu0 %9580
        %9582 = vrot.lane.b32.xlu0 %v4539, 16
        %v9583 = vpop.permute.xlu0 %9582
        %9584 = vrot.lane.b32.xlu0 %v4544, 16
        %v9585 = vpop.permute.xlu0 %9584
        %9586 = vrot.lane.b32.xlu0 %v4549, 16
        %v9587 = vpop.permute.xlu0 %9586
        %9588 = vrot.lane.b32.xlu0 %v4554, 16
        %v9589 = vpop.permute.xlu0 %9588
        %9590 = vrot.lane.b32.xlu0 %v4559, 16
        %v9591 = vpop.permute.xlu0 %9590
        %9592 = vrot.lane.b32.xlu0 %v4564, 16
        %v9593 = vpop.permute.xlu0 %9592
        %9594 = vrot.lane.b32.xlu0 %v4569, 16
        %v9595 = vpop.permute.xlu0 %9594
        %9596 = vrot.lane.b32.xlu0 %v4574, 16
        %v9597 = vpop.permute.xlu0 %9596
        %9598 = vrot.lane.b32.xlu0 %v4579, 16
        %v9599 = vpop.permute.xlu0 %9598
        %9600 = vrot.lane.b32.xlu0 %v4584, 16
        %v9601 = vpop.permute.xlu0 %9600
        %vm9618 = vcmask 162944
        %9619 = vst.msk [vmem:[%s526 + $0x30] sm:$0xff] %vm9618, %v9571
        %9620 = vst.msk [vmem:[%s526 + $0x68] sm:$0xff] %vm9618, %v9573
        %9621 = vst.msk [vmem:[%s526 + $0xa0] sm:$0xff] %vm9618, %v9575
        %9622 = vst.msk [vmem:[%s526 + $0xd8] sm:$0xff] %vm9618, %v9577
        %9623 = vst.msk [vmem:[%s526 + $0x110] sm:$0xff] %vm9618, %v9579
        %9624 = vst.msk [vmem:[%s526 + $0x148] sm:$0xff] %vm9618, %v9581
        %9625 = vst.msk [vmem:[%s526 + $0x180] sm:$0xff] %vm9618, %v9583
        %9626 = vst.msk [vmem:[%s526 + $0x1b8] sm:$0xff] %vm9618, %v9585
        %9627 = vst.msk [vmem:[%s526 + $0x1f0] sm:$0xff] %vm9618, %v9587
        %9628 = vst.msk [vmem:[%s526 + $0x228] sm:$0xff] %vm9618, %v9589
        %9629 = vst.msk [vmem:[%s526 + $0x260] sm:$0xff] %vm9618, %v9591
        %9630 = vst.msk [vmem:[%s526 + $0x298] sm:$0xff] %vm9618, %v9593
        %9631 = vst.msk [vmem:[%s526 + $0x2d0] sm:$0xff] %vm9618, %v9595
        %9632 = vst.msk [vmem:[%s526 + $0x308] sm:$0xff] %vm9618, %v9597
        %9633 = vst.msk [vmem:[%s526 + $0x340] sm:$0xff] %vm9618, %v9599
        %9634 = vst.msk [vmem:[%s526 + $0x378] sm:$0xff] %vm9618, %v9601
        %s9635 = smul.u32 16, %s27
        %p9636 = scmp.lt.s32.totalorder %s9635, 31
        %s9637 = scalar_select %p9636, %s9635, 31
        %s9638 = smul.addr %s9637, 7
        %s9639 = smul.addr %s9638, 8
        %s9640 = scalar_lea.vmem %s14, %s9639
        // Predicated region
        $region85: #{vae_forward.1} parent=75 // pred_check
          %p9641 = pneg %p349
        $region86: #{vae_forward.1} parent=75 // pred_check_branch
          %9643 = sbr.rel (%p9641) target = $region88
        $region87: #{vae_forward.1} parent=75 // pred_region
          %s9644 = smul.u32 16, %s27
        $region88: #{vae_forward.1} parent=75 // pred_fallthru
          _
      $region76: #{vae_forward.1} parent=5 // pred_fallthru
        _
      %p9645 = scmp.le.s32.totalorder 2, %s22
      // Predicated region
      $region89: #{vae_forward.1} parent=5 // pred_check
        %p9646 = pneg %p9645
      $region90: #{vae_forward.1} parent=5 // pred_check_branch
        %9648 = sbr.rel (%p9646) target = $region92
      $region91: #{vae_forward.1} parent=5 // pred_region
        %s9649 = ssub.s32 %s22, 2
        // Predicated region
        $region93: #{vae_forward.1} parent=91 // pred_check
          %p9650 = pneg %p355
        $region94: #{vae_forward.1} parent=91 // pred_check_branch
          %9652 = sbr.rel (%p9650) target = $region96
        $region95: #{vae_forward.1} parent=91 // pred_region
          %s9653 = smul.u32 16, %s28
          %p9654 = scmp.lt.s32.totalorder %s9653, 31
          %s9655 = scalar_select %p9654, %s9653, 31
          %s9656 = smul.addr %s9655, 7
          %s9657 = smul.addr %s9656, 8
          %s9658 = scalar_lea.vmem %s14, %s9657
        $region96: #{vae_forward.1} parent=91 // pred_fallthru
          _
      $region92: #{vae_forward.1} parent=5 // pred_fallthru
        _
    $region6: #{vae_forward.1} parent=1 // loop_footer
      %s26 = sadd.s32 1, %s22
    $region7: #{vae_forward.1} parent=1 // loop_footer_branch
      %21 = sbr.rel target = $region3
    $region8: #{vae_forward.1} parent=1 // loop_exit
      _
    %9659 = vsyncpa [#allocation3], 1
    %s9660 = scalar_lea.sflag [#allocation3], 1
    %9661 = vsyncpa %s9660, 1
    %9662 = vsyncpa [#allocation5], 1

</llo_original>
